<compile_context>
chip_gen: v7x
topology: tpu7x:2x2x1
jax: 0.10.0
libtpu: 0.0.40
codegen_flags: <defaults>
</compile_context>

<pallas_src>
import jax
import jax.numpy as jnp
import numpy as np
from jax.experimental import pallas as pl
from jax.experimental.pallas import tpu as pltpu

NEG_SLOPE = 0.01          # F.leaky_relu default
OUT_C = 16                # output channels of every conv layer
FC_HID = 64               # real fc1 hidden size
FC_HID_PAD = 128          # lane-dense padded hidden size
BLOCK_M = 2048            # row-block cap for the matmul grids
CONV_CFG = (              # (name, kernel_size, stride)
    ("conv1", 7, 3),
    ("conv2", 5, 2),
    ("conv3", 3, 1),
    ("conv4", 3, 1),
)


def _round_up(x, m):
    return ((x + m - 1) // m) * m


def _pick_tm(m, block_m=BLOCK_M):
    """Row-block size: >=2 balanced blocks when M > 8 (v7x dual-TC), capped at
    block_m (big DMAs, few per-step overheads on single-TC v5e/v6e)."""
    if m <= 8:
        return m
    return min(block_m, _round_up(pl.cdiv(m, 2), 8))


# ----------------------------------------------------------------------------
# Pallas kernels
# ----------------------------------------------------------------------------
def _conv_mm_kernel(x_ref, w_ref, b_ref, o_ref):
    """out = leaky_relu(cols @ w + b); bf16 inputs, f32 accumulation."""
    acc = jnp.dot(x_ref[...], w_ref[...], preferred_element_type=jnp.float32)
    acc = acc + b_ref[...]                        # (1, 16) broadcasts over rows
    acc = jnp.where(acc >= 0, acc, NEG_SLOPE * acc)
    o_ref[...] = acc.astype(o_ref.dtype)


def conv_matmul(cols, w, b):
    """cols: (M, K) bf16, w: (K, 16) bf16, b: (1, 16) f32 -> (M, 16) bf16."""
    m, k = cols.shape
    n = w.shape[1]
    tm = _pick_tm(m)
    return pl.pallas_call(
        _conv_mm_kernel,
        out_shape=jax.ShapeDtypeStruct((m, n), jnp.bfloat16),
        grid=(pl.cdiv(m, tm),),
        in_specs=[
            pl.BlockSpec((tm, k), lambda i: (i, 0)),
            pl.BlockSpec((k, n), lambda i: (0, 0)),
            pl.BlockSpec((1, n), lambda i: (0, 0)),
        ],
        out_specs=pl.BlockSpec((tm, n), lambda i: (i, 0)),
        compiler_params=pltpu.CompilerParams(dimension_semantics=("parallel",)),
    )(cols, w, b)


def _fc_head_kernel(x_ref, w1_ref, b1_ref, w2_ref, b2_ref, o_ref):
    """reward = leaky_relu(x @ w1 + b1) @ w2 + b2   (fc1 + fc2 fused, bf16 MXU)."""
    h = jnp.dot(x_ref[...], w1_ref[...], preferred_element_type=jnp.float32)
    h = h + b1_ref[...]
    h = jnp.where(h >= 0, h, NEG_SLOPE * h)
    r = jnp.dot(h.astype(jnp.bfloat16), w2_ref[...],
                preferred_element_type=jnp.float32)
    o_ref[...] = (r + b2_ref[...]).astype(o_ref.dtype)


def fc_head(x, w1, b1, w2, b2):
    """x: (M, 784) bf16 -> per-frame reward (M, 1) f32."""
    m, k = x.shape
    hdim = w1.shape[1]
    tm = _pick_tm(m)
    return pl.pallas_call(
        _fc_head_kernel,
        out_shape=jax.ShapeDtypeStruct((m, 1), jnp.float32),
        grid=(pl.cdiv(m, tm),),
        in_specs=[
            pl.BlockSpec((tm, k), lambda i: (i, 0)),
            pl.BlockSpec((k, hdim), lambda i: (0, 0)),
            pl.BlockSpec((1, hdim), lambda i: (0, 0)),
            pl.BlockSpec((hdim, 1), lambda i: (0, 0)),
            pl.BlockSpec((1, 1), lambda i: (0, 0)),
        ],
        out_specs=pl.BlockSpec((tm, 1), lambda i: (i, 0)),
        compiler_params=pltpu.CompilerParams(dimension_semantics=("parallel",)),
    )(x, w1, b1, w2, b2)


# ----------------------------------------------------------------------------
# Parameters (PyTorch layout) + one-time re-layout for the kernels
# ----------------------------------------------------------------------------
def init_params(key):
    ks = jax.random.split(key, 12)

    def w(k, shape, scale=0.05):
        return (scale * jax.random.normal(k, shape)).astype(jnp.float32)

    return {
        "conv1_w": w(ks[0], (16, 4, 7, 7)),  "conv1_b": w(ks[1], (16,)),
        "conv2_w": w(ks[2], (16, 16, 5, 5)), "conv2_b": w(ks[3], (16,)),
        "conv3_w": w(ks[4], (16, 16, 3, 3)), "conv3_b": w(ks[5], (16,)),
        "conv4_w": w(ks[6], (16, 16, 3, 3)), "conv4_b": w(ks[7], (16,)),
        "fc1_w":   w(ks[8], (64, 784)),      "fc1_b":   w(ks[9], (64,)),
        "fc2_w":   w(ks[10], (1, 64)),       "fc2_b":   w(ks[11], (1,)),
    }


def prepare_params(p):
    """One-time re-layout of PyTorch-format params for the Pallas kernels."""
    pp = {}
    for name, _k, _s in CONV_CFG:
        w = p[name + "_w"]                                   # (out_c, in_c, kh, kw)
        out_c, in_c, kh, kw = w.shape
        # conv_general_dilated_patches flattens the patch as (c_in, kh, kw):
        wm = w.transpose(1, 2, 3, 0).reshape(in_c * kh * kw, out_c)
        pp[name + "_w"] = wm.astype(jnp.bfloat16)
        pp[name + "_b"] = p[name + "_b"].reshape(1, out_c).astype(jnp.float32)
    # PyTorch fc1 expects 784 features in (C, H, W) order; our NHWC flatten is
    # (H, W, C) -> permute the weight's input axis once.  Pad hidden 64 -> 128.
    w1 = (p["fc1_w"].reshape(FC_HID, 16, 7, 7)
          .transpose(2, 3, 1, 0).reshape(784, FC_HID))
    pp["fc1_w"] = jnp.pad(w1, ((0, 0), (0, FC_HID_PAD - FC_HID))).astype(jnp.bfloat16)
    pp["fc1_b"] = (jnp.pad(p["fc1_b"], (0, FC_HID_PAD - FC_HID))
                   .reshape(1, FC_HID_PAD).astype(jnp.float32))
    w2 = p["fc2_w"].T                                        # (64, 1)
    pp["fc2_w"] = jnp.pad(w2, ((0, FC_HID_PAD - FC_HID), (0, 0))).astype(jnp.bfloat16)
    pp["fc2_b"] = p["fc2_b"].reshape(1, 1).astype(jnp.float32)
    return pp


# ----------------------------------------------------------------------------
# Forward pass (all frames of both trajectories batched through the net once)
# ----------------------------------------------------------------------------
def frame_rewards(frames, pp):
    """frames: (N, 84, 84, 4) NHWC -> per-frame reward (N, 1) f32."""
    x = frames.astype(jnp.bfloat16)
    for name, k, s in CONV_CFG:
        n, h, w_, c = x.shape
        oh = (h - k) // s + 1
        ow = (w_ - k) // s + 1
        # Single fused patch-extraction op per layer (feature order (c, kh, kw)).
        cols = jax.lax.conv_general_dilated_patches(
            x, filter_shape=(k, k), window_strides=(s, s), padding="VALID",
            dimension_numbers=("NHWC", "HWIO", "NHWC"))
        cols = cols.reshape(n * oh * ow, c * k * k)
        out = conv_matmul(cols, pp[name + "_w"], pp[name + "_b"])
        x = out.reshape(n, oh, ow, OUT_C)
    feats = x.reshape(x.shape[0], -1)                        # (N, 784), (h, w, c) order
    return fc_head(feats, pp["fc1_w"], pp["fc1_b"], pp["fc2_w"], pp["fc2_b"])


def net_forward(traj_i, traj_j, pp):
    """Matches Net.forward: returns (cum_r_i, cum_r_j), each of shape (B, 1)."""
    ti, bi = traj_i.shape[:2]
    tj, bj = traj_j.shape[:2]
    frames = jnp.concatenate(
        [traj_i.reshape((ti * bi,) + traj_i.shape[2:]),
         traj_j.reshape((tj * bj,) + traj_j.shape[2:])],
        axis=0,
    )
    r = frame_rewards(frames, pp)                            # (ti*bi + tj*bj, 1)
    cum_r_i = r[: ti * bi].reshape(ti, bi, 1).sum(axis=0)
    cum_r_j = r[ti * bi:].reshape(tj, bj, 1).sum(axis=0)
    return cum_r_i, cum_r_j


# ----------------------------------------------------------------------------
# Pure-JAX f32 reference (independent path, uses the raw PyTorch-layout params)
# ----------------------------------------------------------------------------
def _reference_forward(traj_i, traj_j, raw):
    def rewards(frames):
        x = jnp.transpose(frames, (0, 3, 1, 2))              # NCHW
        for name, _k, s in CONV_CFG:
            x = jax.lax.conv_general_dilated(
                x, raw[name + "_w"], (s, s), "VALID",
                dimension_numbers=("NCHW", "OIHW", "NCHW"))
            x = x + raw[name + "_b"][None, :, None, None]
            x = jnp.where(x >= 0, x, NEG_SLOPE * x)
        x = x.reshape(x.shape[0], -1)                        # (N, 784) in (C, H, W)
        h = x @ raw["fc1_w"].T + raw["fc1_b"]
        h = jnp.where(h >= 0, h, NEG_SLOPE * h)
        return h @ raw["fc2_w"].T + raw["fc2_b"]

    def cum(traj):
        t, b = traj.shape[:2]
        r = rewards(traj.reshape((t * b,) + traj.shape[2:]))
        return r.reshape(t, b, 1).sum(axis=0)

    return cum(traj_i), cum(traj_j)


if __name__ == "__main__":
    key = jax.random.PRNGKey(0)
    k_par, k_i, k_j = jax.random.split(key, 3)
    raw_params = init_params(k_par)
    params = prepare_params(raw_params)

    # Small trajectories: T=2 frames each, batch=1 per frame. Spatial 84x84x4 is
    # fixed by the module (view(-1, 784) after the conv stack).
    traj_i = jax.random.uniform(k_i, (2, 1, 84, 84, 4), dtype=jnp.float32)
    traj_j = jax.random.uniform(k_j, (2, 1, 84, 84, 4), dtype=jnp.float32)

    fwd = jax.jit(net_forward)
    cum_r_i, cum_r_j = fwd(traj_i, traj_j, params)
    jax.block_until_ready((cum_r_i, cum_r_j))
    assert cum_r_i.shape == (1, 1) and cum_r_j.shape == (1, 1)

    # Cross-check against the pure-JAX f32 reference (bf16 kernels -> loose tol).
    ref_i, ref_j = jax.jit(_reference_forward)(traj_i, traj_j, raw_params)
    jax.block_until_ready((ref_i, ref_j))
    np.testing.assert_allclose(np.asarray(cum_r_i), np.asarray(ref_i),
                               rtol=5e-2, atol=3e-2)
    np.testing.assert_allclose(np.asarray(cum_r_j), np.asarray(ref_j),
                               rtol=5e-2, atol=3e-2)
    print("KERNEL_OK")
</pallas_src>

<mosaic_0001>
module attributes {stable_mosaic.version = 11 : i64} {
  func.func @_conv_mm_kernel(%arg0: i32, %arg1: memref<1352x196xbf16, #tpu.memory_space<vmem>>, %arg2: memref<196x16xbf16, #tpu.memory_space<vmem>>, %arg3: memref<1x16xf32, #tpu.memory_space<vmem>>, %arg4: memref<1352x16xbf16, #tpu.memory_space<vmem>>) attributes {dimension_semantics = [#tpu.dimension_semantics<parallel>], iteration_bounds = array<i64: 2>, scalar_prefetch = 0 : i64, scratch_operands = 0 : i64, tpu.core_type = #tpu.core_type<tc>, window_params = [{transform_indices = @transform_0, window_bounds = array<i64: 1352, 196>}, {pipeline_mode = #tpu.pipeline_mode<synchronous>, transform_indices = @transform_1, window_bounds = array<i64: 196, 16>}, {pipeline_mode = #tpu.pipeline_mode<synchronous>, transform_indices = @transform_2, window_bounds = array<i64: 1, 16>}, {transform_indices = @transform_3, window_bounds = array<i64: 1352, 16>}]} {
    %c0 = arith.constant 0 : index
    %c0_0 = arith.constant 0 : index
    %0 = vector.load %arg1[%c0, %c0_0] : memref<1352x196xbf16, #tpu.memory_space<vmem>>, vector<1352x196xbf16>
    %c0_1 = arith.constant 0 : index
    %c0_2 = arith.constant 0 : index
    %1 = vector.load %arg2[%c0_1, %c0_2] : memref<196x16xbf16, #tpu.memory_space<vmem>>, vector<196x16xbf16>
    %cst = arith.constant dense<0.000000e+00> : vector<1352x16xf32>
    %2 = tpu.matmul %0, %1, %cst {dimension_numbers = #tpu.dot_dimension_numbers<[1], [0], [0], [1], [0, 0, 1, 1], [], []>} : vector<1352x196xbf16>, vector<196x16xbf16>, vector<1352x16xf32> -> vector<1352x16xf32>
    %c0_3 = arith.constant 0 : index
    %c0_4 = arith.constant 0 : index
    %3 = vector.load %arg3[%c0_3, %c0_4] : memref<1x16xf32, #tpu.memory_space<vmem>>, vector<1x16xf32>
    %4 = vector.broadcast %3 : vector<1x16xf32> to vector<1352x16xf32>
    %5 = arith.addf %2, %4 : vector<1352x16xf32>
    %cst_5 = arith.constant 0.000000e+00 : f32
    %6 = vector.broadcast %cst_5 : f32 to vector<1352x16xf32>
    %7 = arith.cmpf oge, %5, %6 : vector<1352x16xf32>
    %cst_6 = arith.constant 0.00999999977 : f32
    %8 = vector.broadcast %cst_6 : f32 to vector<1352x16xf32>
    %9 = arith.mulf %8, %5 : vector<1352x16xf32>
    %10 = arith.select %7, %5, %9 : vector<1352x16xi1>, vector<1352x16xf32>
    %11 = arith.truncf %10 : vector<1352x16xf32> to vector<1352x16xbf16>
    %c0_7 = arith.constant 0 : index
    %c0_8 = arith.constant 0 : index
    %12 = vector.load %arg4[%c0_7, %c0_8] : memref<1352x16xbf16, #tpu.memory_space<vmem>>, vector<1352x16xbf16>
    tpu.vector_store %arg4[%c0_7, %c0_8], %11 {strides = array<i32>} : memref<1352x16xbf16, #tpu.memory_space<vmem>>, vector<1352x16xbf16>,
    return
  }
  func.func @transform_0(%arg0: i32) -> (i32, i32) {
    %c0_i32 = arith.constant 0 : i32
    %c0_i32_0 = arith.constant 0 : i32
    return %arg0, %c0_i32 : i32, i32
  }
  func.func @transform_1(%arg0: i32) -> (i32, i32) {
    %c0_i32 = arith.constant 0 : i32
    %c0_i32_0 = arith.constant 0 : i32
    %c0_i32_1 = arith.constant 0 : i32
    return %c0_i32, %c0_i32_0 : i32, i32
  }
  func.func @transform_2(%arg0: i32) -> (i32, i32) {
    %c0_i32 = arith.constant 0 : i32
    %c0_i32_0 = arith.constant 0 : i32
    %c0_i32_1 = arith.constant 0 : i32
    return %c0_i32, %c0_i32_0 : i32, i32
  }
  func.func @transform_3(%arg0: i32) -> (i32, i32) {
    %c0_i32 = arith.constant 0 : i32
    %c0_i32_0 = arith.constant 0 : i32
    return %arg0, %c0_i32 : i32, i32
  }
}

module attributes {stable_mosaic.version = 11 : i64} {
  func.func @_conv_mm_kernel(%arg0: i32, %arg1: memref<248x400xbf16, #tpu.memory_space<vmem>>, %arg2: memref<400x16xbf16, #tpu.memory_space<vmem>>, %arg3: memref<1x16xf32, #tpu.memory_space<vmem>>, %arg4: memref<248x16xbf16, #tpu.memory_space<vmem>>) attributes {dimension_semantics = [#tpu.dimension_semantics<parallel>], iteration_bounds = array<i64: 2>, scalar_prefetch = 0 : i64, scratch_operands = 0 : i64, tpu.core_type = #tpu.core_type<tc>, window_params = [{transform_indices = @transform_0, window_bounds = array<i64: 248, 400>}, {pipeline_mode = #tpu.pipeline_mode<synchronous>, transform_indices = @transform_1, window_bounds = array<i64: 400, 16>}, {pipeline_mode = #tpu.pipeline_mode<synchronous>, transform_indices = @transform_2, window_bounds = array<i64: 1, 16>}, {transform_indices = @transform_3, window_bounds = array<i64: 248, 16>}]} {
    %c0 = arith.constant 0 : index
    %c0_0 = arith.constant 0 : index
    %0 = vector.load %arg1[%c0, %c0_0] : memref<248x400xbf16, #tpu.memory_space<vmem>>, vector<248x400xbf16>
    %c0_1 = arith.constant 0 : index
    %c0_2 = arith.constant 0 : index
    %1 = vector.load %arg2[%c0_1, %c0_2] : memref<400x16xbf16, #tpu.memory_space<vmem>>, vector<400x16xbf16>
    %cst = arith.constant dense<0.000000e+00> : vector<248x16xf32>
    %2 = tpu.matmul %0, %1, %cst {dimension_numbers = #tpu.dot_dimension_numbers<[1], [0], [0], [1], [0, 0, 1, 1], [], []>} : vector<248x400xbf16>, vector<400x16xbf16>, vector<248x16xf32> -> vector<248x16xf32>
    %c0_3 = arith.constant 0 : index
    %c0_4 = arith.constant 0 : index
    %3 = vector.load %arg3[%c0_3, %c0_4] : memref<1x16xf32, #tpu.memory_space<vmem>>, vector<1x16xf32>
    %4 = vector.broadcast %3 : vector<1x16xf32> to vector<248x16xf32>
    %5 = arith.addf %2, %4 : vector<248x16xf32>
    %cst_5 = arith.constant 0.000000e+00 : f32
    %6 = vector.broadcast %cst_5 : f32 to vector<248x16xf32>
    %7 = arith.cmpf oge, %5, %6 : vector<248x16xf32>
    %cst_6 = arith.constant 0.00999999977 : f32
    %8 = vector.broadcast %cst_6 : f32 to vector<248x16xf32>
    %9 = arith.mulf %8, %5 : vector<248x16xf32>
    %10 = arith.select %7, %5, %9 : vector<248x16xi1>, vector<248x16xf32>
    %11 = arith.truncf %10 : vector<248x16xf32> to vector<248x16xbf16>
    %c0_7 = arith.constant 0 : index
    %c0_8 = arith.constant 0 : index
    %12 = vector.load %arg4[%c0_7, %c0_8] : memref<248x16xbf16, #tpu.memory_space<vmem>>, vector<248x16xbf16>
    tpu.vector_store %arg4[%c0_7, %c0_8], %11 {strides = array<i32>} : memref<248x16xbf16, #tpu.memory_space<vmem>>, vector<248x16xbf16>,
    return
  }
  func.func @transform_0(%arg0: i32) -> (i32, i32) {
    %c0_i32 = arith.constant 0 : i32
    %c0_i32_0 = arith.constant 0 : i32
    return %arg0, %c0_i32 : i32, i32
  }
  func.func @transform_1(%arg0: i32) -> (i32, i32) {
    %c0_i32 = arith.constant 0 : i32
    %c0_i32_0 = arith.constant 0 : i32
    %c0_i32_1 = arith.constant 0 : i32
    return %c0_i32, %c0_i32_0 : i32, i32
  }
  func.func @transform_2(%arg0: i32) -> (i32, i32) {
    %c0_i32 = arith.constant 0 : i32
    %c0_i32_0 = arith.constant 0 : i32
    %c0_i32_1 = arith.constant 0 : i32
    return %c0_i32, %c0_i32_0 : i32, i32
  }
  func.func @transform_3(%arg0: i32) -> (i32, i32) {
    %c0_i32 = arith.constant 0 : i32
    %c0_i32_0 = arith.constant 0 : i32
    return %arg0, %c0_i32 : i32, i32
  }
}

module attributes {stable_mosaic.version = 11 : i64} {
  func.func @_conv_mm_kernel(%arg0: i32, %arg1: memref<168x144xbf16, #tpu.memory_space<vmem>>, %arg2: memref<144x16xbf16, #tpu.memory_space<vmem>>, %arg3: memref<1x16xf32, #tpu.memory_space<vmem>>, %arg4: memref<168x16xbf16, #tpu.memory_space<vmem>>) attributes {dimension_semantics = [#tpu.dimension_semantics<parallel>], iteration_bounds = array<i64: 2>, scalar_prefetch = 0 : i64, scratch_operands = 0 : i64, tpu.core_type = #tpu.core_type<tc>, window_params = [{transform_indices = @transform_0, window_bounds = array<i64: 168, 144>}, {pipeline_mode = #tpu.pipeline_mode<synchronous>, transform_indices = @transform_1, window_bounds = array<i64: 144, 16>}, {pipeline_mode = #tpu.pipeline_mode<synchronous>, transform_indices = @transform_2, window_bounds = array<i64: 1, 16>}, {transform_indices = @transform_3, window_bounds = array<i64: 168, 16>}]} {
    %c0 = arith.constant 0 : index
    %c0_0 = arith.constant 0 : index
    %0 = vector.load %arg1[%c0, %c0_0] : memref<168x144xbf16, #tpu.memory_space<vmem>>, vector<168x144xbf16>
    %c0_1 = arith.constant 0 : index
    %c0_2 = arith.constant 0 : index
    %1 = vector.load %arg2[%c0_1, %c0_2] : memref<144x16xbf16, #tpu.memory_space<vmem>>, vector<144x16xbf16>
    %cst = arith.constant dense<0.000000e+00> : vector<168x16xf32>
    %2 = tpu.matmul %0, %1, %cst {dimension_numbers = #tpu.dot_dimension_numbers<[1], [0], [0], [1], [0, 0, 1, 1], [], []>} : vector<168x144xbf16>, vector<144x16xbf16>, vector<168x16xf32> -> vector<168x16xf32>
    %c0_3 = arith.constant 0 : index
    %c0_4 = arith.constant 0 : index
    %3 = vector.load %arg3[%c0_3, %c0_4] : memref<1x16xf32, #tpu.memory_space<vmem>>, vector<1x16xf32>
    %4 = vector.broadcast %3 : vector<1x16xf32> to vector<168x16xf32>
    %5 = arith.addf %2, %4 : vector<168x16xf32>
    %cst_5 = arith.constant 0.000000e+00 : f32
    %6 = vector.broadcast %cst_5 : f32 to vector<168x16xf32>
    %7 = arith.cmpf oge, %5, %6 : vector<168x16xf32>
    %cst_6 = arith.constant 0.00999999977 : f32
    %8 = vector.broadcast %cst_6 : f32 to vector<168x16xf32>
    %9 = arith.mulf %8, %5 : vector<168x16xf32>
    %10 = arith.select %7, %5, %9 : vector<168x16xi1>, vector<168x16xf32>
    %11 = arith.truncf %10 : vector<168x16xf32> to vector<168x16xbf16>
    %c0_7 = arith.constant 0 : index
    %c0_8 = arith.constant 0 : index
    %12 = vector.load %arg4[%c0_7, %c0_8] : memref<168x16xbf16, #tpu.memory_space<vmem>>, vector<168x16xbf16>
    tpu.vector_store %arg4[%c0_7, %c0_8], %11 {strides = array<i32>} : memref<168x16xbf16, #tpu.memory_space<vmem>>, vector<168x16xbf16>,
    return
  }
  func.func @transform_0(%arg0: i32) -> (i32, i32) {
    %c0_i32 = arith.constant 0 : i32
    %c0_i32_0 = arith.constant 0 : i32
    return %arg0, %c0_i32 : i32, i32
  }
  func.func @transform_1(%arg0: i32) -> (i32, i32) {
    %c0_i32 = arith.constant 0 : i32
    %c0_i32_0 = arith.constant 0 : i32
    %c0_i32_1 = arith.constant 0 : i32
    return %c0_i32, %c0_i32_0 : i32, i32
  }
  func.func @transform_2(%arg0: i32) -> (i32, i32) {
    %c0_i32 = arith.constant 0 : i32
    %c0_i32_0 = arith.constant 0 : i32
    %c0_i32_1 = arith.constant 0 : i32
    return %c0_i32, %c0_i32_0 : i32, i32
  }
  func.func @transform_3(%arg0: i32) -> (i32, i32) {
    %c0_i32 = arith.constant 0 : i32
    %c0_i32_0 = arith.constant 0 : i32
    return %arg0, %c0_i32 : i32, i32
  }
}

module attributes {stable_mosaic.version = 11 : i64} {
  func.func @_conv_mm_kernel(%arg0: i32, %arg1: memref<104x144xbf16, #tpu.memory_space<vmem>>, %arg2: memref<144x16xbf16, #tpu.memory_space<vmem>>, %arg3: memref<1x16xf32, #tpu.memory_space<vmem>>, %arg4: memref<104x16xbf16, #tpu.memory_space<vmem>>) attributes {dimension_semantics = [#tpu.dimension_semantics<parallel>], iteration_bounds = array<i64: 2>, scalar_prefetch = 0 : i64, scratch_operands = 0 : i64, tpu.core_type = #tpu.core_type<tc>, window_params = [{transform_indices = @transform_0, window_bounds = array<i64: 104, 144>}, {pipeline_mode = #tpu.pipeline_mode<synchronous>, transform_indices = @transform_1, window_bounds = array<i64: 144, 16>}, {pipeline_mode = #tpu.pipeline_mode<synchronous>, transform_indices = @transform_2, window_bounds = array<i64: 1, 16>}, {transform_indices = @transform_3, window_bounds = array<i64: 104, 16>}]} {
    %c0 = arith.constant 0 : index
    %c0_0 = arith.constant 0 : index
    %0 = vector.load %arg1[%c0, %c0_0] : memref<104x144xbf16, #tpu.memory_space<vmem>>, vector<104x144xbf16>
    %c0_1 = arith.constant 0 : index
    %c0_2 = arith.constant 0 : index
    %1 = vector.load %arg2[%c0_1, %c0_2] : memref<144x16xbf16, #tpu.memory_space<vmem>>, vector<144x16xbf16>
    %cst = arith.constant dense<0.000000e+00> : vector<104x16xf32>
    %2 = tpu.matmul %0, %1, %cst {dimension_numbers = #tpu.dot_dimension_numbers<[1], [0], [0], [1], [0, 0, 1, 1], [], []>} : vector<104x144xbf16>, vector<144x16xbf16>, vector<104x16xf32> -> vector<104x16xf32>
    %c0_3 = arith.constant 0 : index
    %c0_4 = arith.constant 0 : index
    %3 = vector.load %arg3[%c0_3, %c0_4] : memref<1x16xf32, #tpu.memory_space<vmem>>, vector<1x16xf32>
    %4 = vector.broadcast %3 : vector<1x16xf32> to vector<104x16xf32>
    %5 = arith.addf %2, %4 : vector<104x16xf32>
    %cst_5 = arith.constant 0.000000e+00 : f32
    %6 = vector.broadcast %cst_5 : f32 to vector<104x16xf32>
    %7 = arith.cmpf oge, %5, %6 : vector<104x16xf32>
    %cst_6 = arith.constant 0.00999999977 : f32
    %8 = vector.broadcast %cst_6 : f32 to vector<104x16xf32>
    %9 = arith.mulf %8, %5 : vector<104x16xf32>
    %10 = arith.select %7, %5, %9 : vector<104x16xi1>, vector<104x16xf32>
    %11 = arith.truncf %10 : vector<104x16xf32> to vector<104x16xbf16>
    %c0_7 = arith.constant 0 : index
    %c0_8 = arith.constant 0 : index
    %12 = vector.load %arg4[%c0_7, %c0_8] : memref<104x16xbf16, #tpu.memory_space<vmem>>, vector<104x16xbf16>
    tpu.vector_store %arg4[%c0_7, %c0_8], %11 {strides = array<i32>} : memref<104x16xbf16, #tpu.memory_space<vmem>>, vector<104x16xbf16>,
    return
  }
  func.func @transform_0(%arg0: i32) -> (i32, i32) {
    %c0_i32 = arith.constant 0 : i32
    %c0_i32_0 = arith.constant 0 : i32
    return %arg0, %c0_i32 : i32, i32
  }
  func.func @transform_1(%arg0: i32) -> (i32, i32) {
    %c0_i32 = arith.constant 0 : i32
    %c0_i32_0 = arith.constant 0 : i32
    %c0_i32_1 = arith.constant 0 : i32
    return %c0_i32, %c0_i32_0 : i32, i32
  }
  func.func @transform_2(%arg0: i32) -> (i32, i32) {
    %c0_i32 = arith.constant 0 : i32
    %c0_i32_0 = arith.constant 0 : i32
    %c0_i32_1 = arith.constant 0 : i32
    return %c0_i32, %c0_i32_0 : i32, i32
  }
  func.func @transform_3(%arg0: i32) -> (i32, i32) {
    %c0_i32 = arith.constant 0 : i32
    %c0_i32_0 = arith.constant 0 : i32
    return %arg0, %c0_i32 : i32, i32
  }
}

module attributes {stable_mosaic.version = 11 : i64} {
  func.func @_fc_head_kernel(%arg0: i32, %arg1: memref<4x784xbf16, #tpu.memory_space<vmem>>, %arg2: memref<784x128xbf16, #tpu.memory_space<vmem>>, %arg3: memref<1x128xf32, #tpu.memory_space<vmem>>, %arg4: memref<128x1xbf16, #tpu.memory_space<vmem>>, %arg5: memref<1x1xf32, #tpu.memory_space<vmem>>, %arg6: memref<4x1xf32, #tpu.memory_space<vmem>>) attributes {dimension_semantics = [#tpu.dimension_semantics<parallel>], iteration_bounds = array<i64: 1>, scalar_prefetch = 0 : i64, scratch_operands = 0 : i64, tpu.core_type = #tpu.core_type<tc>, window_params = [{transform_indices = @transform_0, window_bounds = array<i64: 4, 784>}, {pipeline_mode = #tpu.pipeline_mode<synchronous>, transform_indices = @transform_1, window_bounds = array<i64: 784, 128>}, {pipeline_mode = #tpu.pipeline_mode<synchronous>, transform_indices = @transform_2, window_bounds = array<i64: 1, 128>}, {pipeline_mode = #tpu.pipeline_mode<synchronous>, transform_indices = @transform_3, window_bounds = array<i64: 128, 1>}, {pipeline_mode = #tpu.pipeline_mode<synchronous>, transform_indices = @transform_4, window_bounds = array<i64: 1, 1>}, {transform_indices = @transform_5, window_bounds = array<i64: 4, 1>}]} {
    %c0 = arith.constant 0 : index
    %c0_0 = arith.constant 0 : index
    %0 = vector.load %arg1[%c0, %c0_0] : memref<4x784xbf16, #tpu.memory_space<vmem>>, vector<4x784xbf16>
    %c0_1 = arith.constant 0 : index
    %c0_2 = arith.constant 0 : index
    %1 = vector.load %arg2[%c0_1, %c0_2] : memref<784x128xbf16, #tpu.memory_space<vmem>>, vector<784x128xbf16>
    %cst = arith.constant dense<0.000000e+00> : vector<4x128xf32>
    %2 = tpu.matmul %0, %1, %cst {dimension_numbers = #tpu.dot_dimension_numbers<[1], [0], [0], [1], [0, 0, 1, 1], [], []>} : vector<4x784xbf16>, vector<784x128xbf16>, vector<4x128xf32> -> vector<4x128xf32>
    %c0_3 = arith.constant 0 : index
    %c0_4 = arith.constant 0 : index
    %3 = vector.load %arg3[%c0_3, %c0_4] : memref<1x128xf32, #tpu.memory_space<vmem>>, vector<1x128xf32>
    %4 = vector.broadcast %3 : vector<1x128xf32> to vector<4x128xf32>
    %5 = arith.addf %2, %4 : vector<4x128xf32>
    %cst_5 = arith.constant 0.000000e+00 : f32
    %6 = vector.broadcast %cst_5 : f32 to vector<4x128xf32>
    %7 = arith.cmpf oge, %5, %6 : vector<4x128xf32>
    %cst_6 = arith.constant 0.00999999977 : f32
    %8 = vector.broadcast %cst_6 : f32 to vector<4x128xf32>
    %9 = arith.mulf %8, %5 : vector<4x128xf32>
    %10 = arith.select %7, %5, %9 : vector<4x128xi1>, vector<4x128xf32>
    %11 = arith.truncf %10 : vector<4x128xf32> to vector<4x128xbf16>
    %c0_7 = arith.constant 0 : index
    %c0_8 = arith.constant 0 : index
    %12 = vector.load %arg4[%c0_7, %c0_8] : memref<128x1xbf16, #tpu.memory_space<vmem>>, vector<128x1xbf16>
    %cst_9 = arith.constant dense<0.000000e+00> : vector<4x1xf32>
    %13 = tpu.matmul %11, %12, %cst_9 {dimension_numbers = #tpu.dot_dimension_numbers<[1], [0], [0], [1], [0, 0, 1, 1], [], []>} : vector<4x128xbf16>, vector<128x1xbf16>, vector<4x1xf32> -> vector<4x1xf32>
    %c0_10 = arith.constant 0 : index
    %c0_11 = arith.constant 0 : index
    %14 = vector.load %arg5[%c0_10, %c0_11] : memref<1x1xf32, #tpu.memory_space<vmem>>, vector<1x1xf32>
    %15 = vector.broadcast %14 : vector<1x1xf32> to vector<4x1xf32>
    %16 = arith.addf %13, %15 : vector<4x1xf32>
    %c0_12 = arith.constant 0 : index
    %c0_13 = arith.constant 0 : index
    %17 = vector.load %arg6[%c0_12, %c0_13] : memref<4x1xf32, #tpu.memory_space<vmem>>, vector<4x1xf32>
    tpu.vector_store %arg6[%c0_12, %c0_13], %16 {strides = array<i32>} : memref<4x1xf32, #tpu.memory_space<vmem>>, vector<4x1xf32>,
    return
  }
  func.func @transform_0(%arg0: i32) -> (i32, i32) {
    %c0_i32 = arith.constant 0 : i32
    %c0_i32_0 = arith.constant 0 : i32
    return %arg0, %c0_i32 : i32, i32
  }
  func.func @transform_1(%arg0: i32) -> (i32, i32) {
    %c0_i32 = arith.constant 0 : i32
    %c0_i32_0 = arith.constant 0 : i32
    %c0_i32_1 = arith.constant 0 : i32
    return %c0_i32, %c0_i32_0 : i32, i32
  }
  func.func @transform_2(%arg0: i32) -> (i32, i32) {
    %c0_i32 = arith.constant 0 : i32
    %c0_i32_0 = arith.constant 0 : i32
    %c0_i32_1 = arith.constant 0 : i32
    return %c0_i32, %c0_i32_0 : i32, i32
  }
  func.func @transform_3(%arg0: i32) -> (i32, i32) {
    %c0_i32 = arith.constant 0 : i32
    %c0_i32_0 = arith.constant 0 : i32
    %c0_i32_1 = arith.constant 0 : i32
    return %c0_i32, %c0_i32_0 : i32, i32
  }
  func.func @transform_4(%arg0: i32) -> (i32, i32) {
    %c0_i32 = arith.constant 0 : i32
    %c0_i32_0 = arith.constant 0 : i32
    %c0_i32_1 = arith.constant 0 : i32
    return %c0_i32, %c0_i32_0 : i32, i32
  }
  func.func @transform_5(%arg0: i32) -> (i32, i32) {
    %c0_i32 = arith.constant 0 : i32
    %c0_i32_0 = arith.constant 0 : i32
    return %arg0, %c0_i32 : i32, i32
  }
}

</mosaic_0001>

<llo_original>
// kernel: net_forward.5
$region0: #{net_forward.5}
  #allocation0 [shape = 'u32[]', space=smem, size = 0x4, offset = 0x4, fixed_abs, tag = 'smem constant byte address 0x4 - core index']
  #allocation1 [shape = 'u32[144,128]{1,0:T(1,128)}', space=vmem, size = 0x12000, scoped, tag = 'internal scratch']
  %s0 = inlined_call_operand.vmem [shape: bf16[2704,196], index: 0, kind: input, shape index: {}]
  %s1 = inlined_call_operand.vmem [shape: bf16[196,16], index: 1, kind: input, shape index: {}]
  %s2 = inlined_call_operand.vmem [shape: f32[1,16], index: 2, kind: input, shape index: {}]
  %s3 = inlined_call_operand.vmem [shape: bf16[2704,16], index: 3, kind: output, shape index: {}]
  %s4 = sld [smem:[#allocation0]]
  $region45: #{net_forward.5} parent=0
    _
  %s6 = ssub.s32 1, %s4
  %s7 = scalar_select 0, %s6, %s4
  loop: start=0, step=1, limit=4
  $region2: #{net_forward.5} parent=0 // loop_pre_header
    _
  $region3: #{net_forward.5} parent=0 // loop_header
    %s9 = sphi 0, %s13
    %p10 = scmp.ge.s32.totalorder %s9, 4
    %s19 = sphi 0, %s21
    %s22 = sphi 0, %s19
    %s23 = sphi 0, %s22
    %s39 = sphi 0, %s23
    %s43 = sphi 0, %s43
    %s45 = sphi 0, %s43
    %s46 = sphi 0, %s45
    %s60 = sphi 0, %s46
    %s64 = sphi 0, %s64
    %s66 = sphi 0, %s64
    %s67 = sphi 0, %s66
    %s81 = sphi 0, %s67
    %s87 = sphi 0, %s89
    %s90 = sphi 0, %s87
    %s91 = sphi 0, %s90
    %s107 = sphi 0, %s91
  $region4: #{net_forward.5} parent=0 // loop_header_branch
    %12 = sbr.rel (%p10) target = $region8
  $region5: #{net_forward.5} parent=0 // loop_body
    %s14 = ssub.s32 %s9, 1
    %s15 = ssub.s32 %s9, 2
    %s16 = sadd.s32 %s9, 1
    %s17 = ssub.s32 %s9, %s16
    %p18 = scmp.eq.s32.totalorder %s17, 0
    %s20 = sadd.s32 %s19, 1
    %s21 = scalar_select %p18, %s19, %s20
    %p24 = pneg %p18
    %p25 = scmp.eq.s32.totalorder %s9, 1
    %p26 = por %p24, %p25
    %p27 = scmp.ne.s32.totalorder %s19, %s22
    %p28 = scmp.eq.s32.totalorder %s9, 0
    %p29 = por %p27, %p28
    %p30 = scmp.ne.s32.totalorder %s19, %s22
    %p31 = scmp.eq.s32.totalorder %s14, 1
    %p32 = por %p30, %p31
    %p33 = scmp.ne.s32.totalorder %s22, %s23
    %p34 = scmp.eq.s32.totalorder %s14, 0
    %p35 = por %p33, %p34
    %p36 = scmp.ne.s32.totalorder %s22, %s23
    %p37 = scmp.eq.s32.totalorder %s15, 1
    %p38 = por %p36, %p37
    %p40 = scmp.ne.s32.totalorder %s23, %s39
    %p41 = scmp.eq.s32.totalorder %s15, 0
    %p42 = por %p40, %p41
    %s44 = sadd.s32 %s43, 1
    %p47 = scmp.eq.s32.totalorder %s9, 1
    %p48 = scmp.ne.s32.totalorder %s43, %s45
    %p49 = scmp.eq.s32.totalorder %s9, 0
    %p50 = por %p48, %p49
    %p51 = scmp.ne.s32.totalorder %s43, %s45
    %p52 = scmp.eq.s32.totalorder %s14, 1
    %p53 = por %p51, %p52
    %p54 = scmp.ne.s32.totalorder %s45, %s46
    %p55 = scmp.eq.s32.totalorder %s14, 0
    %p56 = por %p54, %p55
    %p57 = scmp.ne.s32.totalorder %s45, %s46
    %p58 = scmp.eq.s32.totalorder %s15, 1
    %p59 = por %p57, %p58
    %p61 = scmp.ne.s32.totalorder %s46, %s60
    %p62 = scmp.eq.s32.totalorder %s15, 0
    %p63 = por %p61, %p62
    %s65 = sadd.s32 %s64, 1
    %p68 = scmp.eq.s32.totalorder %s9, 1
    %p69 = scmp.ne.s32.totalorder %s64, %s66
    %p70 = scmp.eq.s32.totalorder %s9, 0
    %p71 = por %p69, %p70
    %p72 = scmp.ne.s32.totalorder %s64, %s66
    %p73 = scmp.eq.s32.totalorder %s14, 1
    %p74 = por %p72, %p73
    %p75 = scmp.ne.s32.totalorder %s66, %s67
    %p76 = scmp.eq.s32.totalorder %s14, 0
    %p77 = por %p75, %p76
    %p78 = scmp.ne.s32.totalorder %s66, %s67
    %p79 = scmp.eq.s32.totalorder %s15, 1
    %p80 = por %p78, %p79
    %p82 = scmp.ne.s32.totalorder %s67, %s81
    %p83 = scmp.eq.s32.totalorder %s15, 0
    %p84 = por %p82, %p83
    %s85 = ssub.s32 %s9, %s16
    %p86 = scmp.eq.s32.totalorder %s85, 0
    %s88 = sadd.s32 %s87, 1
    %s89 = scalar_select %p86, %s87, %s88
    %p92 = pneg %p86
    %p93 = scmp.eq.s32.totalorder %s9, 1
    %p94 = por %p92, %p93
    %p95 = scmp.ne.s32.totalorder %s87, %s90
    %p96 = scmp.eq.s32.totalorder %s9, 0
    %p97 = por %p95, %p96
    %p98 = scmp.ne.s32.totalorder %s87, %s90
    %p99 = scmp.eq.s32.totalorder %s14, 1
    %p100 = por %p98, %p99
    %p101 = scmp.ne.s32.totalorder %s90, %s91
    %p102 = scmp.eq.s32.totalorder %s14, 0
    %p103 = por %p101, %p102
    %p104 = scmp.ne.s32.totalorder %s90, %s91
    %p105 = scmp.eq.s32.totalorder %s15, 1
    %p106 = por %p104, %p105
    %p108 = scmp.ne.s32.totalorder %s91, %s107
    %p109 = scmp.eq.s32.totalorder %s15, 0
    %p110 = por %p108, %p109
    %p111 = scmp.le.s32.totalorder 1, %s9
    %p112 = scmp.lt.s32.totalorder %s9, 3
    %p113 = pnand %p111, %p112
    %p114 = pneg %p113
    // Predicated region
    $region9: #{net_forward.5} parent=5 // pred_check
      _
    $region10: #{net_forward.5} parent=5 // pred_check_branch
      %116 = sbr.rel (%p113) target = $region12
    $region11: #{net_forward.5} parent=5 // pred_region
      %s117 = ssub.s32 %s9, 1
      // Predicated region
      $region13: #{net_forward.5} parent=11 // pred_check
        %p118 = pneg %p56
      $region14: #{net_forward.5} parent=11 // pred_check_branch
        %120 = sbr.rel (%p118) target = $region16
      $region15: #{net_forward.5} parent=11 // pred_region
        _
      $region16: #{net_forward.5} parent=11 // pred_fallthru
        _
      // Predicated region
      $region17: #{net_forward.5} parent=11 // pred_check
        %p121 = pneg %p77
      $region18: #{net_forward.5} parent=11 // pred_check_branch
        %123 = sbr.rel (%p121) target = $region20
      $region19: #{net_forward.5} parent=11 // pred_region
        _
      $region20: #{net_forward.5} parent=11 // pred_fallthru
        _
    $region12: #{net_forward.5} parent=5 // pred_fallthru
      _
    %p124 = scmp.lt.s32.totalorder %s9, 2
    // Predicated region
    $region21: #{net_forward.5} parent=5 // pred_check
      %p125 = pneg %p124
    $region22: #{net_forward.5} parent=5 // pred_check_branch
      %127 = sbr.rel (%p125) target = $region24
    $region23: #{net_forward.5} parent=5 // pred_region
      // Predicated region
      $region25: #{net_forward.5} parent=23 // pred_check
        %p128 = pneg %p29
      $region26: #{net_forward.5} parent=23 // pred_check_branch
        %130 = sbr.rel (%p128) target = $region28
      $region27: #{net_forward.5} parent=23 // pred_region
        %s131 = smul.u32 169, %s9
        %p132 = scmp.lt.s32.totalorder %s131, 337
        %s133 = scalar_select %p132, %s131, 337
        %s134 = smul.addr %s133, 2
        %s135 = smul.addr %s134, 4
        %s136 = scalar_lea.vmem %s0, %s135
        %s137 = smul.u32 169, %s9
      $region28: #{net_forward.5} parent=23 // pred_fallthru
        _
    $region24: #{net_forward.5} parent=5 // pred_fallthru
      _
    %p138 = scmp.le.s32.totalorder 1, %s9
    %p139 = scmp.lt.s32.totalorder %s9, 3
    %p140 = pnand %p138, %p139
    %p141 = pneg %p140
    // Predicated region
    $region29: #{net_forward.5} parent=5 // pred_check
      _
    $region30: #{net_forward.5} parent=5 // pred_check_branch
      %143 = sbr.rel (%p140) target = $region32
    $region31: #{net_forward.5} parent=5 // pred_region
      %s144 = ssub.s32 %s9, 1
      %s145 = smul.u32 169, %s14
      %p146 = scmp.lt.s32.totalorder %s145, 337
      %s147 = scalar_select %p146, %s145, 337
      %s148 = smul.addr %s147, 2
      %s149 = smul.addr %s148, 4
      %s150 = scalar_lea.vmem %s0, %s149
      %p151 = pneg %p35
      %p152 = pneg %p32
      %p153 = pneg %p56
      %p154 = pneg %p53
      %p155 = pneg %p77
      %p156 = pneg %p74
      %p157 = pneg %p103
      %p158 = pneg %p100
      %s159 = smul.u32 169, %s14
      %p160 = scmp.lt.s32.totalorder %s159, 337
      %s161 = scalar_select %p160, %s159, 337
      %s162 = smul.addr %s161, 4
      %s163 = scalar_lea.vmem %s3, %s162
      %s164 = smul.u32 169, %s14
      %p165 = scmp.lt.s32.totalorder %s164, 337
      %s166 = scalar_select %p165, %s164, 337
      %s167 = smul.addr %s166, 2
      %s168 = smul.addr %s167, 4
      %s169 = scalar_lea.vmem %s0, %s168
      %s170 = smul.u32 169, %s14
      %s171 = smul.u32 169, %s14
      %p172 = scmp.lt.s32.totalorder %s171, 337
      %s173 = scalar_select %p172, %s171, 337
      %s174 = smul.addr %s173, 4
      %s175 = scalar_lea.vmem %s3, %s174
      %s176 = smul.u32 169, %s14
      %v178 = vld [vmem:[%s169] sm:$0xff]
      %v179 = vld [vmem:[%s169 + $0x8] sm:$0xff]
      %v180 = vld [vmem:[%s169 + $0x10] sm:$0xff]
      %v181 = vld [vmem:[%s169 + $0x18] sm:$0xff]
      %v182 = vld [vmem:[%s169 + $0x20] sm:$0xff]
      %v183 = vld [vmem:[%s169 + $0x28] sm:$0xff]
      %v184 = vld [vmem:[%s169 + $0x30] sm:$0xff]
      %v185 = vld [vmem:[%s169 + $0x38] sm:$0xff]
      %v186 = vld [vmem:[%s169 + $0x40] sm:$0xff]
      %v187 = vld [vmem:[%s169 + $0x48] sm:$0xff]
      %v188 = vld [vmem:[%s169 + $0x50] sm:$0xff]
      %v189 = vld [vmem:[%s169 + $0x58] sm:$0xff]
      %v190 = vld [vmem:[%s169 + $0x60] sm:$0xff]
      %v191 = vld [vmem:[%s169 + $0x68] sm:$0xff]
      %v192 = vld [vmem:[%s169 + $0x70] sm:$0xff]
      %v193 = vld [vmem:[%s169 + $0x78] sm:$0xff]
      %v194 = vld [vmem:[%s169 + $0x80] sm:$0xff]
      %v195 = vld [vmem:[%s169 + $0x88] sm:$0xff]
      %v196 = vld [vmem:[%s169 + $0x90] sm:$0xff]
      %v197 = vld [vmem:[%s169 + $0x98] sm:$0xff]
      %v198 = vld [vmem:[%s169 + $0xa0] sm:$0xff]
      %v199 = vld [vmem:[%s169 + $0xa8] sm:$0xff]
      %v200 = vld [vmem:[%s169 + $0xb0] sm:$0xff]
      %v201 = vld [vmem:[%s169 + $0xb8] sm:$0xff]
      %v202 = vld [vmem:[%s169 + $0xc0] sm:$0xff]
      %v203 = vld [vmem:[%s169 + $0xc8] sm:$0xff]
      %v204 = vld [vmem:[%s169 + $0xd0] sm:$0xff]
      %v205 = vld [vmem:[%s169 + $0xd8] sm:$0xff]
      %v206 = vld [vmem:[%s169 + $0xe0] sm:$0xff]
      %v207 = vld [vmem:[%s169 + $0xe8] sm:$0xff]
      %v208 = vld [vmem:[%s169 + $0xf0] sm:$0xff]
      %v209 = vld [vmem:[%s169 + $0xf8] sm:$0xff]
      %v210 = vld [vmem:[%s169 + $0x100] sm:$0xff]
      %v211 = vld [vmem:[%s169 + $0x108] sm:$0xff]
      %v212 = vld [vmem:[%s169 + $0x110] sm:$0xff]
      %v213 = vld [vmem:[%s169 + $0x118] sm:$0xff]
      %v214 = vld [vmem:[%s169 + $0x120] sm:$0xff]
      %v215 = vld [vmem:[%s169 + $0x128] sm:$0xff]
      %v216 = vld [vmem:[%s169 + $0x130] sm:$0xff]
      %v217 = vld [vmem:[%s169 + $0x138] sm:$0xff]
      %v218 = vld [vmem:[%s169 + $0x140] sm:$0xff]
      %v219 = vld [vmem:[%s169 + $0x148] sm:$0xff]
      %v220 = vld [vmem:[%s169 + $0x150] sm:$0xff]
      %v221 = vld [vmem:[%s169 + $0x158] sm:$0xff]
      %v222 = vld [vmem:[%s169 + $0x160] sm:$0xff]
      %v223 = vld [vmem:[%s169 + $0x168] sm:$0xff]
      %v224 = vld [vmem:[%s169 + $0x170] sm:$0xff]
      %v225 = vld [vmem:[%s169 + $0x178] sm:$0xff]
      %v226 = vld [vmem:[%s169 + $0x180] sm:$0xff]
      %v227 = vld [vmem:[%s169 + $0x188] sm:$0xff]
      %v228 = vld [vmem:[%s169 + $0x190] sm:$0xff]
      %v229 = vld [vmem:[%s169 + $0x198] sm:$0xff]
      %v230 = vld [vmem:[%s169 + $0x1a0] sm:$0xff]
      %v231 = vld [vmem:[%s169 + $0x1a8] sm:$0xff]
      %v232 = vld [vmem:[%s169 + $0x1b0] sm:$0xff]
      %v233 = vld [vmem:[%s169 + $0x1b8] sm:$0xff]
      %v234 = vld [vmem:[%s169 + $0x1c0] sm:$0xff]
      %v235 = vld [vmem:[%s169 + $0x1c8] sm:$0xff]
      %v236 = vld [vmem:[%s169 + $0x1d0] sm:$0xff]
      %v237 = vld [vmem:[%s169 + $0x1d8] sm:$0xff]
      %v238 = vld [vmem:[%s169 + $0x1e0] sm:$0xff]
      %v239 = vld [vmem:[%s169 + $0x1e8] sm:$0xff]
      %v240 = vld [vmem:[%s169 + $0x1f0] sm:$0xff]
      %v241 = vld [vmem:[%s169 + $0x1f8] sm:$0xff]
      %v242 = vld [vmem:[%s169 + $0x200] sm:$0xff]
      %v243 = vld [vmem:[%s169 + $0x208] sm:$0xff]
      %v244 = vld [vmem:[%s169 + $0x210] sm:$0xff]
      %v245 = vld [vmem:[%s169 + $0x218] sm:$0xff]
      %v246 = vld [vmem:[%s169 + $0x220] sm:$0xff]
      %v247 = vld [vmem:[%s169 + $0x228] sm:$0xff]
      %v248 = vld [vmem:[%s169 + $0x230] sm:$0xff]
      %v249 = vld [vmem:[%s169 + $0x238] sm:$0xff]
      %v250 = vld [vmem:[%s169 + $0x240] sm:$0xff]
      %v251 = vld [vmem:[%s169 + $0x248] sm:$0xff]
      %v252 = vld [vmem:[%s169 + $0x250] sm:$0xff]
      %v253 = vld [vmem:[%s169 + $0x258] sm:$0xff]
      %v254 = vld [vmem:[%s169 + $0x260] sm:$0xff]
      %v255 = vld [vmem:[%s169 + $0x268] sm:$0xff]
      %v256 = vld [vmem:[%s169 + $0x270] sm:$0xff]
      %v257 = vld [vmem:[%s169 + $0x278] sm:$0xff]
      %v258 = vld [vmem:[%s169 + $0x280] sm:$0xff]
      %v259 = vld [vmem:[%s169 + $0x288] sm:$0xff]
      %v260 = vld [vmem:[%s169 + $0x290] sm:$0xff]
      %v261 = vld [vmem:[%s169 + $0x298] sm:$0xff]
      %v262 = vld [vmem:[%s169 + $0x2a0] sm:$0xff]
      %v263 = vld [vmem:[%s169 + $0x2a8] sm:$0xff]
      %v264 = vld [vmem:[%s169 + $0x2b0] sm:$0xff]
      %v265 = vld [vmem:[%s169 + $0x2b8] sm:$0xff]
      %v266 = vld [vmem:[%s169 + $0x2c0] sm:$0xff]
      %v267 = vld [vmem:[%s169 + $0x2c8] sm:$0xff]
      %v268 = vld [vmem:[%s169 + $0x2d0] sm:$0xff]
      %v269 = vld [vmem:[%s169 + $0x2d8] sm:$0xff]
      %v270 = vld [vmem:[%s169 + $0x2e0] sm:$0xff]
      %v271 = vld [vmem:[%s169 + $0x2e8] sm:$0xff]
      %v272 = vld [vmem:[%s169 + $0x2f0] sm:$0xff]
      %v273 = vld [vmem:[%s169 + $0x2f8] sm:$0xff]
      %v274 = vld [vmem:[%s169 + $0x300] sm:$0xff]
      %v275 = vld [vmem:[%s169 + $0x308] sm:$0xff]
      %v276 = vld [vmem:[%s169 + $0x310] sm:$0xff]
      %v277 = vld [vmem:[%s169 + $0x318] sm:$0xff]
      %v278 = vld [vmem:[%s169 + $0x320] sm:$0xff]
      %v279 = vld [vmem:[%s169 + $0x328] sm:$0xff]
      %v280 = vld [vmem:[%s169 + $0x330] sm:$0xff]
      %v281 = vld [vmem:[%s169 + $0x338] sm:$0xff]
      %v282 = vld [vmem:[%s169 + $0x340] sm:$0xff]
      %v283 = vld [vmem:[%s169 + $0x348] sm:$0xff]
      %v284 = vld [vmem:[%s169 + $0x350] sm:$0xff]
      %v285 = vld [vmem:[%s169 + $0x358] sm:$0xff]
      %v286 = vld [vmem:[%s169 + $0x360] sm:$0xff]
      %v287 = vld [vmem:[%s169 + $0x368] sm:$0xff]
      %v288 = vld [vmem:[%s169 + $0x370] sm:$0xff]
      %v289 = vld [vmem:[%s169 + $0x378] sm:$0xff]
      %v290 = vld [vmem:[%s169 + $0x380] sm:$0xff]
      %v291 = vld [vmem:[%s169 + $0x388] sm:$0xff]
      %v292 = vld [vmem:[%s169 + $0x390] sm:$0xff]
      %v293 = vld [vmem:[%s169 + $0x398] sm:$0xff]
      %v294 = vld [vmem:[%s169 + $0x3a0] sm:$0xff]
      %v295 = vld [vmem:[%s169 + $0x3a8] sm:$0xff]
      %v296 = vld [vmem:[%s169 + $0x3b0] sm:$0xff]
      %v297 = vld [vmem:[%s169 + $0x3b8] sm:$0xff]
      %v298 = vld [vmem:[%s169 + $0x3c0] sm:$0xff]
      %v299 = vld [vmem:[%s169 + $0x3c8] sm:$0xff]
      %v300 = vld [vmem:[%s169 + $0x3d0] sm:$0xff]
      %v301 = vld [vmem:[%s169 + $0x3d8] sm:$0xff]
      %v302 = vld [vmem:[%s169 + $0x3e0] sm:$0xff]
      %v303 = vld [vmem:[%s169 + $0x3e8] sm:$0xff]
      %v304 = vld [vmem:[%s169 + $0x3f0] sm:$0xff]
      %v305 = vld [vmem:[%s169 + $0x3f8] sm:$0xff]
      %v306 = vld [vmem:[%s169 + $0x400] sm:$0xff]
      %v307 = vld [vmem:[%s169 + $0x408] sm:$0xff]
      %v308 = vld [vmem:[%s169 + $0x410] sm:$0xff]
      %v309 = vld [vmem:[%s169 + $0x418] sm:$0xff]
      %v310 = vld [vmem:[%s169 + $0x420] sm:$0xff]
      %v311 = vld [vmem:[%s169 + $0x428] sm:$0xff]
      %v312 = vld [vmem:[%s169 + $0x430] sm:$0xff]
      %v313 = vld [vmem:[%s169 + $0x438] sm:$0xff]
      %v314 = vld [vmem:[%s169 + $0x440] sm:$0xff]
      %v315 = vld [vmem:[%s169 + $0x448] sm:$0xff]
      %v316 = vld [vmem:[%s169 + $0x450] sm:$0xff]
      %v317 = vld [vmem:[%s169 + $0x458] sm:$0xff]
      %v318 = vld [vmem:[%s169 + $0x460] sm:$0xff]
      %v319 = vld [vmem:[%s169 + $0x468] sm:$0xff]
      %v320 = vld [vmem:[%s169 + $0x470] sm:$0xff]
      %v321 = vld [vmem:[%s169 + $0x478] sm:$0xff]
      %v322 = vld [vmem:[%s169 + $0x480] sm:$0xff]
      %v323 = vld [vmem:[%s169 + $0x488] sm:$0xff]
      %v324 = vld [vmem:[%s169 + $0x490] sm:$0xff]
      %v325 = vld [vmem:[%s169 + $0x498] sm:$0xff]
      %v326 = vld [vmem:[%s169 + $0x4a0] sm:$0xff]
      %v327 = vld [vmem:[%s169 + $0x4a8] sm:$0xff]
      %v328 = vld [vmem:[%s169 + $0x4b0] sm:$0xff]
      %v329 = vld [vmem:[%s169 + $0x4b8] sm:$0xff]
      %v330 = vld [vmem:[%s169 + $0x4c0] sm:$0xff]
      %v331 = vld [vmem:[%s169 + $0x4c8] sm:$0xff]
      %v332 = vld [vmem:[%s169 + $0x4d0] sm:$0xff]
      %v333 = vld [vmem:[%s169 + $0x4d8] sm:$0xff]
      %v334 = vld [vmem:[%s169 + $0x4e0] sm:$0xff]
      %v335 = vld [vmem:[%s169 + $0x4e8] sm:$0xff]
      %v336 = vld [vmem:[%s169 + $0x4f0] sm:$0xff]
      %v337 = vld [vmem:[%s169 + $0x4f8] sm:$0xff]
      %v338 = vld [vmem:[%s169 + $0x500] sm:$0xff]
      %v339 = vld [vmem:[%s169 + $0x508] sm:$0xff]
      %v340 = vld [vmem:[%s169 + $0x510] sm:$0xff]
      %v341 = vld [vmem:[%s169 + $0x518] sm:$0xff]
      %v342 = vld [vmem:[%s169 + $0x520] sm:$0xff]
      %v343 = vld [vmem:[%s169 + $0x528] sm:$0xff]
      %v344 = vld [vmem:[%s169 + $0x530] sm:$0xff]
      %v345 = vld [vmem:[%s169 + $0x538] sm:$0xff]
      %v346 = vld [vmem:[%s169 + $0x540] sm:$0xff]
      %v347 = vld [vmem:[%s1] sm:$0xf]
      %v348 = vld [vmem:[%s1 + $0x4] sm:$0xf]
      %v349 = vld [vmem:[%s1 + $0x8] sm:$0xf]
      %v350 = vld [vmem:[%s1 + $0xc] sm:$0xf]
      %v351 = vld [vmem:[%s1 + $0x10] sm:$0xf]
      %v352 = vld [vmem:[%s1 + $0x14] sm:$0xf]
      %v353 = vld [vmem:[%s1 + $0x18] sm:$0xf]
      %v354 = vld [vmem:[%s1 + $0x1c] sm:$0xf]
      %v355 = vld [vmem:[%s1 + $0x20] sm:$0xf]
      %v356 = vld [vmem:[%s1 + $0x24] sm:$0xf]
      %v357 = vld [vmem:[%s1 + $0x28] sm:$0xf]
      %v358 = vld [vmem:[%s1 + $0x2c] sm:$0xf]
      %v359 = vld [vmem:[%s1 + $0x30] sm:$0xf]
      %v360 = vld [vmem:[%s1 + $0x34] sm:$0xf]
      %v361 = vld [vmem:[%s1 + $0x38] sm:$0xf]
      %v362 = vld [vmem:[%s1 + $0x3c] sm:$0xf]
      %v363 = vld [vmem:[%s1 + $0x40] sm:$0xf]
      %v364 = vld [vmem:[%s1 + $0x44] sm:$0xf]
      %v365 = vld [vmem:[%s1 + $0x48] sm:$0xf]
      %v366 = vld [vmem:[%s1 + $0x4c] sm:$0xf]
      %v367 = vld [vmem:[%s1 + $0x50] sm:$0xf]
      %v368 = vld [vmem:[%s1 + $0x54] sm:$0xf]
      %v369 = vld [vmem:[%s1 + $0x58] sm:$0xf]
      %v370 = vld [vmem:[%s1 + $0x5c] sm:$0xf]
      %v371 = vld [vmem:[%s1 + $0x60] sm:$0x3]
      %v372 = vld [vmem:[%s2] sm:$0x1]
      %v374 = vlaneseq
      %v375 = vshrl.u32 %v374, 7
      %v376 = vsub.s32 0, %v375
      %v377 = vrot.slane %v372, %v376
      %v548 = vunpack.c.l.b16 %v178
      %v549 = vunpack.c.h.b16 %v178
      %v550 = vunpack.c.l.b16 %v179
      %v551 = vunpack.c.h.b16 %v179
      %v552 = vunpack.c.l.b16 %v180
      %v553 = vunpack.c.h.b16 %v180
      %v554 = vunpack.c.l.b16 %v181
      %v555 = vunpack.c.h.b16 %v181
      %v556 = vunpack.c.l.b16 %v182
      %v557 = vunpack.c.h.b16 %v182
      %v558 = vunpack.c.l.b16 %v183
      %v559 = vunpack.c.h.b16 %v183
      %v560 = vunpack.c.l.b16 %v184
      %v561 = vunpack.c.h.b16 %v184
      %v562 = vunpack.c.l.b16 %v185
      %v563 = vunpack.c.h.b16 %v185
      %v564 = vunpack.c.l.b16 %v186
      %v565 = vunpack.c.h.b16 %v186
      %v566 = vunpack.c.l.b16 %v187
      %v567 = vunpack.c.h.b16 %v187
      %v568 = vunpack.c.l.b16 %v188
      %v569 = vunpack.c.h.b16 %v188
      %v570 = vunpack.c.l.b16 %v189
      %v571 = vunpack.c.h.b16 %v189
      %v572 = vunpack.c.l.b16 %v190
      %v573 = vunpack.c.h.b16 %v190
      %v574 = vunpack.c.l.b16 %v191
      %v575 = vunpack.c.h.b16 %v191
      %v576 = vunpack.c.l.b16 %v192
      %v577 = vunpack.c.h.b16 %v192
      %v578 = vunpack.c.l.b16 %v193
      %v579 = vunpack.c.h.b16 %v193
      %v580 = vunpack.c.l.b16 %v194
      %v581 = vunpack.c.h.b16 %v194
      %v582 = vunpack.c.l.b16 %v195
      %v583 = vunpack.c.h.b16 %v195
      %v584 = vunpack.c.l.b16 %v196
      %v585 = vunpack.c.h.b16 %v196
      %v586 = vunpack.c.l.b16 %v197
      %v587 = vunpack.c.h.b16 %v197
      %v588 = vunpack.c.l.b16 %v198
      %v589 = vunpack.c.h.b16 %v198
      %v590 = vunpack.c.l.b16 %v199
      %v591 = vunpack.c.h.b16 %v199
      %v592 = vunpack.c.l.b16 %v200
      %v593 = vunpack.c.h.b16 %v200
      %v594 = vunpack.c.l.b16 %v201
      %v595 = vunpack.c.h.b16 %v201
      %v596 = vunpack.c.l.b16 %v202
      %v597 = vunpack.c.h.b16 %v202
      %v598 = vunpack.c.l.b16 %v203
      %v599 = vunpack.c.h.b16 %v203
      %v600 = vunpack.c.l.b16 %v204
      %v601 = vunpack.c.h.b16 %v204
      %v602 = vunpack.c.l.b16 %v205
      %v603 = vunpack.c.h.b16 %v205
      %v604 = vunpack.c.l.b16 %v206
      %v605 = vunpack.c.h.b16 %v206
      %v606 = vunpack.c.l.b16 %v207
      %v607 = vunpack.c.h.b16 %v207
      %v608 = vunpack.c.l.b16 %v208
      %v609 = vunpack.c.h.b16 %v208
      %v610 = vunpack.c.l.b16 %v209
      %v611 = vunpack.c.h.b16 %v209
      %v612 = vunpack.c.l.b16 %v210
      %v613 = vunpack.c.h.b16 %v210
      %v614 = vunpack.c.l.b16 %v211
      %v615 = vunpack.c.h.b16 %v211
      %v616 = vunpack.c.l.b16 %v212
      %v617 = vunpack.c.h.b16 %v212
      %v618 = vunpack.c.l.b16 %v213
      %v619 = vunpack.c.h.b16 %v213
      %v620 = vunpack.c.l.b16 %v214
      %v621 = vunpack.c.h.b16 %v214
      %v622 = vunpack.c.l.b16 %v215
      %v623 = vunpack.c.h.b16 %v215
      %v624 = vunpack.c.l.b16 %v216
      %v625 = vunpack.c.h.b16 %v216
      %v626 = vunpack.c.l.b16 %v217
      %v627 = vunpack.c.h.b16 %v217
      %v628 = vunpack.c.l.b16 %v218
      %v629 = vunpack.c.h.b16 %v218
      %v630 = vunpack.c.l.b16 %v219
      %v631 = vunpack.c.h.b16 %v219
      %v632 = vunpack.c.l.b16 %v220
      %v633 = vunpack.c.h.b16 %v220
      %v634 = vunpack.c.l.b16 %v221
      %v635 = vunpack.c.h.b16 %v221
      %v636 = vunpack.c.l.b16 %v222
      %v637 = vunpack.c.h.b16 %v222
      %v638 = vunpack.c.l.b16 %v223
      %v639 = vunpack.c.h.b16 %v223
      %v640 = vunpack.c.l.b16 %v224
      %v641 = vunpack.c.h.b16 %v224
      %v642 = vunpack.c.l.b16 %v225
      %v643 = vunpack.c.h.b16 %v225
      %v644 = vunpack.c.l.b16 %v226
      %v645 = vunpack.c.h.b16 %v226
      %v646 = vunpack.c.l.b16 %v227
      %v647 = vunpack.c.h.b16 %v227
      %v648 = vunpack.c.l.b16 %v228
      %v649 = vunpack.c.h.b16 %v228
      %v650 = vunpack.c.l.b16 %v229
      %v651 = vunpack.c.h.b16 %v229
      %v652 = vunpack.c.l.b16 %v230
      %v653 = vunpack.c.h.b16 %v230
      %v654 = vunpack.c.l.b16 %v231
      %v655 = vunpack.c.h.b16 %v231
      %v656 = vunpack.c.l.b16 %v232
      %v657 = vunpack.c.h.b16 %v232
      %v658 = vunpack.c.l.b16 %v233
      %v659 = vunpack.c.h.b16 %v233
      %v660 = vunpack.c.l.b16 %v234
      %v661 = vunpack.c.h.b16 %v234
      %v662 = vunpack.c.l.b16 %v235
      %v663 = vunpack.c.h.b16 %v235
      %v664 = vunpack.c.l.b16 %v236
      %v665 = vunpack.c.h.b16 %v236
      %v666 = vunpack.c.l.b16 %v237
      %v667 = vunpack.c.h.b16 %v237
      %v668 = vunpack.c.l.b16 %v238
      %v669 = vunpack.c.h.b16 %v238
      %v670 = vunpack.c.l.b16 %v239
      %v671 = vunpack.c.h.b16 %v239
      %v672 = vunpack.c.l.b16 %v240
      %v673 = vunpack.c.h.b16 %v240
      %v674 = vunpack.c.l.b16 %v241
      %v675 = vunpack.c.h.b16 %v241
      %v676 = vunpack.c.l.b16 %v242
      %v677 = vunpack.c.h.b16 %v242
      %v678 = vunpack.c.l.b16 %v243
      %v679 = vunpack.c.h.b16 %v243
      %v680 = vunpack.c.l.b16 %v244
      %v681 = vunpack.c.h.b16 %v244
      %v682 = vunpack.c.l.b16 %v245
      %v683 = vunpack.c.h.b16 %v245
      %v684 = vunpack.c.l.b16 %v246
      %v685 = vunpack.c.h.b16 %v246
      %v686 = vunpack.c.l.b16 %v247
      %v687 = vunpack.c.h.b16 %v247
      %v688 = vunpack.c.l.b16 %v248
      %v689 = vunpack.c.h.b16 %v248
      %v690 = vunpack.c.l.b16 %v249
      %v691 = vunpack.c.h.b16 %v249
      %v692 = vunpack.c.l.b16 %v250
      %v693 = vunpack.c.h.b16 %v250
      %v694 = vunpack.c.l.b16 %v251
      %v695 = vunpack.c.h.b16 %v251
      %v696 = vunpack.c.l.b16 %v252
      %v697 = vunpack.c.h.b16 %v252
      %v698 = vunpack.c.l.b16 %v253
      %v699 = vunpack.c.h.b16 %v253
      %v700 = vunpack.c.l.b16 %v254
      %v701 = vunpack.c.h.b16 %v254
      %v702 = vunpack.c.l.b16 %v255
      %v703 = vunpack.c.h.b16 %v255
      %v704 = vunpack.c.l.b16 %v256
      %v705 = vunpack.c.h.b16 %v256
      %v706 = vunpack.c.l.b16 %v257
      %v707 = vunpack.c.h.b16 %v257
      %v708 = vunpack.c.l.b16 %v258
      %v709 = vunpack.c.h.b16 %v258
      %v710 = vunpack.c.l.b16 %v259
      %v711 = vunpack.c.h.b16 %v259
      %v712 = vunpack.c.l.b16 %v260
      %v713 = vunpack.c.h.b16 %v260
      %v714 = vunpack.c.l.b16 %v261
      %v715 = vunpack.c.h.b16 %v261
      %v716 = vunpack.c.l.b16 %v262
      %v717 = vunpack.c.h.b16 %v262
      %v718 = vunpack.c.l.b16 %v263
      %v719 = vunpack.c.h.b16 %v263
      %v720 = vunpack.c.l.b16 %v264
      %v721 = vunpack.c.h.b16 %v264
      %v722 = vunpack.c.l.b16 %v265
      %v723 = vunpack.c.h.b16 %v265
      %v724 = vunpack.c.l.b16 %v266
      %v725 = vunpack.c.h.b16 %v266
      %v726 = vunpack.c.l.b16 %v267
      %v727 = vunpack.c.h.b16 %v267
      %v728 = vunpack.c.l.b16 %v268
      %v729 = vunpack.c.h.b16 %v268
      %v730 = vunpack.c.l.b16 %v269
      %v731 = vunpack.c.h.b16 %v269
      %v732 = vunpack.c.l.b16 %v270
      %v733 = vunpack.c.h.b16 %v270
      %v734 = vunpack.c.l.b16 %v271
      %v735 = vunpack.c.h.b16 %v271
      %v736 = vunpack.c.l.b16 %v272
      %v737 = vunpack.c.h.b16 %v272
      %v738 = vunpack.c.l.b16 %v273
      %v739 = vunpack.c.h.b16 %v273
      %v740 = vunpack.c.l.b16 %v274
      %v741 = vunpack.c.h.b16 %v274
      %v742 = vunpack.c.l.b16 %v275
      %v743 = vunpack.c.h.b16 %v275
      %v744 = vunpack.c.l.b16 %v276
      %v745 = vunpack.c.h.b16 %v276
      %v746 = vunpack.c.l.b16 %v277
      %v747 = vunpack.c.h.b16 %v277
      %v748 = vunpack.c.l.b16 %v278
      %v749 = vunpack.c.h.b16 %v278
      %v750 = vunpack.c.l.b16 %v279
      %v751 = vunpack.c.h.b16 %v279
      %v752 = vunpack.c.l.b16 %v280
      %v753 = vunpack.c.h.b16 %v280
      %v754 = vunpack.c.l.b16 %v281
      %v755 = vunpack.c.h.b16 %v281
      %v756 = vunpack.c.l.b16 %v282
      %v757 = vunpack.c.h.b16 %v282
      %v758 = vunpack.c.l.b16 %v283
      %v759 = vunpack.c.h.b16 %v283
      %v760 = vunpack.c.l.b16 %v284
      %v761 = vunpack.c.h.b16 %v284
      %v762 = vunpack.c.l.b16 %v285
      %v763 = vunpack.c.h.b16 %v285
      %v764 = vunpack.c.l.b16 %v286
      %v765 = vunpack.c.h.b16 %v286
      %v766 = vunpack.c.l.b16 %v287
      %v767 = vunpack.c.h.b16 %v287
      %v768 = vunpack.c.l.b16 %v288
      %v769 = vunpack.c.h.b16 %v288
      %v770 = vunpack.c.l.b16 %v289
      %v771 = vunpack.c.h.b16 %v289
      %v772 = vunpack.c.l.b16 %v290
      %v773 = vunpack.c.h.b16 %v290
      %v774 = vunpack.c.l.b16 %v291
      %v775 = vunpack.c.h.b16 %v291
      %v776 = vunpack.c.l.b16 %v292
      %v777 = vunpack.c.h.b16 %v292
      %v778 = vunpack.c.l.b16 %v293
      %v779 = vunpack.c.h.b16 %v293
      %v780 = vunpack.c.l.b16 %v294
      %v781 = vunpack.c.h.b16 %v294
      %v782 = vunpack.c.l.b16 %v295
      %v783 = vunpack.c.h.b16 %v295
      %v784 = vunpack.c.l.b16 %v296
      %v785 = vunpack.c.h.b16 %v296
      %v786 = vunpack.c.l.b16 %v297
      %v787 = vunpack.c.h.b16 %v297
      %v788 = vunpack.c.l.b16 %v298
      %v789 = vunpack.c.h.b16 %v298
      %v790 = vunpack.c.l.b16 %v299
      %v791 = vunpack.c.h.b16 %v299
      %v792 = vunpack.c.l.b16 %v300
      %v793 = vunpack.c.h.b16 %v300
      %v794 = vunpack.c.l.b16 %v301
      %v795 = vunpack.c.h.b16 %v301
      %v796 = vunpack.c.l.b16 %v302
      %v797 = vunpack.c.h.b16 %v302
      %v798 = vunpack.c.l.b16 %v303
      %v799 = vunpack.c.h.b16 %v303
      %v800 = vunpack.c.l.b16 %v304
      %v801 = vunpack.c.h.b16 %v304
      %v802 = vunpack.c.l.b16 %v305
      %v803 = vunpack.c.h.b16 %v305
      %v804 = vunpack.c.l.b16 %v306
      %v805 = vunpack.c.h.b16 %v306
      %v806 = vunpack.c.l.b16 %v307
      %v807 = vunpack.c.h.b16 %v307
      %v808 = vunpack.c.l.b16 %v308
      %v809 = vunpack.c.h.b16 %v308
      %v810 = vunpack.c.l.b16 %v309
      %v811 = vunpack.c.h.b16 %v309
      %v812 = vunpack.c.l.b16 %v310
      %v813 = vunpack.c.h.b16 %v310
      %v814 = vunpack.c.l.b16 %v311
      %v815 = vunpack.c.h.b16 %v311
      %v816 = vunpack.c.l.b16 %v312
      %v817 = vunpack.c.h.b16 %v312
      %v818 = vunpack.c.l.b16 %v313
      %v819 = vunpack.c.h.b16 %v313
      %v820 = vunpack.c.l.b16 %v314
      %v821 = vunpack.c.h.b16 %v314
      %v822 = vunpack.c.l.b16 %v315
      %v823 = vunpack.c.h.b16 %v315
      %v824 = vunpack.c.l.b16 %v316
      %v825 = vunpack.c.h.b16 %v316
      %v826 = vunpack.c.l.b16 %v317
      %v827 = vunpack.c.h.b16 %v317
      %v828 = vunpack.c.l.b16 %v318
      %v829 = vunpack.c.h.b16 %v318
      %v830 = vunpack.c.l.b16 %v319
      %v831 = vunpack.c.h.b16 %v319
      %v832 = vunpack.c.l.b16 %v320
      %v833 = vunpack.c.h.b16 %v320
      %v834 = vunpack.c.l.b16 %v321
      %v835 = vunpack.c.h.b16 %v321
      %v836 = vunpack.c.l.b16 %v322
      %v837 = vunpack.c.h.b16 %v322
      %v838 = vunpack.c.l.b16 %v323
      %v839 = vunpack.c.h.b16 %v323
      %v840 = vunpack.c.l.b16 %v324
      %v841 = vunpack.c.h.b16 %v324
      %v842 = vunpack.c.l.b16 %v325
      %v843 = vunpack.c.h.b16 %v325
      %v844 = vunpack.c.l.b16 %v326
      %v845 = vunpack.c.h.b16 %v326
      %v846 = vunpack.c.l.b16 %v327
      %v847 = vunpack.c.h.b16 %v327
      %v848 = vunpack.c.l.b16 %v328
      %v849 = vunpack.c.h.b16 %v328
      %v850 = vunpack.c.l.b16 %v329
      %v851 = vunpack.c.h.b16 %v329
      %v852 = vunpack.c.l.b16 %v330
      %v853 = vunpack.c.h.b16 %v330
      %v854 = vunpack.c.l.b16 %v331
      %v855 = vunpack.c.h.b16 %v331
      %v856 = vunpack.c.l.b16 %v332
      %v857 = vunpack.c.h.b16 %v332
      %v858 = vunpack.c.l.b16 %v333
      %v859 = vunpack.c.h.b16 %v333
      %v860 = vunpack.c.l.b16 %v334
      %v861 = vunpack.c.h.b16 %v334
      %v862 = vunpack.c.l.b16 %v335
      %v863 = vunpack.c.h.b16 %v335
      %v864 = vunpack.c.l.b16 %v336
      %v865 = vunpack.c.h.b16 %v336
      %v866 = vunpack.c.l.b16 %v337
      %v867 = vunpack.c.h.b16 %v337
      %v868 = vunpack.c.l.b16 %v338
      %v869 = vunpack.c.h.b16 %v338
      %v870 = vunpack.c.l.b16 %v339
      %v871 = vunpack.c.h.b16 %v339
      %v872 = vunpack.c.l.b16 %v340
      %v873 = vunpack.c.h.b16 %v340
      %v874 = vunpack.c.l.b16 %v341
      %v875 = vunpack.c.h.b16 %v341
      %v876 = vunpack.c.l.b16 %v342
      %v877 = vunpack.c.h.b16 %v342
      %v878 = vunpack.c.l.b16 %v343
      %v879 = vunpack.c.h.b16 %v343
      %v880 = vunpack.c.l.b16 %v344
      %v881 = vunpack.c.h.b16 %v344
      %v882 = vunpack.c.l.b16 %v345
      %v883 = vunpack.c.h.b16 %v345
      %v884 = vunpack.c.l.b16 %v346
      %v885 = vunpack.c.h.b16 %v346
      %v886 = vpack.c.b16 %v550, %v548
      %v887 = vpack.c.b16 %v551, %v549
      %v888 = vpack.c.b16 %v554, %v552
      %v889 = vpack.c.b16 %v555, %v553
      %v890 = vpack.c.b16 %v558, %v556
      %v891 = vpack.c.b16 %v559, %v557
      %v892 = vpack.c.b16 %v562, %v560
      %v893 = vpack.c.b16 %v563, %v561
      %v894 = vpack.c.b16 %v566, %v564
      %v895 = vpack.c.b16 %v567, %v565
      %v896 = vpack.c.b16 %v570, %v568
      %v897 = vpack.c.b16 %v571, %v569
      %v898 = vpack.c.b16 %v574, %v572
      %v899 = vpack.c.b16 %v575, %v573
      %v900 = vpack.c.b16 %v578, %v576
      %v901 = vpack.c.b16 %v579, %v577
      %v902 = vpack.c.b16 %v582, %v580
      %v903 = vpack.c.b16 %v583, %v581
      %v904 = vpack.c.b16 %v586, %v584
      %v905 = vpack.c.b16 %v587, %v585
      %v906 = vpack.c.b16 %v590, %v588
      %v907 = vpack.c.b16 %v591, %v589
      %v908 = vpack.c.b16 %v594, %v592
      %v909 = vpack.c.b16 %v595, %v593
      %v910 = vpack.c.b16 %v598, %v596
      %v911 = vpack.c.b16 %v599, %v597
      %v912 = vpack.c.b16 %v602, %v600
      %v913 = vpack.c.b16 %v603, %v601
      %v914 = vpack.c.b16 %v606, %v604
      %v915 = vpack.c.b16 %v607, %v605
      %v916 = vpack.c.b16 %v610, %v608
      %v917 = vpack.c.b16 %v611, %v609
      %v918 = vpack.c.b16 %v614, %v612
      %v919 = vpack.c.b16 %v615, %v613
      %v920 = vpack.c.b16 %v618, %v616
      %v921 = vpack.c.b16 %v619, %v617
      %v922 = vpack.c.b16 %v622, %v620
      %v923 = vpack.c.b16 %v623, %v621
      %v924 = vpack.c.b16 %v626, %v624
      %v925 = vpack.c.b16 %v627, %v625
      %v926 = vpack.c.b16 %v630, %v628
      %v927 = vpack.c.b16 %v631, %v629
      %v928 = vpack.c.b16 %v634, %v632
      %v929 = vpack.c.b16 %v635, %v633
      %v930 = vpack.c.b16 %v638, %v636
      %v931 = vpack.c.b16 %v639, %v637
      %v932 = vpack.c.b16 %v642, %v640
      %v933 = vpack.c.b16 %v643, %v641
      %v934 = vpack.c.b16 %v646, %v644
      %v935 = vpack.c.b16 %v647, %v645
      %v936 = vpack.c.b16 %v650, %v648
      %v937 = vpack.c.b16 %v651, %v649
      %v938 = vpack.c.b16 %v654, %v652
      %v939 = vpack.c.b16 %v655, %v653
      %v940 = vpack.c.b16 %v658, %v656
      %v941 = vpack.c.b16 %v659, %v657
      %v942 = vpack.c.b16 %v662, %v660
      %v943 = vpack.c.b16 %v663, %v661
      %v944 = vpack.c.b16 %v666, %v664
      %v945 = vpack.c.b16 %v667, %v665
      %v946 = vpack.c.b16 %v670, %v668
      %v947 = vpack.c.b16 %v671, %v669
      %v948 = vpack.c.b16 %v674, %v672
      %v949 = vpack.c.b16 %v675, %v673
      %v950 = vpack.c.b16 %v678, %v676
      %v951 = vpack.c.b16 %v679, %v677
      %v952 = vpack.c.b16 %v682, %v680
      %v953 = vpack.c.b16 %v683, %v681
      %v954 = vpack.c.b16 %v686, %v684
      %v955 = vpack.c.b16 %v687, %v685
      %v956 = vpack.c.b16 %v690, %v688
      %v957 = vpack.c.b16 %v691, %v689
      %v958 = vpack.c.b16 %v694, %v692
      %v959 = vpack.c.b16 %v695, %v693
      %v960 = vpack.c.b16 %v698, %v696
      %v961 = vpack.c.b16 %v699, %v697
      %v962 = vpack.c.b16 %v702, %v700
      %v963 = vpack.c.b16 %v703, %v701
      %v964 = vpack.c.b16 %v706, %v704
      %v965 = vpack.c.b16 %v707, %v705
      %v966 = vpack.c.b16 %v710, %v708
      %v967 = vpack.c.b16 %v711, %v709
      %v968 = vpack.c.b16 %v714, %v712
      %v969 = vpack.c.b16 %v715, %v713
      %v970 = vpack.c.b16 %v718, %v716
      %v971 = vpack.c.b16 %v719, %v717
      %v972 = vpack.c.b16 %v722, %v720
      %v973 = vpack.c.b16 %v723, %v721
      %v974 = vpack.c.b16 %v726, %v724
      %v975 = vpack.c.b16 %v727, %v725
      %v976 = vpack.c.b16 %v730, %v728
      %v977 = vpack.c.b16 %v731, %v729
      %v978 = vpack.c.b16 %v734, %v732
      %v979 = vpack.c.b16 %v735, %v733
      %v980 = vpack.c.b16 %v738, %v736
      %v981 = vpack.c.b16 %v739, %v737
      %v982 = vpack.c.b16 %v742, %v740
      %v983 = vpack.c.b16 %v743, %v741
      %v984 = vpack.c.b16 %v746, %v744
      %v985 = vpack.c.b16 %v747, %v745
      %v986 = vpack.c.b16 %v750, %v748
      %v987 = vpack.c.b16 %v751, %v749
      %v988 = vpack.c.b16 %v754, %v752
      %v989 = vpack.c.b16 %v755, %v753
      %v990 = vpack.c.b16 %v758, %v756
      %v991 = vpack.c.b16 %v759, %v757
      %v992 = vpack.c.b16 %v762, %v760
      %v993 = vpack.c.b16 %v763, %v761
      %v994 = vpack.c.b16 %v766, %v764
      %v995 = vpack.c.b16 %v767, %v765
      %v996 = vpack.c.b16 %v770, %v768
      %v997 = vpack.c.b16 %v771, %v769
      %v998 = vpack.c.b16 %v774, %v772
      %v999 = vpack.c.b16 %v775, %v773
      %v1000 = vpack.c.b16 %v778, %v776
      %v1001 = vpack.c.b16 %v779, %v777
      %v1002 = vpack.c.b16 %v782, %v780
      %v1003 = vpack.c.b16 %v783, %v781
      %v1004 = vpack.c.b16 %v786, %v784
      %v1005 = vpack.c.b16 %v787, %v785
      %v1006 = vpack.c.b16 %v790, %v788
      %v1007 = vpack.c.b16 %v791, %v789
      %v1008 = vpack.c.b16 %v794, %v792
      %v1009 = vpack.c.b16 %v795, %v793
      %v1010 = vpack.c.b16 %v798, %v796
      %v1011 = vpack.c.b16 %v799, %v797
      %v1012 = vpack.c.b16 %v802, %v800
      %v1013 = vpack.c.b16 %v803, %v801
      %v1014 = vpack.c.b16 %v806, %v804
      %v1015 = vpack.c.b16 %v807, %v805
      %v1016 = vpack.c.b16 %v810, %v808
      %v1017 = vpack.c.b16 %v811, %v809
      %v1018 = vpack.c.b16 %v814, %v812
      %v1019 = vpack.c.b16 %v815, %v813
      %v1020 = vpack.c.b16 %v818, %v816
      %v1021 = vpack.c.b16 %v819, %v817
      %v1022 = vpack.c.b16 %v822, %v820
      %v1023 = vpack.c.b16 %v823, %v821
      %v1024 = vpack.c.b16 %v826, %v824
      %v1025 = vpack.c.b16 %v827, %v825
      %v1026 = vpack.c.b16 %v830, %v828
      %v1027 = vpack.c.b16 %v831, %v829
      %v1028 = vpack.c.b16 %v834, %v832
      %v1029 = vpack.c.b16 %v835, %v833
      %v1030 = vpack.c.b16 %v838, %v836
      %v1031 = vpack.c.b16 %v839, %v837
      %v1032 = vpack.c.b16 %v842, %v840
      %v1033 = vpack.c.b16 %v843, %v841
      %v1034 = vpack.c.b16 %v846, %v844
      %v1035 = vpack.c.b16 %v847, %v845
      %v1036 = vpack.c.b16 %v850, %v848
      %v1037 = vpack.c.b16 %v851, %v849
      %v1038 = vpack.c.b16 %v854, %v852
      %v1039 = vpack.c.b16 %v855, %v853
      %v1040 = vpack.c.b16 %v858, %v856
      %v1041 = vpack.c.b16 %v859, %v857
      %v1042 = vpack.c.b16 %v862, %v860
      %v1043 = vpack.c.b16 %v863, %v861
      %v1044 = vpack.c.b16 %v866, %v864
      %v1045 = vpack.c.b16 %v867, %v865
      %v1046 = vpack.c.b16 %v870, %v868
      %v1047 = vpack.c.b16 %v871, %v869
      %v1048 = vpack.c.b16 %v874, %v872
      %v1049 = vpack.c.b16 %v875, %v873
      %v1050 = vpack.c.b16 %v878, %v876
      %v1051 = vpack.c.b16 %v879, %v877
      %v1052 = vpack.c.b16 %v882, %v880
      %v1053 = vpack.c.b16 %v883, %v881
      %v1054 = vpack.c.b16 %v884, %v884
      %v1055 = vpack.c.b16 %v885, %v885
      %v1166 = vunpack.c.l.b16 %v347
      %v1167 = vunpack.c.l.b16 %v348
      %v1168 = vunpack.c.l.b16 %v349
      %v1169 = vunpack.c.l.b16 %v350
      %v1170 = vunpack.c.l.b16 %v351
      %v1171 = vunpack.c.l.b16 %v352
      %v1172 = vunpack.c.l.b16 %v353
      %v1173 = vunpack.c.l.b16 %v354
      %v1174 = vunpack.c.l.b16 %v355
      %v1175 = vunpack.c.l.b16 %v356
      %v1176 = vunpack.c.l.b16 %v357
      %v1177 = vunpack.c.l.b16 %v358
      %v1178 = vunpack.c.l.b16 %v359
      %v1179 = vunpack.c.l.b16 %v360
      %v1180 = vunpack.c.l.b16 %v361
      %v1181 = vunpack.c.l.b16 %v362
      %v1182 = vunpack.c.l.b16 %v363
      %v1183 = vunpack.c.l.b16 %v364
      %v1184 = vunpack.c.l.b16 %v365
      %v1185 = vunpack.c.l.b16 %v366
      %v1186 = vunpack.c.l.b16 %v367
      %v1187 = vunpack.c.l.b16 %v368
      %v1188 = vunpack.c.l.b16 %v369
      %v1189 = vunpack.c.l.b16 %v370
      %v1190 = vunpack.c.l.b16 %v371
      %v1191 = vpack.c.b16 %v1167, %v1166
      %v1192 = vpack.c.b16 %v1169, %v1168
      %v1193 = vpack.c.b16 %v1171, %v1170
      %v1194 = vpack.c.b16 %v1173, %v1172
      %v1195 = vpack.c.b16 %v1175, %v1174
      %v1196 = vpack.c.b16 %v1177, %v1176
      %v1197 = vpack.c.b16 %v1179, %v1178
      %v1198 = vpack.c.b16 %v1181, %v1180
      %v1199 = vpack.c.b16 %v1183, %v1182
      %v1200 = vpack.c.b16 %v1185, %v1184
      %v1201 = vpack.c.b16 %v1187, %v1186
      %v1202 = vpack.c.b16 %v1189, %v1188
      %v1203 = vpack.c.b16 %v1190, %v1190
      %vm1216 = vcmask 556032
      %v1218 = vsel %vm1216, %v887, 0
      %v1221 = vsel %vm1216, %v889, 0
      %v1224 = vsel %vm1216, %v891, 0
      %v1227 = vsel %vm1216, %v893, 0
      %v1230 = vsel %vm1216, %v895, 0
      %v1233 = vsel %vm1216, %v897, 0
      %v1236 = vsel %vm1216, %v899, 0
      %v1239 = vsel %vm1216, %v901, 0
      %v1242 = vsel %vm1216, %v903, 0
      %v1245 = vsel %vm1216, %v905, 0
      %v1248 = vsel %vm1216, %v907, 0
      %v1251 = vsel %vm1216, %v909, 0
      %v1254 = vsel %vm1216, %v911, 0
      %v1257 = vsel %vm1216, %v913, 0
      %v1260 = vsel %vm1216, %v915, 0
      %v1263 = vsel %vm1216, %v917, 0
      %v1266 = vsel %vm1216, %v919, 0
      %v1269 = vsel %vm1216, %v921, 0
      %v1272 = vsel %vm1216, %v923, 0
      %v1275 = vsel %vm1216, %v925, 0
      %v1278 = vsel %vm1216, %v927, 0
      %v1281 = vsel %vm1216, %v929, 0
      %v1284 = vsel %vm1216, %v931, 0
      %v1287 = vsel %vm1216, %v933, 0
      %v1290 = vsel %vm1216, %v935, 0
      %v1293 = vsel %vm1216, %v937, 0
      %v1296 = vsel %vm1216, %v939, 0
      %v1299 = vsel %vm1216, %v941, 0
      %v1302 = vsel %vm1216, %v943, 0
      %v1305 = vsel %vm1216, %v945, 0
      %v1308 = vsel %vm1216, %v947, 0
      %v1311 = vsel %vm1216, %v949, 0
      %v1314 = vsel %vm1216, %v951, 0
      %v1317 = vsel %vm1216, %v953, 0
      %v1320 = vsel %vm1216, %v955, 0
      %v1323 = vsel %vm1216, %v957, 0
      %v1326 = vsel %vm1216, %v959, 0
      %v1329 = vsel %vm1216, %v961, 0
      %v1332 = vsel %vm1216, %v963, 0
      %v1335 = vsel %vm1216, %v965, 0
      %v1338 = vsel %vm1216, %v967, 0
      %v1341 = vsel %vm1216, %v969, 0
      %v1344 = vsel %vm1216, %v971, 0
      %v1347 = vsel %vm1216, %v973, 0
      %v1350 = vsel %vm1216, %v975, 0
      %v1353 = vsel %vm1216, %v977, 0
      %v1356 = vsel %vm1216, %v979, 0
      %v1359 = vsel %vm1216, %v981, 0
      %v1362 = vsel %vm1216, %v983, 0
      %v1365 = vsel %vm1216, %v985, 0
      %v1368 = vsel %vm1216, %v987, 0
      %v1371 = vsel %vm1216, %v989, 0
      %v1374 = vsel %vm1216, %v991, 0
      %v1377 = vsel %vm1216, %v993, 0
      %v1380 = vsel %vm1216, %v995, 0
      %v1383 = vsel %vm1216, %v997, 0
      %v1386 = vsel %vm1216, %v999, 0
      %v1389 = vsel %vm1216, %v1001, 0
      %v1392 = vsel %vm1216, %v1003, 0
      %v1395 = vsel %vm1216, %v1005, 0
      %v1398 = vsel %vm1216, %v1007, 0
      %v1401 = vsel %vm1216, %v1009, 0
      %v1404 = vsel %vm1216, %v1011, 0
      %v1407 = vsel %vm1216, %v1013, 0
      %v1410 = vsel %vm1216, %v1015, 0
      %v1413 = vsel %vm1216, %v1017, 0
      %v1416 = vsel %vm1216, %v1019, 0
      %v1419 = vsel %vm1216, %v1021, 0
      %v1422 = vsel %vm1216, %v1023, 0
      %v1425 = vsel %vm1216, %v1025, 0
      %v1428 = vsel %vm1216, %v1027, 0
      %v1431 = vsel %vm1216, %v1029, 0
      %v1434 = vsel %vm1216, %v1031, 0
      %v1437 = vsel %vm1216, %v1033, 0
      %v1440 = vsel %vm1216, %v1035, 0
      %v1443 = vsel %vm1216, %v1037, 0
      %v1446 = vsel %vm1216, %v1039, 0
      %v1449 = vsel %vm1216, %v1041, 0
      %v1452 = vsel %vm1216, %v1043, 0
      %v1455 = vsel %vm1216, %v1045, 0
      %v1458 = vsel %vm1216, %v1047, 0
      %v1461 = vsel %vm1216, %v1049, 0
      %v1464 = vsel %vm1216, %v1051, 0
      %v1467 = vsel %vm1216, %v1053, 0
      %v1470 = vsel %vm1216, %v1055, 0
      %vm1472 = vcmask 1041408
      %v1474 = vsel %vm1472, %v1203, 0
      %1476 = vmatprep.subr.bf16.mxu0 0
      %1477 = vmatpush1.bf16.msra.mxu0 %v1191
      %1478 = vmatprep.subr.bf16.mxu0 0
      %1479 = vmatpush1.bf16.msra.mxu0 %v1192
      %1480 = vmatprep.subr.bf16.mxu0 0
      %1481 = vmatpush1.bf16.msra.mxu0 %v1193
      %1482 = vmatprep.subr.bf16.mxu0 0
      %1483 = vmatpush1.bf16.msra.mxu0 %v1194
      %1484 = vmatprep.subr.bf16.mxu0 0
      %1485 = vmatpush1.bf16.msra.mxu0 %v1195
      %1486 = vmatprep.subr.bf16.mxu0 0
      %1487 = vmatpush1.bf16.msra.mxu0 %v1196
      %1488 = vmatprep.subr.bf16.mxu0 0
      %1489 = vmatpush1.bf16.msra.mxu0 %v1197
      %1490 = vmatprep.subr.bf16.mxu0 0
      %1491 = vmatpush1.bf16.msra.mxu0 %v1198
      %1492 = vmatprep.subr.bf16.mxu0 0
      %1493 = vmatpush1.bf16.msra.mxu0 %v1199
      %1494 = vmatprep.subr.bf16.mxu0 0
      %1495 = vmatpush1.bf16.msra.mxu0 %v1200
      %1496 = vmatprep.subr.bf16.mxu0 0
      %1497 = vmatpush1.bf16.msra.mxu0 %v1201
      %1498 = vmatprep.subr.bf16.mxu0 0
      %1499 = vmatpush1.bf16.msra.mxu0 %v1202
      %1500 = vmatprep.subr.bf16.mxu0 0
      %1501 = vmatpush1.bf16.msra.mxu0 %v1474
      %1502 = vmatprep.subr.bf16.mxu0 0
      %1503 = vmatpush1.bf16.msra.mxu0 0
      %1504 = vmatprep.subr.bf16.mxu0 0
      %1505 = vmatpush1.bf16.msra.mxu0 0
      %1506 = vmatprep.subr.bf16.mxu0 0
      %1507 = vmatpush1.bf16.msra.mxu0 0
      %1508 = vmatprep.mubr.bf16.mxu0 %v1218
      %1509 = vmatmul.mubr.bf16.gmra.mrb[0].mxu0 %v886
      %v1510 = vpop.f32.mrb[0].mxu0
      %v1511 = vadd.f32 %v377, %v1510
      %v1512 = vpop.f32.mrb[0].mxu0
      %v1513 = vpop.f32.mrb[0].mxu0
      %v1514 = vadd.f32 %v377, %v1513
      %v1515 = vpop.f32.mrb[0].mxu0
      %1516 = vmatprep.mubr.bf16.mxu0 %v1221
      %1517 = vmatmul.mubr.bf16.gmra.mrb[0].mxu0 %v888
      %v1518 = vpop.f32.mrb[0].mxu0
      %v1519 = vadd.f32 %v377, %v1518
      %v1520 = vpop.f32.mrb[0].mxu0
      %v1521 = vpop.f32.mrb[0].mxu0
      %v1522 = vadd.f32 %v377, %v1521
      %v1523 = vpop.f32.mrb[0].mxu0
      %1524 = vmatprep.mubr.bf16.mxu0 %v1224
      %1525 = vmatmul.mubr.bf16.gmra.mrb[0].mxu0 %v890
      %v1526 = vpop.f32.mrb[0].mxu0
      %v1527 = vadd.f32 %v377, %v1526
      %v1528 = vpop.f32.mrb[0].mxu0
      %v1529 = vpop.f32.mrb[0].mxu0
      %v1530 = vadd.f32 %v377, %v1529
      %v1531 = vpop.f32.mrb[0].mxu0
      %1532 = vmatprep.mubr.bf16.mxu0 %v1227
      %1533 = vmatmul.mubr.bf16.gmra.mrb[0].mxu0 %v892
      %v1534 = vpop.f32.mrb[0].mxu0
      %v1535 = vadd.f32 %v377, %v1534
      %v1536 = vpop.f32.mrb[0].mxu0
      %v1537 = vpop.f32.mrb[0].mxu0
      %v1538 = vadd.f32 %v377, %v1537
      %v1539 = vpop.f32.mrb[0].mxu0
      %1540 = vmatprep.mubr.bf16.mxu0 %v1230
      %1541 = vmatmul.mubr.bf16.gmra.mrb[0].mxu0 %v894
      %v1542 = vpop.f32.mrb[0].mxu0
      %v1543 = vadd.f32 %v377, %v1542
      %v1544 = vpop.f32.mrb[0].mxu0
      %v1545 = vpop.f32.mrb[0].mxu0
      %v1546 = vadd.f32 %v377, %v1545
      %v1547 = vpop.f32.mrb[0].mxu0
      %1548 = vmatprep.mubr.bf16.mxu0 %v1233
      %1549 = vmatmul.mubr.bf16.gmra.mrb[0].mxu0 %v896
      %v1550 = vpop.f32.mrb[0].mxu0
      %v1551 = vadd.f32 %v377, %v1550
      %v1552 = vpop.f32.mrb[0].mxu0
      %v1553 = vpop.f32.mrb[0].mxu0
      %v1554 = vadd.f32 %v377, %v1553
      %v1555 = vpop.f32.mrb[0].mxu0
      %1556 = vmatprep.mubr.bf16.mxu0 %v1236
      %1557 = vmatmul.mubr.bf16.gmra.mrb[0].mxu0 %v898
      %v1558 = vpop.f32.mrb[0].mxu0
      %v1559 = vadd.f32 %v377, %v1558
      %v1560 = vpop.f32.mrb[0].mxu0
      %v1561 = vpop.f32.mrb[0].mxu0
      %v1562 = vadd.f32 %v377, %v1561
      %v1563 = vpop.f32.mrb[0].mxu0
      %1564 = vmatprep.mubr.bf16.mxu0 %v1239
      %1565 = vmatmul.mubr.bf16.gmra.mrb[0].mxu0 %v900
      %v1566 = vpop.f32.mrb[0].mxu0
      %v1567 = vadd.f32 %v377, %v1566
      %v1568 = vpop.f32.mrb[0].mxu0
      %v1569 = vpop.f32.mrb[0].mxu0
      %v1570 = vadd.f32 %v377, %v1569
      %v1571 = vpop.f32.mrb[0].mxu0
      %1572 = vmatprep.mubr.bf16.mxu0 %v1242
      %1573 = vmatmul.mubr.bf16.gmra.mrb[0].mxu0 %v902
      %v1574 = vpop.f32.mrb[0].mxu0
      %v1575 = vadd.f32 %v377, %v1574
      %v1576 = vpop.f32.mrb[0].mxu0
      %v1577 = vpop.f32.mrb[0].mxu0
      %v1578 = vadd.f32 %v377, %v1577
      %v1579 = vpop.f32.mrb[0].mxu0
      %1580 = vmatprep.mubr.bf16.mxu0 %v1245
      %1581 = vmatmul.mubr.bf16.gmra.mrb[0].mxu0 %v904
      %v1582 = vpop.f32.mrb[0].mxu0
      %v1583 = vadd.f32 %v377, %v1582
      %v1584 = vpop.f32.mrb[0].mxu0
      %v1585 = vpop.f32.mrb[0].mxu0
      %v1586 = vadd.f32 %v377, %v1585
      %v1587 = vpop.f32.mrb[0].mxu0
      %1588 = vmatprep.mubr.bf16.mxu0 %v1248
      %1589 = vmatmul.mubr.bf16.gmra.mrb[0].mxu0 %v906
      %v1590 = vpop.f32.mrb[0].mxu0
      %v1591 = vadd.f32 %v377, %v1590
      %v1592 = vpop.f32.mrb[0].mxu0
      %v1593 = vpop.f32.mrb[0].mxu0
      %v1594 = vadd.f32 %v377, %v1593
      %v1595 = vpop.f32.mrb[0].mxu0
      %1596 = vmatprep.mubr.bf16.mxu0 %v1251
      %1597 = vmatmul.mubr.bf16.gmra.mrb[0].mxu0 %v908
      %v1598 = vpop.f32.mrb[0].mxu0
      %v1599 = vadd.f32 %v377, %v1598
      %v1600 = vpop.f32.mrb[0].mxu0
      %v1601 = vpop.f32.mrb[0].mxu0
      %v1602 = vadd.f32 %v377, %v1601
      %v1603 = vpop.f32.mrb[0].mxu0
      %1604 = vmatprep.mubr.bf16.mxu0 %v1254
      %1605 = vmatmul.mubr.bf16.gmra.mrb[0].mxu0 %v910
      %v1606 = vpop.f32.mrb[0].mxu0
      %v1607 = vadd.f32 %v377, %v1606
      %v1608 = vpop.f32.mrb[0].mxu0
      %v1609 = vpop.f32.mrb[0].mxu0
      %v1610 = vadd.f32 %v377, %v1609
      %v1611 = vpop.f32.mrb[0].mxu0
      %1612 = vmatprep.mubr.bf16.mxu0 %v1257
      %1613 = vmatmul.mubr.bf16.gmra.mrb[0].mxu0 %v912
      %v1614 = vpop.f32.mrb[0].mxu0
      %v1615 = vadd.f32 %v377, %v1614
      %v1616 = vpop.f32.mrb[0].mxu0
      %v1617 = vpop.f32.mrb[0].mxu0
      %v1618 = vadd.f32 %v377, %v1617
      %v1619 = vpop.f32.mrb[0].mxu0
      %1620 = vmatprep.mubr.bf16.mxu0 %v1260
      %1621 = vmatmul.mubr.bf16.gmra.mrb[0].mxu0 %v914
      %v1622 = vpop.f32.mrb[0].mxu0
      %v1623 = vadd.f32 %v377, %v1622
      %v1624 = vpop.f32.mrb[0].mxu0
      %v1625 = vpop.f32.mrb[0].mxu0
      %v1626 = vadd.f32 %v377, %v1625
      %v1627 = vpop.f32.mrb[0].mxu0
      %1628 = vmatprep.mubr.bf16.mxu0 %v1263
      %1629 = vmatmul.mubr.bf16.gmra.mrb[0].mxu0 %v916
      %v1630 = vpop.f32.mrb[0].mxu0
      %v1631 = vadd.f32 %v377, %v1630
      %v1632 = vpop.f32.mrb[0].mxu0
      %v1633 = vpop.f32.mrb[0].mxu0
      %v1634 = vadd.f32 %v377, %v1633
      %v1635 = vpop.f32.mrb[0].mxu0
      %1636 = vmatprep.mubr.bf16.mxu0 %v1266
      %1637 = vmatmul.mubr.bf16.gmra.mrb[0].mxu0 %v918
      %v1638 = vpop.f32.mrb[0].mxu0
      %v1639 = vadd.f32 %v377, %v1638
      %v1640 = vpop.f32.mrb[0].mxu0
      %v1641 = vpop.f32.mrb[0].mxu0
      %v1642 = vadd.f32 %v377, %v1641
      %v1643 = vpop.f32.mrb[0].mxu0
      %1644 = vmatprep.mubr.bf16.mxu0 %v1269
      %1645 = vmatmul.mubr.bf16.gmra.mrb[0].mxu0 %v920
      %v1646 = vpop.f32.mrb[0].mxu0
      %v1647 = vadd.f32 %v377, %v1646
      %v1648 = vpop.f32.mrb[0].mxu0
      %v1649 = vpop.f32.mrb[0].mxu0
      %v1650 = vadd.f32 %v377, %v1649
      %v1651 = vpop.f32.mrb[0].mxu0
      %1652 = vmatprep.mubr.bf16.mxu0 %v1272
      %1653 = vmatmul.mubr.bf16.gmra.mrb[0].mxu0 %v922
      %v1654 = vpop.f32.mrb[0].mxu0
      %v1655 = vadd.f32 %v377, %v1654
      %v1656 = vpop.f32.mrb[0].mxu0
      %v1657 = vpop.f32.mrb[0].mxu0
      %v1658 = vadd.f32 %v377, %v1657
      %v1659 = vpop.f32.mrb[0].mxu0
      %1660 = vmatprep.mubr.bf16.mxu0 %v1275
      %1661 = vmatmul.mubr.bf16.gmra.mrb[0].mxu0 %v924
      %v1662 = vpop.f32.mrb[0].mxu0
      %v1663 = vadd.f32 %v377, %v1662
      %v1664 = vpop.f32.mrb[0].mxu0
      %v1665 = vpop.f32.mrb[0].mxu0
      %v1666 = vadd.f32 %v377, %v1665
      %v1667 = vpop.f32.mrb[0].mxu0
      %1668 = vmatprep.mubr.bf16.mxu0 %v1278
      %1669 = vmatmul.mubr.bf16.gmra.mrb[0].mxu0 %v926
      %v1670 = vpop.f32.mrb[0].mxu0
      %v1671 = vadd.f32 %v377, %v1670
      %v1672 = vpop.f32.mrb[0].mxu0
      %v1673 = vpop.f32.mrb[0].mxu0
      %v1674 = vadd.f32 %v377, %v1673
      %v1675 = vpop.f32.mrb[0].mxu0
      %1676 = vmatprep.mubr.bf16.mxu0 %v1281
      %1677 = vmatmul.mubr.bf16.gmra.mrb[0].mxu0 %v928
      %v1678 = vpop.f32.mrb[0].mxu0
      %v1679 = vadd.f32 %v377, %v1678
      %v1680 = vpop.f32.mrb[0].mxu0
      %v1681 = vpop.f32.mrb[0].mxu0
      %v1682 = vadd.f32 %v377, %v1681
      %v1683 = vpop.f32.mrb[0].mxu0
      %1684 = vmatprep.mubr.bf16.mxu0 %v1284
      %1685 = vmatmul.mubr.bf16.gmra.mrb[0].mxu0 %v930
      %v1686 = vpop.f32.mrb[0].mxu0
      %v1687 = vadd.f32 %v377, %v1686
      %v1688 = vpop.f32.mrb[0].mxu0
      %v1689 = vpop.f32.mrb[0].mxu0
      %v1690 = vadd.f32 %v377, %v1689
      %v1691 = vpop.f32.mrb[0].mxu0
      %1692 = vmatprep.mubr.bf16.mxu0 %v1287
      %1693 = vmatmul.mubr.bf16.gmra.mrb[0].mxu0 %v932
      %v1694 = vpop.f32.mrb[0].mxu0
      %v1695 = vadd.f32 %v377, %v1694
      %v1696 = vpop.f32.mrb[0].mxu0
      %v1697 = vpop.f32.mrb[0].mxu0
      %v1698 = vadd.f32 %v377, %v1697
      %v1699 = vpop.f32.mrb[0].mxu0
      %1700 = vmatprep.mubr.bf16.mxu0 %v1290
      %1701 = vmatmul.mubr.bf16.gmra.mrb[0].mxu0 %v934
      %v1702 = vpop.f32.mrb[0].mxu0
      %v1703 = vadd.f32 %v377, %v1702
      %v1704 = vpop.f32.mrb[0].mxu0
      %v1705 = vpop.f32.mrb[0].mxu0
      %v1706 = vadd.f32 %v377, %v1705
      %v1707 = vpop.f32.mrb[0].mxu0
      %1708 = vmatprep.mubr.bf16.mxu0 %v1293
      %1709 = vmatmul.mubr.bf16.gmra.mrb[0].mxu0 %v936
      %v1710 = vpop.f32.mrb[0].mxu0
      %v1711 = vadd.f32 %v377, %v1710
      %v1712 = vpop.f32.mrb[0].mxu0
      %v1713 = vpop.f32.mrb[0].mxu0
      %v1714 = vadd.f32 %v377, %v1713
      %v1715 = vpop.f32.mrb[0].mxu0
      %1716 = vmatprep.mubr.bf16.mxu0 %v1296
      %1717 = vmatmul.mubr.bf16.gmra.mrb[0].mxu0 %v938
      %v1718 = vpop.f32.mrb[0].mxu0
      %v1719 = vadd.f32 %v377, %v1718
      %v1720 = vpop.f32.mrb[0].mxu0
      %v1721 = vpop.f32.mrb[0].mxu0
      %v1722 = vadd.f32 %v377, %v1721
      %v1723 = vpop.f32.mrb[0].mxu0
      %1724 = vmatprep.mubr.bf16.mxu0 %v1299
      %1725 = vmatmul.mubr.bf16.gmra.mrb[0].mxu0 %v940
      %v1726 = vpop.f32.mrb[0].mxu0
      %v1727 = vadd.f32 %v377, %v1726
      %v1728 = vpop.f32.mrb[0].mxu0
      %v1729 = vpop.f32.mrb[0].mxu0
      %v1730 = vadd.f32 %v377, %v1729
      %v1731 = vpop.f32.mrb[0].mxu0
      %1732 = vmatprep.mubr.bf16.mxu0 %v1302
      %1733 = vmatmul.mubr.bf16.gmra.mrb[0].mxu0 %v942
      %v1734 = vpop.f32.mrb[0].mxu0
      %v1735 = vadd.f32 %v377, %v1734
      %v1736 = vpop.f32.mrb[0].mxu0
      %v1737 = vpop.f32.mrb[0].mxu0
      %v1738 = vadd.f32 %v377, %v1737
      %v1739 = vpop.f32.mrb[0].mxu0
      %1740 = vmatprep.mubr.bf16.mxu0 %v1305
      %1741 = vmatmul.mubr.bf16.gmra.mrb[0].mxu0 %v944
      %v1742 = vpop.f32.mrb[0].mxu0
      %v1743 = vadd.f32 %v377, %v1742
      %v1744 = vpop.f32.mrb[0].mxu0
      %v1745 = vpop.f32.mrb[0].mxu0
      %v1746 = vadd.f32 %v377, %v1745
      %v1747 = vpop.f32.mrb[0].mxu0
      %1748 = vmatprep.mubr.bf16.mxu0 %v1308
      %1749 = vmatmul.mubr.bf16.gmra.mrb[0].mxu0 %v946
      %v1750 = vpop.f32.mrb[0].mxu0
      %v1751 = vadd.f32 %v377, %v1750
      %v1752 = vpop.f32.mrb[0].mxu0
      %v1753 = vpop.f32.mrb[0].mxu0
      %v1754 = vadd.f32 %v377, %v1753
      %v1755 = vpop.f32.mrb[0].mxu0
      %1756 = vmatprep.mubr.bf16.mxu0 %v1311
      %1757 = vmatmul.mubr.bf16.gmra.mrb[0].mxu0 %v948
      %v1758 = vpop.f32.mrb[0].mxu0
      %v1759 = vadd.f32 %v377, %v1758
      %v1760 = vpop.f32.mrb[0].mxu0
      %v1761 = vpop.f32.mrb[0].mxu0
      %v1762 = vadd.f32 %v377, %v1761
      %v1763 = vpop.f32.mrb[0].mxu0
      %1764 = vmatprep.mubr.bf16.mxu0 %v1314
      %1765 = vmatmul.mubr.bf16.gmra.mrb[0].mxu0 %v950
      %v1766 = vpop.f32.mrb[0].mxu0
      %v1767 = vadd.f32 %v377, %v1766
      %v1768 = vpop.f32.mrb[0].mxu0
      %v1769 = vpop.f32.mrb[0].mxu0
      %v1770 = vadd.f32 %v377, %v1769
      %v1771 = vpop.f32.mrb[0].mxu0
      %1772 = vmatprep.mubr.bf16.mxu0 %v1317
      %1773 = vmatmul.mubr.bf16.gmra.mrb[0].mxu0 %v952
      %v1774 = vpop.f32.mrb[0].mxu0
      %v1775 = vadd.f32 %v377, %v1774
      %v1776 = vpop.f32.mrb[0].mxu0
      %v1777 = vpop.f32.mrb[0].mxu0
      %v1778 = vadd.f32 %v377, %v1777
      %v1779 = vpop.f32.mrb[0].mxu0
      %1780 = vmatprep.mubr.bf16.mxu0 %v1320
      %1781 = vmatmul.mubr.bf16.gmra.mrb[0].mxu0 %v954
      %v1782 = vpop.f32.mrb[0].mxu0
      %v1783 = vadd.f32 %v377, %v1782
      %v1784 = vpop.f32.mrb[0].mxu0
      %v1785 = vpop.f32.mrb[0].mxu0
      %v1786 = vadd.f32 %v377, %v1785
      %v1787 = vpop.f32.mrb[0].mxu0
      %1788 = vmatprep.mubr.bf16.mxu0 %v1323
      %1789 = vmatmul.mubr.bf16.gmra.mrb[0].mxu0 %v956
      %v1790 = vpop.f32.mrb[0].mxu0
      %v1791 = vadd.f32 %v377, %v1790
      %v1792 = vpop.f32.mrb[0].mxu0
      %v1793 = vpop.f32.mrb[0].mxu0
      %v1794 = vadd.f32 %v377, %v1793
      %v1795 = vpop.f32.mrb[0].mxu0
      %1796 = vmatprep.mubr.bf16.mxu0 %v1326
      %1797 = vmatmul.mubr.bf16.gmra.mrb[0].mxu0 %v958
      %v1798 = vpop.f32.mrb[0].mxu0
      %v1799 = vadd.f32 %v377, %v1798
      %v1800 = vpop.f32.mrb[0].mxu0
      %v1801 = vpop.f32.mrb[0].mxu0
      %v1802 = vadd.f32 %v377, %v1801
      %v1803 = vpop.f32.mrb[0].mxu0
      %1804 = vmatprep.mubr.bf16.mxu0 %v1329
      %1805 = vmatmul.mubr.bf16.gmra.mrb[0].mxu0 %v960
      %v1806 = vpop.f32.mrb[0].mxu0
      %v1807 = vadd.f32 %v377, %v1806
      %v1808 = vpop.f32.mrb[0].mxu0
      %v1809 = vpop.f32.mrb[0].mxu0
      %v1810 = vadd.f32 %v377, %v1809
      %v1811 = vpop.f32.mrb[0].mxu0
      %1812 = vmatprep.mubr.bf16.mxu0 %v1332
      %1813 = vmatmul.mubr.bf16.gmra.mrb[0].mxu0 %v962
      %v1814 = vpop.f32.mrb[0].mxu0
      %v1815 = vadd.f32 %v377, %v1814
      %v1816 = vpop.f32.mrb[0].mxu0
      %v1817 = vpop.f32.mrb[0].mxu0
      %v1818 = vadd.f32 %v377, %v1817
      %v1819 = vpop.f32.mrb[0].mxu0
      %1820 = vmatprep.mubr.bf16.mxu0 %v1335
      %1821 = vmatmul.mubr.bf16.gmra.mrb[0].mxu0 %v964
      %v1822 = vpop.f32.mrb[0].mxu0
      %v1823 = vadd.f32 %v377, %v1822
      %v1824 = vpop.f32.mrb[0].mxu0
      %v1825 = vpop.f32.mrb[0].mxu0
      %v1826 = vadd.f32 %v377, %v1825
      %v1827 = vpop.f32.mrb[0].mxu0
      %1828 = vmatprep.mubr.bf16.mxu0 %v1338
      %1829 = vmatmul.mubr.bf16.gmra.mrb[0].mxu0 %v966
      %v1830 = vpop.f32.mrb[0].mxu0
      %v1831 = vadd.f32 %v377, %v1830
      %v1832 = vpop.f32.mrb[0].mxu0
      %v1833 = vpop.f32.mrb[0].mxu0
      %v1834 = vadd.f32 %v377, %v1833
      %v1835 = vpop.f32.mrb[0].mxu0
      %1836 = vmatprep.mubr.bf16.mxu0 %v1341
      %1837 = vmatmul.mubr.bf16.gmra.mrb[0].mxu0 %v968
      %v1838 = vpop.f32.mrb[0].mxu0
      %v1839 = vadd.f32 %v377, %v1838
      %v1840 = vpop.f32.mrb[0].mxu0
      %v1841 = vpop.f32.mrb[0].mxu0
      %v1842 = vadd.f32 %v377, %v1841
      %v1843 = vpop.f32.mrb[0].mxu0
      %1844 = vmatprep.mubr.bf16.mxu0 %v1344
      %1845 = vmatmul.mubr.bf16.gmra.mrb[0].mxu0 %v970
      %v1846 = vpop.f32.mrb[0].mxu0
      %v1847 = vadd.f32 %v377, %v1846
      %v1848 = vpop.f32.mrb[0].mxu0
      %v1849 = vpop.f32.mrb[0].mxu0
      %v1850 = vadd.f32 %v377, %v1849
      %v1851 = vpop.f32.mrb[0].mxu0
      %1852 = vmatprep.mubr.bf16.mxu0 %v1347
      %1853 = vmatmul.mubr.bf16.gmra.mrb[0].mxu0 %v972
      %v1854 = vpop.f32.mrb[0].mxu0
      %v1855 = vadd.f32 %v377, %v1854
      %v1856 = vpop.f32.mrb[0].mxu0
      %v1857 = vpop.f32.mrb[0].mxu0
      %v1858 = vadd.f32 %v377, %v1857
      %v1859 = vpop.f32.mrb[0].mxu0
      %1860 = vmatprep.mubr.bf16.mxu0 %v1350
      %1861 = vmatmul.mubr.bf16.gmra.mrb[0].mxu0 %v974
      %v1862 = vpop.f32.mrb[0].mxu0
      %v1863 = vadd.f32 %v377, %v1862
      %v1864 = vpop.f32.mrb[0].mxu0
      %v1865 = vpop.f32.mrb[0].mxu0
      %v1866 = vadd.f32 %v377, %v1865
      %v1867 = vpop.f32.mrb[0].mxu0
      %1868 = vmatprep.mubr.bf16.mxu0 %v1353
      %1869 = vmatmul.mubr.bf16.gmra.mrb[0].mxu0 %v976
      %v1870 = vpop.f32.mrb[0].mxu0
      %v1871 = vadd.f32 %v377, %v1870
      %v1872 = vpop.f32.mrb[0].mxu0
      %v1873 = vpop.f32.mrb[0].mxu0
      %v1874 = vadd.f32 %v377, %v1873
      %v1875 = vpop.f32.mrb[0].mxu0
      %1876 = vmatprep.mubr.bf16.mxu0 %v1356
      %1877 = vmatmul.mubr.bf16.gmra.mrb[0].mxu0 %v978
      %v1878 = vpop.f32.mrb[0].mxu0
      %v1879 = vadd.f32 %v377, %v1878
      %v1880 = vpop.f32.mrb[0].mxu0
      %v1881 = vpop.f32.mrb[0].mxu0
      %v1882 = vadd.f32 %v377, %v1881
      %v1883 = vpop.f32.mrb[0].mxu0
      %1884 = vmatprep.mubr.bf16.mxu0 %v1359
      %1885 = vmatmul.mubr.bf16.gmra.mrb[0].mxu0 %v980
      %v1886 = vpop.f32.mrb[0].mxu0
      %v1887 = vadd.f32 %v377, %v1886
      %v1888 = vpop.f32.mrb[0].mxu0
      %v1889 = vpop.f32.mrb[0].mxu0
      %v1890 = vadd.f32 %v377, %v1889
      %v1891 = vpop.f32.mrb[0].mxu0
      %1892 = vmatprep.mubr.bf16.mxu0 %v1362
      %1893 = vmatmul.mubr.bf16.gmra.mrb[0].mxu0 %v982
      %v1894 = vpop.f32.mrb[0].mxu0
      %v1895 = vadd.f32 %v377, %v1894
      %v1896 = vpop.f32.mrb[0].mxu0
      %v1897 = vpop.f32.mrb[0].mxu0
      %v1898 = vadd.f32 %v377, %v1897
      %v1899 = vpop.f32.mrb[0].mxu0
      %1900 = vmatprep.mubr.bf16.mxu0 %v1365
      %1901 = vmatmul.mubr.bf16.gmra.mrb[0].mxu0 %v984
      %v1902 = vpop.f32.mrb[0].mxu0
      %v1903 = vadd.f32 %v377, %v1902
      %v1904 = vpop.f32.mrb[0].mxu0
      %v1905 = vpop.f32.mrb[0].mxu0
      %v1906 = vadd.f32 %v377, %v1905
      %v1907 = vpop.f32.mrb[0].mxu0
      %1908 = vmatprep.mubr.bf16.mxu0 %v1368
      %1909 = vmatmul.mubr.bf16.gmra.mrb[0].mxu0 %v986
      %v1910 = vpop.f32.mrb[0].mxu0
      %v1911 = vadd.f32 %v377, %v1910
      %v1912 = vpop.f32.mrb[0].mxu0
      %v1913 = vpop.f32.mrb[0].mxu0
      %v1914 = vadd.f32 %v377, %v1913
      %v1915 = vpop.f32.mrb[0].mxu0
      %1916 = vmatprep.mubr.bf16.mxu0 %v1371
      %1917 = vmatmul.mubr.bf16.gmra.mrb[0].mxu0 %v988
      %v1918 = vpop.f32.mrb[0].mxu0
      %v1919 = vadd.f32 %v377, %v1918
      %v1920 = vpop.f32.mrb[0].mxu0
      %v1921 = vpop.f32.mrb[0].mxu0
      %v1922 = vadd.f32 %v377, %v1921
      %v1923 = vpop.f32.mrb[0].mxu0
      %1924 = vmatprep.mubr.bf16.mxu0 %v1374
      %1925 = vmatmul.mubr.bf16.gmra.mrb[0].mxu0 %v990
      %v1926 = vpop.f32.mrb[0].mxu0
      %v1927 = vadd.f32 %v377, %v1926
      %v1928 = vpop.f32.mrb[0].mxu0
      %v1929 = vpop.f32.mrb[0].mxu0
      %v1930 = vadd.f32 %v377, %v1929
      %v1931 = vpop.f32.mrb[0].mxu0
      %1932 = vmatprep.mubr.bf16.mxu0 %v1377
      %1933 = vmatmul.mubr.bf16.gmra.mrb[0].mxu0 %v992
      %v1934 = vpop.f32.mrb[0].mxu0
      %v1935 = vadd.f32 %v377, %v1934
      %v1936 = vpop.f32.mrb[0].mxu0
      %v1937 = vpop.f32.mrb[0].mxu0
      %v1938 = vadd.f32 %v377, %v1937
      %v1939 = vpop.f32.mrb[0].mxu0
      %1940 = vmatprep.mubr.bf16.mxu0 %v1380
      %1941 = vmatmul.mubr.bf16.gmra.mrb[0].mxu0 %v994
      %v1942 = vpop.f32.mrb[0].mxu0
      %v1943 = vadd.f32 %v377, %v1942
      %v1944 = vpop.f32.mrb[0].mxu0
      %v1945 = vpop.f32.mrb[0].mxu0
      %v1946 = vadd.f32 %v377, %v1945
      %v1947 = vpop.f32.mrb[0].mxu0
      %1948 = vmatprep.mubr.bf16.mxu0 %v1383
      %1949 = vmatmul.mubr.bf16.gmra.mrb[0].mxu0 %v996
      %v1950 = vpop.f32.mrb[0].mxu0
      %v1951 = vadd.f32 %v377, %v1950
      %v1952 = vpop.f32.mrb[0].mxu0
      %v1953 = vpop.f32.mrb[0].mxu0
      %v1954 = vadd.f32 %v377, %v1953
      %v1955 = vpop.f32.mrb[0].mxu0
      %1956 = vmatprep.mubr.bf16.mxu0 %v1386
      %1957 = vmatmul.mubr.bf16.gmra.mrb[0].mxu0 %v998
      %v1958 = vpop.f32.mrb[0].mxu0
      %v1959 = vadd.f32 %v377, %v1958
      %v1960 = vpop.f32.mrb[0].mxu0
      %v1961 = vpop.f32.mrb[0].mxu0
      %v1962 = vadd.f32 %v377, %v1961
      %v1963 = vpop.f32.mrb[0].mxu0
      %1964 = vmatprep.mubr.bf16.mxu0 %v1389
      %1965 = vmatmul.mubr.bf16.gmra.mrb[0].mxu0 %v1000
      %v1966 = vpop.f32.mrb[0].mxu0
      %v1967 = vadd.f32 %v377, %v1966
      %v1968 = vpop.f32.mrb[0].mxu0
      %v1969 = vpop.f32.mrb[0].mxu0
      %v1970 = vadd.f32 %v377, %v1969
      %v1971 = vpop.f32.mrb[0].mxu0
      %1972 = vmatprep.mubr.bf16.mxu0 %v1392
      %1973 = vmatmul.mubr.bf16.gmra.mrb[0].mxu0 %v1002
      %v1974 = vpop.f32.mrb[0].mxu0
      %v1975 = vadd.f32 %v377, %v1974
      %v1976 = vpop.f32.mrb[0].mxu0
      %v1977 = vpop.f32.mrb[0].mxu0
      %v1978 = vadd.f32 %v377, %v1977
      %v1979 = vpop.f32.mrb[0].mxu0
      %1980 = vmatprep.mubr.bf16.mxu0 %v1395
      %1981 = vmatmul.mubr.bf16.gmra.mrb[0].mxu0 %v1004
      %v1982 = vpop.f32.mrb[0].mxu0
      %v1983 = vadd.f32 %v377, %v1982
      %v1984 = vpop.f32.mrb[0].mxu0
      %v1985 = vpop.f32.mrb[0].mxu0
      %v1986 = vadd.f32 %v377, %v1985
      %v1987 = vpop.f32.mrb[0].mxu0
      %1988 = vmatprep.mubr.bf16.mxu0 %v1398
      %1989 = vmatmul.mubr.bf16.gmra.mrb[0].mxu0 %v1006
      %v1990 = vpop.f32.mrb[0].mxu0
      %v1991 = vadd.f32 %v377, %v1990
      %v1992 = vpop.f32.mrb[0].mxu0
      %v1993 = vpop.f32.mrb[0].mxu0
      %v1994 = vadd.f32 %v377, %v1993
      %v1995 = vpop.f32.mrb[0].mxu0
      %1996 = vmatprep.mubr.bf16.mxu0 %v1401
      %1997 = vmatmul.mubr.bf16.gmra.mrb[0].mxu0 %v1008
      %v1998 = vpop.f32.mrb[0].mxu0
      %v1999 = vadd.f32 %v377, %v1998
      %v2000 = vpop.f32.mrb[0].mxu0
      %v2001 = vpop.f32.mrb[0].mxu0
      %v2002 = vadd.f32 %v377, %v2001
      %v2003 = vpop.f32.mrb[0].mxu0
      %2004 = vmatprep.mubr.bf16.mxu0 %v1404
      %2005 = vmatmul.mubr.bf16.gmra.mrb[0].mxu0 %v1010
      %v2006 = vpop.f32.mrb[0].mxu0
      %v2007 = vadd.f32 %v377, %v2006
      %v2008 = vpop.f32.mrb[0].mxu0
      %v2009 = vpop.f32.mrb[0].mxu0
      %v2010 = vadd.f32 %v377, %v2009
      %v2011 = vpop.f32.mrb[0].mxu0
      %2012 = vmatprep.mubr.bf16.mxu0 %v1407
      %2013 = vmatmul.mubr.bf16.gmra.mrb[0].mxu0 %v1012
      %v2014 = vpop.f32.mrb[0].mxu0
      %v2015 = vadd.f32 %v377, %v2014
      %v2016 = vpop.f32.mrb[0].mxu0
      %v2017 = vpop.f32.mrb[0].mxu0
      %v2018 = vadd.f32 %v377, %v2017
      %v2019 = vpop.f32.mrb[0].mxu0
      %2020 = vmatprep.mubr.bf16.mxu0 %v1410
      %2021 = vmatmul.mubr.bf16.gmra.mrb[0].mxu0 %v1014
      %v2022 = vpop.f32.mrb[0].mxu0
      %v2023 = vadd.f32 %v377, %v2022
      %v2024 = vpop.f32.mrb[0].mxu0
      %v2025 = vpop.f32.mrb[0].mxu0
      %v2026 = vadd.f32 %v377, %v2025
      %v2027 = vpop.f32.mrb[0].mxu0
      %2028 = vmatprep.mubr.bf16.mxu0 %v1413
      %2029 = vmatmul.mubr.bf16.gmra.mrb[0].mxu0 %v1016
      %v2030 = vpop.f32.mrb[0].mxu0
      %v2031 = vadd.f32 %v377, %v2030
      %v2032 = vpop.f32.mrb[0].mxu0
      %v2033 = vpop.f32.mrb[0].mxu0
      %v2034 = vadd.f32 %v377, %v2033
      %v2035 = vpop.f32.mrb[0].mxu0
      %2036 = vmatprep.mubr.bf16.mxu0 %v1416
      %2037 = vmatmul.mubr.bf16.gmra.mrb[0].mxu0 %v1018
      %v2038 = vpop.f32.mrb[0].mxu0
      %v2039 = vadd.f32 %v377, %v2038
      %v2040 = vpop.f32.mrb[0].mxu0
      %v2041 = vpop.f32.mrb[0].mxu0
      %v2042 = vadd.f32 %v377, %v2041
      %v2043 = vpop.f32.mrb[0].mxu0
      %2044 = vmatprep.mubr.bf16.mxu0 %v1419
      %2045 = vmatmul.mubr.bf16.gmra.mrb[0].mxu0 %v1020
      %v2046 = vpop.f32.mrb[0].mxu0
      %v2047 = vadd.f32 %v377, %v2046
      %v2048 = vpop.f32.mrb[0].mxu0
      %v2049 = vpop.f32.mrb[0].mxu0
      %v2050 = vadd.f32 %v377, %v2049
      %v2051 = vpop.f32.mrb[0].mxu0
      %2052 = vmatprep.mubr.bf16.mxu0 %v1422
      %2053 = vmatmul.mubr.bf16.gmra.mrb[0].mxu0 %v1022
      %v2054 = vpop.f32.mrb[0].mxu0
      %v2055 = vadd.f32 %v377, %v2054
      %v2056 = vpop.f32.mrb[0].mxu0
      %v2057 = vpop.f32.mrb[0].mxu0
      %v2058 = vadd.f32 %v377, %v2057
      %v2059 = vpop.f32.mrb[0].mxu0
      %2060 = vmatprep.mubr.bf16.mxu0 %v1425
      %2061 = vmatmul.mubr.bf16.gmra.mrb[0].mxu0 %v1024
      %v2062 = vpop.f32.mrb[0].mxu0
      %v2063 = vadd.f32 %v377, %v2062
      %v2064 = vpop.f32.mrb[0].mxu0
      %v2065 = vpop.f32.mrb[0].mxu0
      %v2066 = vadd.f32 %v377, %v2065
      %v2067 = vpop.f32.mrb[0].mxu0
      %2068 = vmatprep.mubr.bf16.mxu0 %v1428
      %2069 = vmatmul.mubr.bf16.gmra.mrb[0].mxu0 %v1026
      %v2070 = vpop.f32.mrb[0].mxu0
      %v2071 = vadd.f32 %v377, %v2070
      %v2072 = vpop.f32.mrb[0].mxu0
      %v2073 = vpop.f32.mrb[0].mxu0
      %v2074 = vadd.f32 %v377, %v2073
      %v2075 = vpop.f32.mrb[0].mxu0
      %2076 = vmatprep.mubr.bf16.mxu0 %v1431
      %2077 = vmatmul.mubr.bf16.gmra.mrb[0].mxu0 %v1028
      %v2078 = vpop.f32.mrb[0].mxu0
      %v2079 = vadd.f32 %v377, %v2078
      %v2080 = vpop.f32.mrb[0].mxu0
      %v2081 = vpop.f32.mrb[0].mxu0
      %v2082 = vadd.f32 %v377, %v2081
      %v2083 = vpop.f32.mrb[0].mxu0
      %2084 = vmatprep.mubr.bf16.mxu0 %v1434
      %2085 = vmatmul.mubr.bf16.gmra.mrb[0].mxu0 %v1030
      %v2086 = vpop.f32.mrb[0].mxu0
      %v2087 = vadd.f32 %v377, %v2086
      %v2088 = vpop.f32.mrb[0].mxu0
      %v2089 = vpop.f32.mrb[0].mxu0
      %v2090 = vadd.f32 %v377, %v2089
      %v2091 = vpop.f32.mrb[0].mxu0
      %2092 = vmatprep.mubr.bf16.mxu0 %v1437
      %2093 = vmatmul.mubr.bf16.gmra.mrb[0].mxu0 %v1032
      %v2094 = vpop.f32.mrb[0].mxu0
      %v2095 = vadd.f32 %v377, %v2094
      %v2096 = vpop.f32.mrb[0].mxu0
      %v2097 = vpop.f32.mrb[0].mxu0
      %v2098 = vadd.f32 %v377, %v2097
      %v2099 = vpop.f32.mrb[0].mxu0
      %2100 = vmatprep.mubr.bf16.mxu0 %v1440
      %2101 = vmatmul.mubr.bf16.gmra.mrb[0].mxu0 %v1034
      %v2102 = vpop.f32.mrb[0].mxu0
      %v2103 = vadd.f32 %v377, %v2102
      %v2104 = vpop.f32.mrb[0].mxu0
      %v2105 = vpop.f32.mrb[0].mxu0
      %v2106 = vadd.f32 %v377, %v2105
      %v2107 = vpop.f32.mrb[0].mxu0
      %2108 = vmatprep.mubr.bf16.mxu0 %v1443
      %2109 = vmatmul.mubr.bf16.gmra.mrb[0].mxu0 %v1036
      %v2110 = vpop.f32.mrb[0].mxu0
      %v2111 = vadd.f32 %v377, %v2110
      %v2112 = vpop.f32.mrb[0].mxu0
      %v2113 = vpop.f32.mrb[0].mxu0
      %v2114 = vadd.f32 %v377, %v2113
      %v2115 = vpop.f32.mrb[0].mxu0
      %2116 = vmatprep.mubr.bf16.mxu0 %v1446
      %2117 = vmatmul.mubr.bf16.gmra.mrb[0].mxu0 %v1038
      %v2118 = vpop.f32.mrb[0].mxu0
      %v2119 = vadd.f32 %v377, %v2118
      %v2120 = vpop.f32.mrb[0].mxu0
      %v2121 = vpop.f32.mrb[0].mxu0
      %v2122 = vadd.f32 %v377, %v2121
      %v2123 = vpop.f32.mrb[0].mxu0
      %2124 = vmatprep.mubr.bf16.mxu0 %v1449
      %2125 = vmatmul.mubr.bf16.gmra.mrb[0].mxu0 %v1040
      %v2126 = vpop.f32.mrb[0].mxu0
      %v2127 = vadd.f32 %v377, %v2126
      %v2128 = vpop.f32.mrb[0].mxu0
      %v2129 = vpop.f32.mrb[0].mxu0
      %v2130 = vadd.f32 %v377, %v2129
      %v2131 = vpop.f32.mrb[0].mxu0
      %2132 = vmatprep.mubr.bf16.mxu0 %v1452
      %2133 = vmatmul.mubr.bf16.gmra.mrb[0].mxu0 %v1042
      %v2134 = vpop.f32.mrb[0].mxu0
      %v2135 = vadd.f32 %v377, %v2134
      %v2136 = vpop.f32.mrb[0].mxu0
      %v2137 = vpop.f32.mrb[0].mxu0
      %v2138 = vadd.f32 %v377, %v2137
      %v2139 = vpop.f32.mrb[0].mxu0
      %2140 = vmatprep.mubr.bf16.mxu0 %v1455
      %2141 = vmatmul.mubr.bf16.gmra.mrb[0].mxu0 %v1044
      %v2142 = vpop.f32.mrb[0].mxu0
      %v2143 = vadd.f32 %v377, %v2142
      %v2144 = vpop.f32.mrb[0].mxu0
      %v2145 = vpop.f32.mrb[0].mxu0
      %v2146 = vadd.f32 %v377, %v2145
      %v2147 = vpop.f32.mrb[0].mxu0
      %2148 = vmatprep.mubr.bf16.mxu0 %v1458
      %2149 = vmatmul.mubr.bf16.gmra.mrb[0].mxu0 %v1046
      %v2150 = vpop.f32.mrb[0].mxu0
      %v2151 = vadd.f32 %v377, %v2150
      %v2152 = vpop.f32.mrb[0].mxu0
      %v2153 = vpop.f32.mrb[0].mxu0
      %v2154 = vadd.f32 %v377, %v2153
      %v2155 = vpop.f32.mrb[0].mxu0
      %2156 = vmatprep.mubr.bf16.mxu0 %v1461
      %2157 = vmatmul.mubr.bf16.gmra.mrb[0].mxu0 %v1048
      %v2158 = vpop.f32.mrb[0].mxu0
      %v2159 = vadd.f32 %v377, %v2158
      %v2160 = vpop.f32.mrb[0].mxu0
      %v2161 = vpop.f32.mrb[0].mxu0
      %v2162 = vadd.f32 %v377, %v2161
      %v2163 = vpop.f32.mrb[0].mxu0
      %2164 = vmatprep.mubr.bf16.mxu0 %v1464
      %2165 = vmatmul.mubr.bf16.gmra.mrb[0].mxu0 %v1050
      %v2166 = vpop.f32.mrb[0].mxu0
      %v2167 = vadd.f32 %v377, %v2166
      %v2168 = vpop.f32.mrb[0].mxu0
      %v2169 = vpop.f32.mrb[0].mxu0
      %v2170 = vadd.f32 %v377, %v2169
      %v2171 = vpop.f32.mrb[0].mxu0
      %2172 = vmatprep.mubr.bf16.mxu0 %v1467
      %2173 = vmatmul.mubr.bf16.gmra.mrb[0].mxu0 %v1052
      %v2174 = vpop.f32.mrb[0].mxu0
      %v2175 = vadd.f32 %v377, %v2174
      %v2176 = vpop.f32.mrb[0].mxu0
      %v2177 = vpop.f32.mrb[0].mxu0
      %v2178 = vadd.f32 %v377, %v2177
      %v2179 = vpop.f32.mrb[0].mxu0
      %2180 = vmatprep.mubr.bf16.mxu0 %v1470
      %2181 = vmatmul.mubr.bf16.gmra.mrb[0].mxu0 %v1054
      %v2182 = vpop.f32.mrb[0].mxu0
      %v2183 = vadd.f32 %v377, %v2182
      %v2184 = vpop.f32.mrb[0].mxu0
      %v2185 = vpop.f32.mrb[0].mxu0
      %v2186 = vpop.f32.mrb[0].mxu0
      %2187 = vdwg.mxu0
      %vm2188 = vcmp.ge.f32.partialorder %v1511, 0.0
      %vm2189 = vcmp.ge.f32.partialorder %v1514, 0.0
      %vm2190 = vcmp.ge.f32.partialorder %v1519, 0.0
      %vm2191 = vcmp.ge.f32.partialorder %v1522, 0.0
      %vm2192 = vcmp.ge.f32.partialorder %v1527, 0.0
      %vm2193 = vcmp.ge.f32.partialorder %v1530, 0.0
      %vm2194 = vcmp.ge.f32.partialorder %v1535, 0.0
      %vm2195 = vcmp.ge.f32.partialorder %v1538, 0.0
      %vm2196 = vcmp.ge.f32.partialorder %v1543, 0.0
      %vm2197 = vcmp.ge.f32.partialorder %v1546, 0.0
      %vm2198 = vcmp.ge.f32.partialorder %v1551, 0.0
      %vm2199 = vcmp.ge.f32.partialorder %v1554, 0.0
      %vm2200 = vcmp.ge.f32.partialorder %v1559, 0.0
      %vm2201 = vcmp.ge.f32.partialorder %v1562, 0.0
      %vm2202 = vcmp.ge.f32.partialorder %v1567, 0.0
      %vm2203 = vcmp.ge.f32.partialorder %v1570, 0.0
      %vm2204 = vcmp.ge.f32.partialorder %v1575, 0.0
      %vm2205 = vcmp.ge.f32.partialorder %v1578, 0.0
      %vm2206 = vcmp.ge.f32.partialorder %v1583, 0.0
      %vm2207 = vcmp.ge.f32.partialorder %v1586, 0.0
      %vm2208 = vcmp.ge.f32.partialorder %v1591, 0.0
      %vm2209 = vcmp.ge.f32.partialorder %v1594, 0.0
      %vm2210 = vcmp.ge.f32.partialorder %v1599, 0.0
      %vm2211 = vcmp.ge.f32.partialorder %v1602, 0.0
      %vm2212 = vcmp.ge.f32.partialorder %v1607, 0.0
      %vm2213 = vcmp.ge.f32.partialorder %v1610, 0.0
      %vm2214 = vcmp.ge.f32.partialorder %v1615, 0.0
      %vm2215 = vcmp.ge.f32.partialorder %v1618, 0.0
      %vm2216 = vcmp.ge.f32.partialorder %v1623, 0.0
      %vm2217 = vcmp.ge.f32.partialorder %v1626, 0.0
      %vm2218 = vcmp.ge.f32.partialorder %v1631, 0.0
      %vm2219 = vcmp.ge.f32.partialorder %v1634, 0.0
      %vm2220 = vcmp.ge.f32.partialorder %v1639, 0.0
      %vm2221 = vcmp.ge.f32.partialorder %v1642, 0.0
      %vm2222 = vcmp.ge.f32.partialorder %v1647, 0.0
      %vm2223 = vcmp.ge.f32.partialorder %v1650, 0.0
      %vm2224 = vcmp.ge.f32.partialorder %v1655, 0.0
      %vm2225 = vcmp.ge.f32.partialorder %v1658, 0.0
      %vm2226 = vcmp.ge.f32.partialorder %v1663, 0.0
      %vm2227 = vcmp.ge.f32.partialorder %v1666, 0.0
      %vm2228 = vcmp.ge.f32.partialorder %v1671, 0.0
      %vm2229 = vcmp.ge.f32.partialorder %v1674, 0.0
      %vm2230 = vcmp.ge.f32.partialorder %v1679, 0.0
      %vm2231 = vcmp.ge.f32.partialorder %v1682, 0.0
      %vm2232 = vcmp.ge.f32.partialorder %v1687, 0.0
      %vm2233 = vcmp.ge.f32.partialorder %v1690, 0.0
      %vm2234 = vcmp.ge.f32.partialorder %v1695, 0.0
      %vm2235 = vcmp.ge.f32.partialorder %v1698, 0.0
      %vm2236 = vcmp.ge.f32.partialorder %v1703, 0.0
      %vm2237 = vcmp.ge.f32.partialorder %v1706, 0.0
      %vm2238 = vcmp.ge.f32.partialorder %v1711, 0.0
      %vm2239 = vcmp.ge.f32.partialorder %v1714, 0.0
      %vm2240 = vcmp.ge.f32.partialorder %v1719, 0.0
      %vm2241 = vcmp.ge.f32.partialorder %v1722, 0.0
      %vm2242 = vcmp.ge.f32.partialorder %v1727, 0.0
      %vm2243 = vcmp.ge.f32.partialorder %v1730, 0.0
      %vm2244 = vcmp.ge.f32.partialorder %v1735, 0.0
      %vm2245 = vcmp.ge.f32.partialorder %v1738, 0.0
      %vm2246 = vcmp.ge.f32.partialorder %v1743, 0.0
      %vm2247 = vcmp.ge.f32.partialorder %v1746, 0.0
      %vm2248 = vcmp.ge.f32.partialorder %v1751, 0.0
      %vm2249 = vcmp.ge.f32.partialorder %v1754, 0.0
      %vm2250 = vcmp.ge.f32.partialorder %v1759, 0.0
      %vm2251 = vcmp.ge.f32.partialorder %v1762, 0.0
      %vm2252 = vcmp.ge.f32.partialorder %v1767, 0.0
      %vm2253 = vcmp.ge.f32.partialorder %v1770, 0.0
      %vm2254 = vcmp.ge.f32.partialorder %v1775, 0.0
      %vm2255 = vcmp.ge.f32.partialorder %v1778, 0.0
      %vm2256 = vcmp.ge.f32.partialorder %v1783, 0.0
      %vm2257 = vcmp.ge.f32.partialorder %v1786, 0.0
      %vm2258 = vcmp.ge.f32.partialorder %v1791, 0.0
      %vm2259 = vcmp.ge.f32.partialorder %v1794, 0.0
      %vm2260 = vcmp.ge.f32.partialorder %v1799, 0.0
      %vm2261 = vcmp.ge.f32.partialorder %v1802, 0.0
      %vm2262 = vcmp.ge.f32.partialorder %v1807, 0.0
      %vm2263 = vcmp.ge.f32.partialorder %v1810, 0.0
      %vm2264 = vcmp.ge.f32.partialorder %v1815, 0.0
      %vm2265 = vcmp.ge.f32.partialorder %v1818, 0.0
      %vm2266 = vcmp.ge.f32.partialorder %v1823, 0.0
      %vm2267 = vcmp.ge.f32.partialorder %v1826, 0.0
      %vm2268 = vcmp.ge.f32.partialorder %v1831, 0.0
      %vm2269 = vcmp.ge.f32.partialorder %v1834, 0.0
      %vm2270 = vcmp.ge.f32.partialorder %v1839, 0.0
      %vm2271 = vcmp.ge.f32.partialorder %v1842, 0.0
      %vm2272 = vcmp.ge.f32.partialorder %v1847, 0.0
      %vm2273 = vcmp.ge.f32.partialorder %v1850, 0.0
      %vm2274 = vcmp.ge.f32.partialorder %v1855, 0.0
      %vm2275 = vcmp.ge.f32.partialorder %v1858, 0.0
      %vm2276 = vcmp.ge.f32.partialorder %v1863, 0.0
      %vm2277 = vcmp.ge.f32.partialorder %v1866, 0.0
      %vm2278 = vcmp.ge.f32.partialorder %v1871, 0.0
      %vm2279 = vcmp.ge.f32.partialorder %v1874, 0.0
      %vm2280 = vcmp.ge.f32.partialorder %v1879, 0.0
      %vm2281 = vcmp.ge.f32.partialorder %v1882, 0.0
      %vm2282 = vcmp.ge.f32.partialorder %v1887, 0.0
      %vm2283 = vcmp.ge.f32.partialorder %v1890, 0.0
      %vm2284 = vcmp.ge.f32.partialorder %v1895, 0.0
      %vm2285 = vcmp.ge.f32.partialorder %v1898, 0.0
      %vm2286 = vcmp.ge.f32.partialorder %v1903, 0.0
      %vm2287 = vcmp.ge.f32.partialorder %v1906, 0.0
      %vm2288 = vcmp.ge.f32.partialorder %v1911, 0.0
      %vm2289 = vcmp.ge.f32.partialorder %v1914, 0.0
      %vm2290 = vcmp.ge.f32.partialorder %v1919, 0.0
      %vm2291 = vcmp.ge.f32.partialorder %v1922, 0.0
      %vm2292 = vcmp.ge.f32.partialorder %v1927, 0.0
      %vm2293 = vcmp.ge.f32.partialorder %v1930, 0.0
      %vm2294 = vcmp.ge.f32.partialorder %v1935, 0.0
      %vm2295 = vcmp.ge.f32.partialorder %v1938, 0.0
      %vm2296 = vcmp.ge.f32.partialorder %v1943, 0.0
      %vm2297 = vcmp.ge.f32.partialorder %v1946, 0.0
      %vm2298 = vcmp.ge.f32.partialorder %v1951, 0.0
      %vm2299 = vcmp.ge.f32.partialorder %v1954, 0.0
      %vm2300 = vcmp.ge.f32.partialorder %v1959, 0.0
      %vm2301 = vcmp.ge.f32.partialorder %v1962, 0.0
      %vm2302 = vcmp.ge.f32.partialorder %v1967, 0.0
      %vm2303 = vcmp.ge.f32.partialorder %v1970, 0.0
      %vm2304 = vcmp.ge.f32.partialorder %v1975, 0.0
      %vm2305 = vcmp.ge.f32.partialorder %v1978, 0.0
      %vm2306 = vcmp.ge.f32.partialorder %v1983, 0.0
      %vm2307 = vcmp.ge.f32.partialorder %v1986, 0.0
      %vm2308 = vcmp.ge.f32.partialorder %v1991, 0.0
      %vm2309 = vcmp.ge.f32.partialorder %v1994, 0.0
      %vm2310 = vcmp.ge.f32.partialorder %v1999, 0.0
      %vm2311 = vcmp.ge.f32.partialorder %v2002, 0.0
      %vm2312 = vcmp.ge.f32.partialorder %v2007, 0.0
      %vm2313 = vcmp.ge.f32.partialorder %v2010, 0.0
      %vm2314 = vcmp.ge.f32.partialorder %v2015, 0.0
      %vm2315 = vcmp.ge.f32.partialorder %v2018, 0.0
      %vm2316 = vcmp.ge.f32.partialorder %v2023, 0.0
      %vm2317 = vcmp.ge.f32.partialorder %v2026, 0.0
      %vm2318 = vcmp.ge.f32.partialorder %v2031, 0.0
      %vm2319 = vcmp.ge.f32.partialorder %v2034, 0.0
      %vm2320 = vcmp.ge.f32.partialorder %v2039, 0.0
      %vm2321 = vcmp.ge.f32.partialorder %v2042, 0.0
      %vm2322 = vcmp.ge.f32.partialorder %v2047, 0.0
      %vm2323 = vcmp.ge.f32.partialorder %v2050, 0.0
      %vm2324 = vcmp.ge.f32.partialorder %v2055, 0.0
      %vm2325 = vcmp.ge.f32.partialorder %v2058, 0.0
      %vm2326 = vcmp.ge.f32.partialorder %v2063, 0.0
      %vm2327 = vcmp.ge.f32.partialorder %v2066, 0.0
      %vm2328 = vcmp.ge.f32.partialorder %v2071, 0.0
      %vm2329 = vcmp.ge.f32.partialorder %v2074, 0.0
      %vm2330 = vcmp.ge.f32.partialorder %v2079, 0.0
      %vm2331 = vcmp.ge.f32.partialorder %v2082, 0.0
      %vm2332 = vcmp.ge.f32.partialorder %v2087, 0.0
      %vm2333 = vcmp.ge.f32.partialorder %v2090, 0.0
      %vm2334 = vcmp.ge.f32.partialorder %v2095, 0.0
      %vm2335 = vcmp.ge.f32.partialorder %v2098, 0.0
      %vm2336 = vcmp.ge.f32.partialorder %v2103, 0.0
      %vm2337 = vcmp.ge.f32.partialorder %v2106, 0.0
      %vm2338 = vcmp.ge.f32.partialorder %v2111, 0.0
      %vm2339 = vcmp.ge.f32.partialorder %v2114, 0.0
      %vm2340 = vcmp.ge.f32.partialorder %v2119, 0.0
      %vm2341 = vcmp.ge.f32.partialorder %v2122, 0.0
      %vm2342 = vcmp.ge.f32.partialorder %v2127, 0.0
      %vm2343 = vcmp.ge.f32.partialorder %v2130, 0.0
      %vm2344 = vcmp.ge.f32.partialorder %v2135, 0.0
      %vm2345 = vcmp.ge.f32.partialorder %v2138, 0.0
      %vm2346 = vcmp.ge.f32.partialorder %v2143, 0.0
      %vm2347 = vcmp.ge.f32.partialorder %v2146, 0.0
      %vm2348 = vcmp.ge.f32.partialorder %v2151, 0.0
      %vm2349 = vcmp.ge.f32.partialorder %v2154, 0.0
      %vm2350 = vcmp.ge.f32.partialorder %v2159, 0.0
      %vm2351 = vcmp.ge.f32.partialorder %v2162, 0.0
      %vm2352 = vcmp.ge.f32.partialorder %v2167, 0.0
      %vm2353 = vcmp.ge.f32.partialorder %v2170, 0.0
      %vm2354 = vcmp.ge.f32.partialorder %v2175, 0.0
      %vm2355 = vcmp.ge.f32.partialorder %v2178, 0.0
      %vm2356 = vcmp.ge.f32.partialorder %v2183, 0.0
      %v2357 = vmul.f32 %v1511, 0.01
      %v2358 = vmul.f32 %v1514, 0.01
      %v2359 = vmul.f32 %v1519, 0.01
      %v2360 = vmul.f32 %v1522, 0.01
      %v2361 = vmul.f32 %v1527, 0.01
      %v2362 = vmul.f32 %v1530, 0.01
      %v2363 = vmul.f32 %v1535, 0.01
      %v2364 = vmul.f32 %v1538, 0.01
      %v2365 = vmul.f32 %v1543, 0.01
      %v2366 = vmul.f32 %v1546, 0.01
      %v2367 = vmul.f32 %v1551, 0.01
      %v2368 = vmul.f32 %v1554, 0.01
      %v2369 = vmul.f32 %v1559, 0.01
      %v2370 = vmul.f32 %v1562, 0.01
      %v2371 = vmul.f32 %v1567, 0.01
      %v2372 = vmul.f32 %v1570, 0.01
      %v2373 = vmul.f32 %v1575, 0.01
      %v2374 = vmul.f32 %v1578, 0.01
      %v2375 = vmul.f32 %v1583, 0.01
      %v2376 = vmul.f32 %v1586, 0.01
      %v2377 = vmul.f32 %v1591, 0.01
      %v2378 = vmul.f32 %v1594, 0.01
      %v2379 = vmul.f32 %v1599, 0.01
      %v2380 = vmul.f32 %v1602, 0.01
      %v2381 = vmul.f32 %v1607, 0.01
      %v2382 = vmul.f32 %v1610, 0.01
      %v2383 = vmul.f32 %v1615, 0.01
      %v2384 = vmul.f32 %v1618, 0.01
      %v2385 = vmul.f32 %v1623, 0.01
      %v2386 = vmul.f32 %v1626, 0.01
      %v2387 = vmul.f32 %v1631, 0.01
      %v2388 = vmul.f32 %v1634, 0.01
      %v2389 = vmul.f32 %v1639, 0.01
      %v2390 = vmul.f32 %v1642, 0.01
      %v2391 = vmul.f32 %v1647, 0.01
      %v2392 = vmul.f32 %v1650, 0.01
      %v2393 = vmul.f32 %v1655, 0.01
      %v2394 = vmul.f32 %v1658, 0.01
      %v2395 = vmul.f32 %v1663, 0.01
      %v2396 = vmul.f32 %v1666, 0.01
      %v2397 = vmul.f32 %v1671, 0.01
      %v2398 = vmul.f32 %v1674, 0.01
      %v2399 = vmul.f32 %v1679, 0.01
      %v2400 = vmul.f32 %v1682, 0.01
      %v2401 = vmul.f32 %v1687, 0.01
      %v2402 = vmul.f32 %v1690, 0.01
      %v2403 = vmul.f32 %v1695, 0.01
      %v2404 = vmul.f32 %v1698, 0.01
      %v2405 = vmul.f32 %v1703, 0.01
      %v2406 = vmul.f32 %v1706, 0.01
      %v2407 = vmul.f32 %v1711, 0.01
      %v2408 = vmul.f32 %v1714, 0.01
      %v2409 = vmul.f32 %v1719, 0.01
      %v2410 = vmul.f32 %v1722, 0.01
      %v2411 = vmul.f32 %v1727, 0.01
      %v2412 = vmul.f32 %v1730, 0.01
      %v2413 = vmul.f32 %v1735, 0.01
      %v2414 = vmul.f32 %v1738, 0.01
      %v2415 = vmul.f32 %v1743, 0.01
      %v2416 = vmul.f32 %v1746, 0.01
      %v2417 = vmul.f32 %v1751, 0.01
      %v2418 = vmul.f32 %v1754, 0.01
      %v2419 = vmul.f32 %v1759, 0.01
      %v2420 = vmul.f32 %v1762, 0.01
      %v2421 = vmul.f32 %v1767, 0.01
      %v2422 = vmul.f32 %v1770, 0.01
      %v2423 = vmul.f32 %v1775, 0.01
      %v2424 = vmul.f32 %v1778, 0.01
      %v2425 = vmul.f32 %v1783, 0.01
      %v2426 = vmul.f32 %v1786, 0.01
      %v2427 = vmul.f32 %v1791, 0.01
      %v2428 = vmul.f32 %v1794, 0.01
      %v2429 = vmul.f32 %v1799, 0.01
      %v2430 = vmul.f32 %v1802, 0.01
      %v2431 = vmul.f32 %v1807, 0.01
      %v2432 = vmul.f32 %v1810, 0.01
      %v2433 = vmul.f32 %v1815, 0.01
      %v2434 = vmul.f32 %v1818, 0.01
      %v2435 = vmul.f32 %v1823, 0.01
      %v2436 = vmul.f32 %v1826, 0.01
      %v2437 = vmul.f32 %v1831, 0.01
      %v2438 = vmul.f32 %v1834, 0.01
      %v2439 = vmul.f32 %v1839, 0.01
      %v2440 = vmul.f32 %v1842, 0.01
      %v2441 = vmul.f32 %v1847, 0.01
      %v2442 = vmul.f32 %v1850, 0.01
      %v2443 = vmul.f32 %v1855, 0.01
      %v2444 = vmul.f32 %v1858, 0.01
      %v2445 = vmul.f32 %v1863, 0.01
      %v2446 = vmul.f32 %v1866, 0.01
      %v2447 = vmul.f32 %v1871, 0.01
      %v2448 = vmul.f32 %v1874, 0.01
      %v2449 = vmul.f32 %v1879, 0.01
      %v2450 = vmul.f32 %v1882, 0.01
      %v2451 = vmul.f32 %v1887, 0.01
      %v2452 = vmul.f32 %v1890, 0.01
      %v2453 = vmul.f32 %v1895, 0.01
      %v2454 = vmul.f32 %v1898, 0.01
      %v2455 = vmul.f32 %v1903, 0.01
      %v2456 = vmul.f32 %v1906, 0.01
      %v2457 = vmul.f32 %v1911, 0.01
      %v2458 = vmul.f32 %v1914, 0.01
      %v2459 = vmul.f32 %v1919, 0.01
      %v2460 = vmul.f32 %v1922, 0.01
      %v2461 = vmul.f32 %v1927, 0.01
      %v2462 = vmul.f32 %v1930, 0.01
      %v2463 = vmul.f32 %v1935, 0.01
      %v2464 = vmul.f32 %v1938, 0.01
      %v2465 = vmul.f32 %v1943, 0.01
      %v2466 = vmul.f32 %v1946, 0.01
      %v2467 = vmul.f32 %v1951, 0.01
      %v2468 = vmul.f32 %v1954, 0.01
      %v2469 = vmul.f32 %v1959, 0.01
      %v2470 = vmul.f32 %v1962, 0.01
      %v2471 = vmul.f32 %v1967, 0.01
      %v2472 = vmul.f32 %v1970, 0.01
      %v2473 = vmul.f32 %v1975, 0.01
      %v2474 = vmul.f32 %v1978, 0.01
      %v2475 = vmul.f32 %v1983, 0.01
      %v2476 = vmul.f32 %v1986, 0.01
      %v2477 = vmul.f32 %v1991, 0.01
      %v2478 = vmul.f32 %v1994, 0.01
      %v2479 = vmul.f32 %v1999, 0.01
      %v2480 = vmul.f32 %v2002, 0.01
      %v2481 = vmul.f32 %v2007, 0.01
      %v2482 = vmul.f32 %v2010, 0.01
      %v2483 = vmul.f32 %v2015, 0.01
      %v2484 = vmul.f32 %v2018, 0.01
      %v2485 = vmul.f32 %v2023, 0.01
      %v2486 = vmul.f32 %v2026, 0.01
      %v2487 = vmul.f32 %v2031, 0.01
      %v2488 = vmul.f32 %v2034, 0.01
      %v2489 = vmul.f32 %v2039, 0.01
      %v2490 = vmul.f32 %v2042, 0.01
      %v2491 = vmul.f32 %v2047, 0.01
      %v2492 = vmul.f32 %v2050, 0.01
      %v2493 = vmul.f32 %v2055, 0.01
      %v2494 = vmul.f32 %v2058, 0.01
      %v2495 = vmul.f32 %v2063, 0.01
      %v2496 = vmul.f32 %v2066, 0.01
      %v2497 = vmul.f32 %v2071, 0.01
      %v2498 = vmul.f32 %v2074, 0.01
      %v2499 = vmul.f32 %v2079, 0.01
      %v2500 = vmul.f32 %v2082, 0.01
      %v2501 = vmul.f32 %v2087, 0.01
      %v2502 = vmul.f32 %v2090, 0.01
      %v2503 = vmul.f32 %v2095, 0.01
      %v2504 = vmul.f32 %v2098, 0.01
      %v2505 = vmul.f32 %v2103, 0.01
      %v2506 = vmul.f32 %v2106, 0.01
      %v2507 = vmul.f32 %v2111, 0.01
      %v2508 = vmul.f32 %v2114, 0.01
      %v2509 = vmul.f32 %v2119, 0.01
      %v2510 = vmul.f32 %v2122, 0.01
      %v2511 = vmul.f32 %v2127, 0.01
      %v2512 = vmul.f32 %v2130, 0.01
      %v2513 = vmul.f32 %v2135, 0.01
      %v2514 = vmul.f32 %v2138, 0.01
      %v2515 = vmul.f32 %v2143, 0.01
      %v2516 = vmul.f32 %v2146, 0.01
      %v2517 = vmul.f32 %v2151, 0.01
      %v2518 = vmul.f32 %v2154, 0.01
      %v2519 = vmul.f32 %v2159, 0.01
      %v2520 = vmul.f32 %v2162, 0.01
      %v2521 = vmul.f32 %v2167, 0.01
      %v2522 = vmul.f32 %v2170, 0.01
      %v2523 = vmul.f32 %v2175, 0.01
      %v2524 = vmul.f32 %v2178, 0.01
      %v2525 = vmul.f32 %v2183, 0.01
      %v2526 = vsel %vm2188, %v1511, %v2357
      %v2527 = vsel %vm2189, %v1514, %v2358
      %v2528 = vsel %vm2190, %v1519, %v2359
      %v2529 = vsel %vm2191, %v1522, %v2360
      %v2530 = vsel %vm2192, %v1527, %v2361
      %v2531 = vsel %vm2193, %v1530, %v2362
      %v2532 = vsel %vm2194, %v1535, %v2363
      %v2533 = vsel %vm2195, %v1538, %v2364
      %v2534 = vsel %vm2196, %v1543, %v2365
      %v2535 = vsel %vm2197, %v1546, %v2366
      %v2536 = vsel %vm2198, %v1551, %v2367
      %v2537 = vsel %vm2199, %v1554, %v2368
      %v2538 = vsel %vm2200, %v1559, %v2369
      %v2539 = vsel %vm2201, %v1562, %v2370
      %v2540 = vsel %vm2202, %v1567, %v2371
      %v2541 = vsel %vm2203, %v1570, %v2372
      %v2542 = vsel %vm2204, %v1575, %v2373
      %v2543 = vsel %vm2205, %v1578, %v2374
      %v2544 = vsel %vm2206, %v1583, %v2375
      %v2545 = vsel %vm2207, %v1586, %v2376
      %v2546 = vsel %vm2208, %v1591, %v2377
      %v2547 = vsel %vm2209, %v1594, %v2378
      %v2548 = vsel %vm2210, %v1599, %v2379
      %v2549 = vsel %vm2211, %v1602, %v2380
      %v2550 = vsel %vm2212, %v1607, %v2381
      %v2551 = vsel %vm2213, %v1610, %v2382
      %v2552 = vsel %vm2214, %v1615, %v2383
      %v2553 = vsel %vm2215, %v1618, %v2384
      %v2554 = vsel %vm2216, %v1623, %v2385
      %v2555 = vsel %vm2217, %v1626, %v2386
      %v2556 = vsel %vm2218, %v1631, %v2387
      %v2557 = vsel %vm2219, %v1634, %v2388
      %v2558 = vsel %vm2220, %v1639, %v2389
      %v2559 = vsel %vm2221, %v1642, %v2390
      %v2560 = vsel %vm2222, %v1647, %v2391
      %v2561 = vsel %vm2223, %v1650, %v2392
      %v2562 = vsel %vm2224, %v1655, %v2393
      %v2563 = vsel %vm2225, %v1658, %v2394
      %v2564 = vsel %vm2226, %v1663, %v2395
      %v2565 = vsel %vm2227, %v1666, %v2396
      %v2566 = vsel %vm2228, %v1671, %v2397
      %v2567 = vsel %vm2229, %v1674, %v2398
      %v2568 = vsel %vm2230, %v1679, %v2399
      %v2569 = vsel %vm2231, %v1682, %v2400
      %v2570 = vsel %vm2232, %v1687, %v2401
      %v2571 = vsel %vm2233, %v1690, %v2402
      %v2572 = vsel %vm2234, %v1695, %v2403
      %v2573 = vsel %vm2235, %v1698, %v2404
      %v2574 = vsel %vm2236, %v1703, %v2405
      %v2575 = vsel %vm2237, %v1706, %v2406
      %v2576 = vsel %vm2238, %v1711, %v2407
      %v2577 = vsel %vm2239, %v1714, %v2408
      %v2578 = vsel %vm2240, %v1719, %v2409
      %v2579 = vsel %vm2241, %v1722, %v2410
      %v2580 = vsel %vm2242, %v1727, %v2411
      %v2581 = vsel %vm2243, %v1730, %v2412
      %v2582 = vsel %vm2244, %v1735, %v2413
      %v2583 = vsel %vm2245, %v1738, %v2414
      %v2584 = vsel %vm2246, %v1743, %v2415
      %v2585 = vsel %vm2247, %v1746, %v2416
      %v2586 = vsel %vm2248, %v1751, %v2417
      %v2587 = vsel %vm2249, %v1754, %v2418
      %v2588 = vsel %vm2250, %v1759, %v2419
      %v2589 = vsel %vm2251, %v1762, %v2420
      %v2590 = vsel %vm2252, %v1767, %v2421
      %v2591 = vsel %vm2253, %v1770, %v2422
      %v2592 = vsel %vm2254, %v1775, %v2423
      %v2593 = vsel %vm2255, %v1778, %v2424
      %v2594 = vsel %vm2256, %v1783, %v2425
      %v2595 = vsel %vm2257, %v1786, %v2426
      %v2596 = vsel %vm2258, %v1791, %v2427
      %v2597 = vsel %vm2259, %v1794, %v2428
      %v2598 = vsel %vm2260, %v1799, %v2429
      %v2599 = vsel %vm2261, %v1802, %v2430
      %v2600 = vsel %vm2262, %v1807, %v2431
      %v2601 = vsel %vm2263, %v1810, %v2432
      %v2602 = vsel %vm2264, %v1815, %v2433
      %v2603 = vsel %vm2265, %v1818, %v2434
      %v2604 = vsel %vm2266, %v1823, %v2435
      %v2605 = vsel %vm2267, %v1826, %v2436
      %v2606 = vsel %vm2268, %v1831, %v2437
      %v2607 = vsel %vm2269, %v1834, %v2438
      %v2608 = vsel %vm2270, %v1839, %v2439
      %v2609 = vsel %vm2271, %v1842, %v2440
      %v2610 = vsel %vm2272, %v1847, %v2441
      %v2611 = vsel %vm2273, %v1850, %v2442
      %v2612 = vsel %vm2274, %v1855, %v2443
      %v2613 = vsel %vm2275, %v1858, %v2444
      %v2614 = vsel %vm2276, %v1863, %v2445
      %v2615 = vsel %vm2277, %v1866, %v2446
      %v2616 = vsel %vm2278, %v1871, %v2447
      %v2617 = vsel %vm2279, %v1874, %v2448
      %v2618 = vsel %vm2280, %v1879, %v2449
      %v2619 = vsel %vm2281, %v1882, %v2450
      %v2620 = vsel %vm2282, %v1887, %v2451
      %v2621 = vsel %vm2283, %v1890, %v2452
      %v2622 = vsel %vm2284, %v1895, %v2453
      %v2623 = vsel %vm2285, %v1898, %v2454
      %v2624 = vsel %vm2286, %v1903, %v2455
      %v2625 = vsel %vm2287, %v1906, %v2456
      %v2626 = vsel %vm2288, %v1911, %v2457
      %v2627 = vsel %vm2289, %v1914, %v2458
      %v2628 = vsel %vm2290, %v1919, %v2459
      %v2629 = vsel %vm2291, %v1922, %v2460
      %v2630 = vsel %vm2292, %v1927, %v2461
      %v2631 = vsel %vm2293, %v1930, %v2462
      %v2632 = vsel %vm2294, %v1935, %v2463
      %v2633 = vsel %vm2295, %v1938, %v2464
      %v2634 = vsel %vm2296, %v1943, %v2465
      %v2635 = vsel %vm2297, %v1946, %v2466
      %v2636 = vsel %vm2298, %v1951, %v2467
      %v2637 = vsel %vm2299, %v1954, %v2468
      %v2638 = vsel %vm2300, %v1959, %v2469
      %v2639 = vsel %vm2301, %v1962, %v2470
      %v2640 = vsel %vm2302, %v1967, %v2471
      %v2641 = vsel %vm2303, %v1970, %v2472
      %v2642 = vsel %vm2304, %v1975, %v2473
      %v2643 = vsel %vm2305, %v1978, %v2474
      %v2644 = vsel %vm2306, %v1983, %v2475
      %v2645 = vsel %vm2307, %v1986, %v2476
      %v2646 = vsel %vm2308, %v1991, %v2477
      %v2647 = vsel %vm2309, %v1994, %v2478
      %v2648 = vsel %vm2310, %v1999, %v2479
      %v2649 = vsel %vm2311, %v2002, %v2480
      %v2650 = vsel %vm2312, %v2007, %v2481
      %v2651 = vsel %vm2313, %v2010, %v2482
      %v2652 = vsel %vm2314, %v2015, %v2483
      %v2653 = vsel %vm2315, %v2018, %v2484
      %v2654 = vsel %vm2316, %v2023, %v2485
      %v2655 = vsel %vm2317, %v2026, %v2486
      %v2656 = vsel %vm2318, %v2031, %v2487
      %v2657 = vsel %vm2319, %v2034, %v2488
      %v2658 = vsel %vm2320, %v2039, %v2489
      %v2659 = vsel %vm2321, %v2042, %v2490
      %v2660 = vsel %vm2322, %v2047, %v2491
      %v2661 = vsel %vm2323, %v2050, %v2492
      %v2662 = vsel %vm2324, %v2055, %v2493
      %v2663 = vsel %vm2325, %v2058, %v2494
      %v2664 = vsel %vm2326, %v2063, %v2495
      %v2665 = vsel %vm2327, %v2066, %v2496
      %v2666 = vsel %vm2328, %v2071, %v2497
      %v2667 = vsel %vm2329, %v2074, %v2498
      %v2668 = vsel %vm2330, %v2079, %v2499
      %v2669 = vsel %vm2331, %v2082, %v2500
      %v2670 = vsel %vm2332, %v2087, %v2501
      %v2671 = vsel %vm2333, %v2090, %v2502
      %v2672 = vsel %vm2334, %v2095, %v2503
      %v2673 = vsel %vm2335, %v2098, %v2504
      %v2674 = vsel %vm2336, %v2103, %v2505
      %v2675 = vsel %vm2337, %v2106, %v2506
      %v2676 = vsel %vm2338, %v2111, %v2507
      %v2677 = vsel %vm2339, %v2114, %v2508
      %v2678 = vsel %vm2340, %v2119, %v2509
      %v2679 = vsel %vm2341, %v2122, %v2510
      %v2680 = vsel %vm2342, %v2127, %v2511
      %v2681 = vsel %vm2343, %v2130, %v2512
      %v2682 = vsel %vm2344, %v2135, %v2513
      %v2683 = vsel %vm2345, %v2138, %v2514
      %v2684 = vsel %vm2346, %v2143, %v2515
      %v2685 = vsel %vm2347, %v2146, %v2516
      %v2686 = vsel %vm2348, %v2151, %v2517
      %v2687 = vsel %vm2349, %v2154, %v2518
      %v2688 = vsel %vm2350, %v2159, %v2519
      %v2689 = vsel %vm2351, %v2162, %v2520
      %v2690 = vsel %vm2352, %v2167, %v2521
      %v2691 = vsel %vm2353, %v2170, %v2522
      %v2692 = vsel %vm2354, %v2175, %v2523
      %v2693 = vsel %vm2355, %v2178, %v2524
      %v2694 = vsel %vm2356, %v2183, %v2525
      %v2695 = vpack.c.bf16 %v2527, %v2526
      %v2696 = vpack.c.bf16 %v2529, %v2528
      %v2697 = vpack.c.bf16 %v2531, %v2530
      %v2698 = vpack.c.bf16 %v2533, %v2532
      %v2699 = vpack.c.bf16 %v2535, %v2534
      %v2700 = vpack.c.bf16 %v2537, %v2536
      %v2701 = vpack.c.bf16 %v2539, %v2538
      %v2702 = vpack.c.bf16 %v2541, %v2540
      %v2703 = vpack.c.bf16 %v2543, %v2542
      %v2704 = vpack.c.bf16 %v2545, %v2544
      %v2705 = vpack.c.bf16 %v2547, %v2546
      %v2706 = vpack.c.bf16 %v2549, %v2548
      %v2707 = vpack.c.bf16 %v2551, %v2550
      %v2708 = vpack.c.bf16 %v2553, %v2552
      %v2709 = vpack.c.bf16 %v2555, %v2554
      %v2710 = vpack.c.bf16 %v2557, %v2556
      %v2711 = vpack.c.bf16 %v2559, %v2558
      %v2712 = vpack.c.bf16 %v2561, %v2560
      %v2713 = vpack.c.bf16 %v2563, %v2562
      %v2714 = vpack.c.bf16 %v2565, %v2564
      %v2715 = vpack.c.bf16 %v2567, %v2566
      %v2716 = vpack.c.bf16 %v2569, %v2568
      %v2717 = vpack.c.bf16 %v2571, %v2570
      %v2718 = vpack.c.bf16 %v2573, %v2572
      %v2719 = vpack.c.bf16 %v2575, %v2574
      %v2720 = vpack.c.bf16 %v2577, %v2576
      %v2721 = vpack.c.bf16 %v2579, %v2578
      %v2722 = vpack.c.bf16 %v2581, %v2580
      %v2723 = vpack.c.bf16 %v2583, %v2582
      %v2724 = vpack.c.bf16 %v2585, %v2584
      %v2725 = vpack.c.bf16 %v2587, %v2586
      %v2726 = vpack.c.bf16 %v2589, %v2588
      %v2727 = vpack.c.bf16 %v2591, %v2590
      %v2728 = vpack.c.bf16 %v2593, %v2592
      %v2729 = vpack.c.bf16 %v2595, %v2594
      %v2730 = vpack.c.bf16 %v2597, %v2596
      %v2731 = vpack.c.bf16 %v2599, %v2598
      %v2732 = vpack.c.bf16 %v2601, %v2600
      %v2733 = vpack.c.bf16 %v2603, %v2602
      %v2734 = vpack.c.bf16 %v2605, %v2604
      %v2735 = vpack.c.bf16 %v2607, %v2606
      %v2736 = vpack.c.bf16 %v2609, %v2608
      %v2737 = vpack.c.bf16 %v2611, %v2610
      %v2738 = vpack.c.bf16 %v2613, %v2612
      %v2739 = vpack.c.bf16 %v2615, %v2614
      %v2740 = vpack.c.bf16 %v2617, %v2616
      %v2741 = vpack.c.bf16 %v2619, %v2618
      %v2742 = vpack.c.bf16 %v2621, %v2620
      %v2743 = vpack.c.bf16 %v2623, %v2622
      %v2744 = vpack.c.bf16 %v2625, %v2624
      %v2745 = vpack.c.bf16 %v2627, %v2626
      %v2746 = vpack.c.bf16 %v2629, %v2628
      %v2747 = vpack.c.bf16 %v2631, %v2630
      %v2748 = vpack.c.bf16 %v2633, %v2632
      %v2749 = vpack.c.bf16 %v2635, %v2634
      %v2750 = vpack.c.bf16 %v2637, %v2636
      %v2751 = vpack.c.bf16 %v2639, %v2638
      %v2752 = vpack.c.bf16 %v2641, %v2640
      %v2753 = vpack.c.bf16 %v2643, %v2642
      %v2754 = vpack.c.bf16 %v2645, %v2644
      %v2755 = vpack.c.bf16 %v2647, %v2646
      %v2756 = vpack.c.bf16 %v2649, %v2648
      %v2757 = vpack.c.bf16 %v2651, %v2650
      %v2758 = vpack.c.bf16 %v2653, %v2652
      %v2759 = vpack.c.bf16 %v2655, %v2654
      %v2760 = vpack.c.bf16 %v2657, %v2656
      %v2761 = vpack.c.bf16 %v2659, %v2658
      %v2762 = vpack.c.bf16 %v2661, %v2660
      %v2763 = vpack.c.bf16 %v2663, %v2662
      %v2764 = vpack.c.bf16 %v2665, %v2664
      %v2765 = vpack.c.bf16 %v2667, %v2666
      %v2766 = vpack.c.bf16 %v2669, %v2668
      %v2767 = vpack.c.bf16 %v2671, %v2670
      %v2768 = vpack.c.bf16 %v2673, %v2672
      %v2769 = vpack.c.bf16 %v2675, %v2674
      %v2770 = vpack.c.bf16 %v2677, %v2676
      %v2771 = vpack.c.bf16 %v2679, %v2678
      %v2772 = vpack.c.bf16 %v2681, %v2680
      %v2773 = vpack.c.bf16 %v2683, %v2682
      %v2774 = vpack.c.bf16 %v2685, %v2684
      %v2775 = vpack.c.bf16 %v2687, %v2686
      %v2776 = vpack.c.bf16 %v2689, %v2688
      %v2777 = vpack.c.bf16 %v2691, %v2690
      %v2778 = vpack.c.bf16 %v2693, %v2692
      %v2779 = vpack.c.bf16 %v2694, %v2694
      %v2865 = vunpack.c.l.b16 %v2695
      %v2866 = vunpack.c.h.b16 %v2695
      %v2867 = vunpack.c.l.b16 %v2696
      %v2868 = vunpack.c.h.b16 %v2696
      %v2869 = vunpack.c.l.b16 %v2697
      %v2870 = vunpack.c.h.b16 %v2697
      %v2871 = vunpack.c.l.b16 %v2698
      %v2872 = vunpack.c.h.b16 %v2698
      %v2873 = vunpack.c.l.b16 %v2699
      %v2874 = vunpack.c.h.b16 %v2699
      %v2875 = vunpack.c.l.b16 %v2700
      %v2876 = vunpack.c.h.b16 %v2700
      %v2877 = vunpack.c.l.b16 %v2701
      %v2878 = vunpack.c.h.b16 %v2701
      %v2879 = vunpack.c.l.b16 %v2702
      %v2880 = vunpack.c.h.b16 %v2702
      %v2881 = vunpack.c.l.b16 %v2703
      %v2882 = vunpack.c.h.b16 %v2703
      %v2883 = vunpack.c.l.b16 %v2704
      %v2884 = vunpack.c.h.b16 %v2704
      %v2885 = vunpack.c.l.b16 %v2705
      %v2886 = vunpack.c.h.b16 %v2705
      %v2887 = vunpack.c.l.b16 %v2706
      %v2888 = vunpack.c.h.b16 %v2706
      %v2889 = vunpack.c.l.b16 %v2707
      %v2890 = vunpack.c.h.b16 %v2707
      %v2891 = vunpack.c.l.b16 %v2708
      %v2892 = vunpack.c.h.b16 %v2708
      %v2893 = vunpack.c.l.b16 %v2709
      %v2894 = vunpack.c.h.b16 %v2709
      %v2895 = vunpack.c.l.b16 %v2710
      %v2896 = vunpack.c.h.b16 %v2710
      %v2897 = vunpack.c.l.b16 %v2711
      %v2898 = vunpack.c.h.b16 %v2711
      %v2899 = vunpack.c.l.b16 %v2712
      %v2900 = vunpack.c.h.b16 %v2712
      %v2901 = vunpack.c.l.b16 %v2713
      %v2902 = vunpack.c.h.b16 %v2713
      %v2903 = vunpack.c.l.b16 %v2714
      %v2904 = vunpack.c.h.b16 %v2714
      %v2905 = vunpack.c.l.b16 %v2715
      %v2906 = vunpack.c.h.b16 %v2715
      %v2907 = vunpack.c.l.b16 %v2716
      %v2908 = vunpack.c.h.b16 %v2716
      %v2909 = vunpack.c.l.b16 %v2717
      %v2910 = vunpack.c.h.b16 %v2717
      %v2911 = vunpack.c.l.b16 %v2718
      %v2912 = vunpack.c.h.b16 %v2718
      %v2913 = vunpack.c.l.b16 %v2719
      %v2914 = vunpack.c.h.b16 %v2719
      %v2915 = vunpack.c.l.b16 %v2720
      %v2916 = vunpack.c.h.b16 %v2720
      %v2917 = vunpack.c.l.b16 %v2721
      %v2918 = vunpack.c.h.b16 %v2721
      %v2919 = vunpack.c.l.b16 %v2722
      %v2920 = vunpack.c.h.b16 %v2722
      %v2921 = vunpack.c.l.b16 %v2723
      %v2922 = vunpack.c.h.b16 %v2723
      %v2923 = vunpack.c.l.b16 %v2724
      %v2924 = vunpack.c.h.b16 %v2724
      %v2925 = vunpack.c.l.b16 %v2725
      %v2926 = vunpack.c.h.b16 %v2725
      %v2927 = vunpack.c.l.b16 %v2726
      %v2928 = vunpack.c.h.b16 %v2726
      %v2929 = vunpack.c.l.b16 %v2727
      %v2930 = vunpack.c.h.b16 %v2727
      %v2931 = vunpack.c.l.b16 %v2728
      %v2932 = vunpack.c.h.b16 %v2728
      %v2933 = vunpack.c.l.b16 %v2729
      %v2934 = vunpack.c.h.b16 %v2729
      %v2935 = vunpack.c.l.b16 %v2730
      %v2936 = vunpack.c.h.b16 %v2730
      %v2937 = vunpack.c.l.b16 %v2731
      %v2938 = vunpack.c.h.b16 %v2731
      %v2939 = vunpack.c.l.b16 %v2732
      %v2940 = vunpack.c.h.b16 %v2732
      %v2941 = vunpack.c.l.b16 %v2733
      %v2942 = vunpack.c.h.b16 %v2733
      %v2943 = vunpack.c.l.b16 %v2734
      %v2944 = vunpack.c.h.b16 %v2734
      %v2945 = vunpack.c.l.b16 %v2735
      %v2946 = vunpack.c.h.b16 %v2735
      %v2947 = vunpack.c.l.b16 %v2736
      %v2948 = vunpack.c.h.b16 %v2736
      %v2949 = vunpack.c.l.b16 %v2737
      %v2950 = vunpack.c.h.b16 %v2737
      %v2951 = vunpack.c.l.b16 %v2738
      %v2952 = vunpack.c.h.b16 %v2738
      %v2953 = vunpack.c.l.b16 %v2739
      %v2954 = vunpack.c.h.b16 %v2739
      %v2955 = vunpack.c.l.b16 %v2740
      %v2956 = vunpack.c.h.b16 %v2740
      %v2957 = vunpack.c.l.b16 %v2741
      %v2958 = vunpack.c.h.b16 %v2741
      %v2959 = vunpack.c.l.b16 %v2742
      %v2960 = vunpack.c.h.b16 %v2742
      %v2961 = vunpack.c.l.b16 %v2743
      %v2962 = vunpack.c.h.b16 %v2743
      %v2963 = vunpack.c.l.b16 %v2744
      %v2964 = vunpack.c.h.b16 %v2744
      %v2965 = vunpack.c.l.b16 %v2745
      %v2966 = vunpack.c.h.b16 %v2745
      %v2967 = vunpack.c.l.b16 %v2746
      %v2968 = vunpack.c.h.b16 %v2746
      %v2969 = vunpack.c.l.b16 %v2747
      %v2970 = vunpack.c.h.b16 %v2747
      %v2971 = vunpack.c.l.b16 %v2748
      %v2972 = vunpack.c.h.b16 %v2748
      %v2973 = vunpack.c.l.b16 %v2749
      %v2974 = vunpack.c.h.b16 %v2749
      %v2975 = vunpack.c.l.b16 %v2750
      %v2976 = vunpack.c.h.b16 %v2750
      %v2977 = vunpack.c.l.b16 %v2751
      %v2978 = vunpack.c.h.b16 %v2751
      %v2979 = vunpack.c.l.b16 %v2752
      %v2980 = vunpack.c.h.b16 %v2752
      %v2981 = vunpack.c.l.b16 %v2753
      %v2982 = vunpack.c.h.b16 %v2753
      %v2983 = vunpack.c.l.b16 %v2754
      %v2984 = vunpack.c.h.b16 %v2754
      %v2985 = vunpack.c.l.b16 %v2755
      %v2986 = vunpack.c.h.b16 %v2755
      %v2987 = vunpack.c.l.b16 %v2756
      %v2988 = vunpack.c.h.b16 %v2756
      %v2989 = vunpack.c.l.b16 %v2757
      %v2990 = vunpack.c.h.b16 %v2757
      %v2991 = vunpack.c.l.b16 %v2758
      %v2992 = vunpack.c.h.b16 %v2758
      %v2993 = vunpack.c.l.b16 %v2759
      %v2994 = vunpack.c.h.b16 %v2759
      %v2995 = vunpack.c.l.b16 %v2760
      %v2996 = vunpack.c.h.b16 %v2760
      %v2997 = vunpack.c.l.b16 %v2761
      %v2998 = vunpack.c.h.b16 %v2761
      %v2999 = vunpack.c.l.b16 %v2762
      %v3000 = vunpack.c.h.b16 %v2762
      %v3001 = vunpack.c.l.b16 %v2763
      %v3002 = vunpack.c.h.b16 %v2763
      %v3003 = vunpack.c.l.b16 %v2764
      %v3004 = vunpack.c.h.b16 %v2764
      %v3005 = vunpack.c.l.b16 %v2765
      %v3006 = vunpack.c.h.b16 %v2765
      %v3007 = vunpack.c.l.b16 %v2766
      %v3008 = vunpack.c.h.b16 %v2766
      %v3009 = vunpack.c.l.b16 %v2767
      %v3010 = vunpack.c.h.b16 %v2767
      %v3011 = vunpack.c.l.b16 %v2768
      %v3012 = vunpack.c.h.b16 %v2768
      %v3013 = vunpack.c.l.b16 %v2769
      %v3014 = vunpack.c.h.b16 %v2769
      %v3015 = vunpack.c.l.b16 %v2770
      %v3016 = vunpack.c.h.b16 %v2770
      %v3017 = vunpack.c.l.b16 %v2771
      %v3018 = vunpack.c.h.b16 %v2771
      %v3019 = vunpack.c.l.b16 %v2772
      %v3020 = vunpack.c.h.b16 %v2772
      %v3021 = vunpack.c.l.b16 %v2773
      %v3022 = vunpack.c.h.b16 %v2773
      %v3023 = vunpack.c.l.b16 %v2774
      %v3024 = vunpack.c.h.b16 %v2774
      %v3025 = vunpack.c.l.b16 %v2775
      %v3026 = vunpack.c.h.b16 %v2775
      %v3027 = vunpack.c.l.b16 %v2776
      %v3028 = vunpack.c.h.b16 %v2776
      %v3029 = vunpack.c.l.b16 %v2777
      %v3030 = vunpack.c.h.b16 %v2777
      %v3031 = vunpack.c.l.b16 %v2778
      %v3032 = vunpack.c.h.b16 %v2778
      %v3033 = vunpack.c.l.b16 %v2779
      %v3034 = vpack.c.b16 %v2865, %v2865
      %v3035 = vpack.c.b16 %v2866, %v2866
      %v3036 = vpack.c.b16 %v2867, %v2867
      %v3037 = vpack.c.b16 %v2868, %v2868
      %v3038 = vpack.c.b16 %v2869, %v2869
      %v3039 = vpack.c.b16 %v2870, %v2870
      %v3040 = vpack.c.b16 %v2871, %v2871
      %v3041 = vpack.c.b16 %v2872, %v2872
      %v3042 = vpack.c.b16 %v2873, %v2873
      %v3043 = vpack.c.b16 %v2874, %v2874
      %v3044 = vpack.c.b16 %v2875, %v2875
      %v3045 = vpack.c.b16 %v2876, %v2876
      %v3046 = vpack.c.b16 %v2877, %v2877
      %v3047 = vpack.c.b16 %v2878, %v2878
      %v3048 = vpack.c.b16 %v2879, %v2879
      %v3049 = vpack.c.b16 %v2880, %v2880
      %v3050 = vpack.c.b16 %v2881, %v2881
      %v3051 = vpack.c.b16 %v2882, %v2882
      %v3052 = vpack.c.b16 %v2883, %v2883
      %v3053 = vpack.c.b16 %v2884, %v2884
      %v3054 = vpack.c.b16 %v2885, %v2885
      %v3055 = vpack.c.b16 %v2886, %v2886
      %v3056 = vpack.c.b16 %v2887, %v2887
      %v3057 = vpack.c.b16 %v2888, %v2888
      %v3058 = vpack.c.b16 %v2889, %v2889
      %v3059 = vpack.c.b16 %v2890, %v2890
      %v3060 = vpack.c.b16 %v2891, %v2891
      %v3061 = vpack.c.b16 %v2892, %v2892
      %v3062 = vpack.c.b16 %v2893, %v2893
      %v3063 = vpack.c.b16 %v2894, %v2894
      %v3064 = vpack.c.b16 %v2895, %v2895
      %v3065 = vpack.c.b16 %v2896, %v2896
      %v3066 = vpack.c.b16 %v2897, %v2897
      %v3067 = vpack.c.b16 %v2898, %v2898
      %v3068 = vpack.c.b16 %v2899, %v2899
      %v3069 = vpack.c.b16 %v2900, %v2900
      %v3070 = vpack.c.b16 %v2901, %v2901
      %v3071 = vpack.c.b16 %v2902, %v2902
      %v3072 = vpack.c.b16 %v2903, %v2903
      %v3073 = vpack.c.b16 %v2904, %v2904
      %v3074 = vpack.c.b16 %v2905, %v2905
      %v3075 = vpack.c.b16 %v2906, %v2906
      %v3076 = vpack.c.b16 %v2907, %v2907
      %v3077 = vpack.c.b16 %v2908, %v2908
      %v3078 = vpack.c.b16 %v2909, %v2909
      %v3079 = vpack.c.b16 %v2910, %v2910
      %v3080 = vpack.c.b16 %v2911, %v2911
      %v3081 = vpack.c.b16 %v2912, %v2912
      %v3082 = vpack.c.b16 %v2913, %v2913
      %v3083 = vpack.c.b16 %v2914, %v2914
      %v3084 = vpack.c.b16 %v2915, %v2915
      %v3085 = vpack.c.b16 %v2916, %v2916
      %v3086 = vpack.c.b16 %v2917, %v2917
      %v3087 = vpack.c.b16 %v2918, %v2918
      %v3088 = vpack.c.b16 %v2919, %v2919
      %v3089 = vpack.c.b16 %v2920, %v2920
      %v3090 = vpack.c.b16 %v2921, %v2921
      %v3091 = vpack.c.b16 %v2922, %v2922
      %v3092 = vpack.c.b16 %v2923, %v2923
      %v3093 = vpack.c.b16 %v2924, %v2924
      %v3094 = vpack.c.b16 %v2925, %v2925
      %v3095 = vpack.c.b16 %v2926, %v2926
      %v3096 = vpack.c.b16 %v2927, %v2927
      %v3097 = vpack.c.b16 %v2928, %v2928
      %v3098 = vpack.c.b16 %v2929, %v2929
      %v3099 = vpack.c.b16 %v2930, %v2930
      %v3100 = vpack.c.b16 %v2931, %v2931
      %v3101 = vpack.c.b16 %v2932, %v2932
      %v3102 = vpack.c.b16 %v2933, %v2933
      %v3103 = vpack.c.b16 %v2934, %v2934
      %v3104 = vpack.c.b16 %v2935, %v2935
      %v3105 = vpack.c.b16 %v2936, %v2936
      %v3106 = vpack.c.b16 %v2937, %v2937
      %v3107 = vpack.c.b16 %v2938, %v2938
      %v3108 = vpack.c.b16 %v2939, %v2939
      %v3109 = vpack.c.b16 %v2940, %v2940
      %v3110 = vpack.c.b16 %v2941, %v2941
      %v3111 = vpack.c.b16 %v2942, %v2942
      %v3112 = vpack.c.b16 %v2943, %v2943
      %v3113 = vpack.c.b16 %v2944, %v2944
      %v3114 = vpack.c.b16 %v2945, %v2945
      %v3115 = vpack.c.b16 %v2946, %v2946
      %v3116 = vpack.c.b16 %v2947, %v2947
      %v3117 = vpack.c.b16 %v2948, %v2948
      %v3118 = vpack.c.b16 %v2949, %v2949
      %v3119 = vpack.c.b16 %v2950, %v2950
      %v3120 = vpack.c.b16 %v2951, %v2951
      %v3121 = vpack.c.b16 %v2952, %v2952
      %v3122 = vpack.c.b16 %v2953, %v2953
      %v3123 = vpack.c.b16 %v2954, %v2954
      %v3124 = vpack.c.b16 %v2955, %v2955
      %v3125 = vpack.c.b16 %v2956, %v2956
      %v3126 = vpack.c.b16 %v2957, %v2957
      %v3127 = vpack.c.b16 %v2958, %v2958
      %v3128 = vpack.c.b16 %v2959, %v2959
      %v3129 = vpack.c.b16 %v2960, %v2960
      %v3130 = vpack.c.b16 %v2961, %v2961
      %v3131 = vpack.c.b16 %v2962, %v2962
      %v3132 = vpack.c.b16 %v2963, %v2963
      %v3133 = vpack.c.b16 %v2964, %v2964
      %v3134 = vpack.c.b16 %v2965, %v2965
      %v3135 = vpack.c.b16 %v2966, %v2966
      %v3136 = vpack.c.b16 %v2967, %v2967
      %v3137 = vpack.c.b16 %v2968, %v2968
      %v3138 = vpack.c.b16 %v2969, %v2969
      %v3139 = vpack.c.b16 %v2970, %v2970
      %v3140 = vpack.c.b16 %v2971, %v2971
      %v3141 = vpack.c.b16 %v2972, %v2972
      %v3142 = vpack.c.b16 %v2973, %v2973
      %v3143 = vpack.c.b16 %v2974, %v2974
      %v3144 = vpack.c.b16 %v2975, %v2975
      %v3145 = vpack.c.b16 %v2976, %v2976
      %v3146 = vpack.c.b16 %v2977, %v2977
      %v3147 = vpack.c.b16 %v2978, %v2978
      %v3148 = vpack.c.b16 %v2979, %v2979
      %v3149 = vpack.c.b16 %v2980, %v2980
      %v3150 = vpack.c.b16 %v2981, %v2981
      %v3151 = vpack.c.b16 %v2982, %v2982
      %v3152 = vpack.c.b16 %v2983, %v2983
      %v3153 = vpack.c.b16 %v2984, %v2984
      %v3154 = vpack.c.b16 %v2985, %v2985
      %v3155 = vpack.c.b16 %v2986, %v2986
      %v3156 = vpack.c.b16 %v2987, %v2987
      %v3157 = vpack.c.b16 %v2988, %v2988
      %v3158 = vpack.c.b16 %v2989, %v2989
      %v3159 = vpack.c.b16 %v2990, %v2990
      %v3160 = vpack.c.b16 %v2991, %v2991
      %v3161 = vpack.c.b16 %v2992, %v2992
      %v3162 = vpack.c.b16 %v2993, %v2993
      %v3163 = vpack.c.b16 %v2994, %v2994
      %v3164 = vpack.c.b16 %v2995, %v2995
      %v3165 = vpack.c.b16 %v2996, %v2996
      %v3166 = vpack.c.b16 %v2997, %v2997
      %v3167 = vpack.c.b16 %v2998, %v2998
      %v3168 = vpack.c.b16 %v2999, %v2999
      %v3169 = vpack.c.b16 %v3000, %v3000
      %v3170 = vpack.c.b16 %v3001, %v3001
      %v3171 = vpack.c.b16 %v3002, %v3002
      %v3172 = vpack.c.b16 %v3003, %v3003
      %v3173 = vpack.c.b16 %v3004, %v3004
      %v3174 = vpack.c.b16 %v3005, %v3005
      %v3175 = vpack.c.b16 %v3006, %v3006
      %v3176 = vpack.c.b16 %v3007, %v3007
      %v3177 = vpack.c.b16 %v3008, %v3008
      %v3178 = vpack.c.b16 %v3009, %v3009
      %v3179 = vpack.c.b16 %v3010, %v3010
      %v3180 = vpack.c.b16 %v3011, %v3011
      %v3181 = vpack.c.b16 %v3012, %v3012
      %v3182 = vpack.c.b16 %v3013, %v3013
      %v3183 = vpack.c.b16 %v3014, %v3014
      %v3184 = vpack.c.b16 %v3015, %v3015
      %v3185 = vpack.c.b16 %v3016, %v3016
      %v3186 = vpack.c.b16 %v3017, %v3017
      %v3187 = vpack.c.b16 %v3018, %v3018
      %v3188 = vpack.c.b16 %v3019, %v3019
      %v3189 = vpack.c.b16 %v3020, %v3020
      %v3190 = vpack.c.b16 %v3021, %v3021
      %v3191 = vpack.c.b16 %v3022, %v3022
      %v3192 = vpack.c.b16 %v3023, %v3023
      %v3193 = vpack.c.b16 %v3024, %v3024
      %v3194 = vpack.c.b16 %v3025, %v3025
      %v3195 = vpack.c.b16 %v3026, %v3026
      %v3196 = vpack.c.b16 %v3027, %v3027
      %v3197 = vpack.c.b16 %v3028, %v3028
      %v3198 = vpack.c.b16 %v3029, %v3029
      %v3199 = vpack.c.b16 %v3030, %v3030
      %v3200 = vpack.c.b16 %v3031, %v3031
      %v3201 = vpack.c.b16 %v3032, %v3032
      %v3202 = vpack.c.b16 %v3033, %v3033
      %vm3372 = vcmask 125952
      %3373 = vst.msk [vmem:[%s175] sm:$0xf] %vm3372, %v3034
      %3374 = vst.msk [vmem:[%s175 + $0x4] sm:$0xf] %vm3372, %v3035
      %3375 = vst.msk [vmem:[%s175 + $0x8] sm:$0xf] %vm3372, %v3036
      %3376 = vst.msk [vmem:[%s175 + $0xc] sm:$0xf] %vm3372, %v3037
      %3377 = vst.msk [vmem:[%s175 + $0x10] sm:$0xf] %vm3372, %v3038
      %3378 = vst.msk [vmem:[%s175 + $0x14] sm:$0xf] %vm3372, %v3039
      %3379 = vst.msk [vmem:[%s175 + $0x18] sm:$0xf] %vm3372, %v3040
      %3380 = vst.msk [vmem:[%s175 + $0x1c] sm:$0xf] %vm3372, %v3041
      %3381 = vst.msk [vmem:[%s175 + $0x20] sm:$0xf] %vm3372, %v3042
      %3382 = vst.msk [vmem:[%s175 + $0x24] sm:$0xf] %vm3372, %v3043
      %3383 = vst.msk [vmem:[%s175 + $0x28] sm:$0xf] %vm3372, %v3044
      %3384 = vst.msk [vmem:[%s175 + $0x2c] sm:$0xf] %vm3372, %v3045
      %3385 = vst.msk [vmem:[%s175 + $0x30] sm:$0xf] %vm3372, %v3046
      %3386 = vst.msk [vmem:[%s175 + $0x34] sm:$0xf] %vm3372, %v3047
      %3387 = vst.msk [vmem:[%s175 + $0x38] sm:$0xf] %vm3372, %v3048
      %3388 = vst.msk [vmem:[%s175 + $0x3c] sm:$0xf] %vm3372, %v3049
      %3389 = vst.msk [vmem:[%s175 + $0x40] sm:$0xf] %vm3372, %v3050
      %3390 = vst.msk [vmem:[%s175 + $0x44] sm:$0xf] %vm3372, %v3051
      %3391 = vst.msk [vmem:[%s175 + $0x48] sm:$0xf] %vm3372, %v3052
      %3392 = vst.msk [vmem:[%s175 + $0x4c] sm:$0xf] %vm3372, %v3053
      %3393 = vst.msk [vmem:[%s175 + $0x50] sm:$0xf] %vm3372, %v3054
      %3394 = vst.msk [vmem:[%s175 + $0x54] sm:$0xf] %vm3372, %v3055
      %3395 = vst.msk [vmem:[%s175 + $0x58] sm:$0xf] %vm3372, %v3056
      %3396 = vst.msk [vmem:[%s175 + $0x5c] sm:$0xf] %vm3372, %v3057
      %3397 = vst.msk [vmem:[%s175 + $0x60] sm:$0xf] %vm3372, %v3058
      %3398 = vst.msk [vmem:[%s175 + $0x64] sm:$0xf] %vm3372, %v3059
      %3399 = vst.msk [vmem:[%s175 + $0x68] sm:$0xf] %vm3372, %v3060
      %3400 = vst.msk [vmem:[%s175 + $0x6c] sm:$0xf] %vm3372, %v3061
      %3401 = vst.msk [vmem:[%s175 + $0x70] sm:$0xf] %vm3372, %v3062
      %3402 = vst.msk [vmem:[%s175 + $0x74] sm:$0xf] %vm3372, %v3063
      %3403 = vst.msk [vmem:[%s175 + $0x78] sm:$0xf] %vm3372, %v3064
      %3404 = vst.msk [vmem:[%s175 + $0x7c] sm:$0xf] %vm3372, %v3065
      %3405 = vst.msk [vmem:[%s175 + $0x80] sm:$0xf] %vm3372, %v3066
      %3406 = vst.msk [vmem:[%s175 + $0x84] sm:$0xf] %vm3372, %v3067
      %3407 = vst.msk [vmem:[%s175 + $0x88] sm:$0xf] %vm3372, %v3068
      %3408 = vst.msk [vmem:[%s175 + $0x8c] sm:$0xf] %vm3372, %v3069
      %3409 = vst.msk [vmem:[%s175 + $0x90] sm:$0xf] %vm3372, %v3070
      %3410 = vst.msk [vmem:[%s175 + $0x94] sm:$0xf] %vm3372, %v3071
      %3411 = vst.msk [vmem:[%s175 + $0x98] sm:$0xf] %vm3372, %v3072
      %3412 = vst.msk [vmem:[%s175 + $0x9c] sm:$0xf] %vm3372, %v3073
      %3413 = vst.msk [vmem:[%s175 + $0xa0] sm:$0xf] %vm3372, %v3074
      %3414 = vst.msk [vmem:[%s175 + $0xa4] sm:$0xf] %vm3372, %v3075
      %3415 = vst.msk [vmem:[%s175 + $0xa8] sm:$0xf] %vm3372, %v3076
      %3416 = vst.msk [vmem:[%s175 + $0xac] sm:$0xf] %vm3372, %v3077
      %3417 = vst.msk [vmem:[%s175 + $0xb0] sm:$0xf] %vm3372, %v3078
      %3418 = vst.msk [vmem:[%s175 + $0xb4] sm:$0xf] %vm3372, %v3079
      %3419 = vst.msk [vmem:[%s175 + $0xb8] sm:$0xf] %vm3372, %v3080
      %3420 = vst.msk [vmem:[%s175 + $0xbc] sm:$0xf] %vm3372, %v3081
      %3421 = vst.msk [vmem:[%s175 + $0xc0] sm:$0xf] %vm3372, %v3082
      %3422 = vst.msk [vmem:[%s175 + $0xc4] sm:$0xf] %vm3372, %v3083
      %3423 = vst.msk [vmem:[%s175 + $0xc8] sm:$0xf] %vm3372, %v3084
      %3424 = vst.msk [vmem:[%s175 + $0xcc] sm:$0xf] %vm3372, %v3085
      %3425 = vst.msk [vmem:[%s175 + $0xd0] sm:$0xf] %vm3372, %v3086
      %3426 = vst.msk [vmem:[%s175 + $0xd4] sm:$0xf] %vm3372, %v3087
      %3427 = vst.msk [vmem:[%s175 + $0xd8] sm:$0xf] %vm3372, %v3088
      %3428 = vst.msk [vmem:[%s175 + $0xdc] sm:$0xf] %vm3372, %v3089
      %3429 = vst.msk [vmem:[%s175 + $0xe0] sm:$0xf] %vm3372, %v3090
      %3430 = vst.msk [vmem:[%s175 + $0xe4] sm:$0xf] %vm3372, %v3091
      %3431 = vst.msk [vmem:[%s175 + $0xe8] sm:$0xf] %vm3372, %v3092
      %3432 = vst.msk [vmem:[%s175 + $0xec] sm:$0xf] %vm3372, %v3093
      %3433 = vst.msk [vmem:[%s175 + $0xf0] sm:$0xf] %vm3372, %v3094
      %3434 = vst.msk [vmem:[%s175 + $0xf4] sm:$0xf] %vm3372, %v3095
      %3435 = vst.msk [vmem:[%s175 + $0xf8] sm:$0xf] %vm3372, %v3096
      %3436 = vst.msk [vmem:[%s175 + $0xfc] sm:$0xf] %vm3372, %v3097
      %3437 = vst.msk [vmem:[%s175 + $0x100] sm:$0xf] %vm3372, %v3098
      %3438 = vst.msk [vmem:[%s175 + $0x104] sm:$0xf] %vm3372, %v3099
      %3439 = vst.msk [vmem:[%s175 + $0x108] sm:$0xf] %vm3372, %v3100
      %3440 = vst.msk [vmem:[%s175 + $0x10c] sm:$0xf] %vm3372, %v3101
      %3441 = vst.msk [vmem:[%s175 + $0x110] sm:$0xf] %vm3372, %v3102
      %3442 = vst.msk [vmem:[%s175 + $0x114] sm:$0xf] %vm3372, %v3103
      %3443 = vst.msk [vmem:[%s175 + $0x118] sm:$0xf] %vm3372, %v3104
      %3444 = vst.msk [vmem:[%s175 + $0x11c] sm:$0xf] %vm3372, %v3105
      %3445 = vst.msk [vmem:[%s175 + $0x120] sm:$0xf] %vm3372, %v3106
      %3446 = vst.msk [vmem:[%s175 + $0x124] sm:$0xf] %vm3372, %v3107
      %3447 = vst.msk [vmem:[%s175 + $0x128] sm:$0xf] %vm3372, %v3108
      %3448 = vst.msk [vmem:[%s175 + $0x12c] sm:$0xf] %vm3372, %v3109
      %3449 = vst.msk [vmem:[%s175 + $0x130] sm:$0xf] %vm3372, %v3110
      %3450 = vst.msk [vmem:[%s175 + $0x134] sm:$0xf] %vm3372, %v3111
      %3451 = vst.msk [vmem:[%s175 + $0x138] sm:$0xf] %vm3372, %v3112
      %3452 = vst.msk [vmem:[%s175 + $0x13c] sm:$0xf] %vm3372, %v3113
      %3453 = vst.msk [vmem:[%s175 + $0x140] sm:$0xf] %vm3372, %v3114
      %3454 = vst.msk [vmem:[%s175 + $0x144] sm:$0xf] %vm3372, %v3115
      %3455 = vst.msk [vmem:[%s175 + $0x148] sm:$0xf] %vm3372, %v3116
      %3456 = vst.msk [vmem:[%s175 + $0x14c] sm:$0xf] %vm3372, %v3117
      %3457 = vst.msk [vmem:[%s175 + $0x150] sm:$0xf] %vm3372, %v3118
      %3458 = vst.msk [vmem:[%s175 + $0x154] sm:$0xf] %vm3372, %v3119
      %3459 = vst.msk [vmem:[%s175 + $0x158] sm:$0xf] %vm3372, %v3120
      %3460 = vst.msk [vmem:[%s175 + $0x15c] sm:$0xf] %vm3372, %v3121
      %3461 = vst.msk [vmem:[%s175 + $0x160] sm:$0xf] %vm3372, %v3122
      %3462 = vst.msk [vmem:[%s175 + $0x164] sm:$0xf] %vm3372, %v3123
      %3463 = vst.msk [vmem:[%s175 + $0x168] sm:$0xf] %vm3372, %v3124
      %3464 = vst.msk [vmem:[%s175 + $0x16c] sm:$0xf] %vm3372, %v3125
      %3465 = vst.msk [vmem:[%s175 + $0x170] sm:$0xf] %vm3372, %v3126
      %3466 = vst.msk [vmem:[%s175 + $0x174] sm:$0xf] %vm3372, %v3127
      %3467 = vst.msk [vmem:[%s175 + $0x178] sm:$0xf] %vm3372, %v3128
      %3468 = vst.msk [vmem:[%s175 + $0x17c] sm:$0xf] %vm3372, %v3129
      %3469 = vst.msk [vmem:[%s175 + $0x180] sm:$0xf] %vm3372, %v3130
      %3470 = vst.msk [vmem:[%s175 + $0x184] sm:$0xf] %vm3372, %v3131
      %3471 = vst.msk [vmem:[%s175 + $0x188] sm:$0xf] %vm3372, %v3132
      %3472 = vst.msk [vmem:[%s175 + $0x18c] sm:$0xf] %vm3372, %v3133
      %3473 = vst.msk [vmem:[%s175 + $0x190] sm:$0xf] %vm3372, %v3134
      %3474 = vst.msk [vmem:[%s175 + $0x194] sm:$0xf] %vm3372, %v3135
      %3475 = vst.msk [vmem:[%s175 + $0x198] sm:$0xf] %vm3372, %v3136
      %3476 = vst.msk [vmem:[%s175 + $0x19c] sm:$0xf] %vm3372, %v3137
      %3477 = vst.msk [vmem:[%s175 + $0x1a0] sm:$0xf] %vm3372, %v3138
      %3478 = vst.msk [vmem:[%s175 + $0x1a4] sm:$0xf] %vm3372, %v3139
      %3479 = vst.msk [vmem:[%s175 + $0x1a8] sm:$0xf] %vm3372, %v3140
      %3480 = vst.msk [vmem:[%s175 + $0x1ac] sm:$0xf] %vm3372, %v3141
      %3481 = vst.msk [vmem:[%s175 + $0x1b0] sm:$0xf] %vm3372, %v3142
      %3482 = vst.msk [vmem:[%s175 + $0x1b4] sm:$0xf] %vm3372, %v3143
      %3483 = vst.msk [vmem:[%s175 + $0x1b8] sm:$0xf] %vm3372, %v3144
      %3484 = vst.msk [vmem:[%s175 + $0x1bc] sm:$0xf] %vm3372, %v3145
      %3485 = vst.msk [vmem:[%s175 + $0x1c0] sm:$0xf] %vm3372, %v3146
      %3486 = vst.msk [vmem:[%s175 + $0x1c4] sm:$0xf] %vm3372, %v3147
      %3487 = vst.msk [vmem:[%s175 + $0x1c8] sm:$0xf] %vm3372, %v3148
      %3488 = vst.msk [vmem:[%s175 + $0x1cc] sm:$0xf] %vm3372, %v3149
      %3489 = vst.msk [vmem:[%s175 + $0x1d0] sm:$0xf] %vm3372, %v3150
      %3490 = vst.msk [vmem:[%s175 + $0x1d4] sm:$0xf] %vm3372, %v3151
      %3491 = vst.msk [vmem:[%s175 + $0x1d8] sm:$0xf] %vm3372, %v3152
      %3492 = vst.msk [vmem:[%s175 + $0x1dc] sm:$0xf] %vm3372, %v3153
      %3493 = vst.msk [vmem:[%s175 + $0x1e0] sm:$0xf] %vm3372, %v3154
      %3494 = vst.msk [vmem:[%s175 + $0x1e4] sm:$0xf] %vm3372, %v3155
      %3495 = vst.msk [vmem:[%s175 + $0x1e8] sm:$0xf] %vm3372, %v3156
      %3496 = vst.msk [vmem:[%s175 + $0x1ec] sm:$0xf] %vm3372, %v3157
      %3497 = vst.msk [vmem:[%s175 + $0x1f0] sm:$0xf] %vm3372, %v3158
      %3498 = vst.msk [vmem:[%s175 + $0x1f4] sm:$0xf] %vm3372, %v3159
      %3499 = vst.msk [vmem:[%s175 + $0x1f8] sm:$0xf] %vm3372, %v3160
      %3500 = vst.msk [vmem:[%s175 + $0x1fc] sm:$0xf] %vm3372, %v3161
      %3501 = vst.msk [vmem:[%s175 + $0x200] sm:$0xf] %vm3372, %v3162
      %3502 = vst.msk [vmem:[%s175 + $0x204] sm:$0xf] %vm3372, %v3163
      %3503 = vst.msk [vmem:[%s175 + $0x208] sm:$0xf] %vm3372, %v3164
      %3504 = vst.msk [vmem:[%s175 + $0x20c] sm:$0xf] %vm3372, %v3165
      %3505 = vst.msk [vmem:[%s175 + $0x210] sm:$0xf] %vm3372, %v3166
      %3506 = vst.msk [vmem:[%s175 + $0x214] sm:$0xf] %vm3372, %v3167
      %3507 = vst.msk [vmem:[%s175 + $0x218] sm:$0xf] %vm3372, %v3168
      %3508 = vst.msk [vmem:[%s175 + $0x21c] sm:$0xf] %vm3372, %v3169
      %3509 = vst.msk [vmem:[%s175 + $0x220] sm:$0xf] %vm3372, %v3170
      %3510 = vst.msk [vmem:[%s175 + $0x224] sm:$0xf] %vm3372, %v3171
      %3511 = vst.msk [vmem:[%s175 + $0x228] sm:$0xf] %vm3372, %v3172
      %3512 = vst.msk [vmem:[%s175 + $0x22c] sm:$0xf] %vm3372, %v3173
      %3513 = vst.msk [vmem:[%s175 + $0x230] sm:$0xf] %vm3372, %v3174
      %3514 = vst.msk [vmem:[%s175 + $0x234] sm:$0xf] %vm3372, %v3175
      %3515 = vst.msk [vmem:[%s175 + $0x238] sm:$0xf] %vm3372, %v3176
      %3516 = vst.msk [vmem:[%s175 + $0x23c] sm:$0xf] %vm3372, %v3177
      %3517 = vst.msk [vmem:[%s175 + $0x240] sm:$0xf] %vm3372, %v3178
      %3518 = vst.msk [vmem:[%s175 + $0x244] sm:$0xf] %vm3372, %v3179
      %3519 = vst.msk [vmem:[%s175 + $0x248] sm:$0xf] %vm3372, %v3180
      %3520 = vst.msk [vmem:[%s175 + $0x24c] sm:$0xf] %vm3372, %v3181
      %3521 = vst.msk [vmem:[%s175 + $0x250] sm:$0xf] %vm3372, %v3182
      %3522 = vst.msk [vmem:[%s175 + $0x254] sm:$0xf] %vm3372, %v3183
      %3523 = vst.msk [vmem:[%s175 + $0x258] sm:$0xf] %vm3372, %v3184
      %3524 = vst.msk [vmem:[%s175 + $0x25c] sm:$0xf] %vm3372, %v3185
      %3525 = vst.msk [vmem:[%s175 + $0x260] sm:$0xf] %vm3372, %v3186
      %3526 = vst.msk [vmem:[%s175 + $0x264] sm:$0xf] %vm3372, %v3187
      %3527 = vst.msk [vmem:[%s175 + $0x268] sm:$0xf] %vm3372, %v3188
      %3528 = vst.msk [vmem:[%s175 + $0x26c] sm:$0xf] %vm3372, %v3189
      %3529 = vst.msk [vmem:[%s175 + $0x270] sm:$0xf] %vm3372, %v3190
      %3530 = vst.msk [vmem:[%s175 + $0x274] sm:$0xf] %vm3372, %v3191
      %3531 = vst.msk [vmem:[%s175 + $0x278] sm:$0xf] %vm3372, %v3192
      %3532 = vst.msk [vmem:[%s175 + $0x27c] sm:$0xf] %vm3372, %v3193
      %3533 = vst.msk [vmem:[%s175 + $0x280] sm:$0xf] %vm3372, %v3194
      %3534 = vst.msk [vmem:[%s175 + $0x284] sm:$0xf] %vm3372, %v3195
      %3535 = vst.msk [vmem:[%s175 + $0x288] sm:$0xf] %vm3372, %v3196
      %3536 = vst.msk [vmem:[%s175 + $0x28c] sm:$0xf] %vm3372, %v3197
      %3537 = vst.msk [vmem:[%s175 + $0x290] sm:$0xf] %vm3372, %v3198
      %3538 = vst.msk [vmem:[%s175 + $0x294] sm:$0xf] %vm3372, %v3199
      %3539 = vst.msk [vmem:[%s175 + $0x298] sm:$0xf] %vm3372, %v3200
      %3540 = vst.msk [vmem:[%s175 + $0x29c] sm:$0xf] %vm3372, %v3201
      %3541 = vst.msk [vmem:[%s175 + $0x2a0] sm:$0xf] %vm3372, %v3202
      %s3542 = smul.u32 169, %s14
      %p3543 = scmp.lt.s32.totalorder %s3542, 337
      %s3544 = scalar_select %p3543, %s3542, 337
      %s3545 = smul.addr %s3544, 4
      %s3546 = scalar_lea.vmem %s3, %s3545
      // Predicated region
      $region33: #{net_forward.5} parent=31 // pred_check
        %p3547 = pneg %p100
      $region34: #{net_forward.5} parent=31 // pred_check_branch
        %3549 = sbr.rel (%p3547) target = $region36
      $region35: #{net_forward.5} parent=31 // pred_region
        %s3550 = smul.u32 169, %s14
      $region36: #{net_forward.5} parent=31 // pred_fallthru
        _
    $region32: #{net_forward.5} parent=5 // pred_fallthru
      _
    %p3551 = scmp.le.s32.totalorder 2, %s9
    // Predicated region
    $region37: #{net_forward.5} parent=5 // pred_check
      %p3552 = pneg %p3551
    $region38: #{net_forward.5} parent=5 // pred_check_branch
      %3554 = sbr.rel (%p3552) target = $region40
    $region39: #{net_forward.5} parent=5 // pred_region
      %s3555 = ssub.s32 %s9, 2
      // Predicated region
      $region41: #{net_forward.5} parent=39 // pred_check
        %p3556 = pneg %p106
      $region42: #{net_forward.5} parent=39 // pred_check_branch
        %3558 = sbr.rel (%p3556) target = $region44
      $region43: #{net_forward.5} parent=39 // pred_region
        %s3559 = smul.u32 169, %s15
        %p3560 = scmp.lt.s32.totalorder %s3559, 337
        %s3561 = scalar_select %p3560, %s3559, 337
        %s3562 = smul.addr %s3561, 4
        %s3563 = scalar_lea.vmem %s3, %s3562
      $region44: #{net_forward.5} parent=39 // pred_fallthru
        _
    $region40: #{net_forward.5} parent=5 // pred_fallthru
      _
  $region6: #{net_forward.5} parent=0 // loop_footer
    %s13 = sadd.s32 1, %s9
  $region7: #{net_forward.5} parent=0 // loop_footer_branch
    %8 = sbr.rel target = $region3
  $region8: #{net_forward.5} parent=0 // loop_exit
    _

// kernel: net_forward.6
$region0: #{net_forward.6}
  #allocation0 [shape = 'u32[]', space=smem, size = 0x4, offset = 0x4, fixed_abs, tag = 'smem constant byte address 0x4 - core index']
  #allocation1 [shape = 'u32[144,128]{1,0:T(1,128)}', space=vmem, size = 0x12000, scoped, tag = 'internal scratch']
  %s0 = inlined_call_operand.vmem [shape: bf16[484,400], index: 0, kind: input, shape index: {}]
  %s1 = inlined_call_operand.vmem [shape: bf16[400,16], index: 1, kind: input, shape index: {}]
  %s2 = inlined_call_operand.vmem [shape: f32[1,16], index: 2, kind: input, shape index: {}]
  %s3 = inlined_call_operand.vmem [shape: bf16[484,16], index: 3, kind: output, shape index: {}]
  %s4 = sld [smem:[#allocation0]]
  $region89: #{net_forward.6} parent=0
    _
  %s6 = ssub.s32 1, %s4
  %s7 = scalar_select 0, %s6, %s4
  $region1: #{net_forward.6} parent=0
    #allocation2 [shape = 'u8[126976]{0}', space=vmem, size = 0x1f000, scoped, tag = 'output window, operand 0']
    loop: start=0, step=1, limit=4
    $region2: #{net_forward.6} parent=1 // loop_pre_header
      _
    $region3: #{net_forward.6} parent=1 // loop_header
      %s9 = sphi 0, %s13
      %p10 = scmp.ge.s32.totalorder %s9, 4
      %s19 = sphi 0, %s21
      %s22 = sphi 0, %s19
      %s23 = sphi 0, %s22
      %s39 = sphi 0, %s23
      %s43 = sphi 0, %s43
      %s45 = sphi 0, %s43
      %s46 = sphi 0, %s45
      %s60 = sphi 0, %s46
      %s64 = sphi 0, %s64
      %s66 = sphi 0, %s64
      %s67 = sphi 0, %s66
      %s81 = sphi 0, %s67
      %s87 = sphi 0, %s89
      %s90 = sphi 0, %s87
      %s91 = sphi 0, %s90
      %s107 = sphi 0, %s91
    $region4: #{net_forward.6} parent=1 // loop_header_branch
      %12 = sbr.rel (%p10) target = $region8
    $region5: #{net_forward.6} parent=1 // loop_body
      %s14 = ssub.s32 %s9, 1
      %s15 = ssub.s32 %s9, 2
      %s16 = sadd.s32 %s9, 1
      %s17 = ssub.s32 %s9, %s16
      %p18 = scmp.eq.s32.totalorder %s17, 0
      %s20 = sadd.s32 %s19, 1
      %s21 = scalar_select %p18, %s19, %s20
      %p24 = pneg %p18
      %p25 = scmp.eq.s32.totalorder %s9, 1
      %p26 = por %p24, %p25
      %p27 = scmp.ne.s32.totalorder %s19, %s22
      %p28 = scmp.eq.s32.totalorder %s9, 0
      %p29 = por %p27, %p28
      %p30 = scmp.ne.s32.totalorder %s19, %s22
      %p31 = scmp.eq.s32.totalorder %s14, 1
      %p32 = por %p30, %p31
      %p33 = scmp.ne.s32.totalorder %s22, %s23
      %p34 = scmp.eq.s32.totalorder %s14, 0
      %p35 = por %p33, %p34
      %p36 = scmp.ne.s32.totalorder %s22, %s23
      %p37 = scmp.eq.s32.totalorder %s15, 1
      %p38 = por %p36, %p37
      %p40 = scmp.ne.s32.totalorder %s23, %s39
      %p41 = scmp.eq.s32.totalorder %s15, 0
      %p42 = por %p40, %p41
      %s44 = sadd.s32 %s43, 1
      %p47 = scmp.eq.s32.totalorder %s9, 1
      %p48 = scmp.ne.s32.totalorder %s43, %s45
      %p49 = scmp.eq.s32.totalorder %s9, 0
      %p50 = por %p48, %p49
      %p51 = scmp.ne.s32.totalorder %s43, %s45
      %p52 = scmp.eq.s32.totalorder %s14, 1
      %p53 = por %p51, %p52
      %p54 = scmp.ne.s32.totalorder %s45, %s46
      %p55 = scmp.eq.s32.totalorder %s14, 0
      %p56 = por %p54, %p55
      %p57 = scmp.ne.s32.totalorder %s45, %s46
      %p58 = scmp.eq.s32.totalorder %s15, 1
      %p59 = por %p57, %p58
      %p61 = scmp.ne.s32.totalorder %s46, %s60
      %p62 = scmp.eq.s32.totalorder %s15, 0
      %p63 = por %p61, %p62
      %s65 = sadd.s32 %s64, 1
      %p68 = scmp.eq.s32.totalorder %s9, 1
      %p69 = scmp.ne.s32.totalorder %s64, %s66
      %p70 = scmp.eq.s32.totalorder %s9, 0
      %p71 = por %p69, %p70
      %p72 = scmp.ne.s32.totalorder %s64, %s66
      %p73 = scmp.eq.s32.totalorder %s14, 1
      %p74 = por %p72, %p73
      %p75 = scmp.ne.s32.totalorder %s66, %s67
      %p76 = scmp.eq.s32.totalorder %s14, 0
      %p77 = por %p75, %p76
      %p78 = scmp.ne.s32.totalorder %s66, %s67
      %p79 = scmp.eq.s32.totalorder %s15, 1
      %p80 = por %p78, %p79
      %p82 = scmp.ne.s32.totalorder %s67, %s81
      %p83 = scmp.eq.s32.totalorder %s15, 0
      %p84 = por %p82, %p83
      %s85 = ssub.s32 %s9, %s16
      %p86 = scmp.eq.s32.totalorder %s85, 0
      %s88 = sadd.s32 %s87, 1
      %s89 = scalar_select %p86, %s87, %s88
      %p92 = pneg %p86
      %p93 = scmp.eq.s32.totalorder %s9, 1
      %p94 = por %p92, %p93
      %p95 = scmp.ne.s32.totalorder %s87, %s90
      %p96 = scmp.eq.s32.totalorder %s9, 0
      %p97 = por %p95, %p96
      %p98 = scmp.ne.s32.totalorder %s87, %s90
      %p99 = scmp.eq.s32.totalorder %s14, 1
      %p100 = por %p98, %p99
      %p101 = scmp.ne.s32.totalorder %s90, %s91
      %p102 = scmp.eq.s32.totalorder %s14, 0
      %p103 = por %p101, %p102
      %p104 = scmp.ne.s32.totalorder %s90, %s91
      %p105 = scmp.eq.s32.totalorder %s15, 1
      %p106 = por %p104, %p105
      %p108 = scmp.ne.s32.totalorder %s91, %s107
      %p109 = scmp.eq.s32.totalorder %s15, 0
      %p110 = por %p108, %p109
      %p111 = scmp.le.s32.totalorder 1, %s9
      %p112 = scmp.lt.s32.totalorder %s9, 3
      %p113 = pnand %p111, %p112
      %p114 = pneg %p113
      // Predicated region
      $region9: #{net_forward.6} parent=5 // pred_check
        _
      $region10: #{net_forward.6} parent=5 // pred_check_branch
        %116 = sbr.rel (%p113) target = $region12
      $region11: #{net_forward.6} parent=5 // pred_region
        %s117 = ssub.s32 %s9, 1
        // Predicated region
        $region13: #{net_forward.6} parent=11 // pred_check
          %p118 = pneg %p56
        $region14: #{net_forward.6} parent=11 // pred_check_branch
          %120 = sbr.rel (%p118) target = $region16
        $region15: #{net_forward.6} parent=11 // pred_region
          _
        $region16: #{net_forward.6} parent=11 // pred_fallthru
          _
        // Predicated region
        $region17: #{net_forward.6} parent=11 // pred_check
          %p121 = pneg %p77
        $region18: #{net_forward.6} parent=11 // pred_check_branch
          %123 = sbr.rel (%p121) target = $region20
        $region19: #{net_forward.6} parent=11 // pred_region
          _
        $region20: #{net_forward.6} parent=11 // pred_fallthru
          _
      $region12: #{net_forward.6} parent=5 // pred_fallthru
        _
      %p124 = scmp.lt.s32.totalorder %s9, 2
      // Predicated region
      $region21: #{net_forward.6} parent=5 // pred_check
        %p125 = pneg %p124
      $region22: #{net_forward.6} parent=5 // pred_check_branch
        %127 = sbr.rel (%p125) target = $region24
      $region23: #{net_forward.6} parent=5 // pred_region
        // Predicated region
        $region25: #{net_forward.6} parent=23 // pred_check
          %p128 = pneg %p29
        $region26: #{net_forward.6} parent=23 // pred_check_branch
          %130 = sbr.rel (%p128) target = $region28
        $region27: #{net_forward.6} parent=23 // pred_region
          %s131 = smul.u32 31, %s9
          %s132 = ssub.s32 61, %s131
          %p133 = scmp.lt.s32.totalorder %s132, 31
          %s134 = scalar_select %p133, %s132, 31
          %s135 = smul.u32 64, %s134
          %s136 = smul.u32 %s135, 4
          %p137 = scmp.lt.s32.totalorder %s131, 60
          %s138 = scalar_select %p137, %s131, 60
          %s139 = smul.addr %s138, 4
          %s140 = smul.addr %s139, 4
          %s141 = scalar_lea.vmem %s0, %s140
          %s142 = smul.u32 31, %s9
          %s143 = ssub.s32 61, %s142
          %p144 = scmp.lt.s32.totalorder %s143, 31
          %s145 = scalar_select %p144, %s143, 31
          %s146 = smul.u32 64, %s145
          %s147 = smul.u32 %s146, 4
        $region28: #{net_forward.6} parent=23 // pred_fallthru
          _
      $region24: #{net_forward.6} parent=5 // pred_fallthru
        _
      %p148 = scmp.le.s32.totalorder 1, %s9
      %p149 = scmp.lt.s32.totalorder %s9, 3
      %p150 = pnand %p148, %p149
      %p151 = pneg %p150
      // Predicated region
      $region29: #{net_forward.6} parent=5 // pred_check
        _
      $region30: #{net_forward.6} parent=5 // pred_check_branch
        %153 = sbr.rel (%p150) target = $region32
      $region31: #{net_forward.6} parent=5 // pred_region
        %s154 = ssub.s32 %s9, 1
        %s155 = smul.u32 31, %s14
        %s156 = ssub.s32 61, %s155
        %p157 = scmp.lt.s32.totalorder %s156, 31
        %s158 = scalar_select %p157, %s156, 31
        %s159 = smul.u32 64, %s158
        %s160 = smul.u32 %s159, 4
        %p161 = scmp.lt.s32.totalorder %s155, 60
        %s162 = scalar_select %p161, %s155, 60
        %s163 = smul.addr %s162, 4
        %s164 = smul.addr %s163, 4
        %s165 = scalar_lea.vmem %s0, %s164
        %p166 = pneg %p35
        %p167 = pneg %p32
        %p168 = pneg %p56
        %p169 = pneg %p53
        %p170 = pneg %p77
        %p171 = pneg %p74
        %p172 = pneg %p103
        %p173 = pneg %p100
        %s174 = sand.u32 %s90, 1
        %s175 = sand.u32 %s90, 1
        %s176 = smul.addr %s175, 124
        %s177 = scalar_lea.vmem [#allocation2], %s176
        %s178 = smul.u32 31, %s14
        %s179 = ssub.s32 61, %s178
        %p180 = scmp.lt.s32.totalorder %s179, 31
        %s181 = scalar_select %p180, %s179, 31
        %s182 = smul.u32 64, %s181
        %s183 = smul.u32 %s182, 4
        %p184 = scmp.lt.s32.totalorder %s178, 60
        %s185 = scalar_select %p184, %s178, 60
        %s186 = smul.addr %s185, 4
        %s187 = smul.addr %s186, 4
        %s188 = scalar_lea.vmem %s0, %s187
        %s189 = smul.u32 31, %s14
        %s190 = ssub.s32 61, %s189
        %p191 = scmp.lt.s32.totalorder %s190, 31
        %s192 = scalar_select %p191, %s190, 31
        %s193 = smul.u32 64, %s192
        %s194 = smul.u32 %s193, 4
        %s195 = smul.u32 31, %s14
        %s196 = ssub.s32 61, %s195
        %p197 = scmp.lt.s32.totalorder %s196, 31
        %s198 = scalar_select %p197, %s196, 31
        %s199 = smul.u32 64, %s198
        %v201 = vld [vmem:[%s188] sm:$0xff]
        %v202 = vld [vmem:[%s188 + $0x8] sm:$0xff]
        %v203 = vld [vmem:[%s188 + $0x10] sm:$0xff]
        %v204 = vld [vmem:[%s188 + $0x18] sm:$0xff]
        %v205 = vld [vmem:[%s188 + $0x20] sm:$0xff]
        %v206 = vld [vmem:[%s188 + $0x28] sm:$0xff]
        %v207 = vld [vmem:[%s188 + $0x30] sm:$0xff]
        %v208 = vld [vmem:[%s188 + $0x38] sm:$0xff]
        %v209 = vld [vmem:[%s188 + $0x40] sm:$0xff]
        %v210 = vld [vmem:[%s188 + $0x48] sm:$0xff]
        %v211 = vld [vmem:[%s188 + $0x50] sm:$0xff]
        %v212 = vld [vmem:[%s188 + $0x58] sm:$0xff]
        %v213 = vld [vmem:[%s188 + $0x60] sm:$0xff]
        %v214 = vld [vmem:[%s188 + $0x68] sm:$0xff]
        %v215 = vld [vmem:[%s188 + $0x70] sm:$0xff]
        %v216 = vld [vmem:[%s188 + $0x78] sm:$0xff]
        %v217 = vld [vmem:[%s188 + $0x80] sm:$0xff]
        %v218 = vld [vmem:[%s188 + $0x88] sm:$0xff]
        %v219 = vld [vmem:[%s188 + $0x90] sm:$0xff]
        %v220 = vld [vmem:[%s188 + $0x98] sm:$0xff]
        %v221 = vld [vmem:[%s188 + $0xa0] sm:$0xff]
        %v222 = vld [vmem:[%s188 + $0xa8] sm:$0xff]
        %v223 = vld [vmem:[%s188 + $0xb0] sm:$0xff]
        %v224 = vld [vmem:[%s188 + $0xb8] sm:$0xff]
        %v225 = vld [vmem:[%s188 + $0xc0] sm:$0xff]
        %v226 = vld [vmem:[%s188 + $0xc8] sm:$0xff]
        %v227 = vld [vmem:[%s188 + $0xd0] sm:$0xff]
        %v228 = vld [vmem:[%s188 + $0xd8] sm:$0xff]
        %v229 = vld [vmem:[%s188 + $0xe0] sm:$0xff]
        %v230 = vld [vmem:[%s188 + $0xe8] sm:$0xff]
        %v231 = vld [vmem:[%s188 + $0xf0] sm:$0xff]
        %v232 = vld [vmem:[%s188 + $0xf8] sm:$0xff]
        %v233 = vld [vmem:[%s188 + $0x100] sm:$0xff]
        %v234 = vld [vmem:[%s188 + $0x108] sm:$0xff]
        %v235 = vld [vmem:[%s188 + $0x110] sm:$0xff]
        %v236 = vld [vmem:[%s188 + $0x118] sm:$0xff]
        %v237 = vld [vmem:[%s188 + $0x120] sm:$0xff]
        %v238 = vld [vmem:[%s188 + $0x128] sm:$0xff]
        %v239 = vld [vmem:[%s188 + $0x130] sm:$0xff]
        %v240 = vld [vmem:[%s188 + $0x138] sm:$0xff]
        %v241 = vld [vmem:[%s188 + $0x140] sm:$0xff]
        %v242 = vld [vmem:[%s188 + $0x148] sm:$0xff]
        %v243 = vld [vmem:[%s188 + $0x150] sm:$0xff]
        %v244 = vld [vmem:[%s188 + $0x158] sm:$0xff]
        %v245 = vld [vmem:[%s188 + $0x160] sm:$0xff]
        %v246 = vld [vmem:[%s188 + $0x168] sm:$0xff]
        %v247 = vld [vmem:[%s188 + $0x170] sm:$0xff]
        %v248 = vld [vmem:[%s188 + $0x178] sm:$0xff]
        %v249 = vld [vmem:[%s188 + $0x180] sm:$0xff]
        %v250 = vld [vmem:[%s188 + $0x188] sm:$0xff]
        %v251 = vld [vmem:[%s188 + $0x190] sm:$0xff]
        %v252 = vld [vmem:[%s188 + $0x198] sm:$0xff]
        %v253 = vld [vmem:[%s188 + $0x1a0] sm:$0xff]
        %v254 = vld [vmem:[%s188 + $0x1a8] sm:$0xff]
        %v255 = vld [vmem:[%s188 + $0x1b0] sm:$0xff]
        %v256 = vld [vmem:[%s188 + $0x1b8] sm:$0xff]
        %v257 = vld [vmem:[%s188 + $0x1c0] sm:$0xff]
        %v258 = vld [vmem:[%s188 + $0x1c8] sm:$0xff]
        %v259 = vld [vmem:[%s188 + $0x1d0] sm:$0xff]
        %v260 = vld [vmem:[%s188 + $0x1d8] sm:$0xff]
        %v261 = vld [vmem:[%s188 + $0x1e0] sm:$0xff]
        %v262 = vld [vmem:[%s188 + $0x1e8] sm:$0xff]
        %v263 = vld [vmem:[%s1] sm:$0xf]
        %v264 = vld [vmem:[%s1 + $0x4] sm:$0xf]
        %v265 = vld [vmem:[%s1 + $0x8] sm:$0xf]
        %v266 = vld [vmem:[%s1 + $0xc] sm:$0xf]
        %v267 = vld [vmem:[%s1 + $0x10] sm:$0xf]
        %v268 = vld [vmem:[%s1 + $0x14] sm:$0xf]
        %v269 = vld [vmem:[%s1 + $0x18] sm:$0xf]
        %v270 = vld [vmem:[%s1 + $0x1c] sm:$0xf]
        %v271 = vld [vmem:[%s1 + $0x20] sm:$0xf]
        %v272 = vld [vmem:[%s1 + $0x24] sm:$0xf]
        %v273 = vld [vmem:[%s1 + $0x28] sm:$0xf]
        %v274 = vld [vmem:[%s1 + $0x2c] sm:$0xf]
        %v275 = vld [vmem:[%s1 + $0x30] sm:$0xf]
        %v276 = vld [vmem:[%s1 + $0x34] sm:$0xf]
        %v277 = vld [vmem:[%s1 + $0x38] sm:$0xf]
        %v278 = vld [vmem:[%s1 + $0x3c] sm:$0xf]
        %v279 = vld [vmem:[%s1 + $0x40] sm:$0xf]
        %v280 = vld [vmem:[%s1 + $0x44] sm:$0xf]
        %v281 = vld [vmem:[%s1 + $0x48] sm:$0xf]
        %v282 = vld [vmem:[%s1 + $0x4c] sm:$0xf]
        %v283 = vld [vmem:[%s1 + $0x50] sm:$0xf]
        %v284 = vld [vmem:[%s1 + $0x54] sm:$0xf]
        %v285 = vld [vmem:[%s1 + $0x58] sm:$0xf]
        %v286 = vld [vmem:[%s1 + $0x5c] sm:$0xf]
        %v287 = vld [vmem:[%s1 + $0x60] sm:$0xf]
        %v288 = vld [vmem:[%s1 + $0x64] sm:$0xf]
        %v289 = vld [vmem:[%s1 + $0x68] sm:$0xf]
        %v290 = vld [vmem:[%s1 + $0x6c] sm:$0xf]
        %v291 = vld [vmem:[%s1 + $0x70] sm:$0xf]
        %v292 = vld [vmem:[%s1 + $0x74] sm:$0xf]
        %v293 = vld [vmem:[%s1 + $0x78] sm:$0xf]
        %v294 = vld [vmem:[%s1 + $0x7c] sm:$0xf]
        %v295 = vld [vmem:[%s1 + $0x80] sm:$0xf]
        %v296 = vld [vmem:[%s1 + $0x84] sm:$0xf]
        %v297 = vld [vmem:[%s1 + $0x88] sm:$0xf]
        %v298 = vld [vmem:[%s1 + $0x8c] sm:$0xf]
        %v299 = vld [vmem:[%s1 + $0x90] sm:$0xf]
        %v300 = vld [vmem:[%s1 + $0x94] sm:$0xf]
        %v301 = vld [vmem:[%s1 + $0x98] sm:$0xf]
        %v302 = vld [vmem:[%s1 + $0x9c] sm:$0xf]
        %v303 = vld [vmem:[%s1 + $0xa0] sm:$0xf]
        %v304 = vld [vmem:[%s1 + $0xa4] sm:$0xf]
        %v305 = vld [vmem:[%s1 + $0xa8] sm:$0xf]
        %v306 = vld [vmem:[%s1 + $0xac] sm:$0xf]
        %v307 = vld [vmem:[%s1 + $0xb0] sm:$0xf]
        %v308 = vld [vmem:[%s1 + $0xb4] sm:$0xf]
        %v309 = vld [vmem:[%s1 + $0xb8] sm:$0xf]
        %v310 = vld [vmem:[%s1 + $0xbc] sm:$0xf]
        %v311 = vld [vmem:[%s1 + $0xc0] sm:$0xf]
        %v312 = vld [vmem:[%s1 + $0xc4] sm:$0xf]
        %v313 = vld [vmem:[%s2] sm:$0x1]
        %v315 = vlaneseq
        %v316 = vshrl.u32 %v315, 7
        %v317 = vsub.s32 0, %v316
        %v318 = vrot.slane %v313, %v317
        %v382 = vunpack.c.l.b16 %v201
        %v383 = vunpack.c.h.b16 %v201
        %v384 = vunpack.c.l.b16 %v202
        %v385 = vunpack.c.h.b16 %v202
        %v386 = vunpack.c.l.b16 %v203
        %v387 = vunpack.c.h.b16 %v203
        %v388 = vunpack.c.l.b16 %v204
        %v389 = vunpack.c.h.b16 %v204
        %v390 = vunpack.c.l.b16 %v205
        %v391 = vunpack.c.h.b16 %v205
        %v392 = vunpack.c.l.b16 %v206
        %v393 = vunpack.c.h.b16 %v206
        %v394 = vunpack.c.l.b16 %v207
        %v395 = vunpack.c.h.b16 %v207
        %v396 = vunpack.c.l.b16 %v208
        %v397 = vunpack.c.h.b16 %v208
        %v398 = vunpack.c.l.b16 %v209
        %v399 = vunpack.c.h.b16 %v209
        %v400 = vunpack.c.l.b16 %v210
        %v401 = vunpack.c.h.b16 %v210
        %v402 = vunpack.c.l.b16 %v211
        %v403 = vunpack.c.h.b16 %v211
        %v404 = vunpack.c.l.b16 %v212
        %v405 = vunpack.c.h.b16 %v212
        %v406 = vunpack.c.l.b16 %v213
        %v407 = vunpack.c.h.b16 %v213
        %v408 = vunpack.c.l.b16 %v214
        %v409 = vunpack.c.h.b16 %v214
        %v410 = vunpack.c.l.b16 %v215
        %v411 = vunpack.c.h.b16 %v215
        %v412 = vunpack.c.l.b16 %v216
        %v413 = vunpack.c.h.b16 %v216
        %v414 = vunpack.c.l.b16 %v217
        %v415 = vunpack.c.h.b16 %v217
        %v416 = vunpack.c.l.b16 %v218
        %v417 = vunpack.c.h.b16 %v218
        %v418 = vunpack.c.l.b16 %v219
        %v419 = vunpack.c.h.b16 %v219
        %v420 = vunpack.c.l.b16 %v220
        %v421 = vunpack.c.h.b16 %v220
        %v422 = vunpack.c.l.b16 %v221
        %v423 = vunpack.c.h.b16 %v221
        %v424 = vunpack.c.l.b16 %v222
        %v425 = vunpack.c.h.b16 %v222
        %v426 = vunpack.c.l.b16 %v223
        %v427 = vunpack.c.h.b16 %v223
        %v428 = vunpack.c.l.b16 %v224
        %v429 = vunpack.c.h.b16 %v224
        %v430 = vunpack.c.l.b16 %v225
        %v431 = vunpack.c.h.b16 %v225
        %v432 = vunpack.c.l.b16 %v226
        %v433 = vunpack.c.h.b16 %v226
        %v434 = vunpack.c.l.b16 %v227
        %v435 = vunpack.c.h.b16 %v227
        %v436 = vunpack.c.l.b16 %v228
        %v437 = vunpack.c.h.b16 %v228
        %v438 = vunpack.c.l.b16 %v229
        %v439 = vunpack.c.h.b16 %v229
        %v440 = vunpack.c.l.b16 %v230
        %v441 = vunpack.c.h.b16 %v230
        %v442 = vunpack.c.l.b16 %v231
        %v443 = vunpack.c.h.b16 %v231
        %v444 = vunpack.c.l.b16 %v232
        %v445 = vunpack.c.h.b16 %v232
        %v446 = vunpack.c.l.b16 %v233
        %v447 = vunpack.c.h.b16 %v233
        %v448 = vunpack.c.l.b16 %v234
        %v449 = vunpack.c.h.b16 %v234
        %v450 = vunpack.c.l.b16 %v235
        %v451 = vunpack.c.h.b16 %v235
        %v452 = vunpack.c.l.b16 %v236
        %v453 = vunpack.c.h.b16 %v236
        %v454 = vunpack.c.l.b16 %v237
        %v455 = vunpack.c.h.b16 %v237
        %v456 = vunpack.c.l.b16 %v238
        %v457 = vunpack.c.h.b16 %v238
        %v458 = vunpack.c.l.b16 %v239
        %v459 = vunpack.c.h.b16 %v239
        %v460 = vunpack.c.l.b16 %v240
        %v461 = vunpack.c.h.b16 %v240
        %v462 = vunpack.c.l.b16 %v241
        %v463 = vunpack.c.h.b16 %v241
        %v464 = vunpack.c.l.b16 %v242
        %v465 = vunpack.c.h.b16 %v242
        %v466 = vunpack.c.l.b16 %v243
        %v467 = vunpack.c.h.b16 %v243
        %v468 = vunpack.c.l.b16 %v244
        %v469 = vunpack.c.h.b16 %v244
        %v470 = vunpack.c.l.b16 %v245
        %v471 = vunpack.c.h.b16 %v245
        %v472 = vunpack.c.l.b16 %v246
        %v473 = vunpack.c.h.b16 %v246
        %v474 = vunpack.c.l.b16 %v247
        %v475 = vunpack.c.h.b16 %v247
        %v476 = vunpack.c.l.b16 %v248
        %v477 = vunpack.c.h.b16 %v248
        %v478 = vunpack.c.l.b16 %v249
        %v479 = vunpack.c.h.b16 %v249
        %v480 = vunpack.c.l.b16 %v250
        %v481 = vunpack.c.h.b16 %v250
        %v482 = vunpack.c.l.b16 %v251
        %v483 = vunpack.c.h.b16 %v251
        %v484 = vunpack.c.l.b16 %v252
        %v485 = vunpack.c.h.b16 %v252
        %v486 = vunpack.c.l.b16 %v253
        %v487 = vunpack.c.h.b16 %v253
        %v488 = vunpack.c.l.b16 %v254
        %v489 = vunpack.c.h.b16 %v254
        %v490 = vunpack.c.l.b16 %v255
        %v491 = vunpack.c.h.b16 %v255
        %v492 = vunpack.c.l.b16 %v256
        %v493 = vunpack.c.h.b16 %v256
        %v494 = vunpack.c.l.b16 %v257
        %v495 = vunpack.c.h.b16 %v257
        %v496 = vunpack.c.l.b16 %v258
        %v497 = vunpack.c.h.b16 %v258
        %v498 = vunpack.c.l.b16 %v259
        %v499 = vunpack.c.h.b16 %v259
        %v500 = vunpack.c.l.b16 %v260
        %v501 = vunpack.c.h.b16 %v260
        %v502 = vunpack.c.l.b16 %v261
        %v503 = vunpack.c.h.b16 %v261
        %v504 = vunpack.c.l.b16 %v262
        %v505 = vunpack.c.h.b16 %v262
        %v506 = vpack.c.b16 %v386, %v382
        %v507 = vpack.c.b16 %v387, %v383
        %v508 = vpack.c.b16 %v388, %v384
        %v509 = vpack.c.b16 %v389, %v385
        %v510 = vpack.c.b16 %v394, %v390
        %v511 = vpack.c.b16 %v395, %v391
        %v512 = vpack.c.b16 %v396, %v392
        %v513 = vpack.c.b16 %v397, %v393
        %v514 = vpack.c.b16 %v402, %v398
        %v515 = vpack.c.b16 %v403, %v399
        %v516 = vpack.c.b16 %v404, %v400
        %v517 = vpack.c.b16 %v405, %v401
        %v518 = vpack.c.b16 %v410, %v406
        %v519 = vpack.c.b16 %v411, %v407
        %v520 = vpack.c.b16 %v412, %v408
        %v521 = vpack.c.b16 %v413, %v409
        %v522 = vpack.c.b16 %v418, %v414
        %v523 = vpack.c.b16 %v419, %v415
        %v524 = vpack.c.b16 %v420, %v416
        %v525 = vpack.c.b16 %v421, %v417
        %v526 = vpack.c.b16 %v426, %v422
        %v527 = vpack.c.b16 %v427, %v423
        %v528 = vpack.c.b16 %v428, %v424
        %v529 = vpack.c.b16 %v429, %v425
        %v530 = vpack.c.b16 %v434, %v430
        %v531 = vpack.c.b16 %v435, %v431
        %v532 = vpack.c.b16 %v436, %v432
        %v533 = vpack.c.b16 %v437, %v433
        %v534 = vpack.c.b16 %v442, %v438
        %v535 = vpack.c.b16 %v443, %v439
        %v536 = vpack.c.b16 %v444, %v440
        %v537 = vpack.c.b16 %v445, %v441
        %v538 = vpack.c.b16 %v450, %v446
        %v539 = vpack.c.b16 %v451, %v447
        %v540 = vpack.c.b16 %v452, %v448
        %v541 = vpack.c.b16 %v453, %v449
        %v542 = vpack.c.b16 %v458, %v454
        %v543 = vpack.c.b16 %v459, %v455
        %v544 = vpack.c.b16 %v460, %v456
        %v545 = vpack.c.b16 %v461, %v457
        %v546 = vpack.c.b16 %v466, %v462
        %v547 = vpack.c.b16 %v467, %v463
        %v548 = vpack.c.b16 %v468, %v464
        %v549 = vpack.c.b16 %v469, %v465
        %v550 = vpack.c.b16 %v474, %v470
        %v551 = vpack.c.b16 %v475, %v471
        %v552 = vpack.c.b16 %v476, %v472
        %v553 = vpack.c.b16 %v477, %v473
        %v554 = vpack.c.b16 %v482, %v478
        %v555 = vpack.c.b16 %v483, %v479
        %v556 = vpack.c.b16 %v484, %v480
        %v557 = vpack.c.b16 %v485, %v481
        %v558 = vpack.c.b16 %v490, %v486
        %v559 = vpack.c.b16 %v491, %v487
        %v560 = vpack.c.b16 %v492, %v488
        %v561 = vpack.c.b16 %v493, %v489
        %v562 = vpack.c.b16 %v498, %v494
        %v563 = vpack.c.b16 %v499, %v495
        %v564 = vpack.c.b16 %v500, %v496
        %v565 = vpack.c.b16 %v501, %v497
        %v566 = vpack.c.b16 %v502, %v502
        %v567 = vpack.c.b16 %v503, %v503
        %v568 = vpack.c.b16 %v504, %v504
        %v569 = vpack.c.b16 %v505, %v505
        %v668 = vunpack.c.l.b16 %v263
        %v669 = vunpack.c.l.b16 %v264
        %v670 = vunpack.c.l.b16 %v265
        %v671 = vunpack.c.l.b16 %v266
        %v672 = vunpack.c.l.b16 %v267
        %v673 = vunpack.c.l.b16 %v268
        %v674 = vunpack.c.l.b16 %v269
        %v675 = vunpack.c.l.b16 %v270
        %v676 = vunpack.c.l.b16 %v271
        %v677 = vunpack.c.l.b16 %v272
        %v678 = vunpack.c.l.b16 %v273
        %v679 = vunpack.c.l.b16 %v274
        %v680 = vunpack.c.l.b16 %v275
        %v681 = vunpack.c.l.b16 %v276
        %v682 = vunpack.c.l.b16 %v277
        %v683 = vunpack.c.l.b16 %v278
        %v684 = vunpack.c.l.b16 %v279
        %v685 = vunpack.c.l.b16 %v280
        %v686 = vunpack.c.l.b16 %v281
        %v687 = vunpack.c.l.b16 %v282
        %v688 = vunpack.c.l.b16 %v283
        %v689 = vunpack.c.l.b16 %v284
        %v690 = vunpack.c.l.b16 %v285
        %v691 = vunpack.c.l.b16 %v286
        %v692 = vunpack.c.l.b16 %v287
        %v693 = vunpack.c.l.b16 %v288
        %v694 = vunpack.c.l.b16 %v289
        %v695 = vunpack.c.l.b16 %v290
        %v696 = vunpack.c.l.b16 %v291
        %v697 = vunpack.c.l.b16 %v292
        %v698 = vunpack.c.l.b16 %v293
        %v699 = vunpack.c.l.b16 %v294
        %v700 = vunpack.c.l.b16 %v295
        %v701 = vunpack.c.l.b16 %v296
        %v702 = vunpack.c.l.b16 %v297
        %v703 = vunpack.c.l.b16 %v298
        %v704 = vunpack.c.l.b16 %v299
        %v705 = vunpack.c.l.b16 %v300
        %v706 = vunpack.c.l.b16 %v301
        %v707 = vunpack.c.l.b16 %v302
        %v708 = vunpack.c.l.b16 %v303
        %v709 = vunpack.c.l.b16 %v304
        %v710 = vunpack.c.l.b16 %v305
        %v711 = vunpack.c.l.b16 %v306
        %v712 = vunpack.c.l.b16 %v307
        %v713 = vunpack.c.l.b16 %v308
        %v714 = vunpack.c.l.b16 %v309
        %v715 = vunpack.c.l.b16 %v310
        %v716 = vunpack.c.l.b16 %v311
        %v717 = vunpack.c.l.b16 %v312
        %v718 = vpack.c.b16 %v669, %v668
        %v719 = vpack.c.b16 %v671, %v670
        %v720 = vpack.c.b16 %v673, %v672
        %v721 = vpack.c.b16 %v675, %v674
        %v722 = vpack.c.b16 %v677, %v676
        %v723 = vpack.c.b16 %v679, %v678
        %v724 = vpack.c.b16 %v681, %v680
        %v725 = vpack.c.b16 %v683, %v682
        %v726 = vpack.c.b16 %v685, %v684
        %v727 = vpack.c.b16 %v687, %v686
        %v728 = vpack.c.b16 %v689, %v688
        %v729 = vpack.c.b16 %v691, %v690
        %v730 = vpack.c.b16 %v693, %v692
        %v731 = vpack.c.b16 %v695, %v694
        %v732 = vpack.c.b16 %v697, %v696
        %v733 = vpack.c.b16 %v699, %v698
        %v734 = vpack.c.b16 %v701, %v700
        %v735 = vpack.c.b16 %v703, %v702
        %v736 = vpack.c.b16 %v705, %v704
        %v737 = vpack.c.b16 %v707, %v706
        %v738 = vpack.c.b16 %v709, %v708
        %v739 = vpack.c.b16 %v711, %v710
        %v740 = vpack.c.b16 %v713, %v712
        %v741 = vpack.c.b16 %v715, %v714
        %v742 = vpack.c.b16 %v717, %v716
        %vm768 = vcmask 130048
        %v770 = vsel %vm768, %v509, 0
        %v773 = vsel %vm768, %v513, 0
        %v776 = vsel %vm768, %v517, 0
        %v779 = vsel %vm768, %v521, 0
        %v782 = vsel %vm768, %v525, 0
        %v785 = vsel %vm768, %v529, 0
        %v788 = vsel %vm768, %v533, 0
        %v791 = vsel %vm768, %v537, 0
        %v794 = vsel %vm768, %v541, 0
        %v797 = vsel %vm768, %v545, 0
        %v800 = vsel %vm768, %v549, 0
        %v803 = vsel %vm768, %v553, 0
        %v806 = vsel %vm768, %v557, 0
        %v809 = vsel %vm768, %v561, 0
        %v812 = vsel %vm768, %v565, 0
        %v815 = vsel %vm768, %v569, 0
        %817 = vmatprep.subr.bf16.mxu0 0
        %818 = vmatpush1.bf16.msra.mxu0 %v718
        %819 = vmatprep.subr.bf16.mxu0 0
        %820 = vmatpush1.bf16.msra.mxu0 %v719
        %821 = vmatprep.subr.bf16.mxu0 0
        %822 = vmatpush1.bf16.msra.mxu0 %v720
        %823 = vmatprep.subr.bf16.mxu0 0
        %824 = vmatpush1.bf16.msra.mxu0 %v721
        %825 = vmatprep.subr.bf16.mxu0 0
        %826 = vmatpush1.bf16.msra.mxu0 %v722
        %827 = vmatprep.subr.bf16.mxu0 0
        %828 = vmatpush1.bf16.msra.mxu0 %v723
        %829 = vmatprep.subr.bf16.mxu0 0
        %830 = vmatpush1.bf16.msra.mxu0 %v724
        %831 = vmatprep.subr.bf16.mxu0 0
        %832 = vmatpush1.bf16.msra.mxu0 %v725
        %833 = vmatprep.subr.bf16.mxu0 0
        %834 = vmatpush1.bf16.msra.mxu0 %v726
        %835 = vmatprep.subr.bf16.mxu0 0
        %836 = vmatpush1.bf16.msra.mxu0 %v727
        %837 = vmatprep.subr.bf16.mxu0 0
        %838 = vmatpush1.bf16.msra.mxu0 %v728
        %839 = vmatprep.subr.bf16.mxu0 0
        %840 = vmatpush1.bf16.msra.mxu0 %v729
        %841 = vmatprep.subr.bf16.mxu0 0
        %842 = vmatpush1.bf16.msra.mxu0 %v730
        %843 = vmatprep.subr.bf16.mxu0 0
        %844 = vmatpush1.bf16.msra.mxu0 %v731
        %845 = vmatprep.subr.bf16.mxu0 0
        %846 = vmatpush1.bf16.msra.mxu0 %v732
        %847 = vmatprep.subr.bf16.mxu0 0
        %848 = vmatpush1.bf16.msra.mxu0 %v733
        %849 = vmatprep.mubr.bf16.mxu0 %v507
        %850 = vmatmul.mubr.bf16.gmra.mrb[0].mxu0 %v506
        %v851 = vpop.f32.mrb[0].mxu0
        %v852 = vadd.f32 %v318, %v851
        %v853 = vpop.f32.mrb[0].mxu0
        %v854 = vpop.f32.mrb[0].mxu0
        %v855 = vadd.f32 %v318, %v854
        %v856 = vpop.f32.mrb[0].mxu0
        %857 = vmatprep.mubr.bf16.mxu0 %v511
        %858 = vmatmul.mubr.bf16.gmra.mrb[0].mxu0 %v510
        %v859 = vpop.f32.mrb[0].mxu0
        %v860 = vadd.f32 %v318, %v859
        %v861 = vpop.f32.mrb[0].mxu0
        %v862 = vpop.f32.mrb[0].mxu0
        %v863 = vadd.f32 %v318, %v862
        %v864 = vpop.f32.mrb[0].mxu0
        %865 = vmatprep.mubr.bf16.mxu0 %v515
        %866 = vmatmul.mubr.bf16.gmra.mrb[0].mxu0 %v514
        %v867 = vpop.f32.mrb[0].mxu0
        %v868 = vadd.f32 %v318, %v867
        %v869 = vpop.f32.mrb[0].mxu0
        %v870 = vpop.f32.mrb[0].mxu0
        %v871 = vadd.f32 %v318, %v870
        %v872 = vpop.f32.mrb[0].mxu0
        %873 = vmatprep.mubr.bf16.mxu0 %v519
        %874 = vmatmul.mubr.bf16.gmra.mrb[0].mxu0 %v518
        %v875 = vpop.f32.mrb[0].mxu0
        %v876 = vadd.f32 %v318, %v875
        %v877 = vpop.f32.mrb[0].mxu0
        %v878 = vpop.f32.mrb[0].mxu0
        %v879 = vadd.f32 %v318, %v878
        %v880 = vpop.f32.mrb[0].mxu0
        %881 = vmatprep.mubr.bf16.mxu0 %v523
        %882 = vmatmul.mubr.bf16.gmra.mrb[0].mxu0 %v522
        %v883 = vpop.f32.mrb[0].mxu0
        %v884 = vadd.f32 %v318, %v883
        %v885 = vpop.f32.mrb[0].mxu0
        %v886 = vpop.f32.mrb[0].mxu0
        %v887 = vadd.f32 %v318, %v886
        %v888 = vpop.f32.mrb[0].mxu0
        %889 = vmatprep.mubr.bf16.mxu0 %v527
        %890 = vmatmul.mubr.bf16.gmra.mrb[0].mxu0 %v526
        %v891 = vpop.f32.mrb[0].mxu0
        %v892 = vadd.f32 %v318, %v891
        %v893 = vpop.f32.mrb[0].mxu0
        %v894 = vpop.f32.mrb[0].mxu0
        %v895 = vadd.f32 %v318, %v894
        %v896 = vpop.f32.mrb[0].mxu0
        %897 = vmatprep.mubr.bf16.mxu0 %v531
        %898 = vmatmul.mubr.bf16.gmra.mrb[0].mxu0 %v530
        %v899 = vpop.f32.mrb[0].mxu0
        %v900 = vadd.f32 %v318, %v899
        %v901 = vpop.f32.mrb[0].mxu0
        %v902 = vpop.f32.mrb[0].mxu0
        %v903 = vadd.f32 %v318, %v902
        %v904 = vpop.f32.mrb[0].mxu0
        %905 = vmatprep.mubr.bf16.mxu0 %v535
        %906 = vmatmul.mubr.bf16.gmra.mrb[0].mxu0 %v534
        %v907 = vpop.f32.mrb[0].mxu0
        %v908 = vadd.f32 %v318, %v907
        %v909 = vpop.f32.mrb[0].mxu0
        %v910 = vpop.f32.mrb[0].mxu0
        %v911 = vadd.f32 %v318, %v910
        %v912 = vpop.f32.mrb[0].mxu0
        %913 = vmatprep.mubr.bf16.mxu0 %v539
        %914 = vmatmul.mubr.bf16.gmra.mrb[0].mxu0 %v538
        %v915 = vpop.f32.mrb[0].mxu0
        %v916 = vadd.f32 %v318, %v915
        %v917 = vpop.f32.mrb[0].mxu0
        %v918 = vpop.f32.mrb[0].mxu0
        %v919 = vadd.f32 %v318, %v918
        %v920 = vpop.f32.mrb[0].mxu0
        %921 = vmatprep.mubr.bf16.mxu0 %v543
        %922 = vmatmul.mubr.bf16.gmra.mrb[0].mxu0 %v542
        %v923 = vpop.f32.mrb[0].mxu0
        %v924 = vadd.f32 %v318, %v923
        %v925 = vpop.f32.mrb[0].mxu0
        %v926 = vpop.f32.mrb[0].mxu0
        %v927 = vadd.f32 %v318, %v926
        %v928 = vpop.f32.mrb[0].mxu0
        %929 = vmatprep.mubr.bf16.mxu0 %v547
        %930 = vmatmul.mubr.bf16.gmra.mrb[0].mxu0 %v546
        %v931 = vpop.f32.mrb[0].mxu0
        %v932 = vadd.f32 %v318, %v931
        %v933 = vpop.f32.mrb[0].mxu0
        %v934 = vpop.f32.mrb[0].mxu0
        %v935 = vadd.f32 %v318, %v934
        %v936 = vpop.f32.mrb[0].mxu0
        %937 = vmatprep.mubr.bf16.mxu0 %v551
        %938 = vmatmul.mubr.bf16.gmra.mrb[0].mxu0 %v550
        %v939 = vpop.f32.mrb[0].mxu0
        %v940 = vadd.f32 %v318, %v939
        %v941 = vpop.f32.mrb[0].mxu0
        %v942 = vpop.f32.mrb[0].mxu0
        %v943 = vadd.f32 %v318, %v942
        %v944 = vpop.f32.mrb[0].mxu0
        %945 = vmatprep.mubr.bf16.mxu0 %v555
        %946 = vmatmul.mubr.bf16.gmra.mrb[0].mxu0 %v554
        %v947 = vpop.f32.mrb[0].mxu0
        %v948 = vadd.f32 %v318, %v947
        %v949 = vpop.f32.mrb[0].mxu0
        %v950 = vpop.f32.mrb[0].mxu0
        %v951 = vadd.f32 %v318, %v950
        %v952 = vpop.f32.mrb[0].mxu0
        %953 = vmatprep.mubr.bf16.mxu0 %v559
        %954 = vmatmul.mubr.bf16.gmra.mrb[0].mxu0 %v558
        %v955 = vpop.f32.mrb[0].mxu0
        %v956 = vadd.f32 %v318, %v955
        %v957 = vpop.f32.mrb[0].mxu0
        %v958 = vpop.f32.mrb[0].mxu0
        %v959 = vadd.f32 %v318, %v958
        %v960 = vpop.f32.mrb[0].mxu0
        %961 = vmatprep.mubr.bf16.mxu0 %v563
        %962 = vmatmul.mubr.bf16.gmra.mrb[0].mxu0 %v562
        %v963 = vpop.f32.mrb[0].mxu0
        %v964 = vadd.f32 %v318, %v963
        %v965 = vpop.f32.mrb[0].mxu0
        %v966 = vpop.f32.mrb[0].mxu0
        %v967 = vadd.f32 %v318, %v966
        %v968 = vpop.f32.mrb[0].mxu0
        %969 = vmatprep.mubr.bf16.mxu0 %v567
        %970 = vmatmul.mubr.bf16.gmra.mrb[0].mxu0 %v566
        %v971 = vpop.f32.mrb[0].mxu0
        %v972 = vadd.f32 %v318, %v971
        %v973 = vpop.f32.mrb[0].mxu0
        %v974 = vpop.f32.mrb[0].mxu0
        %v975 = vpop.f32.mrb[0].mxu0
        %976 = vdwg.mxu0
        %977 = vmatprep.subr.bf16.mxu0 0
        %978 = vmatpush1.bf16.msra.mxu0 %v734
        %979 = vmatprep.subr.bf16.mxu0 0
        %980 = vmatpush1.bf16.msra.mxu0 %v735
        %981 = vmatprep.subr.bf16.mxu0 0
        %982 = vmatpush1.bf16.msra.mxu0 %v736
        %983 = vmatprep.subr.bf16.mxu0 0
        %984 = vmatpush1.bf16.msra.mxu0 %v737
        %985 = vmatprep.subr.bf16.mxu0 0
        %986 = vmatpush1.bf16.msra.mxu0 %v738
        %987 = vmatprep.subr.bf16.mxu0 0
        %988 = vmatpush1.bf16.msra.mxu0 %v739
        %989 = vmatprep.subr.bf16.mxu0 0
        %990 = vmatpush1.bf16.msra.mxu0 %v740
        %991 = vmatprep.subr.bf16.mxu0 0
        %992 = vmatpush1.bf16.msra.mxu0 %v741
        %993 = vmatprep.subr.bf16.mxu0 0
        %994 = vmatpush1.bf16.msra.mxu0 %v742
        %995 = vmatprep.subr.bf16.mxu0 0
        %996 = vmatpush1.bf16.msra.mxu0 0
        %997 = vmatprep.subr.bf16.mxu0 0
        %998 = vmatpush1.bf16.msra.mxu0 0
        %999 = vmatprep.subr.bf16.mxu0 0
        %1000 = vmatpush1.bf16.msra.mxu0 0
        %1001 = vmatprep.subr.bf16.mxu0 0
        %1002 = vmatpush1.bf16.msra.mxu0 0
        %1003 = vmatprep.subr.bf16.mxu0 0
        %1004 = vmatpush1.bf16.msra.mxu0 0
        %1005 = vmatprep.subr.bf16.mxu0 0
        %1006 = vmatpush1.bf16.msra.mxu0 0
        %1007 = vmatprep.subr.bf16.mxu0 0
        %1008 = vmatpush1.bf16.msra.mxu0 0
        %1009 = vmatprep.mubr.bf16.mxu0 %v770
        %1010 = vmatmul.mubr.bf16.gmra.mrb[0].mxu0 %v508
        %v1011 = vpop.f32.mrb[0].mxu0
        %v1012 = vadd.f32 %v852, %v1011
        %v1013 = vpop.f32.mrb[0].mxu0
        %v1014 = vpop.f32.mrb[0].mxu0
        %v1015 = vadd.f32 %v855, %v1014
        %v1016 = vpop.f32.mrb[0].mxu0
        %1017 = vmatprep.mubr.bf16.mxu0 %v773
        %1018 = vmatmul.mubr.bf16.gmra.mrb[0].mxu0 %v512
        %v1019 = vpop.f32.mrb[0].mxu0
        %v1020 = vadd.f32 %v860, %v1019
        %v1021 = vpop.f32.mrb[0].mxu0
        %v1022 = vpop.f32.mrb[0].mxu0
        %v1023 = vadd.f32 %v863, %v1022
        %v1024 = vpop.f32.mrb[0].mxu0
        %1025 = vmatprep.mubr.bf16.mxu0 %v776
        %1026 = vmatmul.mubr.bf16.gmra.mrb[0].mxu0 %v516
        %v1027 = vpop.f32.mrb[0].mxu0
        %v1028 = vadd.f32 %v868, %v1027
        %v1029 = vpop.f32.mrb[0].mxu0
        %v1030 = vpop.f32.mrb[0].mxu0
        %v1031 = vadd.f32 %v871, %v1030
        %v1032 = vpop.f32.mrb[0].mxu0
        %1033 = vmatprep.mubr.bf16.mxu0 %v779
        %1034 = vmatmul.mubr.bf16.gmra.mrb[0].mxu0 %v520
        %v1035 = vpop.f32.mrb[0].mxu0
        %v1036 = vadd.f32 %v876, %v1035
        %v1037 = vpop.f32.mrb[0].mxu0
        %v1038 = vpop.f32.mrb[0].mxu0
        %v1039 = vadd.f32 %v879, %v1038
        %v1040 = vpop.f32.mrb[0].mxu0
        %1041 = vmatprep.mubr.bf16.mxu0 %v782
        %1042 = vmatmul.mubr.bf16.gmra.mrb[0].mxu0 %v524
        %v1043 = vpop.f32.mrb[0].mxu0
        %v1044 = vadd.f32 %v884, %v1043
        %v1045 = vpop.f32.mrb[0].mxu0
        %v1046 = vpop.f32.mrb[0].mxu0
        %v1047 = vadd.f32 %v887, %v1046
        %v1048 = vpop.f32.mrb[0].mxu0
        %1049 = vmatprep.mubr.bf16.mxu0 %v785
        %1050 = vmatmul.mubr.bf16.gmra.mrb[0].mxu0 %v528
        %v1051 = vpop.f32.mrb[0].mxu0
        %v1052 = vadd.f32 %v892, %v1051
        %v1053 = vpop.f32.mrb[0].mxu0
        %v1054 = vpop.f32.mrb[0].mxu0
        %v1055 = vadd.f32 %v895, %v1054
        %v1056 = vpop.f32.mrb[0].mxu0
        %1057 = vmatprep.mubr.bf16.mxu0 %v788
        %1058 = vmatmul.mubr.bf16.gmra.mrb[0].mxu0 %v532
        %v1059 = vpop.f32.mrb[0].mxu0
        %v1060 = vadd.f32 %v900, %v1059
        %v1061 = vpop.f32.mrb[0].mxu0
        %v1062 = vpop.f32.mrb[0].mxu0
        %v1063 = vadd.f32 %v903, %v1062
        %v1064 = vpop.f32.mrb[0].mxu0
        %1065 = vmatprep.mubr.bf16.mxu0 %v791
        %1066 = vmatmul.mubr.bf16.gmra.mrb[0].mxu0 %v536
        %v1067 = vpop.f32.mrb[0].mxu0
        %v1068 = vadd.f32 %v908, %v1067
        %v1069 = vpop.f32.mrb[0].mxu0
        %v1070 = vpop.f32.mrb[0].mxu0
        %v1071 = vadd.f32 %v911, %v1070
        %v1072 = vpop.f32.mrb[0].mxu0
        %1073 = vmatprep.mubr.bf16.mxu0 %v794
        %1074 = vmatmul.mubr.bf16.gmra.mrb[0].mxu0 %v540
        %v1075 = vpop.f32.mrb[0].mxu0
        %v1076 = vadd.f32 %v916, %v1075
        %v1077 = vpop.f32.mrb[0].mxu0
        %v1078 = vpop.f32.mrb[0].mxu0
        %v1079 = vadd.f32 %v919, %v1078
        %v1080 = vpop.f32.mrb[0].mxu0
        %1081 = vmatprep.mubr.bf16.mxu0 %v797
        %1082 = vmatmul.mubr.bf16.gmra.mrb[0].mxu0 %v544
        %v1083 = vpop.f32.mrb[0].mxu0
        %v1084 = vadd.f32 %v924, %v1083
        %v1085 = vpop.f32.mrb[0].mxu0
        %v1086 = vpop.f32.mrb[0].mxu0
        %v1087 = vadd.f32 %v927, %v1086
        %v1088 = vpop.f32.mrb[0].mxu0
        %1089 = vmatprep.mubr.bf16.mxu0 %v800
        %1090 = vmatmul.mubr.bf16.gmra.mrb[0].mxu0 %v548
        %v1091 = vpop.f32.mrb[0].mxu0
        %v1092 = vadd.f32 %v932, %v1091
        %v1093 = vpop.f32.mrb[0].mxu0
        %v1094 = vpop.f32.mrb[0].mxu0
        %v1095 = vadd.f32 %v935, %v1094
        %v1096 = vpop.f32.mrb[0].mxu0
        %1097 = vmatprep.mubr.bf16.mxu0 %v803
        %1098 = vmatmul.mubr.bf16.gmra.mrb[0].mxu0 %v552
        %v1099 = vpop.f32.mrb[0].mxu0
        %v1100 = vadd.f32 %v940, %v1099
        %v1101 = vpop.f32.mrb[0].mxu0
        %v1102 = vpop.f32.mrb[0].mxu0
        %v1103 = vadd.f32 %v943, %v1102
        %v1104 = vpop.f32.mrb[0].mxu0
        %1105 = vmatprep.mubr.bf16.mxu0 %v806
        %1106 = vmatmul.mubr.bf16.gmra.mrb[0].mxu0 %v556
        %v1107 = vpop.f32.mrb[0].mxu0
        %v1108 = vadd.f32 %v948, %v1107
        %v1109 = vpop.f32.mrb[0].mxu0
        %v1110 = vpop.f32.mrb[0].mxu0
        %v1111 = vadd.f32 %v951, %v1110
        %v1112 = vpop.f32.mrb[0].mxu0
        %1113 = vmatprep.mubr.bf16.mxu0 %v809
        %1114 = vmatmul.mubr.bf16.gmra.mrb[0].mxu0 %v560
        %v1115 = vpop.f32.mrb[0].mxu0
        %v1116 = vadd.f32 %v956, %v1115
        %v1117 = vpop.f32.mrb[0].mxu0
        %v1118 = vpop.f32.mrb[0].mxu0
        %v1119 = vadd.f32 %v959, %v1118
        %v1120 = vpop.f32.mrb[0].mxu0
        %1121 = vmatprep.mubr.bf16.mxu0 %v812
        %1122 = vmatmul.mubr.bf16.gmra.mrb[0].mxu0 %v564
        %v1123 = vpop.f32.mrb[0].mxu0
        %v1124 = vadd.f32 %v964, %v1123
        %v1125 = vpop.f32.mrb[0].mxu0
        %v1126 = vpop.f32.mrb[0].mxu0
        %v1127 = vadd.f32 %v967, %v1126
        %v1128 = vpop.f32.mrb[0].mxu0
        %1129 = vmatprep.mubr.bf16.mxu0 %v815
        %1130 = vmatmul.mubr.bf16.gmra.mrb[0].mxu0 %v568
        %v1131 = vpop.f32.mrb[0].mxu0
        %v1132 = vadd.f32 %v972, %v1131
        %v1133 = vpop.f32.mrb[0].mxu0
        %v1134 = vpop.f32.mrb[0].mxu0
        %v1135 = vpop.f32.mrb[0].mxu0
        %1136 = vdwg.mxu0
        %vm1137 = vcmp.ge.f32.partialorder %v1012, 0.0
        %vm1138 = vcmp.ge.f32.partialorder %v1015, 0.0
        %vm1139 = vcmp.ge.f32.partialorder %v1020, 0.0
        %vm1140 = vcmp.ge.f32.partialorder %v1023, 0.0
        %vm1141 = vcmp.ge.f32.partialorder %v1028, 0.0
        %vm1142 = vcmp.ge.f32.partialorder %v1031, 0.0
        %vm1143 = vcmp.ge.f32.partialorder %v1036, 0.0
        %vm1144 = vcmp.ge.f32.partialorder %v1039, 0.0
        %vm1145 = vcmp.ge.f32.partialorder %v1044, 0.0
        %vm1146 = vcmp.ge.f32.partialorder %v1047, 0.0
        %vm1147 = vcmp.ge.f32.partialorder %v1052, 0.0
        %vm1148 = vcmp.ge.f32.partialorder %v1055, 0.0
        %vm1149 = vcmp.ge.f32.partialorder %v1060, 0.0
        %vm1150 = vcmp.ge.f32.partialorder %v1063, 0.0
        %vm1151 = vcmp.ge.f32.partialorder %v1068, 0.0
        %vm1152 = vcmp.ge.f32.partialorder %v1071, 0.0
        %vm1153 = vcmp.ge.f32.partialorder %v1076, 0.0
        %vm1154 = vcmp.ge.f32.partialorder %v1079, 0.0
        %vm1155 = vcmp.ge.f32.partialorder %v1084, 0.0
        %vm1156 = vcmp.ge.f32.partialorder %v1087, 0.0
        %vm1157 = vcmp.ge.f32.partialorder %v1092, 0.0
        %vm1158 = vcmp.ge.f32.partialorder %v1095, 0.0
        %vm1159 = vcmp.ge.f32.partialorder %v1100, 0.0
        %vm1160 = vcmp.ge.f32.partialorder %v1103, 0.0
        %vm1161 = vcmp.ge.f32.partialorder %v1108, 0.0
        %vm1162 = vcmp.ge.f32.partialorder %v1111, 0.0
        %vm1163 = vcmp.ge.f32.partialorder %v1116, 0.0
        %vm1164 = vcmp.ge.f32.partialorder %v1119, 0.0
        %vm1165 = vcmp.ge.f32.partialorder %v1124, 0.0
        %vm1166 = vcmp.ge.f32.partialorder %v1127, 0.0
        %vm1167 = vcmp.ge.f32.partialorder %v1132, 0.0
        %v1168 = vmul.f32 %v1012, 0.01
        %v1169 = vmul.f32 %v1015, 0.01
        %v1170 = vmul.f32 %v1020, 0.01
        %v1171 = vmul.f32 %v1023, 0.01
        %v1172 = vmul.f32 %v1028, 0.01
        %v1173 = vmul.f32 %v1031, 0.01
        %v1174 = vmul.f32 %v1036, 0.01
        %v1175 = vmul.f32 %v1039, 0.01
        %v1176 = vmul.f32 %v1044, 0.01
        %v1177 = vmul.f32 %v1047, 0.01
        %v1178 = vmul.f32 %v1052, 0.01
        %v1179 = vmul.f32 %v1055, 0.01
        %v1180 = vmul.f32 %v1060, 0.01
        %v1181 = vmul.f32 %v1063, 0.01
        %v1182 = vmul.f32 %v1068, 0.01
        %v1183 = vmul.f32 %v1071, 0.01
        %v1184 = vmul.f32 %v1076, 0.01
        %v1185 = vmul.f32 %v1079, 0.01
        %v1186 = vmul.f32 %v1084, 0.01
        %v1187 = vmul.f32 %v1087, 0.01
        %v1188 = vmul.f32 %v1092, 0.01
        %v1189 = vmul.f32 %v1095, 0.01
        %v1190 = vmul.f32 %v1100, 0.01
        %v1191 = vmul.f32 %v1103, 0.01
        %v1192 = vmul.f32 %v1108, 0.01
        %v1193 = vmul.f32 %v1111, 0.01
        %v1194 = vmul.f32 %v1116, 0.01
        %v1195 = vmul.f32 %v1119, 0.01
        %v1196 = vmul.f32 %v1124, 0.01
        %v1197 = vmul.f32 %v1127, 0.01
        %v1198 = vmul.f32 %v1132, 0.01
        %v1199 = vsel %vm1137, %v1012, %v1168
        %v1200 = vsel %vm1138, %v1015, %v1169
        %v1201 = vsel %vm1139, %v1020, %v1170
        %v1202 = vsel %vm1140, %v1023, %v1171
        %v1203 = vsel %vm1141, %v1028, %v1172
        %v1204 = vsel %vm1142, %v1031, %v1173
        %v1205 = vsel %vm1143, %v1036, %v1174
        %v1206 = vsel %vm1144, %v1039, %v1175
        %v1207 = vsel %vm1145, %v1044, %v1176
        %v1208 = vsel %vm1146, %v1047, %v1177
        %v1209 = vsel %vm1147, %v1052, %v1178
        %v1210 = vsel %vm1148, %v1055, %v1179
        %v1211 = vsel %vm1149, %v1060, %v1180
        %v1212 = vsel %vm1150, %v1063, %v1181
        %v1213 = vsel %vm1151, %v1068, %v1182
        %v1214 = vsel %vm1152, %v1071, %v1183
        %v1215 = vsel %vm1153, %v1076, %v1184
        %v1216 = vsel %vm1154, %v1079, %v1185
        %v1217 = vsel %vm1155, %v1084, %v1186
        %v1218 = vsel %vm1156, %v1087, %v1187
        %v1219 = vsel %vm1157, %v1092, %v1188
        %v1220 = vsel %vm1158, %v1095, %v1189
        %v1221 = vsel %vm1159, %v1100, %v1190
        %v1222 = vsel %vm1160, %v1103, %v1191
        %v1223 = vsel %vm1161, %v1108, %v1192
        %v1224 = vsel %vm1162, %v1111, %v1193
        %v1225 = vsel %vm1163, %v1116, %v1194
        %v1226 = vsel %vm1164, %v1119, %v1195
        %v1227 = vsel %vm1165, %v1124, %v1196
        %v1228 = vsel %vm1166, %v1127, %v1197
        %v1229 = vsel %vm1167, %v1132, %v1198
        %v1230 = vpack.c.bf16 %v1200, %v1199
        %v1231 = vpack.c.bf16 %v1202, %v1201
        %v1232 = vpack.c.bf16 %v1204, %v1203
        %v1233 = vpack.c.bf16 %v1206, %v1205
        %v1234 = vpack.c.bf16 %v1208, %v1207
        %v1235 = vpack.c.bf16 %v1210, %v1209
        %v1236 = vpack.c.bf16 %v1212, %v1211
        %v1237 = vpack.c.bf16 %v1214, %v1213
        %v1238 = vpack.c.bf16 %v1216, %v1215
        %v1239 = vpack.c.bf16 %v1218, %v1217
        %v1240 = vpack.c.bf16 %v1220, %v1219
        %v1241 = vpack.c.bf16 %v1222, %v1221
        %v1242 = vpack.c.bf16 %v1224, %v1223
        %v1243 = vpack.c.bf16 %v1226, %v1225
        %v1244 = vpack.c.bf16 %v1228, %v1227
        %v1245 = vpack.c.bf16 %v1229, %v1229
        %v1262 = vunpack.c.l.b16 %v1230
        %v1263 = vunpack.c.h.b16 %v1230
        %v1264 = vunpack.c.l.b16 %v1231
        %v1265 = vunpack.c.h.b16 %v1231
        %v1266 = vunpack.c.l.b16 %v1232
        %v1267 = vunpack.c.h.b16 %v1232
        %v1268 = vunpack.c.l.b16 %v1233
        %v1269 = vunpack.c.h.b16 %v1233
        %v1270 = vunpack.c.l.b16 %v1234
        %v1271 = vunpack.c.h.b16 %v1234
        %v1272 = vunpack.c.l.b16 %v1235
        %v1273 = vunpack.c.h.b16 %v1235
        %v1274 = vunpack.c.l.b16 %v1236
        %v1275 = vunpack.c.h.b16 %v1236
        %v1276 = vunpack.c.l.b16 %v1237
        %v1277 = vunpack.c.h.b16 %v1237
        %v1278 = vunpack.c.l.b16 %v1238
        %v1279 = vunpack.c.h.b16 %v1238
        %v1280 = vunpack.c.l.b16 %v1239
        %v1281 = vunpack.c.h.b16 %v1239
        %v1282 = vunpack.c.l.b16 %v1240
        %v1283 = vunpack.c.h.b16 %v1240
        %v1284 = vunpack.c.l.b16 %v1241
        %v1285 = vunpack.c.h.b16 %v1241
        %v1286 = vunpack.c.l.b16 %v1242
        %v1287 = vunpack.c.h.b16 %v1242
        %v1288 = vunpack.c.l.b16 %v1243
        %v1289 = vunpack.c.h.b16 %v1243
        %v1290 = vunpack.c.l.b16 %v1244
        %v1291 = vunpack.c.h.b16 %v1244
        %v1292 = vunpack.c.l.b16 %v1245
        %v1293 = vpack.c.b16 %v1262, %v1262
        %v1294 = vpack.c.b16 %v1263, %v1263
        %v1295 = vpack.c.b16 %v1264, %v1264
        %v1296 = vpack.c.b16 %v1265, %v1265
        %v1297 = vpack.c.b16 %v1266, %v1266
        %v1298 = vpack.c.b16 %v1267, %v1267
        %v1299 = vpack.c.b16 %v1268, %v1268
        %v1300 = vpack.c.b16 %v1269, %v1269
        %v1301 = vpack.c.b16 %v1270, %v1270
        %v1302 = vpack.c.b16 %v1271, %v1271
        %v1303 = vpack.c.b16 %v1272, %v1272
        %v1304 = vpack.c.b16 %v1273, %v1273
        %v1305 = vpack.c.b16 %v1274, %v1274
        %v1306 = vpack.c.b16 %v1275, %v1275
        %v1307 = vpack.c.b16 %v1276, %v1276
        %v1308 = vpack.c.b16 %v1277, %v1277
        %v1309 = vpack.c.b16 %v1278, %v1278
        %v1310 = vpack.c.b16 %v1279, %v1279
        %v1311 = vpack.c.b16 %v1280, %v1280
        %v1312 = vpack.c.b16 %v1281, %v1281
        %v1313 = vpack.c.b16 %v1282, %v1282
        %v1314 = vpack.c.b16 %v1283, %v1283
        %v1315 = vpack.c.b16 %v1284, %v1284
        %v1316 = vpack.c.b16 %v1285, %v1285
        %v1317 = vpack.c.b16 %v1286, %v1286
        %v1318 = vpack.c.b16 %v1287, %v1287
        %v1319 = vpack.c.b16 %v1288, %v1288
        %v1320 = vpack.c.b16 %v1289, %v1289
        %v1321 = vpack.c.b16 %v1290, %v1290
        %v1322 = vpack.c.b16 %v1291, %v1291
        %v1323 = vpack.c.b16 %v1292, %v1292
        %vm1355 = vcmask 125952
        %1356 = vst.msk [vmem:[%s177] sm:$0xf] %vm1355, %v1293
        %1357 = vst.msk [vmem:[%s177 + $0x4] sm:$0xf] %vm1355, %v1294
        %1358 = vst.msk [vmem:[%s177 + $0x8] sm:$0xf] %vm1355, %v1295
        %1359 = vst.msk [vmem:[%s177 + $0xc] sm:$0xf] %vm1355, %v1296
        %1360 = vst.msk [vmem:[%s177 + $0x10] sm:$0xf] %vm1355, %v1297
        %1361 = vst.msk [vmem:[%s177 + $0x14] sm:$0xf] %vm1355, %v1298
        %1362 = vst.msk [vmem:[%s177 + $0x18] sm:$0xf] %vm1355, %v1299
        %1363 = vst.msk [vmem:[%s177 + $0x1c] sm:$0xf] %vm1355, %v1300
        %1364 = vst.msk [vmem:[%s177 + $0x20] sm:$0xf] %vm1355, %v1301
        %1365 = vst.msk [vmem:[%s177 + $0x24] sm:$0xf] %vm1355, %v1302
        %1366 = vst.msk [vmem:[%s177 + $0x28] sm:$0xf] %vm1355, %v1303
        %1367 = vst.msk [vmem:[%s177 + $0x2c] sm:$0xf] %vm1355, %v1304
        %1368 = vst.msk [vmem:[%s177 + $0x30] sm:$0xf] %vm1355, %v1305
        %1369 = vst.msk [vmem:[%s177 + $0x34] sm:$0xf] %vm1355, %v1306
        %1370 = vst.msk [vmem:[%s177 + $0x38] sm:$0xf] %vm1355, %v1307
        %1371 = vst.msk [vmem:[%s177 + $0x3c] sm:$0xf] %vm1355, %v1308
        %1372 = vst.msk [vmem:[%s177 + $0x40] sm:$0xf] %vm1355, %v1309
        %1373 = vst.msk [vmem:[%s177 + $0x44] sm:$0xf] %vm1355, %v1310
        %1374 = vst.msk [vmem:[%s177 + $0x48] sm:$0xf] %vm1355, %v1311
        %1375 = vst.msk [vmem:[%s177 + $0x4c] sm:$0xf] %vm1355, %v1312
        %1376 = vst.msk [vmem:[%s177 + $0x50] sm:$0xf] %vm1355, %v1313
        %1377 = vst.msk [vmem:[%s177 + $0x54] sm:$0xf] %vm1355, %v1314
        %1378 = vst.msk [vmem:[%s177 + $0x58] sm:$0xf] %vm1355, %v1315
        %1379 = vst.msk [vmem:[%s177 + $0x5c] sm:$0xf] %vm1355, %v1316
        %1380 = vst.msk [vmem:[%s177 + $0x60] sm:$0xf] %vm1355, %v1317
        %1381 = vst.msk [vmem:[%s177 + $0x64] sm:$0xf] %vm1355, %v1318
        %1382 = vst.msk [vmem:[%s177 + $0x68] sm:$0xf] %vm1355, %v1319
        %1383 = vst.msk [vmem:[%s177 + $0x6c] sm:$0xf] %vm1355, %v1320
        %1384 = vst.msk [vmem:[%s177 + $0x70] sm:$0xf] %vm1355, %v1321
        %1385 = vst.msk [vmem:[%s177 + $0x74] sm:$0xf] %vm1355, %v1322
        %1386 = vst.msk [vmem:[%s177 + $0x78] sm:$0xf] %vm1355, %v1323
        %s1387 = sand.u32 %s90, 1
        %s1388 = sand.u32 %s90, 1
        %s1389 = smul.addr %s1388, 124
        %s1390 = scalar_lea.vmem [#allocation2], %s1389
        // Predicated region
        $region33: #{net_forward.6} parent=31 // pred_check
          %p1391 = pneg %p100
        $region34: #{net_forward.6} parent=31 // pred_check_branch
          %1393 = sbr.rel (%p1391) target = $region36
        $region35: #{net_forward.6} parent=31 // pred_region
          %s1394 = smul.u32 31, %s14
          %s1395 = ssub.s32 61, %s1394
          %p1396 = scmp.lt.s32.totalorder %s1395, 31
          %s1397 = scalar_select %p1396, %s1395, 31
          %s1398 = smul.u32 64, %s1397
          %p1399 = scmp.ne.s32.totalorder 0, %s1398
          %s1400 = smul.addr %s1394, 4
          %s1401 = scalar_lea.vmem %s3, %s1400
          // Predicated region
          $region37: #{net_forward.6} parent=35 // pred_check
            %p1402 = pneg %p1399
          $region38: #{net_forward.6} parent=35 // pred_check_branch
            %1404 = sbr.rel (%p1402) target = $region40
          $region39: #{net_forward.6} parent=35 // pred_region
            // Predicated region
            $region41: #{net_forward.6} parent=39 // pred_check
              _
            $region42: #{net_forward.6} parent=39 // pred_check_branch
              %1406 = sbr.rel target = $region44
            $region43: #{net_forward.6} parent=39 // pred_region
              // Predicated region
              $region63: #{net_forward.6} parent=43 // pred_check
                _
              $region64: #{net_forward.6} parent=43 // pred_check_branch
                %1516 = sbr.rel (0) target = $region66
              $region65: #{net_forward.6} parent=43 // pred_region
                %s1518 = sdiv.u32.pop %s1397, 31
                %s1519 = srem.u32.pop %s1397, 31
                // While loop
                $region67: #{net_forward.6} parent=65 // loop_pre_header
                  _
                $region68: #{net_forward.6} parent=65 // loop_header
                  %s1521 = sphi 0, %s1523
                  %p1522 = scmp.ge.s32.totalorder %s1521, %s1518
                  %s1526 = sphi 0, %s1593
                  %s1527 = sphi %s1390, %s1596
                  %s1528 = sphi %s1401, %s1597
                $region69: #{net_forward.6} parent=65 // loop_header_branch
                  %1525 = sbr.rel (%p1522) target = $region73
                $region70: #{net_forward.6} parent=65 // loop_body
                  %v1529 = vld [vmem:[%s1527] sm:$0xf]
                  %1530 = vst [vmem:[%s1528] sm:$0xf] %v1529
                  %v1531 = vld [vmem:[%s1527 + $0x4] sm:$0xf]
                  %1532 = vst [vmem:[%s1528 + $0x4] sm:$0xf] %v1531
                  %v1533 = vld [vmem:[%s1527 + $0x8] sm:$0xf]
                  %1534 = vst [vmem:[%s1528 + $0x8] sm:$0xf] %v1533
                  %v1535 = vld [vmem:[%s1527 + $0xc] sm:$0xf]
                  %1536 = vst [vmem:[%s1528 + $0xc] sm:$0xf] %v1535
                  %v1537 = vld [vmem:[%s1527 + $0x10] sm:$0xf]
                  %1538 = vst [vmem:[%s1528 + $0x10] sm:$0xf] %v1537
                  %v1539 = vld [vmem:[%s1527 + $0x14] sm:$0xf]
                  %1540 = vst [vmem:[%s1528 + $0x14] sm:$0xf] %v1539
                  %v1541 = vld [vmem:[%s1527 + $0x18] sm:$0xf]
                  %1542 = vst [vmem:[%s1528 + $0x18] sm:$0xf] %v1541
                  %v1543 = vld [vmem:[%s1527 + $0x1c] sm:$0xf]
                  %1544 = vst [vmem:[%s1528 + $0x1c] sm:$0xf] %v1543
                  %v1545 = vld [vmem:[%s1527 + $0x20] sm:$0xf]
                  %1546 = vst [vmem:[%s1528 + $0x20] sm:$0xf] %v1545
                  %v1547 = vld [vmem:[%s1527 + $0x24] sm:$0xf]
                  %1548 = vst [vmem:[%s1528 + $0x24] sm:$0xf] %v1547
                  %v1549 = vld [vmem:[%s1527 + $0x28] sm:$0xf]
                  %1550 = vst [vmem:[%s1528 + $0x28] sm:$0xf] %v1549
                  %v1551 = vld [vmem:[%s1527 + $0x2c] sm:$0xf]
                  %1552 = vst [vmem:[%s1528 + $0x2c] sm:$0xf] %v1551
                  %v1553 = vld [vmem:[%s1527 + $0x30] sm:$0xf]
                  %1554 = vst [vmem:[%s1528 + $0x30] sm:$0xf] %v1553
                  %v1555 = vld [vmem:[%s1527 + $0x34] sm:$0xf]
                  %1556 = vst [vmem:[%s1528 + $0x34] sm:$0xf] %v1555
                  %v1557 = vld [vmem:[%s1527 + $0x38] sm:$0xf]
                  %1558 = vst [vmem:[%s1528 + $0x38] sm:$0xf] %v1557
                  %v1559 = vld [vmem:[%s1527 + $0x3c] sm:$0xf]
                  %1560 = vst [vmem:[%s1528 + $0x3c] sm:$0xf] %v1559
                  %v1561 = vld [vmem:[%s1527 + $0x40] sm:$0xf]
                  %1562 = vst [vmem:[%s1528 + $0x40] sm:$0xf] %v1561
                  %v1563 = vld [vmem:[%s1527 + $0x44] sm:$0xf]
                  %1564 = vst [vmem:[%s1528 + $0x44] sm:$0xf] %v1563
                  %v1565 = vld [vmem:[%s1527 + $0x48] sm:$0xf]
                  %1566 = vst [vmem:[%s1528 + $0x48] sm:$0xf] %v1565
                  %v1567 = vld [vmem:[%s1527 + $0x4c] sm:$0xf]
                  %1568 = vst [vmem:[%s1528 + $0x4c] sm:$0xf] %v1567
                  %v1569 = vld [vmem:[%s1527 + $0x50] sm:$0xf]
                  %1570 = vst [vmem:[%s1528 + $0x50] sm:$0xf] %v1569
                  %v1571 = vld [vmem:[%s1527 + $0x54] sm:$0xf]
                  %1572 = vst [vmem:[%s1528 + $0x54] sm:$0xf] %v1571
                  %v1573 = vld [vmem:[%s1527 + $0x58] sm:$0xf]
                  %1574 = vst [vmem:[%s1528 + $0x58] sm:$0xf] %v1573
                  %v1575 = vld [vmem:[%s1527 + $0x5c] sm:$0xf]
                  %1576 = vst [vmem:[%s1528 + $0x5c] sm:$0xf] %v1575
                  %v1577 = vld [vmem:[%s1527 + $0x60] sm:$0xf]
                  %1578 = vst [vmem:[%s1528 + $0x60] sm:$0xf] %v1577
                  %v1579 = vld [vmem:[%s1527 + $0x64] sm:$0xf]
                  %1580 = vst [vmem:[%s1528 + $0x64] sm:$0xf] %v1579
                  %v1581 = vld [vmem:[%s1527 + $0x68] sm:$0xf]
                  %1582 = vst [vmem:[%s1528 + $0x68] sm:$0xf] %v1581
                  %v1583 = vld [vmem:[%s1527 + $0x6c] sm:$0xf]
                  %1584 = vst [vmem:[%s1528 + $0x6c] sm:$0xf] %v1583
                  %v1585 = vld [vmem:[%s1527 + $0x70] sm:$0xf]
                  %1586 = vst [vmem:[%s1528 + $0x70] sm:$0xf] %v1585
                  %v1587 = vld [vmem:[%s1527 + $0x74] sm:$0xf]
                  %1588 = vst [vmem:[%s1528 + $0x74] sm:$0xf] %v1587
                  %v1589 = vld [vmem:[%s1527 + $0x78] sm:$0xf]
                  %1590 = vst [vmem:[%s1528 + $0x78] sm:$0xf] %v1589
                  %s1591 = sadd.s32 1, %s1526
                  %p1592 = scmp.ge.s32.totalorder %s1591, %s1518
                  %s1593 = scalar_select %p1592, 0, %s1591
                  %s1594 = smul.u32 %s1593, 124
                  %s1595 = smul.u32 %s1593, 124
                  %s1596 = scalar_lea.vmem %s1390, %s1594 [#allocation2]
                  %s1597 = scalar_lea.vmem %s1401, %s1595
                $region71: #{net_forward.6} parent=65 // loop_footer
                  %s1523 = sadd.s32 %s1521, 1
                $region72: #{net_forward.6} parent=65 // loop_footer_branch
                  %1520 = sbr.rel target = $region68
                $region73: #{net_forward.6} parent=65 // loop_exit
                  _
                %s1598 = sdiv.u32.pop %s1397, 31
                %s1599 = srem.u32.pop %s1397, 31
                %s1600 = smul.u32 %s1598, 31
                %s1601 = smul.u32 4, %s1600
                %s1602 = scalar_lea.vmem %s1390, %s1601 [#allocation2]
                %s1603 = smul.u32 4, %s1600
                %s1604 = scalar_lea.vmem %s1401, %s1603
                // While loop
                $region74: #{net_forward.6} parent=65 // loop_pre_header
                  _
                $region75: #{net_forward.6} parent=65 // loop_header
                  %s1606 = sphi 0, %s1608
                  %p1607 = scmp.ge.s32.totalorder %s1606, %s1599
                  %s1611 = sphi 0, %s1618
                  %s1612 = sphi %s1602, %s1621
                  %s1613 = sphi %s1604, %s1622
                $region76: #{net_forward.6} parent=65 // loop_header_branch
                  %1610 = sbr.rel (%p1607) target = $region80
                $region77: #{net_forward.6} parent=65 // loop_body
                  %v1614 = vld [vmem:[%s1612] sm:$0xf]
                  %1615 = vst [vmem:[%s1613] sm:$0xf] %v1614
                  %s1616 = sadd.s32 1, %s1611
                  %p1617 = scmp.ge.s32.totalorder %s1616, %s1599
                  %s1618 = scalar_select %p1617, 0, %s1616
                  %s1619 = smul.u32 %s1618, 4
                  %s1620 = smul.u32 %s1618, 4
                  %s1621 = scalar_lea.vmem %s1602, %s1619 [#allocation2]
                  %s1622 = scalar_lea.vmem %s1604, %s1620
                $region78: #{net_forward.6} parent=65 // loop_footer
                  %s1608 = sadd.s32 %s1606, 1
                $region79: #{net_forward.6} parent=65 // loop_footer_branch
                  %1605 = sbr.rel target = $region75
                $region80: #{net_forward.6} parent=65 // loop_exit
                  _
              $region66: #{net_forward.6} parent=43 // pred_fallthru
                _
            $region44: #{net_forward.6} parent=39 // pred_fallthru
              _
            // Predicated region
            $region45: #{net_forward.6} parent=39 // pred_check
              _
            $region46: #{net_forward.6} parent=39 // pred_check_branch
              %1408 = sbr.rel (0) target = $region48
            $region47: #{net_forward.6} parent=39 // pred_region
              %s1410 = sdiv.u32.pop %s1397, 31
              %s1411 = srem.u32.pop %s1397, 31
              // While loop
              $region49: #{net_forward.6} parent=47 // loop_pre_header
                _
              $region50: #{net_forward.6} parent=47 // loop_header
                %s1413 = sphi 0, %s1415
                %p1414 = scmp.ge.s32.totalorder %s1413, %s1410
                %s1418 = sphi 0, %s1485
                %s1419 = sphi %s1390, %s1488
                %s1420 = sphi %s1401, %s1489
              $region51: #{net_forward.6} parent=47 // loop_header_branch
                %1417 = sbr.rel (%p1414) target = $region55
              $region52: #{net_forward.6} parent=47 // loop_body
                %v1421 = vld [vmem:[%s1419] sm:$0xf]
                %1422 = vst [vmem:[%s1420] sm:$0xf] %v1421
                %v1423 = vld [vmem:[%s1419 + $0x4] sm:$0xf]
                %1424 = vst [vmem:[%s1420 + $0x4] sm:$0xf] %v1423
                %v1425 = vld [vmem:[%s1419 + $0x8] sm:$0xf]
                %1426 = vst [vmem:[%s1420 + $0x8] sm:$0xf] %v1425
                %v1427 = vld [vmem:[%s1419 + $0xc] sm:$0xf]
                %1428 = vst [vmem:[%s1420 + $0xc] sm:$0xf] %v1427
                %v1429 = vld [vmem:[%s1419 + $0x10] sm:$0xf]
                %1430 = vst [vmem:[%s1420 + $0x10] sm:$0xf] %v1429
                %v1431 = vld [vmem:[%s1419 + $0x14] sm:$0xf]
                %1432 = vst [vmem:[%s1420 + $0x14] sm:$0xf] %v1431
                %v1433 = vld [vmem:[%s1419 + $0x18] sm:$0xf]
                %1434 = vst [vmem:[%s1420 + $0x18] sm:$0xf] %v1433
                %v1435 = vld [vmem:[%s1419 + $0x1c] sm:$0xf]
                %1436 = vst [vmem:[%s1420 + $0x1c] sm:$0xf] %v1435
                %v1437 = vld [vmem:[%s1419 + $0x20] sm:$0xf]
                %1438 = vst [vmem:[%s1420 + $0x20] sm:$0xf] %v1437
                %v1439 = vld [vmem:[%s1419 + $0x24] sm:$0xf]
                %1440 = vst [vmem:[%s1420 + $0x24] sm:$0xf] %v1439
                %v1441 = vld [vmem:[%s1419 + $0x28] sm:$0xf]
                %1442 = vst [vmem:[%s1420 + $0x28] sm:$0xf] %v1441
                %v1443 = vld [vmem:[%s1419 + $0x2c] sm:$0xf]
                %1444 = vst [vmem:[%s1420 + $0x2c] sm:$0xf] %v1443
                %v1445 = vld [vmem:[%s1419 + $0x30] sm:$0xf]
                %1446 = vst [vmem:[%s1420 + $0x30] sm:$0xf] %v1445
                %v1447 = vld [vmem:[%s1419 + $0x34] sm:$0xf]
                %1448 = vst [vmem:[%s1420 + $0x34] sm:$0xf] %v1447
                %v1449 = vld [vmem:[%s1419 + $0x38] sm:$0xf]
                %1450 = vst [vmem:[%s1420 + $0x38] sm:$0xf] %v1449
                %v1451 = vld [vmem:[%s1419 + $0x3c] sm:$0xf]
                %1452 = vst [vmem:[%s1420 + $0x3c] sm:$0xf] %v1451
                %v1453 = vld [vmem:[%s1419 + $0x40] sm:$0xf]
                %1454 = vst [vmem:[%s1420 + $0x40] sm:$0xf] %v1453
                %v1455 = vld [vmem:[%s1419 + $0x44] sm:$0xf]
                %1456 = vst [vmem:[%s1420 + $0x44] sm:$0xf] %v1455
                %v1457 = vld [vmem:[%s1419 + $0x48] sm:$0xf]
                %1458 = vst [vmem:[%s1420 + $0x48] sm:$0xf] %v1457
                %v1459 = vld [vmem:[%s1419 + $0x4c] sm:$0xf]
                %1460 = vst [vmem:[%s1420 + $0x4c] sm:$0xf] %v1459
                %v1461 = vld [vmem:[%s1419 + $0x50] sm:$0xf]
                %1462 = vst [vmem:[%s1420 + $0x50] sm:$0xf] %v1461
                %v1463 = vld [vmem:[%s1419 + $0x54] sm:$0xf]
                %1464 = vst [vmem:[%s1420 + $0x54] sm:$0xf] %v1463
                %v1465 = vld [vmem:[%s1419 + $0x58] sm:$0xf]
                %1466 = vst [vmem:[%s1420 + $0x58] sm:$0xf] %v1465
                %v1467 = vld [vmem:[%s1419 + $0x5c] sm:$0xf]
                %1468 = vst [vmem:[%s1420 + $0x5c] sm:$0xf] %v1467
                %v1469 = vld [vmem:[%s1419 + $0x60] sm:$0xf]
                %1470 = vst [vmem:[%s1420 + $0x60] sm:$0xf] %v1469
                %v1471 = vld [vmem:[%s1419 + $0x64] sm:$0xf]
                %1472 = vst [vmem:[%s1420 + $0x64] sm:$0xf] %v1471
                %v1473 = vld [vmem:[%s1419 + $0x68] sm:$0xf]
                %1474 = vst [vmem:[%s1420 + $0x68] sm:$0xf] %v1473
                %v1475 = vld [vmem:[%s1419 + $0x6c] sm:$0xf]
                %1476 = vst [vmem:[%s1420 + $0x6c] sm:$0xf] %v1475
                %v1477 = vld [vmem:[%s1419 + $0x70] sm:$0xf]
                %1478 = vst [vmem:[%s1420 + $0x70] sm:$0xf] %v1477
                %v1479 = vld [vmem:[%s1419 + $0x74] sm:$0xf]
                %1480 = vst [vmem:[%s1420 + $0x74] sm:$0xf] %v1479
                %v1481 = vld [vmem:[%s1419 + $0x78] sm:$0xf]
                %1482 = vst [vmem:[%s1420 + $0x78] sm:$0xf] %v1481
                %s1483 = sadd.s32 1, %s1418
                %p1484 = scmp.ge.s32.totalorder %s1483, %s1410
                %s1485 = scalar_select %p1484, 0, %s1483
                %s1486 = smul.u32 %s1485, 124
                %s1487 = smul.u32 %s1485, 124
                %s1488 = scalar_lea.vmem %s1390, %s1486 [#allocation2]
                %s1489 = scalar_lea.vmem %s1401, %s1487
              $region53: #{net_forward.6} parent=47 // loop_footer
                %s1415 = sadd.s32 %s1413, 1
              $region54: #{net_forward.6} parent=47 // loop_footer_branch
                %1412 = sbr.rel target = $region50
              $region55: #{net_forward.6} parent=47 // loop_exit
                _
              %s1490 = sdiv.u32.pop %s1397, 31
              %s1491 = srem.u32.pop %s1397, 31
              %s1492 = smul.u32 %s1490, 31
              %s1493 = smul.u32 4, %s1492
              %s1494 = scalar_lea.vmem %s1390, %s1493 [#allocation2]
              %s1495 = smul.u32 4, %s1492
              %s1496 = scalar_lea.vmem %s1401, %s1495
              // While loop
              $region56: #{net_forward.6} parent=47 // loop_pre_header
                _
              $region57: #{net_forward.6} parent=47 // loop_header
                %s1498 = sphi 0, %s1500
                %p1499 = scmp.ge.s32.totalorder %s1498, %s1491
                %s1503 = sphi 0, %s1510
                %s1504 = sphi %s1494, %s1513
                %s1505 = sphi %s1496, %s1514
              $region58: #{net_forward.6} parent=47 // loop_header_branch
                %1502 = sbr.rel (%p1499) target = $region62
              $region59: #{net_forward.6} parent=47 // loop_body
                %v1506 = vld [vmem:[%s1504] sm:$0xf]
                %1507 = vst [vmem:[%s1505] sm:$0xf] %v1506
                %s1508 = sadd.s32 1, %s1503
                %p1509 = scmp.ge.s32.totalorder %s1508, %s1491
                %s1510 = scalar_select %p1509, 0, %s1508
                %s1511 = smul.u32 %s1510, 4
                %s1512 = smul.u32 %s1510, 4
                %s1513 = scalar_lea.vmem %s1494, %s1511 [#allocation2]
                %s1514 = scalar_lea.vmem %s1496, %s1512
              $region60: #{net_forward.6} parent=47 // loop_footer
                %s1500 = sadd.s32 %s1498, 1
              $region61: #{net_forward.6} parent=47 // loop_footer_branch
                %1497 = sbr.rel target = $region57
              $region62: #{net_forward.6} parent=47 // loop_exit
                _
            $region48: #{net_forward.6} parent=39 // pred_fallthru
              _
          $region40: #{net_forward.6} parent=35 // pred_fallthru
            _
          %1623 = vnop
        $region36: #{net_forward.6} parent=31 // pred_fallthru
          _
      $region32: #{net_forward.6} parent=5 // pred_fallthru
        _
      %p1624 = scmp.le.s32.totalorder 2, %s9
      // Predicated region
      $region81: #{net_forward.6} parent=5 // pred_check
        %p1625 = pneg %p1624
      $region82: #{net_forward.6} parent=5 // pred_check_branch
        %1627 = sbr.rel (%p1625) target = $region84
      $region83: #{net_forward.6} parent=5 // pred_region
        %s1628 = ssub.s32 %s9, 2
        // Predicated region
        $region85: #{net_forward.6} parent=83 // pred_check
          %p1629 = pneg %p106
        $region86: #{net_forward.6} parent=83 // pred_check_branch
          %1631 = sbr.rel (%p1629) target = $region88
        $region87: #{net_forward.6} parent=83 // pred_region
          %s1632 = sand.u32 %s91, 1
          %s1633 = sand.u32 %s91, 1
          %s1634 = smul.addr %s1633, 124
          %s1635 = scalar_lea.vmem [#allocation2], %s1634
        $region88: #{net_forward.6} parent=83 // pred_fallthru
          _
      $region84: #{net_forward.6} parent=5 // pred_fallthru
        _
    $region6: #{net_forward.6} parent=1 // loop_footer
      %s13 = sadd.s32 1, %s9
    $region7: #{net_forward.6} parent=1 // loop_footer_branch
      %8 = sbr.rel target = $region3
    $region8: #{net_forward.6} parent=1 // loop_exit
      _

// kernel: net_forward.7
$region0: #{net_forward.7}
  #allocation0 [shape = 'u32[]', space=smem, size = 0x4, offset = 0x4, fixed_abs, tag = 'smem constant byte address 0x4 - core index']
  #allocation1 [shape = 'u32[144,128]{1,0:T(1,128)}', space=vmem, size = 0x12000, scoped, tag = 'internal scratch']
  %s0 = inlined_call_operand.vmem [shape: bf16[324,144], index: 0, kind: input, shape index: {}]
  %s1 = inlined_call_operand.vmem [shape: bf16[144,16], index: 1, kind: input, shape index: {}]
  %s2 = inlined_call_operand.vmem [shape: f32[1,16], index: 2, kind: input, shape index: {}]
  %s3 = inlined_call_operand.vmem [shape: bf16[324,16], index: 3, kind: output, shape index: {}]
  %s4 = sld [smem:[#allocation0]]
  $region89: #{net_forward.7} parent=0
    _
  %s6 = ssub.s32 1, %s4
  %s7 = scalar_select 0, %s6, %s4
  $region1: #{net_forward.7} parent=0
    #allocation2 [shape = 'u8[86016]{0}', space=vmem, size = 0x15000, scoped, tag = 'output window, operand 0']
    loop: start=0, step=1, limit=4
    $region2: #{net_forward.7} parent=1 // loop_pre_header
      _
    $region3: #{net_forward.7} parent=1 // loop_header
      %s9 = sphi 0, %s13
      %p10 = scmp.ge.s32.totalorder %s9, 4
      %s19 = sphi 0, %s21
      %s22 = sphi 0, %s19
      %s23 = sphi 0, %s22
      %s39 = sphi 0, %s23
      %s43 = sphi 0, %s43
      %s45 = sphi 0, %s43
      %s46 = sphi 0, %s45
      %s60 = sphi 0, %s46
      %s64 = sphi 0, %s64
      %s66 = sphi 0, %s64
      %s67 = sphi 0, %s66
      %s81 = sphi 0, %s67
      %s87 = sphi 0, %s89
      %s90 = sphi 0, %s87
      %s91 = sphi 0, %s90
      %s107 = sphi 0, %s91
    $region4: #{net_forward.7} parent=1 // loop_header_branch
      %12 = sbr.rel (%p10) target = $region8
    $region5: #{net_forward.7} parent=1 // loop_body
      %s14 = ssub.s32 %s9, 1
      %s15 = ssub.s32 %s9, 2
      %s16 = sadd.s32 %s9, 1
      %s17 = ssub.s32 %s9, %s16
      %p18 = scmp.eq.s32.totalorder %s17, 0
      %s20 = sadd.s32 %s19, 1
      %s21 = scalar_select %p18, %s19, %s20
      %p24 = pneg %p18
      %p25 = scmp.eq.s32.totalorder %s9, 1
      %p26 = por %p24, %p25
      %p27 = scmp.ne.s32.totalorder %s19, %s22
      %p28 = scmp.eq.s32.totalorder %s9, 0
      %p29 = por %p27, %p28
      %p30 = scmp.ne.s32.totalorder %s19, %s22
      %p31 = scmp.eq.s32.totalorder %s14, 1
      %p32 = por %p30, %p31
      %p33 = scmp.ne.s32.totalorder %s22, %s23
      %p34 = scmp.eq.s32.totalorder %s14, 0
      %p35 = por %p33, %p34
      %p36 = scmp.ne.s32.totalorder %s22, %s23
      %p37 = scmp.eq.s32.totalorder %s15, 1
      %p38 = por %p36, %p37
      %p40 = scmp.ne.s32.totalorder %s23, %s39
      %p41 = scmp.eq.s32.totalorder %s15, 0
      %p42 = por %p40, %p41
      %s44 = sadd.s32 %s43, 1
      %p47 = scmp.eq.s32.totalorder %s9, 1
      %p48 = scmp.ne.s32.totalorder %s43, %s45
      %p49 = scmp.eq.s32.totalorder %s9, 0
      %p50 = por %p48, %p49
      %p51 = scmp.ne.s32.totalorder %s43, %s45
      %p52 = scmp.eq.s32.totalorder %s14, 1
      %p53 = por %p51, %p52
      %p54 = scmp.ne.s32.totalorder %s45, %s46
      %p55 = scmp.eq.s32.totalorder %s14, 0
      %p56 = por %p54, %p55
      %p57 = scmp.ne.s32.totalorder %s45, %s46
      %p58 = scmp.eq.s32.totalorder %s15, 1
      %p59 = por %p57, %p58
      %p61 = scmp.ne.s32.totalorder %s46, %s60
      %p62 = scmp.eq.s32.totalorder %s15, 0
      %p63 = por %p61, %p62
      %s65 = sadd.s32 %s64, 1
      %p68 = scmp.eq.s32.totalorder %s9, 1
      %p69 = scmp.ne.s32.totalorder %s64, %s66
      %p70 = scmp.eq.s32.totalorder %s9, 0
      %p71 = por %p69, %p70
      %p72 = scmp.ne.s32.totalorder %s64, %s66
      %p73 = scmp.eq.s32.totalorder %s14, 1
      %p74 = por %p72, %p73
      %p75 = scmp.ne.s32.totalorder %s66, %s67
      %p76 = scmp.eq.s32.totalorder %s14, 0
      %p77 = por %p75, %p76
      %p78 = scmp.ne.s32.totalorder %s66, %s67
      %p79 = scmp.eq.s32.totalorder %s15, 1
      %p80 = por %p78, %p79
      %p82 = scmp.ne.s32.totalorder %s67, %s81
      %p83 = scmp.eq.s32.totalorder %s15, 0
      %p84 = por %p82, %p83
      %s85 = ssub.s32 %s9, %s16
      %p86 = scmp.eq.s32.totalorder %s85, 0
      %s88 = sadd.s32 %s87, 1
      %s89 = scalar_select %p86, %s87, %s88
      %p92 = pneg %p86
      %p93 = scmp.eq.s32.totalorder %s9, 1
      %p94 = por %p92, %p93
      %p95 = scmp.ne.s32.totalorder %s87, %s90
      %p96 = scmp.eq.s32.totalorder %s9, 0
      %p97 = por %p95, %p96
      %p98 = scmp.ne.s32.totalorder %s87, %s90
      %p99 = scmp.eq.s32.totalorder %s14, 1
      %p100 = por %p98, %p99
      %p101 = scmp.ne.s32.totalorder %s90, %s91
      %p102 = scmp.eq.s32.totalorder %s14, 0
      %p103 = por %p101, %p102
      %p104 = scmp.ne.s32.totalorder %s90, %s91
      %p105 = scmp.eq.s32.totalorder %s15, 1
      %p106 = por %p104, %p105
      %p108 = scmp.ne.s32.totalorder %s91, %s107
      %p109 = scmp.eq.s32.totalorder %s15, 0
      %p110 = por %p108, %p109
      %p111 = scmp.le.s32.totalorder 1, %s9
      %p112 = scmp.lt.s32.totalorder %s9, 3
      %p113 = pnand %p111, %p112
      %p114 = pneg %p113
      // Predicated region
      $region9: #{net_forward.7} parent=5 // pred_check
        _
      $region10: #{net_forward.7} parent=5 // pred_check_branch
        %116 = sbr.rel (%p113) target = $region12
      $region11: #{net_forward.7} parent=5 // pred_region
        %s117 = ssub.s32 %s9, 1
        // Predicated region
        $region13: #{net_forward.7} parent=11 // pred_check
          %p118 = pneg %p56
        $region14: #{net_forward.7} parent=11 // pred_check_branch
          %120 = sbr.rel (%p118) target = $region16
        $region15: #{net_forward.7} parent=11 // pred_region
          _
        $region16: #{net_forward.7} parent=11 // pred_fallthru
          _
        // Predicated region
        $region17: #{net_forward.7} parent=11 // pred_check
          %p121 = pneg %p77
        $region18: #{net_forward.7} parent=11 // pred_check_branch
          %123 = sbr.rel (%p121) target = $region20
        $region19: #{net_forward.7} parent=11 // pred_region
          _
        $region20: #{net_forward.7} parent=11 // pred_fallthru
          _
      $region12: #{net_forward.7} parent=5 // pred_fallthru
        _
      %p124 = scmp.lt.s32.totalorder %s9, 2
      // Predicated region
      $region21: #{net_forward.7} parent=5 // pred_check
        %p125 = pneg %p124
      $region22: #{net_forward.7} parent=5 // pred_check_branch
        %127 = sbr.rel (%p125) target = $region24
      $region23: #{net_forward.7} parent=5 // pred_region
        // Predicated region
        $region25: #{net_forward.7} parent=23 // pred_check
          %p128 = pneg %p29
        $region26: #{net_forward.7} parent=23 // pred_check_branch
          %130 = sbr.rel (%p128) target = $region28
        $region27: #{net_forward.7} parent=23 // pred_region
          %s131 = smul.u32 21, %s9
          %s132 = ssub.s32 41, %s131
          %p133 = scmp.lt.s32.totalorder %s132, 21
          %s134 = scalar_select %p133, %s132, 21
          %s135 = smul.u32 64, %s134
          %s136 = smul.u32 %s135, 2
          %p137 = scmp.lt.s32.totalorder %s131, 40
          %s138 = scalar_select %p137, %s131, 40
          %s139 = smul.addr %s138, 2
          %s140 = smul.addr %s139, 4
          %s141 = scalar_lea.vmem %s0, %s140
          %s142 = smul.u32 21, %s9
          %s143 = ssub.s32 41, %s142
          %p144 = scmp.lt.s32.totalorder %s143, 21
          %s145 = scalar_select %p144, %s143, 21
          %s146 = smul.u32 64, %s145
          %s147 = smul.u32 %s146, 2
        $region28: #{net_forward.7} parent=23 // pred_fallthru
          _
      $region24: #{net_forward.7} parent=5 // pred_fallthru
        _
      %p148 = scmp.le.s32.totalorder 1, %s9
      %p149 = scmp.lt.s32.totalorder %s9, 3
      %p150 = pnand %p148, %p149
      %p151 = pneg %p150
      // Predicated region
      $region29: #{net_forward.7} parent=5 // pred_check
        _
      $region30: #{net_forward.7} parent=5 // pred_check_branch
        %153 = sbr.rel (%p150) target = $region32
      $region31: #{net_forward.7} parent=5 // pred_region
        %s154 = ssub.s32 %s9, 1
        %s155 = smul.u32 21, %s14
        %s156 = ssub.s32 41, %s155
        %p157 = scmp.lt.s32.totalorder %s156, 21
        %s158 = scalar_select %p157, %s156, 21
        %s159 = smul.u32 64, %s158
        %s160 = smul.u32 %s159, 2
        %p161 = scmp.lt.s32.totalorder %s155, 40
        %s162 = scalar_select %p161, %s155, 40
        %s163 = smul.addr %s162, 2
        %s164 = smul.addr %s163, 4
        %s165 = scalar_lea.vmem %s0, %s164
        %p166 = pneg %p35
        %p167 = pneg %p32
        %p168 = pneg %p56
        %p169 = pneg %p53
        %p170 = pneg %p77
        %p171 = pneg %p74
        %p172 = pneg %p103
        %p173 = pneg %p100
        %s174 = sand.u32 %s90, 1
        %s175 = sand.u32 %s90, 1
        %s176 = smul.addr %s175, 84
        %s177 = scalar_lea.vmem [#allocation2], %s176
        %s178 = smul.u32 21, %s14
        %s179 = ssub.s32 41, %s178
        %p180 = scmp.lt.s32.totalorder %s179, 21
        %s181 = scalar_select %p180, %s179, 21
        %s182 = smul.u32 64, %s181
        %s183 = smul.u32 %s182, 2
        %p184 = scmp.lt.s32.totalorder %s178, 40
        %s185 = scalar_select %p184, %s178, 40
        %s186 = smul.addr %s185, 2
        %s187 = smul.addr %s186, 4
        %s188 = scalar_lea.vmem %s0, %s187
        %s189 = smul.u32 21, %s14
        %s190 = ssub.s32 41, %s189
        %p191 = scmp.lt.s32.totalorder %s190, 21
        %s192 = scalar_select %p191, %s190, 21
        %s193 = smul.u32 64, %s192
        %s194 = smul.u32 %s193, 2
        %s195 = smul.u32 21, %s14
        %s196 = ssub.s32 41, %s195
        %p197 = scmp.lt.s32.totalorder %s196, 21
        %s198 = scalar_select %p197, %s196, 21
        %s199 = smul.u32 64, %s198
        %v201 = vld [vmem:[%s188] sm:$0xff]
        %v202 = vld [vmem:[%s188 + $0x8] sm:$0xff]
        %v203 = vld [vmem:[%s188 + $0x10] sm:$0xff]
        %v204 = vld [vmem:[%s188 + $0x18] sm:$0xff]
        %v205 = vld [vmem:[%s188 + $0x20] sm:$0xff]
        %v206 = vld [vmem:[%s188 + $0x28] sm:$0xff]
        %v207 = vld [vmem:[%s188 + $0x30] sm:$0xff]
        %v208 = vld [vmem:[%s188 + $0x38] sm:$0xff]
        %v209 = vld [vmem:[%s188 + $0x40] sm:$0xff]
        %v210 = vld [vmem:[%s188 + $0x48] sm:$0xff]
        %v211 = vld [vmem:[%s188 + $0x50] sm:$0xff]
        %v212 = vld [vmem:[%s188 + $0x58] sm:$0xff]
        %v213 = vld [vmem:[%s188 + $0x60] sm:$0xff]
        %v214 = vld [vmem:[%s188 + $0x68] sm:$0xff]
        %v215 = vld [vmem:[%s188 + $0x70] sm:$0xff]
        %v216 = vld [vmem:[%s188 + $0x78] sm:$0xff]
        %v217 = vld [vmem:[%s188 + $0x80] sm:$0xff]
        %v218 = vld [vmem:[%s188 + $0x88] sm:$0xff]
        %v219 = vld [vmem:[%s188 + $0x90] sm:$0xff]
        %v220 = vld [vmem:[%s188 + $0x98] sm:$0xff]
        %v221 = vld [vmem:[%s188 + $0xa0] sm:$0xff]
        %v222 = vld [vmem:[%s1] sm:$0xf]
        %v223 = vld [vmem:[%s1 + $0x4] sm:$0xf]
        %v224 = vld [vmem:[%s1 + $0x8] sm:$0xf]
        %v225 = vld [vmem:[%s1 + $0xc] sm:$0xf]
        %v226 = vld [vmem:[%s1 + $0x10] sm:$0xf]
        %v227 = vld [vmem:[%s1 + $0x14] sm:$0xf]
        %v228 = vld [vmem:[%s1 + $0x18] sm:$0xf]
        %v229 = vld [vmem:[%s1 + $0x1c] sm:$0xf]
        %v230 = vld [vmem:[%s1 + $0x20] sm:$0xf]
        %v231 = vld [vmem:[%s1 + $0x24] sm:$0xf]
        %v232 = vld [vmem:[%s1 + $0x28] sm:$0xf]
        %v233 = vld [vmem:[%s1 + $0x2c] sm:$0xf]
        %v234 = vld [vmem:[%s1 + $0x30] sm:$0xf]
        %v235 = vld [vmem:[%s1 + $0x34] sm:$0xf]
        %v236 = vld [vmem:[%s1 + $0x38] sm:$0xf]
        %v237 = vld [vmem:[%s1 + $0x3c] sm:$0xf]
        %v238 = vld [vmem:[%s1 + $0x40] sm:$0xf]
        %v239 = vld [vmem:[%s1 + $0x44] sm:$0xf]
        %v240 = vld [vmem:[%s2] sm:$0x1]
        %v242 = vlaneseq
        %v243 = vshrl.u32 %v242, 7
        %v244 = vsub.s32 0, %v243
        %v245 = vrot.slane %v240, %v244
        %v268 = vunpack.c.l.b16 %v201
        %v269 = vunpack.c.h.b16 %v201
        %v270 = vunpack.c.l.b16 %v202
        %v271 = vunpack.c.h.b16 %v202
        %v272 = vunpack.c.l.b16 %v203
        %v273 = vunpack.c.h.b16 %v203
        %v274 = vunpack.c.l.b16 %v204
        %v275 = vunpack.c.h.b16 %v204
        %v276 = vunpack.c.l.b16 %v205
        %v277 = vunpack.c.h.b16 %v205
        %v278 = vunpack.c.l.b16 %v206
        %v279 = vunpack.c.h.b16 %v206
        %v280 = vunpack.c.l.b16 %v207
        %v281 = vunpack.c.h.b16 %v207
        %v282 = vunpack.c.l.b16 %v208
        %v283 = vunpack.c.h.b16 %v208
        %v284 = vunpack.c.l.b16 %v209
        %v285 = vunpack.c.h.b16 %v209
        %v286 = vunpack.c.l.b16 %v210
        %v287 = vunpack.c.h.b16 %v210
        %v288 = vunpack.c.l.b16 %v211
        %v289 = vunpack.c.h.b16 %v211
        %v290 = vunpack.c.l.b16 %v212
        %v291 = vunpack.c.h.b16 %v212
        %v292 = vunpack.c.l.b16 %v213
        %v293 = vunpack.c.h.b16 %v213
        %v294 = vunpack.c.l.b16 %v214
        %v295 = vunpack.c.h.b16 %v214
        %v296 = vunpack.c.l.b16 %v215
        %v297 = vunpack.c.h.b16 %v215
        %v298 = vunpack.c.l.b16 %v216
        %v299 = vunpack.c.h.b16 %v216
        %v300 = vunpack.c.l.b16 %v217
        %v301 = vunpack.c.h.b16 %v217
        %v302 = vunpack.c.l.b16 %v218
        %v303 = vunpack.c.h.b16 %v218
        %v304 = vunpack.c.l.b16 %v219
        %v305 = vunpack.c.h.b16 %v219
        %v306 = vunpack.c.l.b16 %v220
        %v307 = vunpack.c.h.b16 %v220
        %v308 = vunpack.c.l.b16 %v221
        %v309 = vunpack.c.h.b16 %v221
        %v310 = vpack.c.b16 %v270, %v268
        %v311 = vpack.c.b16 %v271, %v269
        %v312 = vpack.c.b16 %v274, %v272
        %v313 = vpack.c.b16 %v275, %v273
        %v314 = vpack.c.b16 %v278, %v276
        %v315 = vpack.c.b16 %v279, %v277
        %v316 = vpack.c.b16 %v282, %v280
        %v317 = vpack.c.b16 %v283, %v281
        %v318 = vpack.c.b16 %v286, %v284
        %v319 = vpack.c.b16 %v287, %v285
        %v320 = vpack.c.b16 %v290, %v288
        %v321 = vpack.c.b16 %v291, %v289
        %v322 = vpack.c.b16 %v294, %v292
        %v323 = vpack.c.b16 %v295, %v293
        %v324 = vpack.c.b16 %v298, %v296
        %v325 = vpack.c.b16 %v299, %v297
        %v326 = vpack.c.b16 %v302, %v300
        %v327 = vpack.c.b16 %v303, %v301
        %v328 = vpack.c.b16 %v306, %v304
        %v329 = vpack.c.b16 %v307, %v305
        %v330 = vpack.c.b16 %v308, %v308
        %v331 = vpack.c.b16 %v309, %v309
        %v361 = vunpack.c.l.b16 %v222
        %v362 = vunpack.c.l.b16 %v223
        %v363 = vunpack.c.l.b16 %v224
        %v364 = vunpack.c.l.b16 %v225
        %v365 = vunpack.c.l.b16 %v226
        %v366 = vunpack.c.l.b16 %v227
        %v367 = vunpack.c.l.b16 %v228
        %v368 = vunpack.c.l.b16 %v229
        %v369 = vunpack.c.l.b16 %v230
        %v370 = vunpack.c.l.b16 %v231
        %v371 = vunpack.c.l.b16 %v232
        %v372 = vunpack.c.l.b16 %v233
        %v373 = vunpack.c.l.b16 %v234
        %v374 = vunpack.c.l.b16 %v235
        %v375 = vunpack.c.l.b16 %v236
        %v376 = vunpack.c.l.b16 %v237
        %v377 = vunpack.c.l.b16 %v238
        %v378 = vunpack.c.l.b16 %v239
        %v379 = vpack.c.b16 %v362, %v361
        %v380 = vpack.c.b16 %v364, %v363
        %v381 = vpack.c.b16 %v366, %v365
        %v382 = vpack.c.b16 %v368, %v367
        %v383 = vpack.c.b16 %v370, %v369
        %v384 = vpack.c.b16 %v372, %v371
        %v385 = vpack.c.b16 %v374, %v373
        %v386 = vpack.c.b16 %v376, %v375
        %v387 = vpack.c.b16 %v378, %v377
        %vm397 = vcmask 130048
        %v399 = vsel %vm397, %v311, 0
        %v402 = vsel %vm397, %v313, 0
        %v405 = vsel %vm397, %v315, 0
        %v408 = vsel %vm397, %v317, 0
        %v411 = vsel %vm397, %v319, 0
        %v414 = vsel %vm397, %v321, 0
        %v417 = vsel %vm397, %v323, 0
        %v420 = vsel %vm397, %v325, 0
        %v423 = vsel %vm397, %v327, 0
        %v426 = vsel %vm397, %v329, 0
        %v429 = vsel %vm397, %v331, 0
        %431 = vmatprep.subr.bf16.mxu0 0
        %432 = vmatpush1.bf16.msra.mxu0 %v379
        %433 = vmatprep.subr.bf16.mxu0 0
        %434 = vmatpush1.bf16.msra.mxu0 %v380
        %435 = vmatprep.subr.bf16.mxu0 0
        %436 = vmatpush1.bf16.msra.mxu0 %v381
        %437 = vmatprep.subr.bf16.mxu0 0
        %438 = vmatpush1.bf16.msra.mxu0 %v382
        %439 = vmatprep.subr.bf16.mxu0 0
        %440 = vmatpush1.bf16.msra.mxu0 %v383
        %441 = vmatprep.subr.bf16.mxu0 0
        %442 = vmatpush1.bf16.msra.mxu0 %v384
        %443 = vmatprep.subr.bf16.mxu0 0
        %444 = vmatpush1.bf16.msra.mxu0 %v385
        %445 = vmatprep.subr.bf16.mxu0 0
        %446 = vmatpush1.bf16.msra.mxu0 %v386
        %447 = vmatprep.subr.bf16.mxu0 0
        %448 = vmatpush1.bf16.msra.mxu0 %v387
        %449 = vmatprep.subr.bf16.mxu0 0
        %450 = vmatpush1.bf16.msra.mxu0 0
        %451 = vmatprep.subr.bf16.mxu0 0
        %452 = vmatpush1.bf16.msra.mxu0 0
        %453 = vmatprep.subr.bf16.mxu0 0
        %454 = vmatpush1.bf16.msra.mxu0 0
        %455 = vmatprep.subr.bf16.mxu0 0
        %456 = vmatpush1.bf16.msra.mxu0 0
        %457 = vmatprep.subr.bf16.mxu0 0
        %458 = vmatpush1.bf16.msra.mxu0 0
        %459 = vmatprep.subr.bf16.mxu0 0
        %460 = vmatpush1.bf16.msra.mxu0 0
        %461 = vmatprep.subr.bf16.mxu0 0
        %462 = vmatpush1.bf16.msra.mxu0 0
        %463 = vmatprep.mubr.bf16.mxu0 %v399
        %464 = vmatmul.mubr.bf16.gmra.mrb[0].mxu0 %v310
        %v465 = vpop.f32.mrb[0].mxu0
        %v466 = vadd.f32 %v245, %v465
        %v467 = vpop.f32.mrb[0].mxu0
        %v468 = vpop.f32.mrb[0].mxu0
        %v469 = vadd.f32 %v245, %v468
        %v470 = vpop.f32.mrb[0].mxu0
        %471 = vmatprep.mubr.bf16.mxu0 %v402
        %472 = vmatmul.mubr.bf16.gmra.mrb[0].mxu0 %v312
        %v473 = vpop.f32.mrb[0].mxu0
        %v474 = vadd.f32 %v245, %v473
        %v475 = vpop.f32.mrb[0].mxu0
        %v476 = vpop.f32.mrb[0].mxu0
        %v477 = vadd.f32 %v245, %v476
        %v478 = vpop.f32.mrb[0].mxu0
        %479 = vmatprep.mubr.bf16.mxu0 %v405
        %480 = vmatmul.mubr.bf16.gmra.mrb[0].mxu0 %v314
        %v481 = vpop.f32.mrb[0].mxu0
        %v482 = vadd.f32 %v245, %v481
        %v483 = vpop.f32.mrb[0].mxu0
        %v484 = vpop.f32.mrb[0].mxu0
        %v485 = vadd.f32 %v245, %v484
        %v486 = vpop.f32.mrb[0].mxu0
        %487 = vmatprep.mubr.bf16.mxu0 %v408
        %488 = vmatmul.mubr.bf16.gmra.mrb[0].mxu0 %v316
        %v489 = vpop.f32.mrb[0].mxu0
        %v490 = vadd.f32 %v245, %v489
        %v491 = vpop.f32.mrb[0].mxu0
        %v492 = vpop.f32.mrb[0].mxu0
        %v493 = vadd.f32 %v245, %v492
        %v494 = vpop.f32.mrb[0].mxu0
        %495 = vmatprep.mubr.bf16.mxu0 %v411
        %496 = vmatmul.mubr.bf16.gmra.mrb[0].mxu0 %v318
        %v497 = vpop.f32.mrb[0].mxu0
        %v498 = vadd.f32 %v245, %v497
        %v499 = vpop.f32.mrb[0].mxu0
        %v500 = vpop.f32.mrb[0].mxu0
        %v501 = vadd.f32 %v245, %v500
        %v502 = vpop.f32.mrb[0].mxu0
        %503 = vmatprep.mubr.bf16.mxu0 %v414
        %504 = vmatmul.mubr.bf16.gmra.mrb[0].mxu0 %v320
        %v505 = vpop.f32.mrb[0].mxu0
        %v506 = vadd.f32 %v245, %v505
        %v507 = vpop.f32.mrb[0].mxu0
        %v508 = vpop.f32.mrb[0].mxu0
        %v509 = vadd.f32 %v245, %v508
        %v510 = vpop.f32.mrb[0].mxu0
        %511 = vmatprep.mubr.bf16.mxu0 %v417
        %512 = vmatmul.mubr.bf16.gmra.mrb[0].mxu0 %v322
        %v513 = vpop.f32.mrb[0].mxu0
        %v514 = vadd.f32 %v245, %v513
        %v515 = vpop.f32.mrb[0].mxu0
        %v516 = vpop.f32.mrb[0].mxu0
        %v517 = vadd.f32 %v245, %v516
        %v518 = vpop.f32.mrb[0].mxu0
        %519 = vmatprep.mubr.bf16.mxu0 %v420
        %520 = vmatmul.mubr.bf16.gmra.mrb[0].mxu0 %v324
        %v521 = vpop.f32.mrb[0].mxu0
        %v522 = vadd.f32 %v245, %v521
        %v523 = vpop.f32.mrb[0].mxu0
        %v524 = vpop.f32.mrb[0].mxu0
        %v525 = vadd.f32 %v245, %v524
        %v526 = vpop.f32.mrb[0].mxu0
        %527 = vmatprep.mubr.bf16.mxu0 %v423
        %528 = vmatmul.mubr.bf16.gmra.mrb[0].mxu0 %v326
        %v529 = vpop.f32.mrb[0].mxu0
        %v530 = vadd.f32 %v245, %v529
        %v531 = vpop.f32.mrb[0].mxu0
        %v532 = vpop.f32.mrb[0].mxu0
        %v533 = vadd.f32 %v245, %v532
        %v534 = vpop.f32.mrb[0].mxu0
        %535 = vmatprep.mubr.bf16.mxu0 %v426
        %536 = vmatmul.mubr.bf16.gmra.mrb[0].mxu0 %v328
        %v537 = vpop.f32.mrb[0].mxu0
        %v538 = vadd.f32 %v245, %v537
        %v539 = vpop.f32.mrb[0].mxu0
        %v540 = vpop.f32.mrb[0].mxu0
        %v541 = vadd.f32 %v245, %v540
        %v542 = vpop.f32.mrb[0].mxu0
        %543 = vmatprep.mubr.bf16.mxu0 %v429
        %544 = vmatmul.mubr.bf16.gmra.mrb[0].mxu0 %v330
        %v545 = vpop.f32.mrb[0].mxu0
        %v546 = vadd.f32 %v245, %v545
        %v547 = vpop.f32.mrb[0].mxu0
        %v548 = vpop.f32.mrb[0].mxu0
        %v549 = vpop.f32.mrb[0].mxu0
        %550 = vdwg.mxu0
        %vm551 = vcmp.ge.f32.partialorder %v466, 0.0
        %vm552 = vcmp.ge.f32.partialorder %v469, 0.0
        %vm553 = vcmp.ge.f32.partialorder %v474, 0.0
        %vm554 = vcmp.ge.f32.partialorder %v477, 0.0
        %vm555 = vcmp.ge.f32.partialorder %v482, 0.0
        %vm556 = vcmp.ge.f32.partialorder %v485, 0.0
        %vm557 = vcmp.ge.f32.partialorder %v490, 0.0
        %vm558 = vcmp.ge.f32.partialorder %v493, 0.0
        %vm559 = vcmp.ge.f32.partialorder %v498, 0.0
        %vm560 = vcmp.ge.f32.partialorder %v501, 0.0
        %vm561 = vcmp.ge.f32.partialorder %v506, 0.0
        %vm562 = vcmp.ge.f32.partialorder %v509, 0.0
        %vm563 = vcmp.ge.f32.partialorder %v514, 0.0
        %vm564 = vcmp.ge.f32.partialorder %v517, 0.0
        %vm565 = vcmp.ge.f32.partialorder %v522, 0.0
        %vm566 = vcmp.ge.f32.partialorder %v525, 0.0
        %vm567 = vcmp.ge.f32.partialorder %v530, 0.0
        %vm568 = vcmp.ge.f32.partialorder %v533, 0.0
        %vm569 = vcmp.ge.f32.partialorder %v538, 0.0
        %vm570 = vcmp.ge.f32.partialorder %v541, 0.0
        %vm571 = vcmp.ge.f32.partialorder %v546, 0.0
        %v572 = vmul.f32 %v466, 0.01
        %v573 = vmul.f32 %v469, 0.01
        %v574 = vmul.f32 %v474, 0.01
        %v575 = vmul.f32 %v477, 0.01
        %v576 = vmul.f32 %v482, 0.01
        %v577 = vmul.f32 %v485, 0.01
        %v578 = vmul.f32 %v490, 0.01
        %v579 = vmul.f32 %v493, 0.01
        %v580 = vmul.f32 %v498, 0.01
        %v581 = vmul.f32 %v501, 0.01
        %v582 = vmul.f32 %v506, 0.01
        %v583 = vmul.f32 %v509, 0.01
        %v584 = vmul.f32 %v514, 0.01
        %v585 = vmul.f32 %v517, 0.01
        %v586 = vmul.f32 %v522, 0.01
        %v587 = vmul.f32 %v525, 0.01
        %v588 = vmul.f32 %v530, 0.01
        %v589 = vmul.f32 %v533, 0.01
        %v590 = vmul.f32 %v538, 0.01
        %v591 = vmul.f32 %v541, 0.01
        %v592 = vmul.f32 %v546, 0.01
        %v593 = vsel %vm551, %v466, %v572
        %v594 = vsel %vm552, %v469, %v573
        %v595 = vsel %vm553, %v474, %v574
        %v596 = vsel %vm554, %v477, %v575
        %v597 = vsel %vm555, %v482, %v576
        %v598 = vsel %vm556, %v485, %v577
        %v599 = vsel %vm557, %v490, %v578
        %v600 = vsel %vm558, %v493, %v579
        %v601 = vsel %vm559, %v498, %v580
        %v602 = vsel %vm560, %v501, %v581
        %v603 = vsel %vm561, %v506, %v582
        %v604 = vsel %vm562, %v509, %v583
        %v605 = vsel %vm563, %v514, %v584
        %v606 = vsel %vm564, %v517, %v585
        %v607 = vsel %vm565, %v522, %v586
        %v608 = vsel %vm566, %v525, %v587
        %v609 = vsel %vm567, %v530, %v588
        %v610 = vsel %vm568, %v533, %v589
        %v611 = vsel %vm569, %v538, %v590
        %v612 = vsel %vm570, %v541, %v591
        %v613 = vsel %vm571, %v546, %v592
        %v614 = vpack.c.bf16 %v594, %v593
        %v615 = vpack.c.bf16 %v596, %v595
        %v616 = vpack.c.bf16 %v598, %v597
        %v617 = vpack.c.bf16 %v600, %v599
        %v618 = vpack.c.bf16 %v602, %v601
        %v619 = vpack.c.bf16 %v604, %v603
        %v620 = vpack.c.bf16 %v606, %v605
        %v621 = vpack.c.bf16 %v608, %v607
        %v622 = vpack.c.bf16 %v610, %v609
        %v623 = vpack.c.bf16 %v612, %v611
        %v624 = vpack.c.bf16 %v613, %v613
        %v636 = vunpack.c.l.b16 %v614
        %v637 = vunpack.c.h.b16 %v614
        %v638 = vunpack.c.l.b16 %v615
        %v639 = vunpack.c.h.b16 %v615
        %v640 = vunpack.c.l.b16 %v616
        %v641 = vunpack.c.h.b16 %v616
        %v642 = vunpack.c.l.b16 %v617
        %v643 = vunpack.c.h.b16 %v617
        %v644 = vunpack.c.l.b16 %v618
        %v645 = vunpack.c.h.b16 %v618
        %v646 = vunpack.c.l.b16 %v619
        %v647 = vunpack.c.h.b16 %v619
        %v648 = vunpack.c.l.b16 %v620
        %v649 = vunpack.c.h.b16 %v620
        %v650 = vunpack.c.l.b16 %v621
        %v651 = vunpack.c.h.b16 %v621
        %v652 = vunpack.c.l.b16 %v622
        %v653 = vunpack.c.h.b16 %v622
        %v654 = vunpack.c.l.b16 %v623
        %v655 = vunpack.c.h.b16 %v623
        %v656 = vunpack.c.l.b16 %v624
        %v657 = vpack.c.b16 %v636, %v636
        %v658 = vpack.c.b16 %v637, %v637
        %v659 = vpack.c.b16 %v638, %v638
        %v660 = vpack.c.b16 %v639, %v639
        %v661 = vpack.c.b16 %v640, %v640
        %v662 = vpack.c.b16 %v641, %v641
        %v663 = vpack.c.b16 %v642, %v642
        %v664 = vpack.c.b16 %v643, %v643
        %v665 = vpack.c.b16 %v644, %v644
        %v666 = vpack.c.b16 %v645, %v645
        %v667 = vpack.c.b16 %v646, %v646
        %v668 = vpack.c.b16 %v647, %v647
        %v669 = vpack.c.b16 %v648, %v648
        %v670 = vpack.c.b16 %v649, %v649
        %v671 = vpack.c.b16 %v650, %v650
        %v672 = vpack.c.b16 %v651, %v651
        %v673 = vpack.c.b16 %v652, %v652
        %v674 = vpack.c.b16 %v653, %v653
        %v675 = vpack.c.b16 %v654, %v654
        %v676 = vpack.c.b16 %v655, %v655
        %v677 = vpack.c.b16 %v656, %v656
        %vm699 = vcmask 125952
        %700 = vst.msk [vmem:[%s177] sm:$0xf] %vm699, %v657
        %701 = vst.msk [vmem:[%s177 + $0x4] sm:$0xf] %vm699, %v658
        %702 = vst.msk [vmem:[%s177 + $0x8] sm:$0xf] %vm699, %v659
        %703 = vst.msk [vmem:[%s177 + $0xc] sm:$0xf] %vm699, %v660
        %704 = vst.msk [vmem:[%s177 + $0x10] sm:$0xf] %vm699, %v661
        %705 = vst.msk [vmem:[%s177 + $0x14] sm:$0xf] %vm699, %v662
        %706 = vst.msk [vmem:[%s177 + $0x18] sm:$0xf] %vm699, %v663
        %707 = vst.msk [vmem:[%s177 + $0x1c] sm:$0xf] %vm699, %v664
        %708 = vst.msk [vmem:[%s177 + $0x20] sm:$0xf] %vm699, %v665
        %709 = vst.msk [vmem:[%s177 + $0x24] sm:$0xf] %vm699, %v666
        %710 = vst.msk [vmem:[%s177 + $0x28] sm:$0xf] %vm699, %v667
        %711 = vst.msk [vmem:[%s177 + $0x2c] sm:$0xf] %vm699, %v668
        %712 = vst.msk [vmem:[%s177 + $0x30] sm:$0xf] %vm699, %v669
        %713 = vst.msk [vmem:[%s177 + $0x34] sm:$0xf] %vm699, %v670
        %714 = vst.msk [vmem:[%s177 + $0x38] sm:$0xf] %vm699, %v671
        %715 = vst.msk [vmem:[%s177 + $0x3c] sm:$0xf] %vm699, %v672
        %716 = vst.msk [vmem:[%s177 + $0x40] sm:$0xf] %vm699, %v673
        %717 = vst.msk [vmem:[%s177 + $0x44] sm:$0xf] %vm699, %v674
        %718 = vst.msk [vmem:[%s177 + $0x48] sm:$0xf] %vm699, %v675
        %719 = vst.msk [vmem:[%s177 + $0x4c] sm:$0xf] %vm699, %v676
        %720 = vst.msk [vmem:[%s177 + $0x50] sm:$0xf] %vm699, %v677
        %s721 = sand.u32 %s90, 1
        %s722 = sand.u32 %s90, 1
        %s723 = smul.addr %s722, 84
        %s724 = scalar_lea.vmem [#allocation2], %s723
        // Predicated region
        $region33: #{net_forward.7} parent=31 // pred_check
          %p725 = pneg %p100
        $region34: #{net_forward.7} parent=31 // pred_check_branch
          %727 = sbr.rel (%p725) target = $region36
        $region35: #{net_forward.7} parent=31 // pred_region
          %s728 = smul.u32 21, %s14
          %s729 = ssub.s32 41, %s728
          %p730 = scmp.lt.s32.totalorder %s729, 21
          %s731 = scalar_select %p730, %s729, 21
          %s732 = smul.u32 64, %s731
          %p733 = scmp.ne.s32.totalorder 0, %s732
          %s734 = smul.addr %s728, 4
          %s735 = scalar_lea.vmem %s3, %s734
          // Predicated region
          $region37: #{net_forward.7} parent=35 // pred_check
            %p736 = pneg %p733
          $region38: #{net_forward.7} parent=35 // pred_check_branch
            %738 = sbr.rel (%p736) target = $region40
          $region39: #{net_forward.7} parent=35 // pred_region
            // Predicated region
            $region41: #{net_forward.7} parent=39 // pred_check
              _
            $region42: #{net_forward.7} parent=39 // pred_check_branch
              %740 = sbr.rel target = $region44
            $region43: #{net_forward.7} parent=39 // pred_region
              // Predicated region
              $region63: #{net_forward.7} parent=43 // pred_check
                _
              $region64: #{net_forward.7} parent=43 // pred_check_branch
                %830 = sbr.rel (0) target = $region66
              $region65: #{net_forward.7} parent=43 // pred_region
                %s832 = sdiv.u32.pop %s731, 21
                %s833 = srem.u32.pop %s731, 21
                // While loop
                $region67: #{net_forward.7} parent=65 // loop_pre_header
                  _
                $region68: #{net_forward.7} parent=65 // loop_header
                  %s835 = sphi 0, %s837
                  %p836 = scmp.ge.s32.totalorder %s835, %s832
                  %s840 = sphi 0, %s887
                  %s841 = sphi %s724, %s890
                  %s842 = sphi %s735, %s891
                $region69: #{net_forward.7} parent=65 // loop_header_branch
                  %839 = sbr.rel (%p836) target = $region73
                $region70: #{net_forward.7} parent=65 // loop_body
                  %v843 = vld [vmem:[%s841] sm:$0xf]
                  %844 = vst [vmem:[%s842] sm:$0xf] %v843
                  %v845 = vld [vmem:[%s841 + $0x4] sm:$0xf]
                  %846 = vst [vmem:[%s842 + $0x4] sm:$0xf] %v845
                  %v847 = vld [vmem:[%s841 + $0x8] sm:$0xf]
                  %848 = vst [vmem:[%s842 + $0x8] sm:$0xf] %v847
                  %v849 = vld [vmem:[%s841 + $0xc] sm:$0xf]
                  %850 = vst [vmem:[%s842 + $0xc] sm:$0xf] %v849
                  %v851 = vld [vmem:[%s841 + $0x10] sm:$0xf]
                  %852 = vst [vmem:[%s842 + $0x10] sm:$0xf] %v851
                  %v853 = vld [vmem:[%s841 + $0x14] sm:$0xf]
                  %854 = vst [vmem:[%s842 + $0x14] sm:$0xf] %v853
                  %v855 = vld [vmem:[%s841 + $0x18] sm:$0xf]
                  %856 = vst [vmem:[%s842 + $0x18] sm:$0xf] %v855
                  %v857 = vld [vmem:[%s841 + $0x1c] sm:$0xf]
                  %858 = vst [vmem:[%s842 + $0x1c] sm:$0xf] %v857
                  %v859 = vld [vmem:[%s841 + $0x20] sm:$0xf]
                  %860 = vst [vmem:[%s842 + $0x20] sm:$0xf] %v859
                  %v861 = vld [vmem:[%s841 + $0x24] sm:$0xf]
                  %862 = vst [vmem:[%s842 + $0x24] sm:$0xf] %v861
                  %v863 = vld [vmem:[%s841 + $0x28] sm:$0xf]
                  %864 = vst [vmem:[%s842 + $0x28] sm:$0xf] %v863
                  %v865 = vld [vmem:[%s841 + $0x2c] sm:$0xf]
                  %866 = vst [vmem:[%s842 + $0x2c] sm:$0xf] %v865
                  %v867 = vld [vmem:[%s841 + $0x30] sm:$0xf]
                  %868 = vst [vmem:[%s842 + $0x30] sm:$0xf] %v867
                  %v869 = vld [vmem:[%s841 + $0x34] sm:$0xf]
                  %870 = vst [vmem:[%s842 + $0x34] sm:$0xf] %v869
                  %v871 = vld [vmem:[%s841 + $0x38] sm:$0xf]
                  %872 = vst [vmem:[%s842 + $0x38] sm:$0xf] %v871
                  %v873 = vld [vmem:[%s841 + $0x3c] sm:$0xf]
                  %874 = vst [vmem:[%s842 + $0x3c] sm:$0xf] %v873
                  %v875 = vld [vmem:[%s841 + $0x40] sm:$0xf]
                  %876 = vst [vmem:[%s842 + $0x40] sm:$0xf] %v875
                  %v877 = vld [vmem:[%s841 + $0x44] sm:$0xf]
                  %878 = vst [vmem:[%s842 + $0x44] sm:$0xf] %v877
                  %v879 = vld [vmem:[%s841 + $0x48] sm:$0xf]
                  %880 = vst [vmem:[%s842 + $0x48] sm:$0xf] %v879
                  %v881 = vld [vmem:[%s841 + $0x4c] sm:$0xf]
                  %882 = vst [vmem:[%s842 + $0x4c] sm:$0xf] %v881
                  %v883 = vld [vmem:[%s841 + $0x50] sm:$0xf]
                  %884 = vst [vmem:[%s842 + $0x50] sm:$0xf] %v883
                  %s885 = sadd.s32 1, %s840
                  %p886 = scmp.ge.s32.totalorder %s885, %s832
                  %s887 = scalar_select %p886, 0, %s885
                  %s888 = smul.u32 %s887, 84
                  %s889 = smul.u32 %s887, 84
                  %s890 = scalar_lea.vmem %s724, %s888 [#allocation2]
                  %s891 = scalar_lea.vmem %s735, %s889
                $region71: #{net_forward.7} parent=65 // loop_footer
                  %s837 = sadd.s32 %s835, 1
                $region72: #{net_forward.7} parent=65 // loop_footer_branch
                  %834 = sbr.rel target = $region68
                $region73: #{net_forward.7} parent=65 // loop_exit
                  _
                %s892 = sdiv.u32.pop %s731, 21
                %s893 = srem.u32.pop %s731, 21
                %s894 = smul.u32 %s892, 21
                %s895 = smul.u32 4, %s894
                %s896 = scalar_lea.vmem %s724, %s895 [#allocation2]
                %s897 = smul.u32 4, %s894
                %s898 = scalar_lea.vmem %s735, %s897
                // While loop
                $region74: #{net_forward.7} parent=65 // loop_pre_header
                  _
                $region75: #{net_forward.7} parent=65 // loop_header
                  %s900 = sphi 0, %s902
                  %p901 = scmp.ge.s32.totalorder %s900, %s893
                  %s905 = sphi 0, %s912
                  %s906 = sphi %s896, %s915
                  %s907 = sphi %s898, %s916
                $region76: #{net_forward.7} parent=65 // loop_header_branch
                  %904 = sbr.rel (%p901) target = $region80
                $region77: #{net_forward.7} parent=65 // loop_body
                  %v908 = vld [vmem:[%s906] sm:$0xf]
                  %909 = vst [vmem:[%s907] sm:$0xf] %v908
                  %s910 = sadd.s32 1, %s905
                  %p911 = scmp.ge.s32.totalorder %s910, %s893
                  %s912 = scalar_select %p911, 0, %s910
                  %s913 = smul.u32 %s912, 4
                  %s914 = smul.u32 %s912, 4
                  %s915 = scalar_lea.vmem %s896, %s913 [#allocation2]
                  %s916 = scalar_lea.vmem %s898, %s914
                $region78: #{net_forward.7} parent=65 // loop_footer
                  %s902 = sadd.s32 %s900, 1
                $region79: #{net_forward.7} parent=65 // loop_footer_branch
                  %899 = sbr.rel target = $region75
                $region80: #{net_forward.7} parent=65 // loop_exit
                  _
              $region66: #{net_forward.7} parent=43 // pred_fallthru
                _
            $region44: #{net_forward.7} parent=39 // pred_fallthru
              _
            // Predicated region
            $region45: #{net_forward.7} parent=39 // pred_check
              _
            $region46: #{net_forward.7} parent=39 // pred_check_branch
              %742 = sbr.rel (0) target = $region48
            $region47: #{net_forward.7} parent=39 // pred_region
              %s744 = sdiv.u32.pop %s731, 21
              %s745 = srem.u32.pop %s731, 21
              // While loop
              $region49: #{net_forward.7} parent=47 // loop_pre_header
                _
              $region50: #{net_forward.7} parent=47 // loop_header
                %s747 = sphi 0, %s749
                %p748 = scmp.ge.s32.totalorder %s747, %s744
                %s752 = sphi 0, %s799
                %s753 = sphi %s724, %s802
                %s754 = sphi %s735, %s803
              $region51: #{net_forward.7} parent=47 // loop_header_branch
                %751 = sbr.rel (%p748) target = $region55
              $region52: #{net_forward.7} parent=47 // loop_body
                %v755 = vld [vmem:[%s753] sm:$0xf]
                %756 = vst [vmem:[%s754] sm:$0xf] %v755
                %v757 = vld [vmem:[%s753 + $0x4] sm:$0xf]
                %758 = vst [vmem:[%s754 + $0x4] sm:$0xf] %v757
                %v759 = vld [vmem:[%s753 + $0x8] sm:$0xf]
                %760 = vst [vmem:[%s754 + $0x8] sm:$0xf] %v759
                %v761 = vld [vmem:[%s753 + $0xc] sm:$0xf]
                %762 = vst [vmem:[%s754 + $0xc] sm:$0xf] %v761
                %v763 = vld [vmem:[%s753 + $0x10] sm:$0xf]
                %764 = vst [vmem:[%s754 + $0x10] sm:$0xf] %v763
                %v765 = vld [vmem:[%s753 + $0x14] sm:$0xf]
                %766 = vst [vmem:[%s754 + $0x14] sm:$0xf] %v765
                %v767 = vld [vmem:[%s753 + $0x18] sm:$0xf]
                %768 = vst [vmem:[%s754 + $0x18] sm:$0xf] %v767
                %v769 = vld [vmem:[%s753 + $0x1c] sm:$0xf]
                %770 = vst [vmem:[%s754 + $0x1c] sm:$0xf] %v769
                %v771 = vld [vmem:[%s753 + $0x20] sm:$0xf]
                %772 = vst [vmem:[%s754 + $0x20] sm:$0xf] %v771
                %v773 = vld [vmem:[%s753 + $0x24] sm:$0xf]
                %774 = vst [vmem:[%s754 + $0x24] sm:$0xf] %v773
                %v775 = vld [vmem:[%s753 + $0x28] sm:$0xf]
                %776 = vst [vmem:[%s754 + $0x28] sm:$0xf] %v775
                %v777 = vld [vmem:[%s753 + $0x2c] sm:$0xf]
                %778 = vst [vmem:[%s754 + $0x2c] sm:$0xf] %v777
                %v779 = vld [vmem:[%s753 + $0x30] sm:$0xf]
                %780 = vst [vmem:[%s754 + $0x30] sm:$0xf] %v779
                %v781 = vld [vmem:[%s753 + $0x34] sm:$0xf]
                %782 = vst [vmem:[%s754 + $0x34] sm:$0xf] %v781
                %v783 = vld [vmem:[%s753 + $0x38] sm:$0xf]
                %784 = vst [vmem:[%s754 + $0x38] sm:$0xf] %v783
                %v785 = vld [vmem:[%s753 + $0x3c] sm:$0xf]
                %786 = vst [vmem:[%s754 + $0x3c] sm:$0xf] %v785
                %v787 = vld [vmem:[%s753 + $0x40] sm:$0xf]
                %788 = vst [vmem:[%s754 + $0x40] sm:$0xf] %v787
                %v789 = vld [vmem:[%s753 + $0x44] sm:$0xf]
                %790 = vst [vmem:[%s754 + $0x44] sm:$0xf] %v789
                %v791 = vld [vmem:[%s753 + $0x48] sm:$0xf]
                %792 = vst [vmem:[%s754 + $0x48] sm:$0xf] %v791
                %v793 = vld [vmem:[%s753 + $0x4c] sm:$0xf]
                %794 = vst [vmem:[%s754 + $0x4c] sm:$0xf] %v793
                %v795 = vld [vmem:[%s753 + $0x50] sm:$0xf]
                %796 = vst [vmem:[%s754 + $0x50] sm:$0xf] %v795
                %s797 = sadd.s32 1, %s752
                %p798 = scmp.ge.s32.totalorder %s797, %s744
                %s799 = scalar_select %p798, 0, %s797
                %s800 = smul.u32 %s799, 84
                %s801 = smul.u32 %s799, 84
                %s802 = scalar_lea.vmem %s724, %s800 [#allocation2]
                %s803 = scalar_lea.vmem %s735, %s801
              $region53: #{net_forward.7} parent=47 // loop_footer
                %s749 = sadd.s32 %s747, 1
              $region54: #{net_forward.7} parent=47 // loop_footer_branch
                %746 = sbr.rel target = $region50
              $region55: #{net_forward.7} parent=47 // loop_exit
                _
              %s804 = sdiv.u32.pop %s731, 21
              %s805 = srem.u32.pop %s731, 21
              %s806 = smul.u32 %s804, 21
              %s807 = smul.u32 4, %s806
              %s808 = scalar_lea.vmem %s724, %s807 [#allocation2]
              %s809 = smul.u32 4, %s806
              %s810 = scalar_lea.vmem %s735, %s809
              // While loop
              $region56: #{net_forward.7} parent=47 // loop_pre_header
                _
              $region57: #{net_forward.7} parent=47 // loop_header
                %s812 = sphi 0, %s814
                %p813 = scmp.ge.s32.totalorder %s812, %s805
                %s817 = sphi 0, %s824
                %s818 = sphi %s808, %s827
                %s819 = sphi %s810, %s828
              $region58: #{net_forward.7} parent=47 // loop_header_branch
                %816 = sbr.rel (%p813) target = $region62
              $region59: #{net_forward.7} parent=47 // loop_body
                %v820 = vld [vmem:[%s818] sm:$0xf]
                %821 = vst [vmem:[%s819] sm:$0xf] %v820
                %s822 = sadd.s32 1, %s817
                %p823 = scmp.ge.s32.totalorder %s822, %s805
                %s824 = scalar_select %p823, 0, %s822
                %s825 = smul.u32 %s824, 4
                %s826 = smul.u32 %s824, 4
                %s827 = scalar_lea.vmem %s808, %s825 [#allocation2]
                %s828 = scalar_lea.vmem %s810, %s826
              $region60: #{net_forward.7} parent=47 // loop_footer
                %s814 = sadd.s32 %s812, 1
              $region61: #{net_forward.7} parent=47 // loop_footer_branch
                %811 = sbr.rel target = $region57
              $region62: #{net_forward.7} parent=47 // loop_exit
                _
            $region48: #{net_forward.7} parent=39 // pred_fallthru
              _
          $region40: #{net_forward.7} parent=35 // pred_fallthru
            _
          %917 = vnop
        $region36: #{net_forward.7} parent=31 // pred_fallthru
          _
      $region32: #{net_forward.7} parent=5 // pred_fallthru
        _
      %p918 = scmp.le.s32.totalorder 2, %s9
      // Predicated region
      $region81: #{net_forward.7} parent=5 // pred_check
        %p919 = pneg %p918
      $region82: #{net_forward.7} parent=5 // pred_check_branch
        %921 = sbr.rel (%p919) target = $region84
      $region83: #{net_forward.7} parent=5 // pred_region
        %s922 = ssub.s32 %s9, 2
        // Predicated region
        $region85: #{net_forward.7} parent=83 // pred_check
          %p923 = pneg %p106
        $region86: #{net_forward.7} parent=83 // pred_check_branch
          %925 = sbr.rel (%p923) target = $region88
        $region87: #{net_forward.7} parent=83 // pred_region
          %s926 = sand.u32 %s91, 1
          %s927 = sand.u32 %s91, 1
          %s928 = smul.addr %s927, 84
          %s929 = scalar_lea.vmem [#allocation2], %s928
        $region88: #{net_forward.7} parent=83 // pred_fallthru
          _
      $region84: #{net_forward.7} parent=5 // pred_fallthru
        _
    $region6: #{net_forward.7} parent=1 // loop_footer
      %s13 = sadd.s32 1, %s9
    $region7: #{net_forward.7} parent=1 // loop_footer_branch
      %8 = sbr.rel target = $region3
    $region8: #{net_forward.7} parent=1 // loop_exit
      _

// kernel: net_forward.8
$region0: #{net_forward.8}
  #allocation0 [shape = 'u32[]', space=smem, size = 0x4, offset = 0x4, fixed_abs, tag = 'smem constant byte address 0x4 - core index']
  #allocation1 [shape = 'u32[144,128]{1,0:T(1,128)}', space=vmem, size = 0x12000, scoped, tag = 'internal scratch']
  %s0 = inlined_call_operand.vmem [shape: bf16[196,144], index: 0, kind: input, shape index: {}]
  %s1 = inlined_call_operand.vmem [shape: bf16[144,16], index: 1, kind: input, shape index: {}]
  %s2 = inlined_call_operand.vmem [shape: f32[1,16], index: 2, kind: input, shape index: {}]
  %s3 = inlined_call_operand.vmem [shape: bf16[196,16], index: 3, kind: output, shape index: {}]
  %s4 = sld [smem:[#allocation0]]
  $region89: #{net_forward.8} parent=0
    _
  %s6 = ssub.s32 1, %s4
  %s7 = scalar_select 0, %s6, %s4
  $region1: #{net_forward.8} parent=0
    #allocation2 [shape = 'u8[53248]{0}', space=vmem, size = 0xd000, scoped, tag = 'output window, operand 0']
    loop: start=0, step=1, limit=4
    $region2: #{net_forward.8} parent=1 // loop_pre_header
      _
    $region3: #{net_forward.8} parent=1 // loop_header
      %s9 = sphi 0, %s13
      %p10 = scmp.ge.s32.totalorder %s9, 4
      %s19 = sphi 0, %s21
      %s22 = sphi 0, %s19
      %s23 = sphi 0, %s22
      %s39 = sphi 0, %s23
      %s43 = sphi 0, %s43
      %s45 = sphi 0, %s43
      %s46 = sphi 0, %s45
      %s60 = sphi 0, %s46
      %s64 = sphi 0, %s64
      %s66 = sphi 0, %s64
      %s67 = sphi 0, %s66
      %s81 = sphi 0, %s67
      %s87 = sphi 0, %s89
      %s90 = sphi 0, %s87
      %s91 = sphi 0, %s90
      %s107 = sphi 0, %s91
    $region4: #{net_forward.8} parent=1 // loop_header_branch
      %12 = sbr.rel (%p10) target = $region8
    $region5: #{net_forward.8} parent=1 // loop_body
      %s14 = ssub.s32 %s9, 1
      %s15 = ssub.s32 %s9, 2
      %s16 = sadd.s32 %s9, 1
      %s17 = ssub.s32 %s9, %s16
      %p18 = scmp.eq.s32.totalorder %s17, 0
      %s20 = sadd.s32 %s19, 1
      %s21 = scalar_select %p18, %s19, %s20
      %p24 = pneg %p18
      %p25 = scmp.eq.s32.totalorder %s9, 1
      %p26 = por %p24, %p25
      %p27 = scmp.ne.s32.totalorder %s19, %s22
      %p28 = scmp.eq.s32.totalorder %s9, 0
      %p29 = por %p27, %p28
      %p30 = scmp.ne.s32.totalorder %s19, %s22
      %p31 = scmp.eq.s32.totalorder %s14, 1
      %p32 = por %p30, %p31
      %p33 = scmp.ne.s32.totalorder %s22, %s23
      %p34 = scmp.eq.s32.totalorder %s14, 0
      %p35 = por %p33, %p34
      %p36 = scmp.ne.s32.totalorder %s22, %s23
      %p37 = scmp.eq.s32.totalorder %s15, 1
      %p38 = por %p36, %p37
      %p40 = scmp.ne.s32.totalorder %s23, %s39
      %p41 = scmp.eq.s32.totalorder %s15, 0
      %p42 = por %p40, %p41
      %s44 = sadd.s32 %s43, 1
      %p47 = scmp.eq.s32.totalorder %s9, 1
      %p48 = scmp.ne.s32.totalorder %s43, %s45
      %p49 = scmp.eq.s32.totalorder %s9, 0
      %p50 = por %p48, %p49
      %p51 = scmp.ne.s32.totalorder %s43, %s45
      %p52 = scmp.eq.s32.totalorder %s14, 1
      %p53 = por %p51, %p52
      %p54 = scmp.ne.s32.totalorder %s45, %s46
      %p55 = scmp.eq.s32.totalorder %s14, 0
      %p56 = por %p54, %p55
      %p57 = scmp.ne.s32.totalorder %s45, %s46
      %p58 = scmp.eq.s32.totalorder %s15, 1
      %p59 = por %p57, %p58
      %p61 = scmp.ne.s32.totalorder %s46, %s60
      %p62 = scmp.eq.s32.totalorder %s15, 0
      %p63 = por %p61, %p62
      %s65 = sadd.s32 %s64, 1
      %p68 = scmp.eq.s32.totalorder %s9, 1
      %p69 = scmp.ne.s32.totalorder %s64, %s66
      %p70 = scmp.eq.s32.totalorder %s9, 0
      %p71 = por %p69, %p70
      %p72 = scmp.ne.s32.totalorder %s64, %s66
      %p73 = scmp.eq.s32.totalorder %s14, 1
      %p74 = por %p72, %p73
      %p75 = scmp.ne.s32.totalorder %s66, %s67
      %p76 = scmp.eq.s32.totalorder %s14, 0
      %p77 = por %p75, %p76
      %p78 = scmp.ne.s32.totalorder %s66, %s67
      %p79 = scmp.eq.s32.totalorder %s15, 1
      %p80 = por %p78, %p79
      %p82 = scmp.ne.s32.totalorder %s67, %s81
      %p83 = scmp.eq.s32.totalorder %s15, 0
      %p84 = por %p82, %p83
      %s85 = ssub.s32 %s9, %s16
      %p86 = scmp.eq.s32.totalorder %s85, 0
      %s88 = sadd.s32 %s87, 1
      %s89 = scalar_select %p86, %s87, %s88
      %p92 = pneg %p86
      %p93 = scmp.eq.s32.totalorder %s9, 1
      %p94 = por %p92, %p93
      %p95 = scmp.ne.s32.totalorder %s87, %s90
      %p96 = scmp.eq.s32.totalorder %s9, 0
      %p97 = por %p95, %p96
      %p98 = scmp.ne.s32.totalorder %s87, %s90
      %p99 = scmp.eq.s32.totalorder %s14, 1
      %p100 = por %p98, %p99
      %p101 = scmp.ne.s32.totalorder %s90, %s91
      %p102 = scmp.eq.s32.totalorder %s14, 0
      %p103 = por %p101, %p102
      %p104 = scmp.ne.s32.totalorder %s90, %s91
      %p105 = scmp.eq.s32.totalorder %s15, 1
      %p106 = por %p104, %p105
      %p108 = scmp.ne.s32.totalorder %s91, %s107
      %p109 = scmp.eq.s32.totalorder %s15, 0
      %p110 = por %p108, %p109
      %p111 = scmp.le.s32.totalorder 1, %s9
      %p112 = scmp.lt.s32.totalorder %s9, 3
      %p113 = pnand %p111, %p112
      %p114 = pneg %p113
      // Predicated region
      $region9: #{net_forward.8} parent=5 // pred_check
        _
      $region10: #{net_forward.8} parent=5 // pred_check_branch
        %116 = sbr.rel (%p113) target = $region12
      $region11: #{net_forward.8} parent=5 // pred_region
        %s117 = ssub.s32 %s9, 1
        // Predicated region
        $region13: #{net_forward.8} parent=11 // pred_check
          %p118 = pneg %p56
        $region14: #{net_forward.8} parent=11 // pred_check_branch
          %120 = sbr.rel (%p118) target = $region16
        $region15: #{net_forward.8} parent=11 // pred_region
          _
        $region16: #{net_forward.8} parent=11 // pred_fallthru
          _
        // Predicated region
        $region17: #{net_forward.8} parent=11 // pred_check
          %p121 = pneg %p77
        $region18: #{net_forward.8} parent=11 // pred_check_branch
          %123 = sbr.rel (%p121) target = $region20
        $region19: #{net_forward.8} parent=11 // pred_region
          _
        $region20: #{net_forward.8} parent=11 // pred_fallthru
          _
      $region12: #{net_forward.8} parent=5 // pred_fallthru
        _
      %p124 = scmp.lt.s32.totalorder %s9, 2
      // Predicated region
      $region21: #{net_forward.8} parent=5 // pred_check
        %p125 = pneg %p124
      $region22: #{net_forward.8} parent=5 // pred_check_branch
        %127 = sbr.rel (%p125) target = $region24
      $region23: #{net_forward.8} parent=5 // pred_region
        // Predicated region
        $region25: #{net_forward.8} parent=23 // pred_check
          %p128 = pneg %p29
        $region26: #{net_forward.8} parent=23 // pred_check_branch
          %130 = sbr.rel (%p128) target = $region28
        $region27: #{net_forward.8} parent=23 // pred_region
          %s131 = smul.u32 13, %s9
          %s132 = ssub.s32 25, %s131
          %p133 = scmp.lt.s32.totalorder %s132, 13
          %s134 = scalar_select %p133, %s132, 13
          %s135 = smul.u32 64, %s134
          %s136 = smul.u32 %s135, 2
          %p137 = scmp.lt.s32.totalorder %s131, 24
          %s138 = scalar_select %p137, %s131, 24
          %s139 = smul.addr %s138, 2
          %s140 = smul.addr %s139, 4
          %s141 = scalar_lea.vmem %s0, %s140
          %s142 = smul.u32 13, %s9
          %s143 = ssub.s32 25, %s142
          %p144 = scmp.lt.s32.totalorder %s143, 13
          %s145 = scalar_select %p144, %s143, 13
          %s146 = smul.u32 64, %s145
          %s147 = smul.u32 %s146, 2
        $region28: #{net_forward.8} parent=23 // pred_fallthru
          _
      $region24: #{net_forward.8} parent=5 // pred_fallthru
        _
      %p148 = scmp.le.s32.totalorder 1, %s9
      %p149 = scmp.lt.s32.totalorder %s9, 3
      %p150 = pnand %p148, %p149
      %p151 = pneg %p150
      // Predicated region
      $region29: #{net_forward.8} parent=5 // pred_check
        _
      $region30: #{net_forward.8} parent=5 // pred_check_branch
        %153 = sbr.rel (%p150) target = $region32
      $region31: #{net_forward.8} parent=5 // pred_region
        %s154 = ssub.s32 %s9, 1
        %s155 = smul.u32 13, %s14
        %s156 = ssub.s32 25, %s155
        %p157 = scmp.lt.s32.totalorder %s156, 13
        %s158 = scalar_select %p157, %s156, 13
        %s159 = smul.u32 64, %s158
        %s160 = smul.u32 %s159, 2
        %p161 = scmp.lt.s32.totalorder %s155, 24
        %s162 = scalar_select %p161, %s155, 24
        %s163 = smul.addr %s162, 2
        %s164 = smul.addr %s163, 4
        %s165 = scalar_lea.vmem %s0, %s164
        %p166 = pneg %p35
        %p167 = pneg %p32
        %p168 = pneg %p56
        %p169 = pneg %p53
        %p170 = pneg %p77
        %p171 = pneg %p74
        %p172 = pneg %p103
        %p173 = pneg %p100
        %s174 = sand.u32 %s90, 1
        %s175 = sand.u32 %s90, 1
        %s176 = smul.addr %s175, 52
        %s177 = scalar_lea.vmem [#allocation2], %s176
        %s178 = smul.u32 13, %s14
        %s179 = ssub.s32 25, %s178
        %p180 = scmp.lt.s32.totalorder %s179, 13
        %s181 = scalar_select %p180, %s179, 13
        %s182 = smul.u32 64, %s181
        %s183 = smul.u32 %s182, 2
        %p184 = scmp.lt.s32.totalorder %s178, 24
        %s185 = scalar_select %p184, %s178, 24
        %s186 = smul.addr %s185, 2
        %s187 = smul.addr %s186, 4
        %s188 = scalar_lea.vmem %s0, %s187
        %s189 = smul.u32 13, %s14
        %s190 = ssub.s32 25, %s189
        %p191 = scmp.lt.s32.totalorder %s190, 13
        %s192 = scalar_select %p191, %s190, 13
        %s193 = smul.u32 64, %s192
        %s194 = smul.u32 %s193, 2
        %s195 = smul.u32 13, %s14
        %s196 = ssub.s32 25, %s195
        %p197 = scmp.lt.s32.totalorder %s196, 13
        %s198 = scalar_select %p197, %s196, 13
        %s199 = smul.u32 64, %s198
        %v201 = vld [vmem:[%s188] sm:$0xff]
        %v202 = vld [vmem:[%s188 + $0x8] sm:$0xff]
        %v203 = vld [vmem:[%s188 + $0x10] sm:$0xff]
        %v204 = vld [vmem:[%s188 + $0x18] sm:$0xff]
        %v205 = vld [vmem:[%s188 + $0x20] sm:$0xff]
        %v206 = vld [vmem:[%s188 + $0x28] sm:$0xff]
        %v207 = vld [vmem:[%s188 + $0x30] sm:$0xff]
        %v208 = vld [vmem:[%s188 + $0x38] sm:$0xff]
        %v209 = vld [vmem:[%s188 + $0x40] sm:$0xff]
        %v210 = vld [vmem:[%s188 + $0x48] sm:$0xff]
        %v211 = vld [vmem:[%s188 + $0x50] sm:$0xff]
        %v212 = vld [vmem:[%s188 + $0x58] sm:$0xff]
        %v213 = vld [vmem:[%s188 + $0x60] sm:$0xff]
        %v214 = vld [vmem:[%s1] sm:$0xf]
        %v215 = vld [vmem:[%s1 + $0x4] sm:$0xf]
        %v216 = vld [vmem:[%s1 + $0x8] sm:$0xf]
        %v217 = vld [vmem:[%s1 + $0xc] sm:$0xf]
        %v218 = vld [vmem:[%s1 + $0x10] sm:$0xf]
        %v219 = vld [vmem:[%s1 + $0x14] sm:$0xf]
        %v220 = vld [vmem:[%s1 + $0x18] sm:$0xf]
        %v221 = vld [vmem:[%s1 + $0x1c] sm:$0xf]
        %v222 = vld [vmem:[%s1 + $0x20] sm:$0xf]
        %v223 = vld [vmem:[%s1 + $0x24] sm:$0xf]
        %v224 = vld [vmem:[%s1 + $0x28] sm:$0xf]
        %v225 = vld [vmem:[%s1 + $0x2c] sm:$0xf]
        %v226 = vld [vmem:[%s1 + $0x30] sm:$0xf]
        %v227 = vld [vmem:[%s1 + $0x34] sm:$0xf]
        %v228 = vld [vmem:[%s1 + $0x38] sm:$0xf]
        %v229 = vld [vmem:[%s1 + $0x3c] sm:$0xf]
        %v230 = vld [vmem:[%s1 + $0x40] sm:$0xf]
        %v231 = vld [vmem:[%s1 + $0x44] sm:$0xf]
        %v232 = vld [vmem:[%s2] sm:$0x1]
        %v234 = vlaneseq
        %v235 = vshrl.u32 %v234, 7
        %v236 = vsub.s32 0, %v235
        %v237 = vrot.slane %v232, %v236
        %v252 = vunpack.c.l.b16 %v201
        %v253 = vunpack.c.h.b16 %v201
        %v254 = vunpack.c.l.b16 %v202
        %v255 = vunpack.c.h.b16 %v202
        %v256 = vunpack.c.l.b16 %v203
        %v257 = vunpack.c.h.b16 %v203
        %v258 = vunpack.c.l.b16 %v204
        %v259 = vunpack.c.h.b16 %v204
        %v260 = vunpack.c.l.b16 %v205
        %v261 = vunpack.c.h.b16 %v205
        %v262 = vunpack.c.l.b16 %v206
        %v263 = vunpack.c.h.b16 %v206
        %v264 = vunpack.c.l.b16 %v207
        %v265 = vunpack.c.h.b16 %v207
        %v266 = vunpack.c.l.b16 %v208
        %v267 = vunpack.c.h.b16 %v208
        %v268 = vunpack.c.l.b16 %v209
        %v269 = vunpack.c.h.b16 %v209
        %v270 = vunpack.c.l.b16 %v210
        %v271 = vunpack.c.h.b16 %v210
        %v272 = vunpack.c.l.b16 %v211
        %v273 = vunpack.c.h.b16 %v211
        %v274 = vunpack.c.l.b16 %v212
        %v275 = vunpack.c.h.b16 %v212
        %v276 = vunpack.c.l.b16 %v213
        %v277 = vunpack.c.h.b16 %v213
        %v278 = vpack.c.b16 %v254, %v252
        %v279 = vpack.c.b16 %v255, %v253
        %v280 = vpack.c.b16 %v258, %v256
        %v281 = vpack.c.b16 %v259, %v257
        %v282 = vpack.c.b16 %v262, %v260
        %v283 = vpack.c.b16 %v263, %v261
        %v284 = vpack.c.b16 %v266, %v264
        %v285 = vpack.c.b16 %v267, %v265
        %v286 = vpack.c.b16 %v270, %v268
        %v287 = vpack.c.b16 %v271, %v269
        %v288 = vpack.c.b16 %v274, %v272
        %v289 = vpack.c.b16 %v275, %v273
        %v290 = vpack.c.b16 %v276, %v276
        %v291 = vpack.c.b16 %v277, %v277
        %v317 = vunpack.c.l.b16 %v214
        %v318 = vunpack.c.l.b16 %v215
        %v319 = vunpack.c.l.b16 %v216
        %v320 = vunpack.c.l.b16 %v217
        %v321 = vunpack.c.l.b16 %v218
        %v322 = vunpack.c.l.b16 %v219
        %v323 = vunpack.c.l.b16 %v220
        %v324 = vunpack.c.l.b16 %v221
        %v325 = vunpack.c.l.b16 %v222
        %v326 = vunpack.c.l.b16 %v223
        %v327 = vunpack.c.l.b16 %v224
        %v328 = vunpack.c.l.b16 %v225
        %v329 = vunpack.c.l.b16 %v226
        %v330 = vunpack.c.l.b16 %v227
        %v331 = vunpack.c.l.b16 %v228
        %v332 = vunpack.c.l.b16 %v229
        %v333 = vunpack.c.l.b16 %v230
        %v334 = vunpack.c.l.b16 %v231
        %v335 = vpack.c.b16 %v318, %v317
        %v336 = vpack.c.b16 %v320, %v319
        %v337 = vpack.c.b16 %v322, %v321
        %v338 = vpack.c.b16 %v324, %v323
        %v339 = vpack.c.b16 %v326, %v325
        %v340 = vpack.c.b16 %v328, %v327
        %v341 = vpack.c.b16 %v330, %v329
        %v342 = vpack.c.b16 %v332, %v331
        %v343 = vpack.c.b16 %v334, %v333
        %vm353 = vcmask 130048
        %v355 = vsel %vm353, %v279, 0
        %v358 = vsel %vm353, %v281, 0
        %v361 = vsel %vm353, %v283, 0
        %v364 = vsel %vm353, %v285, 0
        %v367 = vsel %vm353, %v287, 0
        %v370 = vsel %vm353, %v289, 0
        %v373 = vsel %vm353, %v291, 0
        %375 = vmatprep.subr.bf16.mxu0 0
        %376 = vmatpush1.bf16.msra.mxu0 %v335
        %377 = vmatprep.subr.bf16.mxu0 0
        %378 = vmatpush1.bf16.msra.mxu0 %v336
        %379 = vmatprep.subr.bf16.mxu0 0
        %380 = vmatpush1.bf16.msra.mxu0 %v337
        %381 = vmatprep.subr.bf16.mxu0 0
        %382 = vmatpush1.bf16.msra.mxu0 %v338
        %383 = vmatprep.subr.bf16.mxu0 0
        %384 = vmatpush1.bf16.msra.mxu0 %v339
        %385 = vmatprep.subr.bf16.mxu0 0
        %386 = vmatpush1.bf16.msra.mxu0 %v340
        %387 = vmatprep.subr.bf16.mxu0 0
        %388 = vmatpush1.bf16.msra.mxu0 %v341
        %389 = vmatprep.subr.bf16.mxu0 0
        %390 = vmatpush1.bf16.msra.mxu0 %v342
        %391 = vmatprep.subr.bf16.mxu0 0
        %392 = vmatpush1.bf16.msra.mxu0 %v343
        %393 = vmatprep.subr.bf16.mxu0 0
        %394 = vmatpush1.bf16.msra.mxu0 0
        %395 = vmatprep.subr.bf16.mxu0 0
        %396 = vmatpush1.bf16.msra.mxu0 0
        %397 = vmatprep.subr.bf16.mxu0 0
        %398 = vmatpush1.bf16.msra.mxu0 0
        %399 = vmatprep.subr.bf16.mxu0 0
        %400 = vmatpush1.bf16.msra.mxu0 0
        %401 = vmatprep.subr.bf16.mxu0 0
        %402 = vmatpush1.bf16.msra.mxu0 0
        %403 = vmatprep.subr.bf16.mxu0 0
        %404 = vmatpush1.bf16.msra.mxu0 0
        %405 = vmatprep.subr.bf16.mxu0 0
        %406 = vmatpush1.bf16.msra.mxu0 0
        %407 = vmatprep.mubr.bf16.mxu0 %v355
        %408 = vmatmul.mubr.bf16.gmra.mrb[0].mxu0 %v278
        %v409 = vpop.f32.mrb[0].mxu0
        %v410 = vadd.f32 %v237, %v409
        %v411 = vpop.f32.mrb[0].mxu0
        %v412 = vpop.f32.mrb[0].mxu0
        %v413 = vadd.f32 %v237, %v412
        %v414 = vpop.f32.mrb[0].mxu0
        %415 = vmatprep.mubr.bf16.mxu0 %v358
        %416 = vmatmul.mubr.bf16.gmra.mrb[0].mxu0 %v280
        %v417 = vpop.f32.mrb[0].mxu0
        %v418 = vadd.f32 %v237, %v417
        %v419 = vpop.f32.mrb[0].mxu0
        %v420 = vpop.f32.mrb[0].mxu0
        %v421 = vadd.f32 %v237, %v420
        %v422 = vpop.f32.mrb[0].mxu0
        %423 = vmatprep.mubr.bf16.mxu0 %v361
        %424 = vmatmul.mubr.bf16.gmra.mrb[0].mxu0 %v282
        %v425 = vpop.f32.mrb[0].mxu0
        %v426 = vadd.f32 %v237, %v425
        %v427 = vpop.f32.mrb[0].mxu0
        %v428 = vpop.f32.mrb[0].mxu0
        %v429 = vadd.f32 %v237, %v428
        %v430 = vpop.f32.mrb[0].mxu0
        %431 = vmatprep.mubr.bf16.mxu0 %v364
        %432 = vmatmul.mubr.bf16.gmra.mrb[0].mxu0 %v284
        %v433 = vpop.f32.mrb[0].mxu0
        %v434 = vadd.f32 %v237, %v433
        %v435 = vpop.f32.mrb[0].mxu0
        %v436 = vpop.f32.mrb[0].mxu0
        %v437 = vadd.f32 %v237, %v436
        %v438 = vpop.f32.mrb[0].mxu0
        %439 = vmatprep.mubr.bf16.mxu0 %v367
        %440 = vmatmul.mubr.bf16.gmra.mrb[0].mxu0 %v286
        %v441 = vpop.f32.mrb[0].mxu0
        %v442 = vadd.f32 %v237, %v441
        %v443 = vpop.f32.mrb[0].mxu0
        %v444 = vpop.f32.mrb[0].mxu0
        %v445 = vadd.f32 %v237, %v444
        %v446 = vpop.f32.mrb[0].mxu0
        %447 = vmatprep.mubr.bf16.mxu0 %v370
        %448 = vmatmul.mubr.bf16.gmra.mrb[0].mxu0 %v288
        %v449 = vpop.f32.mrb[0].mxu0
        %v450 = vadd.f32 %v237, %v449
        %v451 = vpop.f32.mrb[0].mxu0
        %v452 = vpop.f32.mrb[0].mxu0
        %v453 = vadd.f32 %v237, %v452
        %v454 = vpop.f32.mrb[0].mxu0
        %455 = vmatprep.mubr.bf16.mxu0 %v373
        %456 = vmatmul.mubr.bf16.gmra.mrb[0].mxu0 %v290
        %v457 = vpop.f32.mrb[0].mxu0
        %v458 = vadd.f32 %v237, %v457
        %v459 = vpop.f32.mrb[0].mxu0
        %v460 = vpop.f32.mrb[0].mxu0
        %v461 = vpop.f32.mrb[0].mxu0
        %462 = vdwg.mxu0
        %vm463 = vcmp.ge.f32.partialorder %v410, 0.0
        %vm464 = vcmp.ge.f32.partialorder %v413, 0.0
        %vm465 = vcmp.ge.f32.partialorder %v418, 0.0
        %vm466 = vcmp.ge.f32.partialorder %v421, 0.0
        %vm467 = vcmp.ge.f32.partialorder %v426, 0.0
        %vm468 = vcmp.ge.f32.partialorder %v429, 0.0
        %vm469 = vcmp.ge.f32.partialorder %v434, 0.0
        %vm470 = vcmp.ge.f32.partialorder %v437, 0.0
        %vm471 = vcmp.ge.f32.partialorder %v442, 0.0
        %vm472 = vcmp.ge.f32.partialorder %v445, 0.0
        %vm473 = vcmp.ge.f32.partialorder %v450, 0.0
        %vm474 = vcmp.ge.f32.partialorder %v453, 0.0
        %vm475 = vcmp.ge.f32.partialorder %v458, 0.0
        %v476 = vmul.f32 %v410, 0.01
        %v477 = vmul.f32 %v413, 0.01
        %v478 = vmul.f32 %v418, 0.01
        %v479 = vmul.f32 %v421, 0.01
        %v480 = vmul.f32 %v426, 0.01
        %v481 = vmul.f32 %v429, 0.01
        %v482 = vmul.f32 %v434, 0.01
        %v483 = vmul.f32 %v437, 0.01
        %v484 = vmul.f32 %v442, 0.01
        %v485 = vmul.f32 %v445, 0.01
        %v486 = vmul.f32 %v450, 0.01
        %v487 = vmul.f32 %v453, 0.01
        %v488 = vmul.f32 %v458, 0.01
        %v489 = vsel %vm463, %v410, %v476
        %v490 = vsel %vm464, %v413, %v477
        %v491 = vsel %vm465, %v418, %v478
        %v492 = vsel %vm466, %v421, %v479
        %v493 = vsel %vm467, %v426, %v480
        %v494 = vsel %vm468, %v429, %v481
        %v495 = vsel %vm469, %v434, %v482
        %v496 = vsel %vm470, %v437, %v483
        %v497 = vsel %vm471, %v442, %v484
        %v498 = vsel %vm472, %v445, %v485
        %v499 = vsel %vm473, %v450, %v486
        %v500 = vsel %vm474, %v453, %v487
        %v501 = vsel %vm475, %v458, %v488
        %v502 = vpack.c.bf16 %v490, %v489
        %v503 = vpack.c.bf16 %v492, %v491
        %v504 = vpack.c.bf16 %v494, %v493
        %v505 = vpack.c.bf16 %v496, %v495
        %v506 = vpack.c.bf16 %v498, %v497
        %v507 = vpack.c.bf16 %v500, %v499
        %v508 = vpack.c.bf16 %v501, %v501
        %v516 = vunpack.c.l.b16 %v502
        %v517 = vunpack.c.h.b16 %v502
        %v518 = vunpack.c.l.b16 %v503
        %v519 = vunpack.c.h.b16 %v503
        %v520 = vunpack.c.l.b16 %v504
        %v521 = vunpack.c.h.b16 %v504
        %v522 = vunpack.c.l.b16 %v505
        %v523 = vunpack.c.h.b16 %v505
        %v524 = vunpack.c.l.b16 %v506
        %v525 = vunpack.c.h.b16 %v506
        %v526 = vunpack.c.l.b16 %v507
        %v527 = vunpack.c.h.b16 %v507
        %v528 = vunpack.c.l.b16 %v508
        %v529 = vpack.c.b16 %v516, %v516
        %v530 = vpack.c.b16 %v517, %v517
        %v531 = vpack.c.b16 %v518, %v518
        %v532 = vpack.c.b16 %v519, %v519
        %v533 = vpack.c.b16 %v520, %v520
        %v534 = vpack.c.b16 %v521, %v521
        %v535 = vpack.c.b16 %v522, %v522
        %v536 = vpack.c.b16 %v523, %v523
        %v537 = vpack.c.b16 %v524, %v524
        %v538 = vpack.c.b16 %v525, %v525
        %v539 = vpack.c.b16 %v526, %v526
        %v540 = vpack.c.b16 %v527, %v527
        %v541 = vpack.c.b16 %v528, %v528
        %vm555 = vcmask 125952
        %556 = vst.msk [vmem:[%s177] sm:$0xf] %vm555, %v529
        %557 = vst.msk [vmem:[%s177 + $0x4] sm:$0xf] %vm555, %v530
        %558 = vst.msk [vmem:[%s177 + $0x8] sm:$0xf] %vm555, %v531
        %559 = vst.msk [vmem:[%s177 + $0xc] sm:$0xf] %vm555, %v532
        %560 = vst.msk [vmem:[%s177 + $0x10] sm:$0xf] %vm555, %v533
        %561 = vst.msk [vmem:[%s177 + $0x14] sm:$0xf] %vm555, %v534
        %562 = vst.msk [vmem:[%s177 + $0x18] sm:$0xf] %vm555, %v535
        %563 = vst.msk [vmem:[%s177 + $0x1c] sm:$0xf] %vm555, %v536
        %564 = vst.msk [vmem:[%s177 + $0x20] sm:$0xf] %vm555, %v537
        %565 = vst.msk [vmem:[%s177 + $0x24] sm:$0xf] %vm555, %v538
        %566 = vst.msk [vmem:[%s177 + $0x28] sm:$0xf] %vm555, %v539
        %567 = vst.msk [vmem:[%s177 + $0x2c] sm:$0xf] %vm555, %v540
        %568 = vst.msk [vmem:[%s177 + $0x30] sm:$0xf] %vm555, %v541
        %s569 = sand.u32 %s90, 1
        %s570 = sand.u32 %s90, 1
        %s571 = smul.addr %s570, 52
        %s572 = scalar_lea.vmem [#allocation2], %s571
        // Predicated region
        $region33: #{net_forward.8} parent=31 // pred_check
          %p573 = pneg %p100
        $region34: #{net_forward.8} parent=31 // pred_check_branch
          %575 = sbr.rel (%p573) target = $region36
        $region35: #{net_forward.8} parent=31 // pred_region
          %s576 = smul.u32 13, %s14
          %s577 = ssub.s32 25, %s576
          %p578 = scmp.lt.s32.totalorder %s577, 13
          %s579 = scalar_select %p578, %s577, 13
          %s580 = smul.u32 64, %s579
          %p581 = scmp.ne.s32.totalorder 0, %s580
          %s582 = smul.addr %s576, 4
          %s583 = scalar_lea.vmem %s3, %s582
          // Predicated region
          $region37: #{net_forward.8} parent=35 // pred_check
            %p584 = pneg %p581
          $region38: #{net_forward.8} parent=35 // pred_check_branch
            %586 = sbr.rel (%p584) target = $region40
          $region39: #{net_forward.8} parent=35 // pred_region
            // Predicated region
            $region41: #{net_forward.8} parent=39 // pred_check
              _
            $region42: #{net_forward.8} parent=39 // pred_check_branch
              %588 = sbr.rel target = $region44
            $region43: #{net_forward.8} parent=39 // pred_region
              // Predicated region
              $region63: #{net_forward.8} parent=43 // pred_check
                _
              $region64: #{net_forward.8} parent=43 // pred_check_branch
                %662 = sbr.rel (0) target = $region66
              $region65: #{net_forward.8} parent=43 // pred_region
                %s664 = sdiv.u32.pop %s579, 13
                %s665 = srem.u32.pop %s579, 13
                // While loop
                $region67: #{net_forward.8} parent=65 // loop_pre_header
                  _
                $region68: #{net_forward.8} parent=65 // loop_header
                  %s667 = sphi 0, %s669
                  %p668 = scmp.ge.s32.totalorder %s667, %s664
                  %s672 = sphi 0, %s703
                  %s673 = sphi %s572, %s706
                  %s674 = sphi %s583, %s707
                $region69: #{net_forward.8} parent=65 // loop_header_branch
                  %671 = sbr.rel (%p668) target = $region73
                $region70: #{net_forward.8} parent=65 // loop_body
                  %v675 = vld [vmem:[%s673] sm:$0xf]
                  %676 = vst [vmem:[%s674] sm:$0xf] %v675
                  %v677 = vld [vmem:[%s673 + $0x4] sm:$0xf]
                  %678 = vst [vmem:[%s674 + $0x4] sm:$0xf] %v677
                  %v679 = vld [vmem:[%s673 + $0x8] sm:$0xf]
                  %680 = vst [vmem:[%s674 + $0x8] sm:$0xf] %v679
                  %v681 = vld [vmem:[%s673 + $0xc] sm:$0xf]
                  %682 = vst [vmem:[%s674 + $0xc] sm:$0xf] %v681
                  %v683 = vld [vmem:[%s673 + $0x10] sm:$0xf]
                  %684 = vst [vmem:[%s674 + $0x10] sm:$0xf] %v683
                  %v685 = vld [vmem:[%s673 + $0x14] sm:$0xf]
                  %686 = vst [vmem:[%s674 + $0x14] sm:$0xf] %v685
                  %v687 = vld [vmem:[%s673 + $0x18] sm:$0xf]
                  %688 = vst [vmem:[%s674 + $0x18] sm:$0xf] %v687
                  %v689 = vld [vmem:[%s673 + $0x1c] sm:$0xf]
                  %690 = vst [vmem:[%s674 + $0x1c] sm:$0xf] %v689
                  %v691 = vld [vmem:[%s673 + $0x20] sm:$0xf]
                  %692 = vst [vmem:[%s674 + $0x20] sm:$0xf] %v691
                  %v693 = vld [vmem:[%s673 + $0x24] sm:$0xf]
                  %694 = vst [vmem:[%s674 + $0x24] sm:$0xf] %v693
                  %v695 = vld [vmem:[%s673 + $0x28] sm:$0xf]
                  %696 = vst [vmem:[%s674 + $0x28] sm:$0xf] %v695
                  %v697 = vld [vmem:[%s673 + $0x2c] sm:$0xf]
                  %698 = vst [vmem:[%s674 + $0x2c] sm:$0xf] %v697
                  %v699 = vld [vmem:[%s673 + $0x30] sm:$0xf]
                  %700 = vst [vmem:[%s674 + $0x30] sm:$0xf] %v699
                  %s701 = sadd.s32 1, %s672
                  %p702 = scmp.ge.s32.totalorder %s701, %s664
                  %s703 = scalar_select %p702, 0, %s701
                  %s704 = smul.u32 %s703, 52
                  %s705 = smul.u32 %s703, 52
                  %s706 = scalar_lea.vmem %s572, %s704 [#allocation2]
                  %s707 = scalar_lea.vmem %s583, %s705
                $region71: #{net_forward.8} parent=65 // loop_footer
                  %s669 = sadd.s32 %s667, 1
                $region72: #{net_forward.8} parent=65 // loop_footer_branch
                  %666 = sbr.rel target = $region68
                $region73: #{net_forward.8} parent=65 // loop_exit
                  _
                %s708 = sdiv.u32.pop %s579, 13
                %s709 = srem.u32.pop %s579, 13
                %s710 = smul.u32 %s708, 13
                %s711 = smul.u32 4, %s710
                %s712 = scalar_lea.vmem %s572, %s711 [#allocation2]
                %s713 = smul.u32 4, %s710
                %s714 = scalar_lea.vmem %s583, %s713
                // While loop
                $region74: #{net_forward.8} parent=65 // loop_pre_header
                  _
                $region75: #{net_forward.8} parent=65 // loop_header
                  %s716 = sphi 0, %s718
                  %p717 = scmp.ge.s32.totalorder %s716, %s709
                  %s721 = sphi 0, %s728
                  %s722 = sphi %s712, %s731
                  %s723 = sphi %s714, %s732
                $region76: #{net_forward.8} parent=65 // loop_header_branch
                  %720 = sbr.rel (%p717) target = $region80
                $region77: #{net_forward.8} parent=65 // loop_body
                  %v724 = vld [vmem:[%s722] sm:$0xf]
                  %725 = vst [vmem:[%s723] sm:$0xf] %v724
                  %s726 = sadd.s32 1, %s721
                  %p727 = scmp.ge.s32.totalorder %s726, %s709
                  %s728 = scalar_select %p727, 0, %s726
                  %s729 = smul.u32 %s728, 4
                  %s730 = smul.u32 %s728, 4
                  %s731 = scalar_lea.vmem %s712, %s729 [#allocation2]
                  %s732 = scalar_lea.vmem %s714, %s730
                $region78: #{net_forward.8} parent=65 // loop_footer
                  %s718 = sadd.s32 %s716, 1
                $region79: #{net_forward.8} parent=65 // loop_footer_branch
                  %715 = sbr.rel target = $region75
                $region80: #{net_forward.8} parent=65 // loop_exit
                  _
              $region66: #{net_forward.8} parent=43 // pred_fallthru
                _
            $region44: #{net_forward.8} parent=39 // pred_fallthru
              _
            // Predicated region
            $region45: #{net_forward.8} parent=39 // pred_check
              _
            $region46: #{net_forward.8} parent=39 // pred_check_branch
              %590 = sbr.rel (0) target = $region48
            $region47: #{net_forward.8} parent=39 // pred_region
              %s592 = sdiv.u32.pop %s579, 13
              %s593 = srem.u32.pop %s579, 13
              // While loop
              $region49: #{net_forward.8} parent=47 // loop_pre_header
                _
              $region50: #{net_forward.8} parent=47 // loop_header
                %s595 = sphi 0, %s597
                %p596 = scmp.ge.s32.totalorder %s595, %s592
                %s600 = sphi 0, %s631
                %s601 = sphi %s572, %s634
                %s602 = sphi %s583, %s635
              $region51: #{net_forward.8} parent=47 // loop_header_branch
                %599 = sbr.rel (%p596) target = $region55
              $region52: #{net_forward.8} parent=47 // loop_body
                %v603 = vld [vmem:[%s601] sm:$0xf]
                %604 = vst [vmem:[%s602] sm:$0xf] %v603
                %v605 = vld [vmem:[%s601 + $0x4] sm:$0xf]
                %606 = vst [vmem:[%s602 + $0x4] sm:$0xf] %v605
                %v607 = vld [vmem:[%s601 + $0x8] sm:$0xf]
                %608 = vst [vmem:[%s602 + $0x8] sm:$0xf] %v607
                %v609 = vld [vmem:[%s601 + $0xc] sm:$0xf]
                %610 = vst [vmem:[%s602 + $0xc] sm:$0xf] %v609
                %v611 = vld [vmem:[%s601 + $0x10] sm:$0xf]
                %612 = vst [vmem:[%s602 + $0x10] sm:$0xf] %v611
                %v613 = vld [vmem:[%s601 + $0x14] sm:$0xf]
                %614 = vst [vmem:[%s602 + $0x14] sm:$0xf] %v613
                %v615 = vld [vmem:[%s601 + $0x18] sm:$0xf]
                %616 = vst [vmem:[%s602 + $0x18] sm:$0xf] %v615
                %v617 = vld [vmem:[%s601 + $0x1c] sm:$0xf]
                %618 = vst [vmem:[%s602 + $0x1c] sm:$0xf] %v617
                %v619 = vld [vmem:[%s601 + $0x20] sm:$0xf]
                %620 = vst [vmem:[%s602 + $0x20] sm:$0xf] %v619
                %v621 = vld [vmem:[%s601 + $0x24] sm:$0xf]
                %622 = vst [vmem:[%s602 + $0x24] sm:$0xf] %v621
                %v623 = vld [vmem:[%s601 + $0x28] sm:$0xf]
                %624 = vst [vmem:[%s602 + $0x28] sm:$0xf] %v623
                %v625 = vld [vmem:[%s601 + $0x2c] sm:$0xf]
                %626 = vst [vmem:[%s602 + $0x2c] sm:$0xf] %v625
                %v627 = vld [vmem:[%s601 + $0x30] sm:$0xf]
                %628 = vst [vmem:[%s602 + $0x30] sm:$0xf] %v627
                %s629 = sadd.s32 1, %s600
                %p630 = scmp.ge.s32.totalorder %s629, %s592
                %s631 = scalar_select %p630, 0, %s629
                %s632 = smul.u32 %s631, 52
                %s633 = smul.u32 %s631, 52
                %s634 = scalar_lea.vmem %s572, %s632 [#allocation2]
                %s635 = scalar_lea.vmem %s583, %s633
              $region53: #{net_forward.8} parent=47 // loop_footer
                %s597 = sadd.s32 %s595, 1
              $region54: #{net_forward.8} parent=47 // loop_footer_branch
                %594 = sbr.rel target = $region50
              $region55: #{net_forward.8} parent=47 // loop_exit
                _
              %s636 = sdiv.u32.pop %s579, 13
              %s637 = srem.u32.pop %s579, 13
              %s638 = smul.u32 %s636, 13
              %s639 = smul.u32 4, %s638
              %s640 = scalar_lea.vmem %s572, %s639 [#allocation2]
              %s641 = smul.u32 4, %s638
              %s642 = scalar_lea.vmem %s583, %s641
              // While loop
              $region56: #{net_forward.8} parent=47 // loop_pre_header
                _
              $region57: #{net_forward.8} parent=47 // loop_header
                %s644 = sphi 0, %s646
                %p645 = scmp.ge.s32.totalorder %s644, %s637
                %s649 = sphi 0, %s656
                %s650 = sphi %s640, %s659
                %s651 = sphi %s642, %s660
              $region58: #{net_forward.8} parent=47 // loop_header_branch
                %648 = sbr.rel (%p645) target = $region62
              $region59: #{net_forward.8} parent=47 // loop_body
                %v652 = vld [vmem:[%s650] sm:$0xf]
                %653 = vst [vmem:[%s651] sm:$0xf] %v652
                %s654 = sadd.s32 1, %s649
                %p655 = scmp.ge.s32.totalorder %s654, %s637
                %s656 = scalar_select %p655, 0, %s654
                %s657 = smul.u32 %s656, 4
                %s658 = smul.u32 %s656, 4
                %s659 = scalar_lea.vmem %s640, %s657 [#allocation2]
                %s660 = scalar_lea.vmem %s642, %s658
              $region60: #{net_forward.8} parent=47 // loop_footer
                %s646 = sadd.s32 %s644, 1
              $region61: #{net_forward.8} parent=47 // loop_footer_branch
                %643 = sbr.rel target = $region57
              $region62: #{net_forward.8} parent=47 // loop_exit
                _
            $region48: #{net_forward.8} parent=39 // pred_fallthru
              _
          $region40: #{net_forward.8} parent=35 // pred_fallthru
            _
          %733 = vnop
        $region36: #{net_forward.8} parent=31 // pred_fallthru
          _
      $region32: #{net_forward.8} parent=5 // pred_fallthru
        _
      %p734 = scmp.le.s32.totalorder 2, %s9
      // Predicated region
      $region81: #{net_forward.8} parent=5 // pred_check
        %p735 = pneg %p734
      $region82: #{net_forward.8} parent=5 // pred_check_branch
        %737 = sbr.rel (%p735) target = $region84
      $region83: #{net_forward.8} parent=5 // pred_region
        %s738 = ssub.s32 %s9, 2
        // Predicated region
        $region85: #{net_forward.8} parent=83 // pred_check
          %p739 = pneg %p106
        $region86: #{net_forward.8} parent=83 // pred_check_branch
          %741 = sbr.rel (%p739) target = $region88
        $region87: #{net_forward.8} parent=83 // pred_region
          %s742 = sand.u32 %s91, 1
          %s743 = sand.u32 %s91, 1
          %s744 = smul.addr %s743, 52
          %s745 = scalar_lea.vmem [#allocation2], %s744
        $region88: #{net_forward.8} parent=83 // pred_fallthru
          _
      $region84: #{net_forward.8} parent=5 // pred_fallthru
        _
    $region6: #{net_forward.8} parent=1 // loop_footer
      %s13 = sadd.s32 1, %s9
    $region7: #{net_forward.8} parent=1 // loop_footer_branch
      %8 = sbr.rel target = $region3
    $region8: #{net_forward.8} parent=1 // loop_exit
      _

// kernel: net_forward.9
$region0: #{net_forward.9}
  #allocation0 [shape = 'u32[]', space=smem, size = 0x4, offset = 0x4, fixed_abs, tag = 'smem constant byte address 0x4 - core index']
  #allocation1 [shape = 'u32[144,128]{1,0:T(1,128)}', space=vmem, size = 0x12000, scoped, tag = 'internal scratch']
  #allocation2 [shape = 'f32[1,1]{1,0:T(1,128)S(1)}', space=vmem, size = 0x200, scoped, tag = 'scoped memory for net_forward.9']
  %s0 = inlined_call_operand.vmem [shape: bf16[4,784], index: 0, kind: input, shape index: {}]
  %s1 = inlined_call_operand.vmem [shape: bf16[784,128], index: 1, kind: input, shape index: {}]
  %s2 = inlined_call_operand.vmem [shape: f32[1,128], index: 2, kind: input, shape index: {}]
  %s3 = inlined_call_operand.vmem [shape: bf16[128,1], index: 3, kind: input, shape index: {}]
  %s4 = inlined_call_operand.<no memory space> [shape: f32[1,1], index: 4, kind: input, shape index: {}]
  %s5 = inlined_call_operand.vmem [shape: f32[4,1], index: 5, kind: output, shape index: {}]
  %s6 = sld [smem:[#allocation0]]
  $region30: #{net_forward.9} parent=0
    _
  %s8 = ssub.s32 1, %s6
  %s9 = scalar_select 0, %s8, %s6
  %v10 = vstv %s4
  %11 = vst [vmem:[#allocation2] sm:$0x1] %v10
  // Predicated region
  $region2: #{net_forward.9} parent=0 // pred_check
    _
  $region3: #{net_forward.9} parent=0 // pred_check_branch
    %13 = sbr.rel (0) target = $region5
  $region4: #{net_forward.9} parent=0 // pred_region
    _
  $region5: #{net_forward.9} parent=0 // pred_fallthru
    _
  // Predicated region
  $region6: #{net_forward.9} parent=0 // pred_check
    _
  $region7: #{net_forward.9} parent=0 // pred_check_branch
    %15 = sbr.rel (0) target = $region9
  $region8: #{net_forward.9} parent=0 // pred_region
    _
  $region9: #{net_forward.9} parent=0 // pred_fallthru
    _
  // Predicated region
  $region10: #{net_forward.9} parent=0 // pred_check
    _
  $region11: #{net_forward.9} parent=0 // pred_check_branch
    %17 = sbr.rel (0) target = $region13
  $region12: #{net_forward.9} parent=0 // pred_region
    _
  $region13: #{net_forward.9} parent=0 // pred_fallthru
    _
  // Predicated region
  $region14: #{net_forward.9} parent=0 // pred_check
    _
  $region15: #{net_forward.9} parent=0 // pred_check_branch
    %19 = sbr.rel (0) target = $region17
  $region16: #{net_forward.9} parent=0 // pred_region
    _
  $region17: #{net_forward.9} parent=0 // pred_fallthru
    _
  // Predicated region
  $region18: #{net_forward.9} parent=0 // pred_check
    _
  $region19: #{net_forward.9} parent=0 // pred_check_branch
    %21 = sbr.rel (0) target = $region21
  $region20: #{net_forward.9} parent=0 // pred_region
    _
  $region21: #{net_forward.9} parent=0 // pred_fallthru
    _
  %v23 = vld [vmem:[%s0] sm:$0xff]
  %v24 = vld [vmem:[%s0 + $0x8] sm:$0x3f]
  %v25 = vld [vmem:[%s1] sm:$0xf]
  %v26 = vld [vmem:[%s1 + $0x4] sm:$0xf]
  %v27 = vld [vmem:[%s1 + $0x8] sm:$0xf]
  %v28 = vld [vmem:[%s1 + $0xc] sm:$0xf]
  %v29 = vld [vmem:[%s1 + $0x10] sm:$0xf]
  %v30 = vld [vmem:[%s1 + $0x14] sm:$0xf]
  %v31 = vld [vmem:[%s1 + $0x18] sm:$0xf]
  %v32 = vld [vmem:[%s1 + $0x1c] sm:$0xf]
  %v33 = vld [vmem:[%s1 + $0x20] sm:$0xf]
  %v34 = vld [vmem:[%s1 + $0x24] sm:$0xf]
  %v35 = vld [vmem:[%s1 + $0x28] sm:$0xf]
  %v36 = vld [vmem:[%s1 + $0x2c] sm:$0xf]
  %v37 = vld [vmem:[%s1 + $0x30] sm:$0xf]
  %v38 = vld [vmem:[%s1 + $0x34] sm:$0xf]
  %v39 = vld [vmem:[%s1 + $0x38] sm:$0xf]
  %v40 = vld [vmem:[%s1 + $0x3c] sm:$0xf]
  %v41 = vld [vmem:[%s1 + $0x40] sm:$0xf]
  %v42 = vld [vmem:[%s1 + $0x44] sm:$0xf]
  %v43 = vld [vmem:[%s1 + $0x48] sm:$0xf]
  %v44 = vld [vmem:[%s1 + $0x4c] sm:$0xf]
  %v45 = vld [vmem:[%s1 + $0x50] sm:$0xf]
  %v46 = vld [vmem:[%s1 + $0x54] sm:$0xf]
  %v47 = vld [vmem:[%s1 + $0x58] sm:$0xf]
  %v48 = vld [vmem:[%s1 + $0x5c] sm:$0xf]
  %v49 = vld [vmem:[%s1 + $0x60] sm:$0xf]
  %v50 = vld [vmem:[%s1 + $0x64] sm:$0xf]
  %v51 = vld [vmem:[%s1 + $0x68] sm:$0xf]
  %v52 = vld [vmem:[%s1 + $0x6c] sm:$0xf]
  %v53 = vld [vmem:[%s1 + $0x70] sm:$0xf]
  %v54 = vld [vmem:[%s1 + $0x74] sm:$0xf]
  %v55 = vld [vmem:[%s1 + $0x78] sm:$0xf]
  %v56 = vld [vmem:[%s1 + $0x7c] sm:$0xf]
  %v57 = vld [vmem:[%s1 + $0x80] sm:$0xf]
  %v58 = vld [vmem:[%s1 + $0x84] sm:$0xf]
  %v59 = vld [vmem:[%s1 + $0x88] sm:$0xf]
  %v60 = vld [vmem:[%s1 + $0x8c] sm:$0xf]
  %v61 = vld [vmem:[%s1 + $0x90] sm:$0xf]
  %v62 = vld [vmem:[%s1 + $0x94] sm:$0xf]
  %v63 = vld [vmem:[%s1 + $0x98] sm:$0xf]
  %v64 = vld [vmem:[%s1 + $0x9c] sm:$0xf]
  %v65 = vld [vmem:[%s1 + $0xa0] sm:$0xf]
  %v66 = vld [vmem:[%s1 + $0xa4] sm:$0xf]
  %v67 = vld [vmem:[%s1 + $0xa8] sm:$0xf]
  %v68 = vld [vmem:[%s1 + $0xac] sm:$0xf]
  %v69 = vld [vmem:[%s1 + $0xb0] sm:$0xf]
  %v70 = vld [vmem:[%s1 + $0xb4] sm:$0xf]
  %v71 = vld [vmem:[%s1 + $0xb8] sm:$0xf]
  %v72 = vld [vmem:[%s1 + $0xbc] sm:$0xf]
  %v73 = vld [vmem:[%s1 + $0xc0] sm:$0xf]
  %v74 = vld [vmem:[%s1 + $0xc4] sm:$0xf]
  %v75 = vld [vmem:[%s1 + $0xc8] sm:$0xf]
  %v76 = vld [vmem:[%s1 + $0xcc] sm:$0xf]
  %v77 = vld [vmem:[%s1 + $0xd0] sm:$0xf]
  %v78 = vld [vmem:[%s1 + $0xd4] sm:$0xf]
  %v79 = vld [vmem:[%s1 + $0xd8] sm:$0xf]
  %v80 = vld [vmem:[%s1 + $0xdc] sm:$0xf]
  %v81 = vld [vmem:[%s1 + $0xe0] sm:$0xf]
  %v82 = vld [vmem:[%s1 + $0xe4] sm:$0xf]
  %v83 = vld [vmem:[%s1 + $0xe8] sm:$0xf]
  %v84 = vld [vmem:[%s1 + $0xec] sm:$0xf]
  %v85 = vld [vmem:[%s1 + $0xf0] sm:$0xf]
  %v86 = vld [vmem:[%s1 + $0xf4] sm:$0xf]
  %v87 = vld [vmem:[%s1 + $0xf8] sm:$0xf]
  %v88 = vld [vmem:[%s1 + $0xfc] sm:$0xf]
  %v89 = vld [vmem:[%s1 + $0x100] sm:$0xf]
  %v90 = vld [vmem:[%s1 + $0x104] sm:$0xf]
  %v91 = vld [vmem:[%s1 + $0x108] sm:$0xf]
  %v92 = vld [vmem:[%s1 + $0x10c] sm:$0xf]
  %v93 = vld [vmem:[%s1 + $0x110] sm:$0xf]
  %v94 = vld [vmem:[%s1 + $0x114] sm:$0xf]
  %v95 = vld [vmem:[%s1 + $0x118] sm:$0xf]
  %v96 = vld [vmem:[%s1 + $0x11c] sm:$0xf]
  %v97 = vld [vmem:[%s1 + $0x120] sm:$0xf]
  %v98 = vld [vmem:[%s1 + $0x124] sm:$0xf]
  %v99 = vld [vmem:[%s1 + $0x128] sm:$0xf]
  %v100 = vld [vmem:[%s1 + $0x12c] sm:$0xf]
  %v101 = vld [vmem:[%s1 + $0x130] sm:$0xf]
  %v102 = vld [vmem:[%s1 + $0x134] sm:$0xf]
  %v103 = vld [vmem:[%s1 + $0x138] sm:$0xf]
  %v104 = vld [vmem:[%s1 + $0x13c] sm:$0xf]
  %v105 = vld [vmem:[%s1 + $0x140] sm:$0xf]
  %v106 = vld [vmem:[%s1 + $0x144] sm:$0xf]
  %v107 = vld [vmem:[%s1 + $0x148] sm:$0xf]
  %v108 = vld [vmem:[%s1 + $0x14c] sm:$0xf]
  %v109 = vld [vmem:[%s1 + $0x150] sm:$0xf]
  %v110 = vld [vmem:[%s1 + $0x154] sm:$0xf]
  %v111 = vld [vmem:[%s1 + $0x158] sm:$0xf]
  %v112 = vld [vmem:[%s1 + $0x15c] sm:$0xf]
  %v113 = vld [vmem:[%s1 + $0x160] sm:$0xf]
  %v114 = vld [vmem:[%s1 + $0x164] sm:$0xf]
  %v115 = vld [vmem:[%s1 + $0x168] sm:$0xf]
  %v116 = vld [vmem:[%s1 + $0x16c] sm:$0xf]
  %v117 = vld [vmem:[%s1 + $0x170] sm:$0xf]
  %v118 = vld [vmem:[%s1 + $0x174] sm:$0xf]
  %v119 = vld [vmem:[%s1 + $0x178] sm:$0xf]
  %v120 = vld [vmem:[%s1 + $0x17c] sm:$0xf]
  %v121 = vld [vmem:[%s1 + $0x180] sm:$0xf]
  %v122 = vld [vmem:[%s1 + $0x184] sm:$0xf]
  %v123 = vld [vmem:[%s2] sm:$0x1]
  %v125 = vlaneseq
  %v126 = vshrl.u32 %v125, 7
  %v127 = vsub.s32 0, %v126
  %v128 = vrot.slane %v123, %v127
  %v132 = vcombine.high %v23, %v23
  %v134 = vunpack.c.l.s4 1983009808
  %v135 = vunpack.c.0.s8 %v134
  %v136 = vlaneseq
  %v137 = vshrl.u32 %v136, 7
  %v138 = vsub.s32 %v135, %v137
  %v139 = vrot.slane %v23, %v138
  %v141 = vunpack.c.l.s4 1983009808
  %v142 = vunpack.c.0.s8 %v141
  %v143 = vlaneseq
  %v144 = vshrl.u32 %v143, 7
  %v145 = vsub.s32 %v142, %v144
  %v146 = vrot.slane %v132, %v145
  %v147 = vcombine.high %v139, %v139
  %v148 = vcombine.high %v146, %v146
  %v149 = vcombine.high %v24, %v24
  %v151 = vunpack.c.l.s4 1983009808
  %v152 = vunpack.c.0.s8 %v151
  %v153 = vlaneseq
  %v154 = vshrl.u32 %v153, 7
  %v155 = vsub.s32 %v152, %v154
  %v156 = vrot.slane %v24, %v155
  %v158 = vunpack.c.l.s4 1983009808
  %v159 = vunpack.c.0.s8 %v158
  %v160 = vlaneseq
  %v161 = vshrl.u32 %v160, 7
  %v162 = vsub.s32 %v159, %v161
  %v163 = vrot.slane %v149, %v162
  %v164 = vcombine.high %v156, %v156
  %v269 = vunpack.c.l.b16 %v25
  %v270 = vunpack.c.l.b16 %v26
  %v271 = vunpack.c.l.b16 %v27
  %v272 = vunpack.c.l.b16 %v28
  %v273 = vunpack.c.l.b16 %v29
  %v274 = vunpack.c.l.b16 %v30
  %v275 = vunpack.c.l.b16 %v31
  %v276 = vunpack.c.l.b16 %v32
  %v277 = vunpack.c.l.b16 %v33
  %v278 = vunpack.c.l.b16 %v34
  %v279 = vunpack.c.l.b16 %v35
  %v280 = vunpack.c.l.b16 %v36
  %v281 = vunpack.c.l.b16 %v37
  %v282 = vunpack.c.l.b16 %v38
  %v283 = vunpack.c.l.b16 %v39
  %v284 = vunpack.c.l.b16 %v40
  %v285 = vunpack.c.l.b16 %v41
  %v286 = vunpack.c.l.b16 %v42
  %v287 = vunpack.c.l.b16 %v43
  %v288 = vunpack.c.l.b16 %v44
  %v289 = vunpack.c.l.b16 %v45
  %v290 = vunpack.c.l.b16 %v46
  %v291 = vunpack.c.l.b16 %v47
  %v292 = vunpack.c.l.b16 %v48
  %v293 = vunpack.c.l.b16 %v49
  %v294 = vunpack.c.l.b16 %v50
  %v295 = vunpack.c.l.b16 %v51
  %v296 = vunpack.c.l.b16 %v52
  %v297 = vunpack.c.l.b16 %v53
  %v298 = vunpack.c.l.b16 %v54
  %v299 = vunpack.c.l.b16 %v55
  %v300 = vunpack.c.l.b16 %v56
  %v301 = vunpack.c.l.b16 %v57
  %v302 = vunpack.c.l.b16 %v58
  %v303 = vunpack.c.l.b16 %v59
  %v304 = vunpack.c.l.b16 %v60
  %v305 = vunpack.c.l.b16 %v61
  %v306 = vunpack.c.l.b16 %v62
  %v307 = vunpack.c.l.b16 %v63
  %v308 = vunpack.c.l.b16 %v64
  %v309 = vunpack.c.l.b16 %v65
  %v310 = vunpack.c.l.b16 %v66
  %v311 = vunpack.c.l.b16 %v67
  %v312 = vunpack.c.l.b16 %v68
  %v313 = vunpack.c.l.b16 %v69
  %v314 = vunpack.c.l.b16 %v70
  %v315 = vunpack.c.l.b16 %v71
  %v316 = vunpack.c.l.b16 %v72
  %v317 = vunpack.c.l.b16 %v73
  %v318 = vunpack.c.l.b16 %v74
  %v319 = vunpack.c.l.b16 %v75
  %v320 = vunpack.c.l.b16 %v76
  %v321 = vunpack.c.l.b16 %v77
  %v322 = vunpack.c.l.b16 %v78
  %v323 = vunpack.c.l.b16 %v79
  %v324 = vunpack.c.l.b16 %v80
  %v325 = vunpack.c.l.b16 %v81
  %v326 = vunpack.c.l.b16 %v82
  %v327 = vunpack.c.l.b16 %v83
  %v328 = vunpack.c.l.b16 %v84
  %v329 = vunpack.c.l.b16 %v85
  %v330 = vunpack.c.l.b16 %v86
  %v331 = vunpack.c.l.b16 %v87
  %v332 = vunpack.c.l.b16 %v88
  %v333 = vunpack.c.l.b16 %v89
  %v334 = vunpack.c.l.b16 %v90
  %v335 = vunpack.c.l.b16 %v91
  %v336 = vunpack.c.l.b16 %v92
  %v337 = vunpack.c.l.b16 %v93
  %v338 = vunpack.c.l.b16 %v94
  %v339 = vunpack.c.l.b16 %v95
  %v340 = vunpack.c.l.b16 %v96
  %v341 = vunpack.c.l.b16 %v97
  %v342 = vunpack.c.l.b16 %v98
  %v343 = vunpack.c.l.b16 %v99
  %v344 = vunpack.c.l.b16 %v100
  %v345 = vunpack.c.l.b16 %v101
  %v346 = vunpack.c.l.b16 %v102
  %v347 = vunpack.c.l.b16 %v103
  %v348 = vunpack.c.l.b16 %v104
  %v349 = vunpack.c.l.b16 %v105
  %v350 = vunpack.c.l.b16 %v106
  %v351 = vunpack.c.l.b16 %v107
  %v352 = vunpack.c.l.b16 %v108
  %v353 = vunpack.c.l.b16 %v109
  %v354 = vunpack.c.l.b16 %v110
  %v355 = vunpack.c.l.b16 %v111
  %v356 = vunpack.c.l.b16 %v112
  %v357 = vunpack.c.l.b16 %v113
  %v358 = vunpack.c.l.b16 %v114
  %v359 = vunpack.c.l.b16 %v115
  %v360 = vunpack.c.l.b16 %v116
  %v361 = vunpack.c.l.b16 %v117
  %v362 = vunpack.c.l.b16 %v118
  %v363 = vunpack.c.l.b16 %v119
  %v364 = vunpack.c.l.b16 %v120
  %v365 = vunpack.c.l.b16 %v121
  %v366 = vunpack.c.l.b16 %v122
  %v367 = vpack.c.b16 %v270, %v269
  %v368 = vpack.c.b16 %v272, %v271
  %v369 = vpack.c.b16 %v274, %v273
  %v370 = vpack.c.b16 %v276, %v275
  %v371 = vpack.c.b16 %v278, %v277
  %v372 = vpack.c.b16 %v280, %v279
  %v373 = vpack.c.b16 %v282, %v281
  %v374 = vpack.c.b16 %v284, %v283
  %v375 = vpack.c.b16 %v286, %v285
  %v376 = vpack.c.b16 %v288, %v287
  %v377 = vpack.c.b16 %v290, %v289
  %v378 = vpack.c.b16 %v292, %v291
  %v379 = vpack.c.b16 %v294, %v293
  %v380 = vpack.c.b16 %v296, %v295
  %v381 = vpack.c.b16 %v298, %v297
  %v382 = vpack.c.b16 %v300, %v299
  %v383 = vpack.c.b16 %v302, %v301
  %v384 = vpack.c.b16 %v304, %v303
  %v385 = vpack.c.b16 %v306, %v305
  %v386 = vpack.c.b16 %v308, %v307
  %v387 = vpack.c.b16 %v310, %v309
  %v388 = vpack.c.b16 %v312, %v311
  %v389 = vpack.c.b16 %v314, %v313
  %v390 = vpack.c.b16 %v316, %v315
  %v391 = vpack.c.b16 %v318, %v317
  %v392 = vpack.c.b16 %v320, %v319
  %v393 = vpack.c.b16 %v322, %v321
  %v394 = vpack.c.b16 %v324, %v323
  %v395 = vpack.c.b16 %v326, %v325
  %v396 = vpack.c.b16 %v328, %v327
  %v397 = vpack.c.b16 %v330, %v329
  %v398 = vpack.c.b16 %v332, %v331
  %v399 = vpack.c.b16 %v334, %v333
  %v400 = vpack.c.b16 %v336, %v335
  %v401 = vpack.c.b16 %v338, %v337
  %v402 = vpack.c.b16 %v340, %v339
  %v403 = vpack.c.b16 %v342, %v341
  %v404 = vpack.c.b16 %v344, %v343
  %v405 = vpack.c.b16 %v346, %v345
  %v406 = vpack.c.b16 %v348, %v347
  %v407 = vpack.c.b16 %v350, %v349
  %v408 = vpack.c.b16 %v352, %v351
  %v409 = vpack.c.b16 %v354, %v353
  %v410 = vpack.c.b16 %v356, %v355
  %v411 = vpack.c.b16 %v358, %v357
  %v412 = vpack.c.b16 %v360, %v359
  %v413 = vpack.c.b16 %v362, %v361
  %v414 = vpack.c.b16 %v364, %v363
  %v415 = vpack.c.b16 %v366, %v365
  %vm465 = vcmask 130048
  %v467 = vsel %vm465, %v163, 0
  %469 = vmatprep.subr.bf16.mxu0 0
  %470 = vmatpush1.bf16.msra.mxu0 %v367
  %471 = vmatprep.subr.bf16.mxu0 0
  %472 = vmatpush1.bf16.msra.mxu0 %v368
  %473 = vmatprep.subr.bf16.mxu0 0
  %474 = vmatpush1.bf16.msra.mxu0 %v369
  %475 = vmatprep.subr.bf16.mxu0 0
  %476 = vmatpush1.bf16.msra.mxu0 %v370
  %477 = vmatprep.subr.bf16.mxu0 0
  %478 = vmatpush1.bf16.msra.mxu0 %v371
  %479 = vmatprep.subr.bf16.mxu0 0
  %480 = vmatpush1.bf16.msra.mxu0 %v372
  %481 = vmatprep.subr.bf16.mxu0 0
  %482 = vmatpush1.bf16.msra.mxu0 %v373
  %483 = vmatprep.subr.bf16.mxu0 0
  %484 = vmatpush1.bf16.msra.mxu0 %v374
  %485 = vmatprep.subr.bf16.mxu0 0
  %486 = vmatpush1.bf16.msra.mxu0 %v375
  %487 = vmatprep.subr.bf16.mxu0 0
  %488 = vmatpush1.bf16.msra.mxu0 %v376
  %489 = vmatprep.subr.bf16.mxu0 0
  %490 = vmatpush1.bf16.msra.mxu0 %v377
  %491 = vmatprep.subr.bf16.mxu0 0
  %492 = vmatpush1.bf16.msra.mxu0 %v378
  %493 = vmatprep.subr.bf16.mxu0 0
  %494 = vmatpush1.bf16.msra.mxu0 %v379
  %495 = vmatprep.subr.bf16.mxu0 0
  %496 = vmatpush1.bf16.msra.mxu0 %v380
  %497 = vmatprep.subr.bf16.mxu0 0
  %498 = vmatpush1.bf16.msra.mxu0 %v381
  %499 = vmatprep.subr.bf16.mxu0 0
  %500 = vmatpush1.bf16.msra.mxu0 %v382
  %501 = vmatprep.mubr.bf16.mxu0 %v147
  %502 = vmatmul.mubr.bf16.gmra.mrb[0].mxu0 %v139
  %v503 = vpop.f32.mrb[0].mxu0
  %v504 = vadd.f32 %v128, %v503
  %v505 = vpop.f32.mrb[0].mxu0
  %v506 = vpop.f32.mrb[0].mxu0
  %v507 = vpop.f32.mrb[0].mxu0
  %508 = vdwg.mxu0
  %509 = vmatprep.subr.bf16.mxu0 0
  %510 = vmatpush1.bf16.msra.mxu0 %v383
  %511 = vmatprep.subr.bf16.mxu0 0
  %512 = vmatpush1.bf16.msra.mxu0 %v384
  %513 = vmatprep.subr.bf16.mxu0 0
  %514 = vmatpush1.bf16.msra.mxu0 %v385
  %515 = vmatprep.subr.bf16.mxu0 0
  %516 = vmatpush1.bf16.msra.mxu0 %v386
  %517 = vmatprep.subr.bf16.mxu0 0
  %518 = vmatpush1.bf16.msra.mxu0 %v387
  %519 = vmatprep.subr.bf16.mxu0 0
  %520 = vmatpush1.bf16.msra.mxu0 %v388
  %521 = vmatprep.subr.bf16.mxu0 0
  %522 = vmatpush1.bf16.msra.mxu0 %v389
  %523 = vmatprep.subr.bf16.mxu0 0
  %524 = vmatpush1.bf16.msra.mxu0 %v390
  %525 = vmatprep.subr.bf16.mxu0 0
  %526 = vmatpush1.bf16.msra.mxu0 %v391
  %527 = vmatprep.subr.bf16.mxu0 0
  %528 = vmatpush1.bf16.msra.mxu0 %v392
  %529 = vmatprep.subr.bf16.mxu0 0
  %530 = vmatpush1.bf16.msra.mxu0 %v393
  %531 = vmatprep.subr.bf16.mxu0 0
  %532 = vmatpush1.bf16.msra.mxu0 %v394
  %533 = vmatprep.subr.bf16.mxu0 0
  %534 = vmatpush1.bf16.msra.mxu0 %v395
  %535 = vmatprep.subr.bf16.mxu0 0
  %536 = vmatpush1.bf16.msra.mxu0 %v396
  %537 = vmatprep.subr.bf16.mxu0 0
  %538 = vmatpush1.bf16.msra.mxu0 %v397
  %539 = vmatprep.subr.bf16.mxu0 0
  %540 = vmatpush1.bf16.msra.mxu0 %v398
  %541 = vmatprep.mubr.bf16.mxu0 %v148
  %542 = vmatmul.mubr.bf16.gmra.mrb[0].mxu0 %v146
  %v543 = vpop.f32.mrb[0].mxu0
  %v544 = vadd.f32 %v504, %v543
  %v545 = vpop.f32.mrb[0].mxu0
  %v546 = vpop.f32.mrb[0].mxu0
  %v547 = vpop.f32.mrb[0].mxu0
  %548 = vdwg.mxu0
  %549 = vmatprep.subr.bf16.mxu0 0
  %550 = vmatpush1.bf16.msra.mxu0 %v399
  %551 = vmatprep.subr.bf16.mxu0 0
  %552 = vmatpush1.bf16.msra.mxu0 %v400
  %553 = vmatprep.subr.bf16.mxu0 0
  %554 = vmatpush1.bf16.msra.mxu0 %v401
  %555 = vmatprep.subr.bf16.mxu0 0
  %556 = vmatpush1.bf16.msra.mxu0 %v402
  %557 = vmatprep.subr.bf16.mxu0 0
  %558 = vmatpush1.bf16.msra.mxu0 %v403
  %559 = vmatprep.subr.bf16.mxu0 0
  %560 = vmatpush1.bf16.msra.mxu0 %v404
  %561 = vmatprep.subr.bf16.mxu0 0
  %562 = vmatpush1.bf16.msra.mxu0 %v405
  %563 = vmatprep.subr.bf16.mxu0 0
  %564 = vmatpush1.bf16.msra.mxu0 %v406
  %565 = vmatprep.subr.bf16.mxu0 0
  %566 = vmatpush1.bf16.msra.mxu0 %v407
  %567 = vmatprep.subr.bf16.mxu0 0
  %568 = vmatpush1.bf16.msra.mxu0 %v408
  %569 = vmatprep.subr.bf16.mxu0 0
  %570 = vmatpush1.bf16.msra.mxu0 %v409
  %571 = vmatprep.subr.bf16.mxu0 0
  %572 = vmatpush1.bf16.msra.mxu0 %v410
  %573 = vmatprep.subr.bf16.mxu0 0
  %574 = vmatpush1.bf16.msra.mxu0 %v411
  %575 = vmatprep.subr.bf16.mxu0 0
  %576 = vmatpush1.bf16.msra.mxu0 %v412
  %577 = vmatprep.subr.bf16.mxu0 0
  %578 = vmatpush1.bf16.msra.mxu0 %v413
  %579 = vmatprep.subr.bf16.mxu0 0
  %580 = vmatpush1.bf16.msra.mxu0 %v414
  %581 = vmatprep.mubr.bf16.mxu0 %v164
  %582 = vmatmul.mubr.bf16.gmra.mrb[0].mxu0 %v156
  %v583 = vpop.f32.mrb[0].mxu0
  %v584 = vadd.f32 %v544, %v583
  %v585 = vpop.f32.mrb[0].mxu0
  %v586 = vpop.f32.mrb[0].mxu0
  %v587 = vpop.f32.mrb[0].mxu0
  %588 = vdwg.mxu0
  %589 = vmatprep.subr.bf16.mxu0 0
  %590 = vmatpush1.bf16.msra.mxu0 %v415
  %591 = vmatprep.subr.bf16.mxu0 0
  %592 = vmatpush1.bf16.msra.mxu0 0
  %593 = vmatprep.subr.bf16.mxu0 0
  %594 = vmatpush1.bf16.msra.mxu0 0
  %595 = vmatprep.subr.bf16.mxu0 0
  %596 = vmatpush1.bf16.msra.mxu0 0
  %597 = vmatprep.subr.bf16.mxu0 0
  %598 = vmatpush1.bf16.msra.mxu0 0
  %599 = vmatprep.subr.bf16.mxu0 0
  %600 = vmatpush1.bf16.msra.mxu0 0
  %601 = vmatprep.subr.bf16.mxu0 0
  %602 = vmatpush1.bf16.msra.mxu0 0
  %603 = vmatprep.subr.bf16.mxu0 0
  %604 = vmatpush1.bf16.msra.mxu0 0
  %605 = vmatprep.subr.bf16.mxu0 0
  %606 = vmatpush1.bf16.msra.mxu0 0
  %607 = vmatprep.subr.bf16.mxu0 0
  %608 = vmatpush1.bf16.msra.mxu0 0
  %609 = vmatprep.subr.bf16.mxu0 0
  %610 = vmatpush1.bf16.msra.mxu0 0
  %611 = vmatprep.subr.bf16.mxu0 0
  %612 = vmatpush1.bf16.msra.mxu0 0
  %613 = vmatprep.subr.bf16.mxu0 0
  %614 = vmatpush1.bf16.msra.mxu0 0
  %615 = vmatprep.subr.bf16.mxu0 0
  %616 = vmatpush1.bf16.msra.mxu0 0
  %617 = vmatprep.subr.bf16.mxu0 0
  %618 = vmatpush1.bf16.msra.mxu0 0
  %619 = vmatprep.subr.bf16.mxu0 0
  %620 = vmatpush1.bf16.msra.mxu0 0
  %621 = vmatprep.mubr.bf16.mxu0 0
  %622 = vmatmul.mubr.bf16.gmra.mrb[0].mxu0 %v467
  %v623 = vpop.f32.mrb[0].mxu0
  %v624 = vadd.f32 %v584, %v623
  %v625 = vpop.f32.mrb[0].mxu0
  %v626 = vpop.f32.mrb[0].mxu0
  %v627 = vpop.f32.mrb[0].mxu0
  %628 = vdwg.mxu0
  %vm629 = vcmp.ge.f32.partialorder %v624, 0.0
  %v630 = vmul.f32 %v624, 0.01
  %v631 = vsel %vm629, %v624, %v630
  %v632 = vpack.c.bf16 %v631, %v631
  %v633 = vld [vmem:[%s3] sm:$0xf]
  %v634 = vld [vmem:[%s3 + $0x4] sm:$0xf]
  %v635 = vld [vmem:[%s3 + $0x8] sm:$0xf]
  %v636 = vld [vmem:[%s3 + $0xc] sm:$0xf]
  %v637 = vld [vmem:[%s3 + $0x10] sm:$0xf]
  %v638 = vld [vmem:[%s3 + $0x14] sm:$0xf]
  %v639 = vld [vmem:[%s3 + $0x18] sm:$0xf]
  %v640 = vld [vmem:[%s3 + $0x1c] sm:$0xf]
  %v641 = vld [vmem:[%s3 + $0x20] sm:$0xf]
  %v642 = vld [vmem:[%s3 + $0x24] sm:$0xf]
  %v643 = vld [vmem:[%s3 + $0x28] sm:$0xf]
  %v644 = vld [vmem:[%s3 + $0x2c] sm:$0xf]
  %v645 = vld [vmem:[%s3 + $0x30] sm:$0xf]
  %v646 = vld [vmem:[%s3 + $0x34] sm:$0xf]
  %v647 = vld [vmem:[%s3 + $0x38] sm:$0xf]
  %v648 = vld [vmem:[%s3 + $0x3c] sm:$0xf]
  %v649 = vld [vmem:[#allocation2] sm:$0x1]
  %v651 = vlaneseq
  %v652 = vshrl.u32 %v651, 7
  %v653 = vsub.s32 0, %v652
  %v654 = vrot.slane %v649, %v653
  %v672 = vunpack.c.l.b16 %v633
  %v673 = vunpack.c.l.b16 %v634
  %v674 = vunpack.c.l.b16 %v635
  %v675 = vunpack.c.l.b16 %v636
  %v676 = vunpack.c.l.b16 %v637
  %v677 = vunpack.c.l.b16 %v638
  %v678 = vunpack.c.l.b16 %v639
  %v679 = vunpack.c.l.b16 %v640
  %v680 = vunpack.c.l.b16 %v641
  %v681 = vunpack.c.l.b16 %v642
  %v682 = vunpack.c.l.b16 %v643
  %v683 = vunpack.c.l.b16 %v644
  %v684 = vunpack.c.l.b16 %v645
  %v685 = vunpack.c.l.b16 %v646
  %v686 = vunpack.c.l.b16 %v647
  %v687 = vunpack.c.l.b16 %v648
  %v688 = vpack.c.b16 %v673, %v672
  %v689 = vpack.c.b16 %v675, %v674
  %v690 = vpack.c.b16 %v677, %v676
  %v691 = vpack.c.b16 %v679, %v678
  %v692 = vpack.c.b16 %v681, %v680
  %v693 = vpack.c.b16 %v683, %v682
  %v694 = vpack.c.b16 %v685, %v684
  %v695 = vpack.c.b16 %v687, %v686
  %704 = vmatprep.subr.bf16.mxu0 0
  %705 = vmatpush1.bf16.msra.mxu0 %v688
  %706 = vmatprep.subr.bf16.mxu0 0
  %707 = vmatpush1.bf16.msra.mxu0 %v689
  %708 = vmatprep.subr.bf16.mxu0 0
  %709 = vmatpush1.bf16.msra.mxu0 %v690
  %710 = vmatprep.subr.bf16.mxu0 0
  %711 = vmatpush1.bf16.msra.mxu0 %v691
  %712 = vmatprep.subr.bf16.mxu0 0
  %713 = vmatpush1.bf16.msra.mxu0 %v692
  %714 = vmatprep.subr.bf16.mxu0 0
  %715 = vmatpush1.bf16.msra.mxu0 %v693
  %716 = vmatprep.subr.bf16.mxu0 0
  %717 = vmatpush1.bf16.msra.mxu0 %v694
  %718 = vmatprep.subr.bf16.mxu0 0
  %719 = vmatpush1.bf16.msra.mxu0 %v695
  %720 = vmatprep.subr.bf16.mxu0 0
  %721 = vmatpush1.bf16.msra.mxu0 0
  %722 = vmatprep.subr.bf16.mxu0 0
  %723 = vmatpush1.bf16.msra.mxu0 0
  %724 = vmatprep.subr.bf16.mxu0 0
  %725 = vmatpush1.bf16.msra.mxu0 0
  %726 = vmatprep.subr.bf16.mxu0 0
  %727 = vmatpush1.bf16.msra.mxu0 0
  %728 = vmatprep.subr.bf16.mxu0 0
  %729 = vmatpush1.bf16.msra.mxu0 0
  %730 = vmatprep.subr.bf16.mxu0 0
  %731 = vmatpush1.bf16.msra.mxu0 0
  %732 = vmatprep.subr.bf16.mxu0 0
  %733 = vmatpush1.bf16.msra.mxu0 0
  %734 = vmatprep.subr.bf16.mxu0 0
  %735 = vmatpush1.bf16.msra.mxu0 0
  %736 = vmatprep.mubr.bf16.mxu0 0
  %737 = vmatmul.mubr.bf16.gmra.mrb[0].mxu0 %v632
  %v738 = vpop.f32.mrb[0].mxu0
  %v739 = vadd.f32 %v654, %v738
  %v740 = vpop.f32.mrb[0].mxu0
  %v741 = vpop.f32.mrb[0].mxu0
  %v742 = vpop.f32.mrb[0].mxu0
  %743 = vdwg.mxu0
  %vm744 = vcmask 3072
  %745 = vst.msk [vmem:[%s5] sm:$0xf] %vm744, %v739
  // Predicated region
  $region22: #{net_forward.9} parent=0 // pred_check
    _
  $region23: #{net_forward.9} parent=0 // pred_check_branch
    %747 = sbr.rel (0) target = $region25
  $region24: #{net_forward.9} parent=0 // pred_region
    _
  $region25: #{net_forward.9} parent=0 // pred_fallthru
    _
  // Predicated region
  $region26: #{net_forward.9} parent=0 // pred_check
    _
  $region27: #{net_forward.9} parent=0 // pred_check_branch
    %749 = sbr.rel (0) target = $region29
  $region28: #{net_forward.9} parent=0 // pred_region
    _
  $region29: #{net_forward.9} parent=0 // pred_fallthru
    _

</llo_original>
